<compile_context>
chip_gen: v7x
topology: tpu7x:2x2x1
jax: 0.10.0
libtpu: 0.0.40
codegen_flags: <defaults>
</compile_context>

<pallas_src>
import jax
import jax.numpy as jnp
from jax.experimental import pallas as pl
from jax.experimental.pallas import tpu as pltpu

# ----- model sizes (consistent with the module's __init__ shapes) -----
L = 16   # len(identifiers)  (number of unique node labels)
S = 32   # args.step_dimensions
C = 32   # args.combined_dimensions
T = 8    # class_number (number of graph classes)


def gam_walk_kernel(labels_ref, m1_ref, m2_ref, whh_ref, bias_ref,
                    h0_ref, c0_ref, attn0_ref, wout_ref,
                    logp_ref, attn_out_ref):
    f32 = jnp.float32
    n_steps = labels_ref.shape[0]
    l_dim = attn0_ref.shape[0]
    c = h0_ref.shape[0]
    t_cls = logp_ref.shape[1]
    tb = h0_ref.shape[1]

    # ---- hoisted, recurrence-independent pieces (original forward() always
    #      feeds self.lstm_h_0 / self.lstm_c_0: no h/c recurrence across steps)
    hb = jnp.dot(whh_ref[...], h0_ref[...],
                 preferred_element_type=f32) + bias_ref[...]        # (4C, tb)
    c0 = c0_ref[...]                                                # (C, tb)
    m1 = m1_ref[...]                                                # (4C, L)
    m2 = m2_ref[...]                                                # (4C, L)
    wout = wout_ref[...]                                            # (T+L, C)
    labels = labels_ref[...]                                        # (W, tb) int32
    iota_l = jax.lax.broadcasted_iota(jnp.int32, (l_dim, tb), 0)    # hoisted

    # Initial attention is already normalized (uniform) -> row-sum reciprocal 1.
    a_exp = attn0_ref[...]                                          # (L, tb)
    inv = jnp.ones((1, tb), f32)

    # Static unroll is fine at W=8; switch to lax.fori_loop(..., unroll=4)
    # with (a_exp, inv) as the carry if W grows past ~32.
    for step in range(n_steps):
        # ---- recurrence-independent per-step input path ----
        onehot = (iota_l == labels[step:step + 1, :]).astype(f32)   # (L, tb)
        base = jnp.dot(m2, onehot, preferred_element_type=f32) + hb  # (4C, tb)

        # ---- critical recurrence: attn -> gates (deferred normalization) ----
        dot1 = jnp.dot(m1, a_exp, preferred_element_type=f32)       # (4C, tb)
        gates = dot1 * inv + base                                   # (4C, tb)

        # ---- LSTM cell, PyTorch gate order i,f,g,o (sublane slicing) ----
        sig = jax.nn.sigmoid(gates)          # full lane-dense vregs (EUP)
        th = jnp.tanh(gates)
        i_g = sig[0 * c:1 * c]
        f_g = sig[1 * c:2 * c]
        g_g = th[2 * c:3 * c]
        o_g = sig[3 * c:4 * c]
        c1 = f_g * c0 + i_g * g_g
        h1 = o_g * jnp.tanh(c1)                                     # (C, tb)

        # ---- DownStreamNetworkLayer: one fused head matmul ----
        out = jnp.dot(wout, h1, preferred_element_type=f32)         # (T+L, tb)
        preds = out[:t_cls]                                         # (T, tb)
        att_logits = out[t_cls:]                                    # (L, tb)

        # class log-softmax over the class (sublane) axis
        p_max = jnp.max(preds, axis=0, keepdims=True)
        p_sh = preds - p_max
        logp_ref[step] = p_sh - jnp.log(jnp.sum(jnp.exp(p_sh), axis=0,
                                                keepdims=True))

        # rank softmax: carry UNnormalized exp; its reduce/recip overlap the
        # next step's matmul (applied there as `dot1 * inv`).
        a_max = jnp.max(att_logits, axis=0, keepdims=True)
        a_exp = jnp.exp(att_logits - a_max)                         # (L, tb)
        inv = 1.0 / jnp.sum(a_exp, axis=0, keepdims=True)           # (1, tb)
        attn_out_ref[step] = a_exp * inv                            # normalized


def _num_tensorcores():
    """2 TensorCores/chip on v7x, 1 on v5e/v6e."""
    try:
        kind = jax.devices()[0].device_kind.lower()
    except Exception:
        return 1
    return 2 if ("v7" in kind or "tpu7" in kind) else 1


def gam_walk(labels, ts1, ts2, ts3, wih_t, whh_t, bias, h0, c0, attn0,
             theta_class, theta_rank, *, batch_tile=None):
    """Run W walk-steps for B independent walks in one Pallas kernel.

    labels: (W, B) int32 — externally sampled node label per step/walk.
    Returns (logp, attn_hist): (W, B, T) per-step class log-probs and
    (W, B, L) attention after each step.
    """
    n_steps, bsz = labels.shape
    l_dim = ts1.shape[0]
    s_dim = ts1.shape[1]
    c_dim = h0.shape[1]
    t_dim = theta_class.shape[1]

    # ---- weight folding (weights only; `state` is never an exposed output) ----
    m1 = ts1 @ ts3[:s_dim] @ wih_t                       # (L, 4C)
    m2 = ts2 @ ts3[s_dim:] @ wih_t                       # (L, 4C)
    m1_t = m1.T                                          # (4C, L)
    m2_t = m2.T                                          # (4C, L)
    whh = whh_t.T                                        # (4C, C)
    bias_col = bias.T                                    # (4C, 1)
    wout_t = jnp.concatenate([theta_class, theta_rank], axis=1).T   # (T+L, C)

    # ---- lane-transposed per-walk state ----
    h0_t = h0.T                                          # (C, B)
    c0_t = c0.T                                          # (C, B)
    attn0_t = attn0.T                                    # (L, B)
    labels = labels.astype(jnp.int32)

    # ---- per-generation batch tile: 1 grid step per TensorCore ----
    if batch_tile is None:
        n_tc = _num_tensorcores()
        tb = bsz // n_tc if (bsz % n_tc == 0) else bsz
        if tb != bsz and tb % 128 != 0:
            tb = bsz
    else:
        tb = min(batch_tile, bsz)
    assert bsz % tb == 0
    full = lambda i: (0, 0)

    logp_t, attn_t = pl.pallas_call(
        gam_walk_kernel,
        out_shape=(jax.ShapeDtypeStruct((n_steps, t_dim, bsz), jnp.float32),
                   jax.ShapeDtypeStruct((n_steps, l_dim, bsz), jnp.float32)),
        grid=(bsz // tb,),
        in_specs=[
            pl.BlockSpec((n_steps, tb), lambda i: (0, i)),            # labels
            pl.BlockSpec((4 * c_dim, l_dim), full),                   # m1_t
            pl.BlockSpec((4 * c_dim, l_dim), full),                   # m2_t
            pl.BlockSpec((4 * c_dim, c_dim), full),                   # whh
            pl.BlockSpec((4 * c_dim, 1), full),                       # bias_col
            pl.BlockSpec((c_dim, tb), lambda i: (0, i)),              # h0_t
            pl.BlockSpec((c_dim, tb), lambda i: (0, i)),              # c0_t
            pl.BlockSpec((l_dim, tb), lambda i: (0, i)),              # attn0_t
            pl.BlockSpec((t_dim + l_dim, c_dim), full),               # wout_t
        ],
        out_specs=(
            pl.BlockSpec((n_steps, t_dim, tb), lambda i: (0, 0, i)),
            pl.BlockSpec((n_steps, l_dim, tb), lambda i: (0, 0, i)),
        ),
        compiler_params=pltpu.CompilerParams(
            dimension_semantics=("parallel",)),
    )(labels, m1_t, m2_t, whh, bias_col, h0_t, c0_t, attn0_t, wout_t)

    # back to batch-major for the caller
    return jnp.transpose(logp_t, (0, 2, 1)), jnp.transpose(attn_t, (0, 2, 1))


def gam_reference(labels, ts1, ts2, ts3, wih_t, whh_t, bias, h0, c0, attn0,
                  theta_class, theta_rank):
    """Pure-JAX reference mirroring the PyTorch forward, called W times.

    Uses the ORIGINAL (unfolded, batch-major) weights so it also validates the
    algebraic weight folding + lane-transposed layout of gam_walk.  Mirrors the
    original module exactly: the LSTM initial state is self.lstm_h_0 /
    self.lstm_c_0 every call (no h/c recurrence across steps); only the
    attention recurs.
    """
    n_steps = labels.shape[0]
    onehot = jax.nn.one_hot(labels, ts1.shape[0], dtype=jnp.float32)  # (W,B,L)
    attn = attn0
    logps, attns = [], []
    for step in range(n_steps):
        hidden_attention = attn @ ts1
        hidden_node = onehot[step] @ ts2
        state = jnp.concatenate([hidden_attention, hidden_node], axis=1) @ ts3
        gates = state @ wih_t + h0 @ whh_t + bias
        i_g = jax.nn.sigmoid(gates[:, 0 * C:1 * C])
        f_g = jax.nn.sigmoid(gates[:, 1 * C:2 * C])
        g_g = jnp.tanh(gates[:, 2 * C:3 * C])
        o_g = jax.nn.sigmoid(gates[:, 3 * C:4 * C])
        c1 = f_g * c0 + i_g * g_g
        h1 = o_g * jnp.tanh(c1)
        preds = h1 @ theta_class
        attn = jax.nn.softmax(h1 @ theta_rank, axis=1)
        logps.append(jax.nn.log_softmax(preds, axis=1))
        attns.append(attn)
    return jnp.stack(logps), jnp.stack(attns)


if __name__ == "__main__":
    key = jax.random.PRNGKey(0)
    ks = jax.random.split(key, 11)

    B = 256        # independent walks (batched)
    W_STEPS = 8    # walk steps per call (forward() invoked W times)

    # --- deterministic parameter init (matching __init__ shapes) ---
    # StepNetworkLayer: uniform(-1, 1)
    ts1 = jax.random.uniform(ks[0], (L, S), jnp.float32, -1.0, 1.0)
    ts2 = jax.random.uniform(ks[1], (L, S), jnp.float32, -1.0, 1.0)
    ts3 = jax.random.uniform(ks[2], (2 * S, C), jnp.float32, -1.0, 1.0)
    # LSTM (C -> C, 1 layer), PyTorch default init U(-1/sqrt(C), 1/sqrt(C)),
    # weights pre-transposed to (C, 4C); b_ih + b_hh folded.
    bnd = 1.0 / jnp.sqrt(jnp.float32(C))
    wih_t = jax.random.uniform(ks[3], (C, 4 * C), jnp.float32, -bnd, bnd)
    whh_t = jax.random.uniform(ks[4], (C, 4 * C), jnp.float32, -bnd, bnd)
    bias = jax.random.uniform(ks[5], (1, 4 * C), jnp.float32, -bnd, bnd)
    # DownStreamNetworkLayer: xavier_normal_
    std_c = jnp.sqrt(2.0 / (C + T))
    std_r = jnp.sqrt(2.0 / (C + L))
    theta_class = std_c * jax.random.normal(ks[6], (C, T), jnp.float32)
    theta_rank = std_r * jax.random.normal(ks[7], (C, L), jnp.float32)

    # reset_attention(): uniform attention, random lstm_h_0 / lstm_c_0 per walk
    attn0 = jnp.ones((B, L), jnp.float32) / L
    h0 = jax.random.normal(ks[8], (B, C), jnp.float32)
    c0 = jax.random.normal(ks[9], (B, C), jnp.float32)

    # TODO(synk): make_step (networkx neighbor sets, attention-weighted
    # np.random.choice of a label, random.choice of the next node, JSON graph
    # loading) is stochastic graph glue with no Pallas equivalent; the sampled
    # label per step/walk is provided as an int32 input here.
    labels = jax.random.randint(ks[10], (W_STEPS, B), 0, L, dtype=jnp.int32)

    args = (labels, ts1, ts2, ts3, wih_t, whh_t, bias, h0, c0, attn0,
            theta_class, theta_rank)

    logp, attn_hist = jax.block_until_ready(gam_walk(*args))
    logp_ref, attn_ref = gam_reference(*args)

    # attention_score returned by the original forward = attention *before*
    # that step's update, indexed at the sampled label (trivial gather, wrapper).
    attn_before = jnp.concatenate([attn0[None], attn_hist[:-1]], axis=0)
    attention_scores = jnp.take_along_axis(
        attn_before, labels[..., None], axis=2)[..., 0]

    assert logp.shape == (W_STEPS, B, T)
    assert attn_hist.shape == (W_STEPS, B, L)
    assert attention_scores.shape == (W_STEPS, B)
    assert jnp.allclose(logp, logp_ref, atol=2e-4, rtol=2e-4)
    assert jnp.allclose(attn_hist, attn_ref, atol=2e-4, rtol=2e-4)

    print("KERNEL_OK")
</pallas_src>

<mosaic_0001>
module attributes {stable_mosaic.version = 11 : i64} {
  func.func @gam_walk_kernel(%arg0: i32, %arg1: memref<8x256xi32, #tpu.memory_space<vmem>>, %arg2: memref<128x16xf32, #tpu.memory_space<vmem>>, %arg3: memref<128x16xf32, #tpu.memory_space<vmem>>, %arg4: memref<128x32xf32, #tpu.memory_space<vmem>>, %arg5: memref<128x1xf32, #tpu.memory_space<vmem>>, %arg6: memref<32x256xf32, #tpu.memory_space<vmem>>, %arg7: memref<32x256xf32, #tpu.memory_space<vmem>>, %arg8: memref<16x256xf32, #tpu.memory_space<vmem>>, %arg9: memref<24x32xf32, #tpu.memory_space<vmem>>, %arg10: memref<8x8x256xf32, #tpu.memory_space<vmem>>, %arg11: memref<8x16x256xf32, #tpu.memory_space<vmem>>) attributes {dimension_semantics = [#tpu.dimension_semantics<parallel>], iteration_bounds = array<i64: 1>, scalar_prefetch = 0 : i64, scratch_operands = 0 : i64, tpu.core_type = #tpu.core_type<tc>, window_params = [{transform_indices = @transform_0, window_bounds = array<i64: 8, 256>}, {pipeline_mode = #tpu.pipeline_mode<synchronous>, transform_indices = @transform_1, window_bounds = array<i64: 128, 16>}, {pipeline_mode = #tpu.pipeline_mode<synchronous>, transform_indices = @transform_2, window_bounds = array<i64: 128, 16>}, {pipeline_mode = #tpu.pipeline_mode<synchronous>, transform_indices = @transform_3, window_bounds = array<i64: 128, 32>}, {pipeline_mode = #tpu.pipeline_mode<synchronous>, transform_indices = @transform_4, window_bounds = array<i64: 128, 1>}, {transform_indices = @transform_5, window_bounds = array<i64: 32, 256>}, {transform_indices = @transform_6, window_bounds = array<i64: 32, 256>}, {transform_indices = @transform_7, window_bounds = array<i64: 16, 256>}, {pipeline_mode = #tpu.pipeline_mode<synchronous>, transform_indices = @transform_8, window_bounds = array<i64: 24, 32>}, {transform_indices = @transform_9, window_bounds = array<i64: 8, 8, 256>}, {transform_indices = @transform_10, window_bounds = array<i64: 8, 16, 256>}]} {
    %c0 = arith.constant 0 : index
    %c0_0 = arith.constant 0 : index
    %0 = vector.load %arg4[%c0, %c0_0] : memref<128x32xf32, #tpu.memory_space<vmem>>, vector<128x32xf32>
    %c0_1 = arith.constant 0 : index
    %c0_2 = arith.constant 0 : index
    %1 = vector.load %arg6[%c0_1, %c0_2] : memref<32x256xf32, #tpu.memory_space<vmem>>, vector<32x256xf32>
    %cst = arith.constant dense<0.000000e+00> : vector<128x256xf32>
    %2 = tpu.matmul %0, %1, %cst {dimension_numbers = #tpu.dot_dimension_numbers<[1], [0], [0], [1], [0, 0, 1, 1], [], []>} : vector<128x32xf32>, vector<32x256xf32>, vector<128x256xf32> -> vector<128x256xf32>
    %c0_3 = arith.constant 0 : index
    %c0_4 = arith.constant 0 : index
    %3 = vector.load %arg5[%c0_3, %c0_4] : memref<128x1xf32, #tpu.memory_space<vmem>>, vector<128x1xf32>
    %4 = vector.broadcast %3 : vector<128x1xf32> to vector<128x256xf32>
    %5 = arith.addf %2, %4 : vector<128x256xf32>
    %c0_5 = arith.constant 0 : index
    %c0_6 = arith.constant 0 : index
    %6 = vector.load %arg7[%c0_5, %c0_6] : memref<32x256xf32, #tpu.memory_space<vmem>>, vector<32x256xf32>
    %c0_7 = arith.constant 0 : index
    %c0_8 = arith.constant 0 : index
    %7 = vector.load %arg2[%c0_7, %c0_8] : memref<128x16xf32, #tpu.memory_space<vmem>>, vector<128x16xf32>
    %c0_9 = arith.constant 0 : index
    %c0_10 = arith.constant 0 : index
    %8 = vector.load %arg3[%c0_9, %c0_10] : memref<128x16xf32, #tpu.memory_space<vmem>>, vector<128x16xf32>
    %c0_11 = arith.constant 0 : index
    %c0_12 = arith.constant 0 : index
    %9 = vector.load %arg9[%c0_11, %c0_12] : memref<24x32xf32, #tpu.memory_space<vmem>>, vector<24x32xf32>
    %c0_13 = arith.constant 0 : index
    %c0_14 = arith.constant 0 : index
    %10 = vector.load %arg1[%c0_13, %c0_14] : memref<8x256xi32, #tpu.memory_space<vmem>>, vector<8x256xi32>
    %11 = tpu.iota {dimensions = array<i32: 0>} : vector<16x256xi32>
    %c0_15 = arith.constant 0 : index
    %c0_16 = arith.constant 0 : index
    %12 = vector.load %arg8[%c0_15, %c0_16] : memref<16x256xf32, #tpu.memory_space<vmem>>, vector<16x256xf32>
    %cst_17 = arith.constant 1.000000e+00 : f32
    %13 = vector.broadcast %cst_17 : f32 to vector<1x256xf32>
    %14 = vector.extract_strided_slice %10 {offsets = [0, 0], sizes = [1, 256], strides = [1, 1]} : vector<8x256xi32> to vector<1x256xi32>
    %15 = vector.broadcast %14 : vector<1x256xi32> to vector<16x256xi32>
    %16 = arith.cmpi eq, %11, %15 : vector<16x256xi32>
    %17 = arith.extui %16 : vector<16x256xi1> to vector<16x256xi32>
    %18 = arith.sitofp %17 : vector<16x256xi32> to vector<16x256xf32>
    %cst_18 = arith.constant dense<0.000000e+00> : vector<128x256xf32>
    %19 = tpu.matmul %8, %18, %cst_18 {dimension_numbers = #tpu.dot_dimension_numbers<[1], [0], [0], [1], [0, 0, 1, 1], [], []>} : vector<128x16xf32>, vector<16x256xf32>, vector<128x256xf32> -> vector<128x256xf32>
    %20 = arith.addf %19, %5 : vector<128x256xf32>
    %cst_19 = arith.constant dense<0.000000e+00> : vector<128x256xf32>
    %21 = tpu.matmul %7, %12, %cst_19 {dimension_numbers = #tpu.dot_dimension_numbers<[1], [0], [0], [1], [0, 0, 1, 1], [], []>} : vector<128x16xf32>, vector<16x256xf32>, vector<128x256xf32> -> vector<128x256xf32>
    %22 = vector.broadcast %13 : vector<1x256xf32> to vector<128x256xf32>
    %23 = arith.mulf %21, %22 : vector<128x256xf32>
    %24 = arith.addf %23, %20 : vector<128x256xf32>
    %25 = arith.negf %24 : vector<128x256xf32>
    %26 = math.exp %25 : vector<128x256xf32>
    %cst_20 = arith.constant 1.000000e+00 : f32
    %27 = vector.broadcast %cst_20 : f32 to vector<128x256xf32>
    %28 = arith.addf %27, %26 : vector<128x256xf32>
    %29 = arith.divf %27, %28 : vector<128x256xf32>
    %30 = math.tanh %24 : vector<128x256xf32>
    %31 = vector.extract_strided_slice %29 {offsets = [0, 0], sizes = [32, 256], strides = [1, 1]} : vector<128x256xf32> to vector<32x256xf32>
    %32 = vector.extract_strided_slice %29 {offsets = [32, 0], sizes = [32, 256], strides = [1, 1]} : vector<128x256xf32> to vector<32x256xf32>
    %33 = vector.extract_strided_slice %30 {offsets = [64, 0], sizes = [32, 256], strides = [1, 1]} : vector<128x256xf32> to vector<32x256xf32>
    %34 = vector.extract_strided_slice %29 {offsets = [96, 0], sizes = [32, 256], strides = [1, 1]} : vector<128x256xf32> to vector<32x256xf32>
    %35 = arith.mulf %32, %6 : vector<32x256xf32>
    %36 = arith.mulf %31, %33 : vector<32x256xf32>
    %37 = arith.addf %35, %36 : vector<32x256xf32>
    %38 = math.tanh %37 : vector<32x256xf32>
    %39 = arith.mulf %34, %38 : vector<32x256xf32>
    %cst_21 = arith.constant dense<0.000000e+00> : vector<24x256xf32>
    %40 = tpu.matmul %9, %39, %cst_21 {dimension_numbers = #tpu.dot_dimension_numbers<[1], [0], [0], [1], [0, 0, 1, 1], [], []>} : vector<24x32xf32>, vector<32x256xf32>, vector<24x256xf32> -> vector<24x256xf32>
    %41 = vector.extract_strided_slice %40 {offsets = [0, 0], sizes = [8, 256], strides = [1, 1]} : vector<24x256xf32> to vector<8x256xf32>
    %42 = vector.extract_strided_slice %40 {offsets = [8, 0], sizes = [16, 256], strides = [1, 1]} : vector<24x256xf32> to vector<16x256xf32>
    %cst_22 = arith.constant dense<0xFF800000> : vector<256xf32>
    %43 = vector.multi_reduction <maximumf>, %41, %cst_22 [0] : vector<8x256xf32> to vector<256xf32>
    %44 = vector.shape_cast %43 : vector<256xf32> to vector<1x256xf32>
    %45 = vector.broadcast %44 : vector<1x256xf32> to vector<8x256xf32>
    %46 = arith.subf %41, %45 : vector<8x256xf32>
    %47 = math.exp %46 : vector<8x256xf32>
    %cst_23 = arith.constant dense<0.000000e+00> : vector<256xf32>
    %48 = vector.multi_reduction <add>, %47, %cst_23 [0] : vector<8x256xf32> to vector<256xf32>
    %49 = vector.shape_cast %48 : vector<256xf32> to vector<1x256xf32>
    %50 = math.log %49 : vector<1x256xf32>
    %51 = vector.broadcast %50 : vector<1x256xf32> to vector<8x256xf32>
    %52 = arith.subf %46, %51 : vector<8x256xf32>
    %c0_24 = arith.constant 0 : index
    %c0_25 = arith.constant 0 : index
    %c0_26 = arith.constant 0 : index
    %53 = vector.load %arg10[%c0_24, %c0_25, %c0_26] : memref<8x8x256xf32, #tpu.memory_space<vmem>>, vector<1x8x256xf32>
    %54 = vector.shape_cast %53 : vector<1x8x256xf32> to vector<8x256xf32>
    %55 = vector.shape_cast %52 : vector<8x256xf32> to vector<1x8x256xf32>
    tpu.vector_store %arg10[%c0_24, %c0_25, %c0_26], %55 {strides = array<i32>} : memref<8x8x256xf32, #tpu.memory_space<vmem>>, vector<1x8x256xf32>,
    %cst_27 = arith.constant dense<0xFF800000> : vector<256xf32>
    %56 = vector.multi_reduction <maximumf>, %42, %cst_27 [0] : vector<16x256xf32> to vector<256xf32>
    %57 = vector.shape_cast %56 : vector<256xf32> to vector<1x256xf32>
    %58 = vector.broadcast %57 : vector<1x256xf32> to vector<16x256xf32>
    %59 = arith.subf %42, %58 : vector<16x256xf32>
    %60 = math.exp %59 : vector<16x256xf32>
    %cst_28 = arith.constant dense<0.000000e+00> : vector<256xf32>
    %61 = vector.multi_reduction <add>, %60, %cst_28 [0] : vector<16x256xf32> to vector<256xf32>
    %62 = vector.shape_cast %61 : vector<256xf32> to vector<1x256xf32>
    %cst_29 = arith.constant 1.000000e+00 : f32
    %63 = vector.broadcast %cst_29 : f32 to vector<1x256xf32>
    %64 = arith.divf %63, %62 : vector<1x256xf32>
    %65 = vector.broadcast %64 : vector<1x256xf32> to vector<16x256xf32>
    %66 = arith.mulf %60, %65 : vector<16x256xf32>
    %c0_30 = arith.constant 0 : index
    %c0_31 = arith.constant 0 : index
    %c0_32 = arith.constant 0 : index
    %67 = vector.load %arg11[%c0_30, %c0_31, %c0_32] : memref<8x16x256xf32, #tpu.memory_space<vmem>>, vector<1x16x256xf32>
    %68 = vector.shape_cast %67 : vector<1x16x256xf32> to vector<16x256xf32>
    %69 = vector.shape_cast %66 : vector<16x256xf32> to vector<1x16x256xf32>
    tpu.vector_store %arg11[%c0_30, %c0_31, %c0_32], %69 {strides = array<i32>} : memref<8x16x256xf32, #tpu.memory_space<vmem>>, vector<1x16x256xf32>,
    %70 = vector.extract_strided_slice %10 {offsets = [1, 0], sizes = [1, 256], strides = [1, 1]} : vector<8x256xi32> to vector<1x256xi32>
    %71 = vector.broadcast %70 : vector<1x256xi32> to vector<16x256xi32>
    %72 = arith.cmpi eq, %11, %71 : vector<16x256xi32>
    %73 = arith.extui %72 : vector<16x256xi1> to vector<16x256xi32>
    %74 = arith.sitofp %73 : vector<16x256xi32> to vector<16x256xf32>
    %cst_33 = arith.constant dense<0.000000e+00> : vector<128x256xf32>
    %75 = tpu.matmul %8, %74, %cst_33 {dimension_numbers = #tpu.dot_dimension_numbers<[1], [0], [0], [1], [0, 0, 1, 1], [], []>} : vector<128x16xf32>, vector<16x256xf32>, vector<128x256xf32> -> vector<128x256xf32>
    %76 = arith.addf %75, %5 : vector<128x256xf32>
    %cst_34 = arith.constant dense<0.000000e+00> : vector<128x256xf32>
    %77 = tpu.matmul %7, %60, %cst_34 {dimension_numbers = #tpu.dot_dimension_numbers<[1], [0], [0], [1], [0, 0, 1, 1], [], []>} : vector<128x16xf32>, vector<16x256xf32>, vector<128x256xf32> -> vector<128x256xf32>
    %78 = vector.broadcast %64 : vector<1x256xf32> to vector<128x256xf32>
    %79 = arith.mulf %77, %78 : vector<128x256xf32>
    %80 = arith.addf %79, %76 : vector<128x256xf32>
    %81 = arith.negf %80 : vector<128x256xf32>
    %82 = math.exp %81 : vector<128x256xf32>
    %cst_35 = arith.constant 1.000000e+00 : f32
    %83 = vector.broadcast %cst_35 : f32 to vector<128x256xf32>
    %84 = arith.addf %83, %82 : vector<128x256xf32>
    %85 = arith.divf %83, %84 : vector<128x256xf32>
    %86 = math.tanh %80 : vector<128x256xf32>
    %87 = vector.extract_strided_slice %85 {offsets = [0, 0], sizes = [32, 256], strides = [1, 1]} : vector<128x256xf32> to vector<32x256xf32>
    %88 = vector.extract_strided_slice %85 {offsets = [32, 0], sizes = [32, 256], strides = [1, 1]} : vector<128x256xf32> to vector<32x256xf32>
    %89 = vector.extract_strided_slice %86 {offsets = [64, 0], sizes = [32, 256], strides = [1, 1]} : vector<128x256xf32> to vector<32x256xf32>
    %90 = vector.extract_strided_slice %85 {offsets = [96, 0], sizes = [32, 256], strides = [1, 1]} : vector<128x256xf32> to vector<32x256xf32>
    %91 = arith.mulf %88, %6 : vector<32x256xf32>
    %92 = arith.mulf %87, %89 : vector<32x256xf32>
    %93 = arith.addf %91, %92 : vector<32x256xf32>
    %94 = math.tanh %93 : vector<32x256xf32>
    %95 = arith.mulf %90, %94 : vector<32x256xf32>
    %cst_36 = arith.constant dense<0.000000e+00> : vector<24x256xf32>
    %96 = tpu.matmul %9, %95, %cst_36 {dimension_numbers = #tpu.dot_dimension_numbers<[1], [0], [0], [1], [0, 0, 1, 1], [], []>} : vector<24x32xf32>, vector<32x256xf32>, vector<24x256xf32> -> vector<24x256xf32>
    %97 = vector.extract_strided_slice %96 {offsets = [0, 0], sizes = [8, 256], strides = [1, 1]} : vector<24x256xf32> to vector<8x256xf32>
    %98 = vector.extract_strided_slice %96 {offsets = [8, 0], sizes = [16, 256], strides = [1, 1]} : vector<24x256xf32> to vector<16x256xf32>
    %cst_37 = arith.constant dense<0xFF800000> : vector<256xf32>
    %99 = vector.multi_reduction <maximumf>, %97, %cst_37 [0] : vector<8x256xf32> to vector<256xf32>
    %100 = vector.shape_cast %99 : vector<256xf32> to vector<1x256xf32>
    %101 = vector.broadcast %100 : vector<1x256xf32> to vector<8x256xf32>
    %102 = arith.subf %97, %101 : vector<8x256xf32>
    %103 = math.exp %102 : vector<8x256xf32>
    %cst_38 = arith.constant dense<0.000000e+00> : vector<256xf32>
    %104 = vector.multi_reduction <add>, %103, %cst_38 [0] : vector<8x256xf32> to vector<256xf32>
    %105 = vector.shape_cast %104 : vector<256xf32> to vector<1x256xf32>
    %106 = math.log %105 : vector<1x256xf32>
    %107 = vector.broadcast %106 : vector<1x256xf32> to vector<8x256xf32>
    %108 = arith.subf %102, %107 : vector<8x256xf32>
    %c1 = arith.constant 1 : index
    %c0_39 = arith.constant 0 : index
    %c0_40 = arith.constant 0 : index
    %109 = vector.load %arg10[%c1, %c0_39, %c0_40] : memref<8x8x256xf32, #tpu.memory_space<vmem>>, vector<1x8x256xf32>
    %110 = vector.shape_cast %109 : vector<1x8x256xf32> to vector<8x256xf32>
    %111 = vector.shape_cast %108 : vector<8x256xf32> to vector<1x8x256xf32>
    tpu.vector_store %arg10[%c1, %c0_39, %c0_40], %111 {strides = array<i32>} : memref<8x8x256xf32, #tpu.memory_space<vmem>>, vector<1x8x256xf32>,
    %cst_41 = arith.constant dense<0xFF800000> : vector<256xf32>
    %112 = vector.multi_reduction <maximumf>, %98, %cst_41 [0] : vector<16x256xf32> to vector<256xf32>
    %113 = vector.shape_cast %112 : vector<256xf32> to vector<1x256xf32>
    %114 = vector.broadcast %113 : vector<1x256xf32> to vector<16x256xf32>
    %115 = arith.subf %98, %114 : vector<16x256xf32>
    %116 = math.exp %115 : vector<16x256xf32>
    %cst_42 = arith.constant dense<0.000000e+00> : vector<256xf32>
    %117 = vector.multi_reduction <add>, %116, %cst_42 [0] : vector<16x256xf32> to vector<256xf32>
    %118 = vector.shape_cast %117 : vector<256xf32> to vector<1x256xf32>
    %cst_43 = arith.constant 1.000000e+00 : f32
    %119 = vector.broadcast %cst_43 : f32 to vector<1x256xf32>
    %120 = arith.divf %119, %118 : vector<1x256xf32>
    %121 = vector.broadcast %120 : vector<1x256xf32> to vector<16x256xf32>
    %122 = arith.mulf %116, %121 : vector<16x256xf32>
    %c1_44 = arith.constant 1 : index
    %c0_45 = arith.constant 0 : index
    %c0_46 = arith.constant 0 : index
    %123 = vector.load %arg11[%c1_44, %c0_45, %c0_46] : memref<8x16x256xf32, #tpu.memory_space<vmem>>, vector<1x16x256xf32>
    %124 = vector.shape_cast %123 : vector<1x16x256xf32> to vector<16x256xf32>
    %125 = vector.shape_cast %122 : vector<16x256xf32> to vector<1x16x256xf32>
    tpu.vector_store %arg11[%c1_44, %c0_45, %c0_46], %125 {strides = array<i32>} : memref<8x16x256xf32, #tpu.memory_space<vmem>>, vector<1x16x256xf32>,
    %126 = vector.extract_strided_slice %10 {offsets = [2, 0], sizes = [1, 256], strides = [1, 1]} : vector<8x256xi32> to vector<1x256xi32>
    %127 = vector.broadcast %126 : vector<1x256xi32> to vector<16x256xi32>
    %128 = arith.cmpi eq, %11, %127 : vector<16x256xi32>
    %129 = arith.extui %128 : vector<16x256xi1> to vector<16x256xi32>
    %130 = arith.sitofp %129 : vector<16x256xi32> to vector<16x256xf32>
    %cst_47 = arith.constant dense<0.000000e+00> : vector<128x256xf32>
    %131 = tpu.matmul %8, %130, %cst_47 {dimension_numbers = #tpu.dot_dimension_numbers<[1], [0], [0], [1], [0, 0, 1, 1], [], []>} : vector<128x16xf32>, vector<16x256xf32>, vector<128x256xf32> -> vector<128x256xf32>
    %132 = arith.addf %131, %5 : vector<128x256xf32>
    %cst_48 = arith.constant dense<0.000000e+00> : vector<128x256xf32>
    %133 = tpu.matmul %7, %116, %cst_48 {dimension_numbers = #tpu.dot_dimension_numbers<[1], [0], [0], [1], [0, 0, 1, 1], [], []>} : vector<128x16xf32>, vector<16x256xf32>, vector<128x256xf32> -> vector<128x256xf32>
    %134 = vector.broadcast %120 : vector<1x256xf32> to vector<128x256xf32>
    %135 = arith.mulf %133, %134 : vector<128x256xf32>
    %136 = arith.addf %135, %132 : vector<128x256xf32>
    %137 = arith.negf %136 : vector<128x256xf32>
    %138 = math.exp %137 : vector<128x256xf32>
    %cst_49 = arith.constant 1.000000e+00 : f32
    %139 = vector.broadcast %cst_49 : f32 to vector<128x256xf32>
    %140 = arith.addf %139, %138 : vector<128x256xf32>
    %141 = arith.divf %139, %140 : vector<128x256xf32>
    %142 = math.tanh %136 : vector<128x256xf32>
    %143 = vector.extract_strided_slice %141 {offsets = [0, 0], sizes = [32, 256], strides = [1, 1]} : vector<128x256xf32> to vector<32x256xf32>
    %144 = vector.extract_strided_slice %141 {offsets = [32, 0], sizes = [32, 256], strides = [1, 1]} : vector<128x256xf32> to vector<32x256xf32>
    %145 = vector.extract_strided_slice %142 {offsets = [64, 0], sizes = [32, 256], strides = [1, 1]} : vector<128x256xf32> to vector<32x256xf32>
    %146 = vector.extract_strided_slice %141 {offsets = [96, 0], sizes = [32, 256], strides = [1, 1]} : vector<128x256xf32> to vector<32x256xf32>
    %147 = arith.mulf %144, %6 : vector<32x256xf32>
    %148 = arith.mulf %143, %145 : vector<32x256xf32>
    %149 = arith.addf %147, %148 : vector<32x256xf32>
    %150 = math.tanh %149 : vector<32x256xf32>
    %151 = arith.mulf %146, %150 : vector<32x256xf32>
    %cst_50 = arith.constant dense<0.000000e+00> : vector<24x256xf32>
    %152 = tpu.matmul %9, %151, %cst_50 {dimension_numbers = #tpu.dot_dimension_numbers<[1], [0], [0], [1], [0, 0, 1, 1], [], []>} : vector<24x32xf32>, vector<32x256xf32>, vector<24x256xf32> -> vector<24x256xf32>
    %153 = vector.extract_strided_slice %152 {offsets = [0, 0], sizes = [8, 256], strides = [1, 1]} : vector<24x256xf32> to vector<8x256xf32>
    %154 = vector.extract_strided_slice %152 {offsets = [8, 0], sizes = [16, 256], strides = [1, 1]} : vector<24x256xf32> to vector<16x256xf32>
    %cst_51 = arith.constant dense<0xFF800000> : vector<256xf32>
    %155 = vector.multi_reduction <maximumf>, %153, %cst_51 [0] : vector<8x256xf32> to vector<256xf32>
    %156 = vector.shape_cast %155 : vector<256xf32> to vector<1x256xf32>
    %157 = vector.broadcast %156 : vector<1x256xf32> to vector<8x256xf32>
    %158 = arith.subf %153, %157 : vector<8x256xf32>
    %159 = math.exp %158 : vector<8x256xf32>
    %cst_52 = arith.constant dense<0.000000e+00> : vector<256xf32>
    %160 = vector.multi_reduction <add>, %159, %cst_52 [0] : vector<8x256xf32> to vector<256xf32>
    %161 = vector.shape_cast %160 : vector<256xf32> to vector<1x256xf32>
    %162 = math.log %161 : vector<1x256xf32>
    %163 = vector.broadcast %162 : vector<1x256xf32> to vector<8x256xf32>
    %164 = arith.subf %158, %163 : vector<8x256xf32>
    %c2 = arith.constant 2 : index
    %c0_53 = arith.constant 0 : index
    %c0_54 = arith.constant 0 : index
    %165 = vector.load %arg10[%c2, %c0_53, %c0_54] : memref<8x8x256xf32, #tpu.memory_space<vmem>>, vector<1x8x256xf32>
    %166 = vector.shape_cast %165 : vector<1x8x256xf32> to vector<8x256xf32>
    %167 = vector.shape_cast %164 : vector<8x256xf32> to vector<1x8x256xf32>
    tpu.vector_store %arg10[%c2, %c0_53, %c0_54], %167 {strides = array<i32>} : memref<8x8x256xf32, #tpu.memory_space<vmem>>, vector<1x8x256xf32>,
    %cst_55 = arith.constant dense<0xFF800000> : vector<256xf32>
    %168 = vector.multi_reduction <maximumf>, %154, %cst_55 [0] : vector<16x256xf32> to vector<256xf32>
    %169 = vector.shape_cast %168 : vector<256xf32> to vector<1x256xf32>
    %170 = vector.broadcast %169 : vector<1x256xf32> to vector<16x256xf32>
    %171 = arith.subf %154, %170 : vector<16x256xf32>
    %172 = math.exp %171 : vector<16x256xf32>
    %cst_56 = arith.constant dense<0.000000e+00> : vector<256xf32>
    %173 = vector.multi_reduction <add>, %172, %cst_56 [0] : vector<16x256xf32> to vector<256xf32>
    %174 = vector.shape_cast %173 : vector<256xf32> to vector<1x256xf32>
    %cst_57 = arith.constant 1.000000e+00 : f32
    %175 = vector.broadcast %cst_57 : f32 to vector<1x256xf32>
    %176 = arith.divf %175, %174 : vector<1x256xf32>
    %177 = vector.broadcast %176 : vector<1x256xf32> to vector<16x256xf32>
    %178 = arith.mulf %172, %177 : vector<16x256xf32>
    %c2_58 = arith.constant 2 : index
    %c0_59 = arith.constant 0 : index
    %c0_60 = arith.constant 0 : index
    %179 = vector.load %arg11[%c2_58, %c0_59, %c0_60] : memref<8x16x256xf32, #tpu.memory_space<vmem>>, vector<1x16x256xf32>
    %180 = vector.shape_cast %179 : vector<1x16x256xf32> to vector<16x256xf32>
    %181 = vector.shape_cast %178 : vector<16x256xf32> to vector<1x16x256xf32>
    tpu.vector_store %arg11[%c2_58, %c0_59, %c0_60], %181 {strides = array<i32>} : memref<8x16x256xf32, #tpu.memory_space<vmem>>, vector<1x16x256xf32>,
    %182 = vector.extract_strided_slice %10 {offsets = [3, 0], sizes = [1, 256], strides = [1, 1]} : vector<8x256xi32> to vector<1x256xi32>
    %183 = vector.broadcast %182 : vector<1x256xi32> to vector<16x256xi32>
    %184 = arith.cmpi eq, %11, %183 : vector<16x256xi32>
    %185 = arith.extui %184 : vector<16x256xi1> to vector<16x256xi32>
    %186 = arith.sitofp %185 : vector<16x256xi32> to vector<16x256xf32>
    %cst_61 = arith.constant dense<0.000000e+00> : vector<128x256xf32>
    %187 = tpu.matmul %8, %186, %cst_61 {dimension_numbers = #tpu.dot_dimension_numbers<[1], [0], [0], [1], [0, 0, 1, 1], [], []>} : vector<128x16xf32>, vector<16x256xf32>, vector<128x256xf32> -> vector<128x256xf32>
    %188 = arith.addf %187, %5 : vector<128x256xf32>
    %cst_62 = arith.constant dense<0.000000e+00> : vector<128x256xf32>
    %189 = tpu.matmul %7, %172, %cst_62 {dimension_numbers = #tpu.dot_dimension_numbers<[1], [0], [0], [1], [0, 0, 1, 1], [], []>} : vector<128x16xf32>, vector<16x256xf32>, vector<128x256xf32> -> vector<128x256xf32>
    %190 = vector.broadcast %176 : vector<1x256xf32> to vector<128x256xf32>
    %191 = arith.mulf %189, %190 : vector<128x256xf32>
    %192 = arith.addf %191, %188 : vector<128x256xf32>
    %193 = arith.negf %192 : vector<128x256xf32>
    %194 = math.exp %193 : vector<128x256xf32>
    %cst_63 = arith.constant 1.000000e+00 : f32
    %195 = vector.broadcast %cst_63 : f32 to vector<128x256xf32>
    %196 = arith.addf %195, %194 : vector<128x256xf32>
    %197 = arith.divf %195, %196 : vector<128x256xf32>
    %198 = math.tanh %192 : vector<128x256xf32>
    %199 = vector.extract_strided_slice %197 {offsets = [0, 0], sizes = [32, 256], strides = [1, 1]} : vector<128x256xf32> to vector<32x256xf32>
    %200 = vector.extract_strided_slice %197 {offsets = [32, 0], sizes = [32, 256], strides = [1, 1]} : vector<128x256xf32> to vector<32x256xf32>
    %201 = vector.extract_strided_slice %198 {offsets = [64, 0], sizes = [32, 256], strides = [1, 1]} : vector<128x256xf32> to vector<32x256xf32>
    %202 = vector.extract_strided_slice %197 {offsets = [96, 0], sizes = [32, 256], strides = [1, 1]} : vector<128x256xf32> to vector<32x256xf32>
    %203 = arith.mulf %200, %6 : vector<32x256xf32>
    %204 = arith.mulf %199, %201 : vector<32x256xf32>
    %205 = arith.addf %203, %204 : vector<32x256xf32>
    %206 = math.tanh %205 : vector<32x256xf32>
    %207 = arith.mulf %202, %206 : vector<32x256xf32>
    %cst_64 = arith.constant dense<0.000000e+00> : vector<24x256xf32>
    %208 = tpu.matmul %9, %207, %cst_64 {dimension_numbers = #tpu.dot_dimension_numbers<[1], [0], [0], [1], [0, 0, 1, 1], [], []>} : vector<24x32xf32>, vector<32x256xf32>, vector<24x256xf32> -> vector<24x256xf32>
    %209 = vector.extract_strided_slice %208 {offsets = [0, 0], sizes = [8, 256], strides = [1, 1]} : vector<24x256xf32> to vector<8x256xf32>
    %210 = vector.extract_strided_slice %208 {offsets = [8, 0], sizes = [16, 256], strides = [1, 1]} : vector<24x256xf32> to vector<16x256xf32>
    %cst_65 = arith.constant dense<0xFF800000> : vector<256xf32>
    %211 = vector.multi_reduction <maximumf>, %209, %cst_65 [0] : vector<8x256xf32> to vector<256xf32>
    %212 = vector.shape_cast %211 : vector<256xf32> to vector<1x256xf32>
    %213 = vector.broadcast %212 : vector<1x256xf32> to vector<8x256xf32>
    %214 = arith.subf %209, %213 : vector<8x256xf32>
    %215 = math.exp %214 : vector<8x256xf32>
    %cst_66 = arith.constant dense<0.000000e+00> : vector<256xf32>
    %216 = vector.multi_reduction <add>, %215, %cst_66 [0] : vector<8x256xf32> to vector<256xf32>
    %217 = vector.shape_cast %216 : vector<256xf32> to vector<1x256xf32>
    %218 = math.log %217 : vector<1x256xf32>
    %219 = vector.broadcast %218 : vector<1x256xf32> to vector<8x256xf32>
    %220 = arith.subf %214, %219 : vector<8x256xf32>
    %c3 = arith.constant 3 : index
    %c0_67 = arith.constant 0 : index
    %c0_68 = arith.constant 0 : index
    %221 = vector.load %arg10[%c3, %c0_67, %c0_68] : memref<8x8x256xf32, #tpu.memory_space<vmem>>, vector<1x8x256xf32>
    %222 = vector.shape_cast %221 : vector<1x8x256xf32> to vector<8x256xf32>
    %223 = vector.shape_cast %220 : vector<8x256xf32> to vector<1x8x256xf32>
    tpu.vector_store %arg10[%c3, %c0_67, %c0_68], %223 {strides = array<i32>} : memref<8x8x256xf32, #tpu.memory_space<vmem>>, vector<1x8x256xf32>,
    %cst_69 = arith.constant dense<0xFF800000> : vector<256xf32>
    %224 = vector.multi_reduction <maximumf>, %210, %cst_69 [0] : vector<16x256xf32> to vector<256xf32>
    %225 = vector.shape_cast %224 : vector<256xf32> to vector<1x256xf32>
    %226 = vector.broadcast %225 : vector<1x256xf32> to vector<16x256xf32>
    %227 = arith.subf %210, %226 : vector<16x256xf32>
    %228 = math.exp %227 : vector<16x256xf32>
    %cst_70 = arith.constant dense<0.000000e+00> : vector<256xf32>
    %229 = vector.multi_reduction <add>, %228, %cst_70 [0] : vector<16x256xf32> to vector<256xf32>
    %230 = vector.shape_cast %229 : vector<256xf32> to vector<1x256xf32>
    %cst_71 = arith.constant 1.000000e+00 : f32
    %231 = vector.broadcast %cst_71 : f32 to vector<1x256xf32>
    %232 = arith.divf %231, %230 : vector<1x256xf32>
    %233 = vector.broadcast %232 : vector<1x256xf32> to vector<16x256xf32>
    %234 = arith.mulf %228, %233 : vector<16x256xf32>
    %c3_72 = arith.constant 3 : index
    %c0_73 = arith.constant 0 : index
    %c0_74 = arith.constant 0 : index
    %235 = vector.load %arg11[%c3_72, %c0_73, %c0_74] : memref<8x16x256xf32, #tpu.memory_space<vmem>>, vector<1x16x256xf32>
    %236 = vector.shape_cast %235 : vector<1x16x256xf32> to vector<16x256xf32>
    %237 = vector.shape_cast %234 : vector<16x256xf32> to vector<1x16x256xf32>
    tpu.vector_store %arg11[%c3_72, %c0_73, %c0_74], %237 {strides = array<i32>} : memref<8x16x256xf32, #tpu.memory_space<vmem>>, vector<1x16x256xf32>,
    %238 = vector.extract_strided_slice %10 {offsets = [4, 0], sizes = [1, 256], strides = [1, 1]} : vector<8x256xi32> to vector<1x256xi32>
    %239 = vector.broadcast %238 : vector<1x256xi32> to vector<16x256xi32>
    %240 = arith.cmpi eq, %11, %239 : vector<16x256xi32>
    %241 = arith.extui %240 : vector<16x256xi1> to vector<16x256xi32>
    %242 = arith.sitofp %241 : vector<16x256xi32> to vector<16x256xf32>
    %cst_75 = arith.constant dense<0.000000e+00> : vector<128x256xf32>
    %243 = tpu.matmul %8, %242, %cst_75 {dimension_numbers = #tpu.dot_dimension_numbers<[1], [0], [0], [1], [0, 0, 1, 1], [], []>} : vector<128x16xf32>, vector<16x256xf32>, vector<128x256xf32> -> vector<128x256xf32>
    %244 = arith.addf %243, %5 : vector<128x256xf32>
    %cst_76 = arith.constant dense<0.000000e+00> : vector<128x256xf32>
    %245 = tpu.matmul %7, %228, %cst_76 {dimension_numbers = #tpu.dot_dimension_numbers<[1], [0], [0], [1], [0, 0, 1, 1], [], []>} : vector<128x16xf32>, vector<16x256xf32>, vector<128x256xf32> -> vector<128x256xf32>
    %246 = vector.broadcast %232 : vector<1x256xf32> to vector<128x256xf32>
    %247 = arith.mulf %245, %246 : vector<128x256xf32>
    %248 = arith.addf %247, %244 : vector<128x256xf32>
    %249 = arith.negf %248 : vector<128x256xf32>
    %250 = math.exp %249 : vector<128x256xf32>
    %cst_77 = arith.constant 1.000000e+00 : f32
    %251 = vector.broadcast %cst_77 : f32 to vector<128x256xf32>
    %252 = arith.addf %251, %250 : vector<128x256xf32>
    %253 = arith.divf %251, %252 : vector<128x256xf32>
    %254 = math.tanh %248 : vector<128x256xf32>
    %255 = vector.extract_strided_slice %253 {offsets = [0, 0], sizes = [32, 256], strides = [1, 1]} : vector<128x256xf32> to vector<32x256xf32>
    %256 = vector.extract_strided_slice %253 {offsets = [32, 0], sizes = [32, 256], strides = [1, 1]} : vector<128x256xf32> to vector<32x256xf32>
    %257 = vector.extract_strided_slice %254 {offsets = [64, 0], sizes = [32, 256], strides = [1, 1]} : vector<128x256xf32> to vector<32x256xf32>
    %258 = vector.extract_strided_slice %253 {offsets = [96, 0], sizes = [32, 256], strides = [1, 1]} : vector<128x256xf32> to vector<32x256xf32>
    %259 = arith.mulf %256, %6 : vector<32x256xf32>
    %260 = arith.mulf %255, %257 : vector<32x256xf32>
    %261 = arith.addf %259, %260 : vector<32x256xf32>
    %262 = math.tanh %261 : vector<32x256xf32>
    %263 = arith.mulf %258, %262 : vector<32x256xf32>
    %cst_78 = arith.constant dense<0.000000e+00> : vector<24x256xf32>
    %264 = tpu.matmul %9, %263, %cst_78 {dimension_numbers = #tpu.dot_dimension_numbers<[1], [0], [0], [1], [0, 0, 1, 1], [], []>} : vector<24x32xf32>, vector<32x256xf32>, vector<24x256xf32> -> vector<24x256xf32>
    %265 = vector.extract_strided_slice %264 {offsets = [0, 0], sizes = [8, 256], strides = [1, 1]} : vector<24x256xf32> to vector<8x256xf32>
    %266 = vector.extract_strided_slice %264 {offsets = [8, 0], sizes = [16, 256], strides = [1, 1]} : vector<24x256xf32> to vector<16x256xf32>
    %cst_79 = arith.constant dense<0xFF800000> : vector<256xf32>
    %267 = vector.multi_reduction <maximumf>, %265, %cst_79 [0] : vector<8x256xf32> to vector<256xf32>
    %268 = vector.shape_cast %267 : vector<256xf32> to vector<1x256xf32>
    %269 = vector.broadcast %268 : vector<1x256xf32> to vector<8x256xf32>
    %270 = arith.subf %265, %269 : vector<8x256xf32>
    %271 = math.exp %270 : vector<8x256xf32>
    %cst_80 = arith.constant dense<0.000000e+00> : vector<256xf32>
    %272 = vector.multi_reduction <add>, %271, %cst_80 [0] : vector<8x256xf32> to vector<256xf32>
    %273 = vector.shape_cast %272 : vector<256xf32> to vector<1x256xf32>
    %274 = math.log %273 : vector<1x256xf32>
    %275 = vector.broadcast %274 : vector<1x256xf32> to vector<8x256xf32>
    %276 = arith.subf %270, %275 : vector<8x256xf32>
    %c4 = arith.constant 4 : index
    %c0_81 = arith.constant 0 : index
    %c0_82 = arith.constant 0 : index
    %277 = vector.load %arg10[%c4, %c0_81, %c0_82] : memref<8x8x256xf32, #tpu.memory_space<vmem>>, vector<1x8x256xf32>
    %278 = vector.shape_cast %277 : vector<1x8x256xf32> to vector<8x256xf32>
    %279 = vector.shape_cast %276 : vector<8x256xf32> to vector<1x8x256xf32>
    tpu.vector_store %arg10[%c4, %c0_81, %c0_82], %279 {strides = array<i32>} : memref<8x8x256xf32, #tpu.memory_space<vmem>>, vector<1x8x256xf32>,
    %cst_83 = arith.constant dense<0xFF800000> : vector<256xf32>
    %280 = vector.multi_reduction <maximumf>, %266, %cst_83 [0] : vector<16x256xf32> to vector<256xf32>
    %281 = vector.shape_cast %280 : vector<256xf32> to vector<1x256xf32>
    %282 = vector.broadcast %281 : vector<1x256xf32> to vector<16x256xf32>
    %283 = arith.subf %266, %282 : vector<16x256xf32>
    %284 = math.exp %283 : vector<16x256xf32>
    %cst_84 = arith.constant dense<0.000000e+00> : vector<256xf32>
    %285 = vector.multi_reduction <add>, %284, %cst_84 [0] : vector<16x256xf32> to vector<256xf32>
    %286 = vector.shape_cast %285 : vector<256xf32> to vector<1x256xf32>
    %cst_85 = arith.constant 1.000000e+00 : f32
    %287 = vector.broadcast %cst_85 : f32 to vector<1x256xf32>
    %288 = arith.divf %287, %286 : vector<1x256xf32>
    %289 = vector.broadcast %288 : vector<1x256xf32> to vector<16x256xf32>
    %290 = arith.mulf %284, %289 : vector<16x256xf32>
    %c4_86 = arith.constant 4 : index
    %c0_87 = arith.constant 0 : index
    %c0_88 = arith.constant 0 : index
    %291 = vector.load %arg11[%c4_86, %c0_87, %c0_88] : memref<8x16x256xf32, #tpu.memory_space<vmem>>, vector<1x16x256xf32>
    %292 = vector.shape_cast %291 : vector<1x16x256xf32> to vector<16x256xf32>
    %293 = vector.shape_cast %290 : vector<16x256xf32> to vector<1x16x256xf32>
    tpu.vector_store %arg11[%c4_86, %c0_87, %c0_88], %293 {strides = array<i32>} : memref<8x16x256xf32, #tpu.memory_space<vmem>>, vector<1x16x256xf32>,
    %294 = vector.extract_strided_slice %10 {offsets = [5, 0], sizes = [1, 256], strides = [1, 1]} : vector<8x256xi32> to vector<1x256xi32>
    %295 = vector.broadcast %294 : vector<1x256xi32> to vector<16x256xi32>
    %296 = arith.cmpi eq, %11, %295 : vector<16x256xi32>
    %297 = arith.extui %296 : vector<16x256xi1> to vector<16x256xi32>
    %298 = arith.sitofp %297 : vector<16x256xi32> to vector<16x256xf32>
    %cst_89 = arith.constant dense<0.000000e+00> : vector<128x256xf32>
    %299 = tpu.matmul %8, %298, %cst_89 {dimension_numbers = #tpu.dot_dimension_numbers<[1], [0], [0], [1], [0, 0, 1, 1], [], []>} : vector<128x16xf32>, vector<16x256xf32>, vector<128x256xf32> -> vector<128x256xf32>
    %300 = arith.addf %299, %5 : vector<128x256xf32>
    %cst_90 = arith.constant dense<0.000000e+00> : vector<128x256xf32>
    %301 = tpu.matmul %7, %284, %cst_90 {dimension_numbers = #tpu.dot_dimension_numbers<[1], [0], [0], [1], [0, 0, 1, 1], [], []>} : vector<128x16xf32>, vector<16x256xf32>, vector<128x256xf32> -> vector<128x256xf32>
    %302 = vector.broadcast %288 : vector<1x256xf32> to vector<128x256xf32>
    %303 = arith.mulf %301, %302 : vector<128x256xf32>
    %304 = arith.addf %303, %300 : vector<128x256xf32>
    %305 = arith.negf %304 : vector<128x256xf32>
    %306 = math.exp %305 : vector<128x256xf32>
    %cst_91 = arith.constant 1.000000e+00 : f32
    %307 = vector.broadcast %cst_91 : f32 to vector<128x256xf32>
    %308 = arith.addf %307, %306 : vector<128x256xf32>
    %309 = arith.divf %307, %308 : vector<128x256xf32>
    %310 = math.tanh %304 : vector<128x256xf32>
    %311 = vector.extract_strided_slice %309 {offsets = [0, 0], sizes = [32, 256], strides = [1, 1]} : vector<128x256xf32> to vector<32x256xf32>
    %312 = vector.extract_strided_slice %309 {offsets = [32, 0], sizes = [32, 256], strides = [1, 1]} : vector<128x256xf32> to vector<32x256xf32>
    %313 = vector.extract_strided_slice %310 {offsets = [64, 0], sizes = [32, 256], strides = [1, 1]} : vector<128x256xf32> to vector<32x256xf32>
    %314 = vector.extract_strided_slice %309 {offsets = [96, 0], sizes = [32, 256], strides = [1, 1]} : vector<128x256xf32> to vector<32x256xf32>
    %315 = arith.mulf %312, %6 : vector<32x256xf32>
    %316 = arith.mulf %311, %313 : vector<32x256xf32>
    %317 = arith.addf %315, %316 : vector<32x256xf32>
    %318 = math.tanh %317 : vector<32x256xf32>
    %319 = arith.mulf %314, %318 : vector<32x256xf32>
    %cst_92 = arith.constant dense<0.000000e+00> : vector<24x256xf32>
    %320 = tpu.matmul %9, %319, %cst_92 {dimension_numbers = #tpu.dot_dimension_numbers<[1], [0], [0], [1], [0, 0, 1, 1], [], []>} : vector<24x32xf32>, vector<32x256xf32>, vector<24x256xf32> -> vector<24x256xf32>
    %321 = vector.extract_strided_slice %320 {offsets = [0, 0], sizes = [8, 256], strides = [1, 1]} : vector<24x256xf32> to vector<8x256xf32>
    %322 = vector.extract_strided_slice %320 {offsets = [8, 0], sizes = [16, 256], strides = [1, 1]} : vector<24x256xf32> to vector<16x256xf32>
    %cst_93 = arith.constant dense<0xFF800000> : vector<256xf32>
    %323 = vector.multi_reduction <maximumf>, %321, %cst_93 [0] : vector<8x256xf32> to vector<256xf32>
    %324 = vector.shape_cast %323 : vector<256xf32> to vector<1x256xf32>
    %325 = vector.broadcast %324 : vector<1x256xf32> to vector<8x256xf32>
    %326 = arith.subf %321, %325 : vector<8x256xf32>
    %327 = math.exp %326 : vector<8x256xf32>
    %cst_94 = arith.constant dense<0.000000e+00> : vector<256xf32>
    %328 = vector.multi_reduction <add>, %327, %cst_94 [0] : vector<8x256xf32> to vector<256xf32>
    %329 = vector.shape_cast %328 : vector<256xf32> to vector<1x256xf32>
    %330 = math.log %329 : vector<1x256xf32>
    %331 = vector.broadcast %330 : vector<1x256xf32> to vector<8x256xf32>
    %332 = arith.subf %326, %331 : vector<8x256xf32>
    %c5 = arith.constant 5 : index
    %c0_95 = arith.constant 0 : index
    %c0_96 = arith.constant 0 : index
    %333 = vector.load %arg10[%c5, %c0_95, %c0_96] : memref<8x8x256xf32, #tpu.memory_space<vmem>>, vector<1x8x256xf32>
    %334 = vector.shape_cast %333 : vector<1x8x256xf32> to vector<8x256xf32>
    %335 = vector.shape_cast %332 : vector<8x256xf32> to vector<1x8x256xf32>
    tpu.vector_store %arg10[%c5, %c0_95, %c0_96], %335 {strides = array<i32>} : memref<8x8x256xf32, #tpu.memory_space<vmem>>, vector<1x8x256xf32>,
    %cst_97 = arith.constant dense<0xFF800000> : vector<256xf32>
    %336 = vector.multi_reduction <maximumf>, %322, %cst_97 [0] : vector<16x256xf32> to vector<256xf32>
    %337 = vector.shape_cast %336 : vector<256xf32> to vector<1x256xf32>
    %338 = vector.broadcast %337 : vector<1x256xf32> to vector<16x256xf32>
    %339 = arith.subf %322, %338 : vector<16x256xf32>
    %340 = math.exp %339 : vector<16x256xf32>
    %cst_98 = arith.constant dense<0.000000e+00> : vector<256xf32>
    %341 = vector.multi_reduction <add>, %340, %cst_98 [0] : vector<16x256xf32> to vector<256xf32>
    %342 = vector.shape_cast %341 : vector<256xf32> to vector<1x256xf32>
    %cst_99 = arith.constant 1.000000e+00 : f32
    %343 = vector.broadcast %cst_99 : f32 to vector<1x256xf32>
    %344 = arith.divf %343, %342 : vector<1x256xf32>
    %345 = vector.broadcast %344 : vector<1x256xf32> to vector<16x256xf32>
    %346 = arith.mulf %340, %345 : vector<16x256xf32>
    %c5_100 = arith.constant 5 : index
    %c0_101 = arith.constant 0 : index
    %c0_102 = arith.constant 0 : index
    %347 = vector.load %arg11[%c5_100, %c0_101, %c0_102] : memref<8x16x256xf32, #tpu.memory_space<vmem>>, vector<1x16x256xf32>
    %348 = vector.shape_cast %347 : vector<1x16x256xf32> to vector<16x256xf32>
    %349 = vector.shape_cast %346 : vector<16x256xf32> to vector<1x16x256xf32>
    tpu.vector_store %arg11[%c5_100, %c0_101, %c0_102], %349 {strides = array<i32>} : memref<8x16x256xf32, #tpu.memory_space<vmem>>, vector<1x16x256xf32>,
    %350 = vector.extract_strided_slice %10 {offsets = [6, 0], sizes = [1, 256], strides = [1, 1]} : vector<8x256xi32> to vector<1x256xi32>
    %351 = vector.broadcast %350 : vector<1x256xi32> to vector<16x256xi32>
    %352 = arith.cmpi eq, %11, %351 : vector<16x256xi32>
    %353 = arith.extui %352 : vector<16x256xi1> to vector<16x256xi32>
    %354 = arith.sitofp %353 : vector<16x256xi32> to vector<16x256xf32>
    %cst_103 = arith.constant dense<0.000000e+00> : vector<128x256xf32>
    %355 = tpu.matmul %8, %354, %cst_103 {dimension_numbers = #tpu.dot_dimension_numbers<[1], [0], [0], [1], [0, 0, 1, 1], [], []>} : vector<128x16xf32>, vector<16x256xf32>, vector<128x256xf32> -> vector<128x256xf32>
    %356 = arith.addf %355, %5 : vector<128x256xf32>
    %cst_104 = arith.constant dense<0.000000e+00> : vector<128x256xf32>
    %357 = tpu.matmul %7, %340, %cst_104 {dimension_numbers = #tpu.dot_dimension_numbers<[1], [0], [0], [1], [0, 0, 1, 1], [], []>} : vector<128x16xf32>, vector<16x256xf32>, vector<128x256xf32> -> vector<128x256xf32>
    %358 = vector.broadcast %344 : vector<1x256xf32> to vector<128x256xf32>
    %359 = arith.mulf %357, %358 : vector<128x256xf32>
    %360 = arith.addf %359, %356 : vector<128x256xf32>
    %361 = arith.negf %360 : vector<128x256xf32>
    %362 = math.exp %361 : vector<128x256xf32>
    %cst_105 = arith.constant 1.000000e+00 : f32
    %363 = vector.broadcast %cst_105 : f32 to vector<128x256xf32>
    %364 = arith.addf %363, %362 : vector<128x256xf32>
    %365 = arith.divf %363, %364 : vector<128x256xf32>
    %366 = math.tanh %360 : vector<128x256xf32>
    %367 = vector.extract_strided_slice %365 {offsets = [0, 0], sizes = [32, 256], strides = [1, 1]} : vector<128x256xf32> to vector<32x256xf32>
    %368 = vector.extract_strided_slice %365 {offsets = [32, 0], sizes = [32, 256], strides = [1, 1]} : vector<128x256xf32> to vector<32x256xf32>
    %369 = vector.extract_strided_slice %366 {offsets = [64, 0], sizes = [32, 256], strides = [1, 1]} : vector<128x256xf32> to vector<32x256xf32>
    %370 = vector.extract_strided_slice %365 {offsets = [96, 0], sizes = [32, 256], strides = [1, 1]} : vector<128x256xf32> to vector<32x256xf32>
    %371 = arith.mulf %368, %6 : vector<32x256xf32>
    %372 = arith.mulf %367, %369 : vector<32x256xf32>
    %373 = arith.addf %371, %372 : vector<32x256xf32>
    %374 = math.tanh %373 : vector<32x256xf32>
    %375 = arith.mulf %370, %374 : vector<32x256xf32>
    %cst_106 = arith.constant dense<0.000000e+00> : vector<24x256xf32>
    %376 = tpu.matmul %9, %375, %cst_106 {dimension_numbers = #tpu.dot_dimension_numbers<[1], [0], [0], [1], [0, 0, 1, 1], [], []>} : vector<24x32xf32>, vector<32x256xf32>, vector<24x256xf32> -> vector<24x256xf32>
    %377 = vector.extract_strided_slice %376 {offsets = [0, 0], sizes = [8, 256], strides = [1, 1]} : vector<24x256xf32> to vector<8x256xf32>
    %378 = vector.extract_strided_slice %376 {offsets = [8, 0], sizes = [16, 256], strides = [1, 1]} : vector<24x256xf32> to vector<16x256xf32>
    %cst_107 = arith.constant dense<0xFF800000> : vector<256xf32>
    %379 = vector.multi_reduction <maximumf>, %377, %cst_107 [0] : vector<8x256xf32> to vector<256xf32>
    %380 = vector.shape_cast %379 : vector<256xf32> to vector<1x256xf32>
    %381 = vector.broadcast %380 : vector<1x256xf32> to vector<8x256xf32>
    %382 = arith.subf %377, %381 : vector<8x256xf32>
    %383 = math.exp %382 : vector<8x256xf32>
    %cst_108 = arith.constant dense<0.000000e+00> : vector<256xf32>
    %384 = vector.multi_reduction <add>, %383, %cst_108 [0] : vector<8x256xf32> to vector<256xf32>
    %385 = vector.shape_cast %384 : vector<256xf32> to vector<1x256xf32>
    %386 = math.log %385 : vector<1x256xf32>
    %387 = vector.broadcast %386 : vector<1x256xf32> to vector<8x256xf32>
    %388 = arith.subf %382, %387 : vector<8x256xf32>
    %c6 = arith.constant 6 : index
    %c0_109 = arith.constant 0 : index
    %c0_110 = arith.constant 0 : index
    %389 = vector.load %arg10[%c6, %c0_109, %c0_110] : memref<8x8x256xf32, #tpu.memory_space<vmem>>, vector<1x8x256xf32>
    %390 = vector.shape_cast %389 : vector<1x8x256xf32> to vector<8x256xf32>
    %391 = vector.shape_cast %388 : vector<8x256xf32> to vector<1x8x256xf32>
    tpu.vector_store %arg10[%c6, %c0_109, %c0_110], %391 {strides = array<i32>} : memref<8x8x256xf32, #tpu.memory_space<vmem>>, vector<1x8x256xf32>,
    %cst_111 = arith.constant dense<0xFF800000> : vector<256xf32>
    %392 = vector.multi_reduction <maximumf>, %378, %cst_111 [0] : vector<16x256xf32> to vector<256xf32>
    %393 = vector.shape_cast %392 : vector<256xf32> to vector<1x256xf32>
    %394 = vector.broadcast %393 : vector<1x256xf32> to vector<16x256xf32>
    %395 = arith.subf %378, %394 : vector<16x256xf32>
    %396 = math.exp %395 : vector<16x256xf32>
    %cst_112 = arith.constant dense<0.000000e+00> : vector<256xf32>
    %397 = vector.multi_reduction <add>, %396, %cst_112 [0] : vector<16x256xf32> to vector<256xf32>
    %398 = vector.shape_cast %397 : vector<256xf32> to vector<1x256xf32>
    %cst_113 = arith.constant 1.000000e+00 : f32
    %399 = vector.broadcast %cst_113 : f32 to vector<1x256xf32>
    %400 = arith.divf %399, %398 : vector<1x256xf32>
    %401 = vector.broadcast %400 : vector<1x256xf32> to vector<16x256xf32>
    %402 = arith.mulf %396, %401 : vector<16x256xf32>
    %c6_114 = arith.constant 6 : index
    %c0_115 = arith.constant 0 : index
    %c0_116 = arith.constant 0 : index
    %403 = vector.load %arg11[%c6_114, %c0_115, %c0_116] : memref<8x16x256xf32, #tpu.memory_space<vmem>>, vector<1x16x256xf32>
    %404 = vector.shape_cast %403 : vector<1x16x256xf32> to vector<16x256xf32>
    %405 = vector.shape_cast %402 : vector<16x256xf32> to vector<1x16x256xf32>
    tpu.vector_store %arg11[%c6_114, %c0_115, %c0_116], %405 {strides = array<i32>} : memref<8x16x256xf32, #tpu.memory_space<vmem>>, vector<1x16x256xf32>,
    %406 = vector.extract_strided_slice %10 {offsets = [7, 0], sizes = [1, 256], strides = [1, 1]} : vector<8x256xi32> to vector<1x256xi32>
    %407 = vector.broadcast %406 : vector<1x256xi32> to vector<16x256xi32>
    %408 = arith.cmpi eq, %11, %407 : vector<16x256xi32>
    %409 = arith.extui %408 : vector<16x256xi1> to vector<16x256xi32>
    %410 = arith.sitofp %409 : vector<16x256xi32> to vector<16x256xf32>
    %cst_117 = arith.constant dense<0.000000e+00> : vector<128x256xf32>
    %411 = tpu.matmul %8, %410, %cst_117 {dimension_numbers = #tpu.dot_dimension_numbers<[1], [0], [0], [1], [0, 0, 1, 1], [], []>} : vector<128x16xf32>, vector<16x256xf32>, vector<128x256xf32> -> vector<128x256xf32>
    %412 = arith.addf %411, %5 : vector<128x256xf32>
    %cst_118 = arith.constant dense<0.000000e+00> : vector<128x256xf32>
    %413 = tpu.matmul %7, %396, %cst_118 {dimension_numbers = #tpu.dot_dimension_numbers<[1], [0], [0], [1], [0, 0, 1, 1], [], []>} : vector<128x16xf32>, vector<16x256xf32>, vector<128x256xf32> -> vector<128x256xf32>
    %414 = vector.broadcast %400 : vector<1x256xf32> to vector<128x256xf32>
    %415 = arith.mulf %413, %414 : vector<128x256xf32>
    %416 = arith.addf %415, %412 : vector<128x256xf32>
    %417 = arith.negf %416 : vector<128x256xf32>
    %418 = math.exp %417 : vector<128x256xf32>
    %cst_119 = arith.constant 1.000000e+00 : f32
    %419 = vector.broadcast %cst_119 : f32 to vector<128x256xf32>
    %420 = arith.addf %419, %418 : vector<128x256xf32>
    %421 = arith.divf %419, %420 : vector<128x256xf32>
    %422 = math.tanh %416 : vector<128x256xf32>
    %423 = vector.extract_strided_slice %421 {offsets = [0, 0], sizes = [32, 256], strides = [1, 1]} : vector<128x256xf32> to vector<32x256xf32>
    %424 = vector.extract_strided_slice %421 {offsets = [32, 0], sizes = [32, 256], strides = [1, 1]} : vector<128x256xf32> to vector<32x256xf32>
    %425 = vector.extract_strided_slice %422 {offsets = [64, 0], sizes = [32, 256], strides = [1, 1]} : vector<128x256xf32> to vector<32x256xf32>
    %426 = vector.extract_strided_slice %421 {offsets = [96, 0], sizes = [32, 256], strides = [1, 1]} : vector<128x256xf32> to vector<32x256xf32>
    %427 = arith.mulf %424, %6 : vector<32x256xf32>
    %428 = arith.mulf %423, %425 : vector<32x256xf32>
    %429 = arith.addf %427, %428 : vector<32x256xf32>
    %430 = math.tanh %429 : vector<32x256xf32>
    %431 = arith.mulf %426, %430 : vector<32x256xf32>
    %cst_120 = arith.constant dense<0.000000e+00> : vector<24x256xf32>
    %432 = tpu.matmul %9, %431, %cst_120 {dimension_numbers = #tpu.dot_dimension_numbers<[1], [0], [0], [1], [0, 0, 1, 1], [], []>} : vector<24x32xf32>, vector<32x256xf32>, vector<24x256xf32> -> vector<24x256xf32>
    %433 = vector.extract_strided_slice %432 {offsets = [0, 0], sizes = [8, 256], strides = [1, 1]} : vector<24x256xf32> to vector<8x256xf32>
    %434 = vector.extract_strided_slice %432 {offsets = [8, 0], sizes = [16, 256], strides = [1, 1]} : vector<24x256xf32> to vector<16x256xf32>
    %cst_121 = arith.constant dense<0xFF800000> : vector<256xf32>
    %435 = vector.multi_reduction <maximumf>, %433, %cst_121 [0] : vector<8x256xf32> to vector<256xf32>
    %436 = vector.shape_cast %435 : vector<256xf32> to vector<1x256xf32>
    %437 = vector.broadcast %436 : vector<1x256xf32> to vector<8x256xf32>
    %438 = arith.subf %433, %437 : vector<8x256xf32>
    %439 = math.exp %438 : vector<8x256xf32>
    %cst_122 = arith.constant dense<0.000000e+00> : vector<256xf32>
    %440 = vector.multi_reduction <add>, %439, %cst_122 [0] : vector<8x256xf32> to vector<256xf32>
    %441 = vector.shape_cast %440 : vector<256xf32> to vector<1x256xf32>
    %442 = math.log %441 : vector<1x256xf32>
    %443 = vector.broadcast %442 : vector<1x256xf32> to vector<8x256xf32>
    %444 = arith.subf %438, %443 : vector<8x256xf32>
    %c7 = arith.constant 7 : index
    %c0_123 = arith.constant 0 : index
    %c0_124 = arith.constant 0 : index
    %445 = vector.load %arg10[%c7, %c0_123, %c0_124] : memref<8x8x256xf32, #tpu.memory_space<vmem>>, vector<1x8x256xf32>
    %446 = vector.shape_cast %445 : vector<1x8x256xf32> to vector<8x256xf32>
    %447 = vector.shape_cast %444 : vector<8x256xf32> to vector<1x8x256xf32>
    tpu.vector_store %arg10[%c7, %c0_123, %c0_124], %447 {strides = array<i32>} : memref<8x8x256xf32, #tpu.memory_space<vmem>>, vector<1x8x256xf32>,
    %cst_125 = arith.constant dense<0xFF800000> : vector<256xf32>
    %448 = vector.multi_reduction <maximumf>, %434, %cst_125 [0] : vector<16x256xf32> to vector<256xf32>
    %449 = vector.shape_cast %448 : vector<256xf32> to vector<1x256xf32>
    %450 = vector.broadcast %449 : vector<1x256xf32> to vector<16x256xf32>
    %451 = arith.subf %434, %450 : vector<16x256xf32>
    %452 = math.exp %451 : vector<16x256xf32>
    %cst_126 = arith.constant dense<0.000000e+00> : vector<256xf32>
    %453 = vector.multi_reduction <add>, %452, %cst_126 [0] : vector<16x256xf32> to vector<256xf32>
    %454 = vector.shape_cast %453 : vector<256xf32> to vector<1x256xf32>
    %cst_127 = arith.constant 1.000000e+00 : f32
    %455 = vector.broadcast %cst_127 : f32 to vector<1x256xf32>
    %456 = arith.divf %455, %454 : vector<1x256xf32>
    %457 = vector.broadcast %456 : vector<1x256xf32> to vector<16x256xf32>
    %458 = arith.mulf %452, %457 : vector<16x256xf32>
    %c7_128 = arith.constant 7 : index
    %c0_129 = arith.constant 0 : index
    %c0_130 = arith.constant 0 : index
    %459 = vector.load %arg11[%c7_128, %c0_129, %c0_130] : memref<8x16x256xf32, #tpu.memory_space<vmem>>, vector<1x16x256xf32>
    %460 = vector.shape_cast %459 : vector<1x16x256xf32> to vector<16x256xf32>
    %461 = vector.shape_cast %458 : vector<16x256xf32> to vector<1x16x256xf32>
    tpu.vector_store %arg11[%c7_128, %c0_129, %c0_130], %461 {strides = array<i32>} : memref<8x16x256xf32, #tpu.memory_space<vmem>>, vector<1x16x256xf32>,
    return
  }
  func.func @transform_0(%arg0: i32) -> (i32, i32) {
    %c0_i32 = arith.constant 0 : i32
    %c0_i32_0 = arith.constant 0 : i32
    return %c0_i32, %arg0 : i32, i32
  }
  func.func @transform_1(%arg0: i32) -> (i32, i32) {
    %c0_i32 = arith.constant 0 : i32
    %c0_i32_0 = arith.constant 0 : i32
    %c0_i32_1 = arith.constant 0 : i32
    return %c0_i32, %c0_i32_0 : i32, i32
  }
  func.func @transform_2(%arg0: i32) -> (i32, i32) {
    %c0_i32 = arith.constant 0 : i32
    %c0_i32_0 = arith.constant 0 : i32
    %c0_i32_1 = arith.constant 0 : i32
    return %c0_i32, %c0_i32_0 : i32, i32
  }
  func.func @transform_3(%arg0: i32) -> (i32, i32) {
    %c0_i32 = arith.constant 0 : i32
    %c0_i32_0 = arith.constant 0 : i32
    %c0_i32_1 = arith.constant 0 : i32
    return %c0_i32, %c0_i32_0 : i32, i32
  }
  func.func @transform_4(%arg0: i32) -> (i32, i32) {
    %c0_i32 = arith.constant 0 : i32
    %c0_i32_0 = arith.constant 0 : i32
    %c0_i32_1 = arith.constant 0 : i32
    return %c0_i32, %c0_i32_0 : i32, i32
  }
  func.func @transform_5(%arg0: i32) -> (i32, i32) {
    %c0_i32 = arith.constant 0 : i32
    %c0_i32_0 = arith.constant 0 : i32
    return %c0_i32, %arg0 : i32, i32
  }
  func.func @transform_6(%arg0: i32) -> (i32, i32) {
    %c0_i32 = arith.constant 0 : i32
    %c0_i32_0 = arith.constant 0 : i32
    return %c0_i32, %arg0 : i32, i32
  }
  func.func @transform_7(%arg0: i32) -> (i32, i32) {
    %c0_i32 = arith.constant 0 : i32
    %c0_i32_0 = arith.constant 0 : i32
    return %c0_i32, %arg0 : i32, i32
  }
  func.func @transform_8(%arg0: i32) -> (i32, i32) {
    %c0_i32 = arith.constant 0 : i32
    %c0_i32_0 = arith.constant 0 : i32
    %c0_i32_1 = arith.constant 0 : i32
    return %c0_i32, %c0_i32_0 : i32, i32
  }
  func.func @transform_9(%arg0: i32) -> (i32, i32, i32) {
    %c0_i32 = arith.constant 0 : i32
    %c0_i32_0 = arith.constant 0 : i32
    %c0_i32_1 = arith.constant 0 : i32
    return %c0_i32, %c0_i32_0, %arg0 : i32, i32, i32
  }
  func.func @transform_10(%arg0: i32) -> (i32, i32, i32) {
    %c0_i32 = arith.constant 0 : i32
    %c0_i32_0 = arith.constant 0 : i32
    %c0_i32_1 = arith.constant 0 : i32
    return %c0_i32, %c0_i32_0, %arg0 : i32, i32, i32
  }
}

</mosaic_0001>

<llo_original>
// kernel: tpu_custom_call.1
$region0: #{tpu_custom_call.1}
  #allocation0 [shape = 'u32[]', space=smem, size = 0x4, offset = 0x4, fixed_abs, tag = 'smem constant byte address 0x4 - core index']
  #allocation1 [shape = 'u32[144,128]{1,0:T(1,128)}', space=vmem, size = 0x12000, scoped, tag = 'internal scratch']
  %s0 = inlined_call_operand.vmem [shape: s32[8,256], index: 0, kind: input, shape index: {}]
  %s1 = inlined_call_operand.vmem [shape: f32[128,16], index: 1, kind: input, shape index: {}]
  %s2 = inlined_call_operand.vmem [shape: f32[128,16], index: 2, kind: input, shape index: {}]
  %s3 = inlined_call_operand.vmem [shape: f32[128,32], index: 3, kind: input, shape index: {}]
  %s4 = inlined_call_operand.vmem [shape: f32[128,1], index: 4, kind: input, shape index: {}]
  %s5 = inlined_call_operand.vmem [shape: f32[32,256], index: 5, kind: input, shape index: {}]
  %s6 = inlined_call_operand.vmem [shape: f32[32,256], index: 6, kind: input, shape index: {}]
  %s7 = inlined_call_operand.vmem [shape: f32[16,256], index: 7, kind: input, shape index: {}]
  %s8 = inlined_call_operand.vmem [shape: f32[24,32], index: 8, kind: input, shape index: {}]
  %s9 = inlined_call_operand.hbm [shape: f32[8,8,256], index: 9, kind: output, shape index: {0}]
  %s10 = inlined_call_operand.hbm [shape: f32[8,16,256], index: 10, kind: output, shape index: {1}]
  %11 = xla_tuple %s9, %s10
  %s12 = sld [smem:[#allocation0]]
  $region54: #{tpu_custom_call.1} parent=0
    _
  %s14 = ssub.s32 1, %s12
  %s15 = scalar_select 0, %s14, %s12
  $region1: #{tpu_custom_call.1} parent=0
    #allocation2 [shape = 'u8[65536]{0}', space=vmem, size = 0x10000, scoped, tag = 'output window, operand 0, single buffered']
    #allocation3 [shape = 's32[1]{0}', space=sflag, size = 0x4, scoped, tag = 'scoped memory for tpu_custom_call.1']
    #allocation4 [shape = 'u8[131072]{0}', space=vmem, size = 0x20000, scoped, tag = 'output window, operand 1, single buffered']
    #allocation5 [shape = 's32[1]{0}', space=sflag, size = 0x4, scoped, tag = 'scoped memory for tpu_custom_call.1']
    %16 = vsyncpa [#allocation3], 0
    %17 = vsyncpa [#allocation5], 0
    // Predicated region
    $region2: #{tpu_custom_call.1} parent=1 // pred_check
      _
    $region3: #{tpu_custom_call.1} parent=1 // pred_check_branch
      %19 = sbr.rel (0) target = $region5
    $region4: #{tpu_custom_call.1} parent=1 // pred_region
      _
    $region5: #{tpu_custom_call.1} parent=1 // pred_fallthru
      _
    // Predicated region
    $region6: #{tpu_custom_call.1} parent=1 // pred_check
      _
    $region7: #{tpu_custom_call.1} parent=1 // pred_check_branch
      %21 = sbr.rel (0) target = $region9
    $region8: #{tpu_custom_call.1} parent=1 // pred_region
      _
    $region9: #{tpu_custom_call.1} parent=1 // pred_fallthru
      _
    // Predicated region
    $region10: #{tpu_custom_call.1} parent=1 // pred_check
      _
    $region11: #{tpu_custom_call.1} parent=1 // pred_check_branch
      %23 = sbr.rel (0) target = $region13
    $region12: #{tpu_custom_call.1} parent=1 // pred_region
      _
    $region13: #{tpu_custom_call.1} parent=1 // pred_fallthru
      _
    // Predicated region
    $region14: #{tpu_custom_call.1} parent=1 // pred_check
      _
    $region15: #{tpu_custom_call.1} parent=1 // pred_check_branch
      %25 = sbr.rel (0) target = $region17
    $region16: #{tpu_custom_call.1} parent=1 // pred_region
      _
    $region17: #{tpu_custom_call.1} parent=1 // pred_fallthru
      _
    // Predicated region
    $region18: #{tpu_custom_call.1} parent=1 // pred_check
      _
    $region19: #{tpu_custom_call.1} parent=1 // pred_check_branch
      %27 = sbr.rel (0) target = $region21
    $region20: #{tpu_custom_call.1} parent=1 // pred_region
      _
    $region21: #{tpu_custom_call.1} parent=1 // pred_fallthru
      _
    // Predicated region
    $region22: #{tpu_custom_call.1} parent=1 // pred_check
      _
    $region23: #{tpu_custom_call.1} parent=1 // pred_check_branch
      %29 = sbr.rel (0) target = $region25
    $region24: #{tpu_custom_call.1} parent=1 // pred_region
      _
    $region25: #{tpu_custom_call.1} parent=1 // pred_fallthru
      _
    // Predicated region
    $region26: #{tpu_custom_call.1} parent=1 // pred_check
      _
    $region27: #{tpu_custom_call.1} parent=1 // pred_check_branch
      %31 = sbr.rel (0) target = $region29
    $region28: #{tpu_custom_call.1} parent=1 // pred_region
      _
    $region29: #{tpu_custom_call.1} parent=1 // pred_fallthru
      _
    // Predicated region
    $region30: #{tpu_custom_call.1} parent=1 // pred_check
      _
    $region31: #{tpu_custom_call.1} parent=1 // pred_check_branch
      %33 = sbr.rel (0) target = $region33
    $region32: #{tpu_custom_call.1} parent=1 // pred_region
      _
    $region33: #{tpu_custom_call.1} parent=1 // pred_fallthru
      _
    // Predicated region
    $region34: #{tpu_custom_call.1} parent=1 // pred_check
      _
    $region35: #{tpu_custom_call.1} parent=1 // pred_check_branch
      %35 = sbr.rel (0) target = $region37
    $region36: #{tpu_custom_call.1} parent=1 // pred_region
      _
    $region37: #{tpu_custom_call.1} parent=1 // pred_fallthru
      _
    %v36 = vld [vmem:[%s3] sm:$0xff]
    %v37 = vld [vmem:[%s3 + $0x8] sm:$0xff]
    %v38 = vld [vmem:[%s3 + $0x10] sm:$0xff]
    %v39 = vld [vmem:[%s3 + $0x18] sm:$0xff]
    %v40 = vld [vmem:[%s3 + $0x20] sm:$0xff]
    %v41 = vld [vmem:[%s3 + $0x28] sm:$0xff]
    %v42 = vld [vmem:[%s3 + $0x30] sm:$0xff]
    %v43 = vld [vmem:[%s3 + $0x38] sm:$0xff]
    %v44 = vld [vmem:[%s3 + $0x40] sm:$0xff]
    %v45 = vld [vmem:[%s3 + $0x48] sm:$0xff]
    %v46 = vld [vmem:[%s3 + $0x50] sm:$0xff]
    %v47 = vld [vmem:[%s3 + $0x58] sm:$0xff]
    %v48 = vld [vmem:[%s3 + $0x60] sm:$0xff]
    %v49 = vld [vmem:[%s3 + $0x68] sm:$0xff]
    %v50 = vld [vmem:[%s3 + $0x70] sm:$0xff]
    %v51 = vld [vmem:[%s3 + $0x78] sm:$0xff]
    %v52 = vld [vmem:[%s5] sm:$0xff]
    %v53 = vld [vmem:[%s5 + $0x8] sm:$0xff]
    %v54 = vld [vmem:[%s5 + $0x10] sm:$0xff]
    %v55 = vld [vmem:[%s5 + $0x18] sm:$0xff]
    %v56 = vld [vmem:[%s5 + $0x20] sm:$0xff]
    %v57 = vld [vmem:[%s5 + $0x28] sm:$0xff]
    %v58 = vld [vmem:[%s5 + $0x30] sm:$0xff]
    %v59 = vld [vmem:[%s5 + $0x38] sm:$0xff]
    %v60 = vld [vmem:[%s4] sm:$0xff]
    %v61 = vld [vmem:[%s4 + $0x8] sm:$0xff]
    %v62 = vld [vmem:[%s4 + $0x10] sm:$0xff]
    %v63 = vld [vmem:[%s4 + $0x18] sm:$0xff]
    %v64 = vld [vmem:[%s4 + $0x20] sm:$0xff]
    %v65 = vld [vmem:[%s4 + $0x28] sm:$0xff]
    %v66 = vld [vmem:[%s4 + $0x30] sm:$0xff]
    %v67 = vld [vmem:[%s4 + $0x38] sm:$0xff]
    %v68 = vld [vmem:[%s4 + $0x40] sm:$0xff]
    %v69 = vld [vmem:[%s4 + $0x48] sm:$0xff]
    %v70 = vld [vmem:[%s4 + $0x50] sm:$0xff]
    %v71 = vld [vmem:[%s4 + $0x58] sm:$0xff]
    %v72 = vld [vmem:[%s4 + $0x60] sm:$0xff]
    %v73 = vld [vmem:[%s4 + $0x68] sm:$0xff]
    %v74 = vld [vmem:[%s4 + $0x70] sm:$0xff]
    %v75 = vld [vmem:[%s4 + $0x78] sm:$0xff]
    %77 = vset.pattern.permute.xlu0 0
    %78 = vperm.xlu0 %77, %v60
    %v79 = vpop.permute.xlu0 %78
    %82 = vset.pattern.permute.xlu0 0
    %83 = vperm.xlu0 %82, %v61
    %v84 = vpop.permute.xlu0 %83
    %87 = vset.pattern.permute.xlu0 0
    %88 = vperm.xlu0 %87, %v62
    %v89 = vpop.permute.xlu0 %88
    %92 = vset.pattern.permute.xlu0 0
    %93 = vperm.xlu0 %92, %v63
    %v94 = vpop.permute.xlu0 %93
    %97 = vset.pattern.permute.xlu0 0
    %98 = vperm.xlu0 %97, %v64
    %v99 = vpop.permute.xlu0 %98
    %102 = vset.pattern.permute.xlu0 0
    %103 = vperm.xlu0 %102, %v65
    %v104 = vpop.permute.xlu0 %103
    %107 = vset.pattern.permute.xlu0 0
    %108 = vperm.xlu0 %107, %v66
    %v109 = vpop.permute.xlu0 %108
    %112 = vset.pattern.permute.xlu0 0
    %113 = vperm.xlu0 %112, %v67
    %v114 = vpop.permute.xlu0 %113
    %117 = vset.pattern.permute.xlu0 0
    %118 = vperm.xlu0 %117, %v68
    %v119 = vpop.permute.xlu0 %118
    %122 = vset.pattern.permute.xlu0 0
    %123 = vperm.xlu0 %122, %v69
    %v124 = vpop.permute.xlu0 %123
    %127 = vset.pattern.permute.xlu0 0
    %128 = vperm.xlu0 %127, %v70
    %v129 = vpop.permute.xlu0 %128
    %132 = vset.pattern.permute.xlu0 0
    %133 = vperm.xlu0 %132, %v71
    %v134 = vpop.permute.xlu0 %133
    %137 = vset.pattern.permute.xlu0 0
    %138 = vperm.xlu0 %137, %v72
    %v139 = vpop.permute.xlu0 %138
    %142 = vset.pattern.permute.xlu0 0
    %143 = vperm.xlu0 %142, %v73
    %v144 = vpop.permute.xlu0 %143
    %147 = vset.pattern.permute.xlu0 0
    %148 = vperm.xlu0 %147, %v74
    %v149 = vpop.permute.xlu0 %148
    %152 = vset.pattern.permute.xlu0 0
    %153 = vperm.xlu0 %152, %v75
    %v154 = vpop.permute.xlu0 %153
    %vm156 = vcmask 261120
    %v158 = vsel %vm156, %v36, 0
    %v161 = vsel %vm156, %v37, 0
    %v164 = vsel %vm156, %v38, 0
    %v167 = vsel %vm156, %v39, 0
    %v170 = vsel %vm156, %v40, 0
    %v173 = vsel %vm156, %v41, 0
    %v176 = vsel %vm156, %v42, 0
    %v179 = vsel %vm156, %v43, 0
    %v182 = vsel %vm156, %v44, 0
    %v185 = vsel %vm156, %v45, 0
    %v188 = vsel %vm156, %v46, 0
    %v191 = vsel %vm156, %v47, 0
    %v194 = vsel %vm156, %v48, 0
    %v197 = vsel %vm156, %v49, 0
    %v200 = vsel %vm156, %v50, 0
    %v203 = vsel %vm156, %v51, 0
    %205 = vmatprep.subr.mxu0 %v53
    %206 = vmatpush1.msra.mxu0 %v52
    %207 = vmatprep.subr.mxu0 %v55
    %208 = vmatpush1.msra.mxu0 %v54
    %209 = vmatprep.subr.mxu0 %v57
    %210 = vmatpush1.msra.mxu0 %v56
    %211 = vmatprep.subr.mxu0 %v59
    %212 = vmatpush1.msra.mxu0 %v58
    %213 = vmatprep.subr.mxu0 0.0
    %214 = vmatpush1.msra.mxu0 0.0
    %215 = vmatprep.subr.mxu0 0.0
    %216 = vmatpush1.msra.mxu0 0.0
    %217 = vmatprep.subr.mxu0 0.0
    %218 = vmatpush1.msra.mxu0 0.0
    %219 = vmatprep.subr.mxu0 0.0
    %220 = vmatpush1.msra.mxu0 0.0
    %221 = vmatprep.subr.mxu0 0.0
    %222 = vmatpush1.msra.mxu0 0.0
    %223 = vmatprep.subr.mxu0 0.0
    %224 = vmatpush1.msra.mxu0 0.0
    %225 = vmatprep.subr.mxu0 0.0
    %226 = vmatpush1.msra.mxu0 0.0
    %227 = vmatprep.subr.mxu0 0.0
    %228 = vmatpush1.msra.mxu0 0.0
    %229 = vmatprep.subr.mxu0 0.0
    %230 = vmatpush1.msra.mxu0 0.0
    %231 = vmatprep.subr.mxu0 0.0
    %232 = vmatpush1.msra.mxu0 0.0
    %233 = vmatprep.subr.mxu0 0.0
    %234 = vmatpush1.msra.mxu0 0.0
    %235 = vmatprep.subr.mxu0 0.0
    %236 = vmatpush1.msra.mxu0 0.0
    %237 = vmatprep.subr.mxu0 0.0
    %238 = vmatpush1.msra.mxu0 0.0
    %239 = vmatprep.subr.mxu0 0.0
    %240 = vmatpush1.msra.mxu0 0.0
    %241 = vmatprep.subr.mxu0 0.0
    %242 = vmatpush1.msra.mxu0 0.0
    %243 = vmatprep.subr.mxu0 0.0
    %244 = vmatpush1.msra.mxu0 0.0
    %245 = vmatprep.subr.mxu0 0.0
    %246 = vmatpush1.msra.mxu0 0.0
    %247 = vmatprep.subr.mxu0 0.0
    %248 = vmatpush1.msra.mxu0 0.0
    %249 = vmatprep.subr.mxu0 0.0
    %250 = vmatpush1.msra.mxu0 0.0
    %251 = vmatprep.subr.mxu0 0.0
    %252 = vmatpush1.msra.mxu0 0.0
    %253 = vmatprep.subr.mxu0 0.0
    %254 = vmatpush1.msra.mxu0 0.0
    %255 = vmatprep.subr.mxu0 0.0
    %256 = vmatpush1.msra.mxu0 0.0
    %257 = vmatprep.subr.mxu0 0.0
    %258 = vmatpush1.msra.mxu0 0.0
    %259 = vmatprep.subr.mxu0 0.0
    %260 = vmatpush1.msra.mxu0 0.0
    %261 = vmatprep.subr.mxu0 0.0
    %262 = vmatpush1.msra.mxu0 0.0
    %263 = vmatprep.subr.mxu0 0.0
    %264 = vmatpush1.msra.mxu0 0.0
    %265 = vmatprep.subr.mxu0 0.0
    %266 = vmatpush1.msra.mxu0 0.0
    %267 = vmatprep.subr.mxu0 0.0
    %268 = vmatpush1.msra.mxu0 0.0
    %269 = vmatprep.mubr.f32.mxu0 0.0
    %270 = vmatmul.mubr.f32.gmra.mrb[0].mxu0 %v158
    %v271 = vpop.f32.mrb[0].mxu0
    %v272 = vadd.f32 %v79, %v271
    %v273 = vpop.f32.mrb[0].mxu0
    %v274 = vadd.f32 %v79, %v273
    %275 = vmatprep.mubr.f32.mxu0 0.0
    %276 = vmatmul.mubr.f32.gmra.mrb[0].mxu0 %v161
    %v277 = vpop.f32.mrb[0].mxu0
    %v278 = vadd.f32 %v84, %v277
    %v279 = vpop.f32.mrb[0].mxu0
    %v280 = vadd.f32 %v84, %v279
    %281 = vmatprep.mubr.f32.mxu0 0.0
    %282 = vmatmul.mubr.f32.gmra.mrb[0].mxu0 %v164
    %v283 = vpop.f32.mrb[0].mxu0
    %v284 = vadd.f32 %v89, %v283
    %v285 = vpop.f32.mrb[0].mxu0
    %v286 = vadd.f32 %v89, %v285
    %287 = vmatprep.mubr.f32.mxu0 0.0
    %288 = vmatmul.mubr.f32.gmra.mrb[0].mxu0 %v167
    %v289 = vpop.f32.mrb[0].mxu0
    %v290 = vadd.f32 %v94, %v289
    %v291 = vpop.f32.mrb[0].mxu0
    %v292 = vadd.f32 %v94, %v291
    %293 = vmatprep.mubr.f32.mxu0 0.0
    %294 = vmatmul.mubr.f32.gmra.mrb[0].mxu0 %v170
    %v295 = vpop.f32.mrb[0].mxu0
    %v296 = vadd.f32 %v99, %v295
    %v297 = vpop.f32.mrb[0].mxu0
    %v298 = vadd.f32 %v99, %v297
    %299 = vmatprep.mubr.f32.mxu0 0.0
    %300 = vmatmul.mubr.f32.gmra.mrb[0].mxu0 %v173
    %v301 = vpop.f32.mrb[0].mxu0
    %v302 = vadd.f32 %v104, %v301
    %v303 = vpop.f32.mrb[0].mxu0
    %v304 = vadd.f32 %v104, %v303
    %305 = vmatprep.mubr.f32.mxu0 0.0
    %306 = vmatmul.mubr.f32.gmra.mrb[0].mxu0 %v176
    %v307 = vpop.f32.mrb[0].mxu0
    %v308 = vadd.f32 %v109, %v307
    %v309 = vpop.f32.mrb[0].mxu0
    %v310 = vadd.f32 %v109, %v309
    %311 = vmatprep.mubr.f32.mxu0 0.0
    %312 = vmatmul.mubr.f32.gmra.mrb[0].mxu0 %v179
    %v313 = vpop.f32.mrb[0].mxu0
    %v314 = vadd.f32 %v114, %v313
    %v315 = vpop.f32.mrb[0].mxu0
    %v316 = vadd.f32 %v114, %v315
    %317 = vmatprep.mubr.f32.mxu0 0.0
    %318 = vmatmul.mubr.f32.gmra.mrb[0].mxu0 %v182
    %v319 = vpop.f32.mrb[0].mxu0
    %v320 = vadd.f32 %v119, %v319
    %v321 = vpop.f32.mrb[0].mxu0
    %v322 = vadd.f32 %v119, %v321
    %323 = vmatprep.mubr.f32.mxu0 0.0
    %324 = vmatmul.mubr.f32.gmra.mrb[0].mxu0 %v185
    %v325 = vpop.f32.mrb[0].mxu0
    %v326 = vadd.f32 %v124, %v325
    %v327 = vpop.f32.mrb[0].mxu0
    %v328 = vadd.f32 %v124, %v327
    %329 = vmatprep.mubr.f32.mxu0 0.0
    %330 = vmatmul.mubr.f32.gmra.mrb[0].mxu0 %v188
    %v331 = vpop.f32.mrb[0].mxu0
    %v332 = vadd.f32 %v129, %v331
    %v333 = vpop.f32.mrb[0].mxu0
    %v334 = vadd.f32 %v129, %v333
    %335 = vmatprep.mubr.f32.mxu0 0.0
    %336 = vmatmul.mubr.f32.gmra.mrb[0].mxu0 %v191
    %v337 = vpop.f32.mrb[0].mxu0
    %v338 = vadd.f32 %v134, %v337
    %v339 = vpop.f32.mrb[0].mxu0
    %v340 = vadd.f32 %v134, %v339
    %341 = vmatprep.mubr.f32.mxu0 0.0
    %342 = vmatmul.mubr.f32.gmra.mrb[0].mxu0 %v194
    %v343 = vpop.f32.mrb[0].mxu0
    %v344 = vadd.f32 %v139, %v343
    %v345 = vpop.f32.mrb[0].mxu0
    %v346 = vadd.f32 %v139, %v345
    %347 = vmatprep.mubr.f32.mxu0 0.0
    %348 = vmatmul.mubr.f32.gmra.mrb[0].mxu0 %v197
    %v349 = vpop.f32.mrb[0].mxu0
    %v350 = vadd.f32 %v144, %v349
    %v351 = vpop.f32.mrb[0].mxu0
    %v352 = vadd.f32 %v144, %v351
    %353 = vmatprep.mubr.f32.mxu0 0.0
    %354 = vmatmul.mubr.f32.gmra.mrb[0].mxu0 %v200
    %v355 = vpop.f32.mrb[0].mxu0
    %v356 = vadd.f32 %v149, %v355
    %v357 = vpop.f32.mrb[0].mxu0
    %v358 = vadd.f32 %v149, %v357
    %359 = vmatprep.mubr.f32.mxu0 0.0
    %360 = vmatmul.mubr.f32.gmra.mrb[0].mxu0 %v203
    %v361 = vpop.f32.mrb[0].mxu0
    %v362 = vadd.f32 %v154, %v361
    %v363 = vpop.f32.mrb[0].mxu0
    %v364 = vadd.f32 %v154, %v363
    %365 = vdwg.mxu0
    %v366 = vld [vmem:[%s6] sm:$0xff]
    %v367 = vld [vmem:[%s6 + $0x8] sm:$0xff]
    %v368 = vld [vmem:[%s6 + $0x10] sm:$0xff]
    %v369 = vld [vmem:[%s6 + $0x18] sm:$0xff]
    %v370 = vld [vmem:[%s6 + $0x20] sm:$0xff]
    %v371 = vld [vmem:[%s6 + $0x28] sm:$0xff]
    %v372 = vld [vmem:[%s6 + $0x30] sm:$0xff]
    %v373 = vld [vmem:[%s6 + $0x38] sm:$0xff]
    %v374 = vld [vmem:[%s1] sm:$0xff]
    %v375 = vld [vmem:[%s1 + $0x8] sm:$0xff]
    %v376 = vld [vmem:[%s1 + $0x10] sm:$0xff]
    %v377 = vld [vmem:[%s1 + $0x18] sm:$0xff]
    %v378 = vld [vmem:[%s1 + $0x20] sm:$0xff]
    %v379 = vld [vmem:[%s1 + $0x28] sm:$0xff]
    %v380 = vld [vmem:[%s1 + $0x30] sm:$0xff]
    %v381 = vld [vmem:[%s1 + $0x38] sm:$0xff]
    %v382 = vld [vmem:[%s1 + $0x40] sm:$0xff]
    %v383 = vld [vmem:[%s1 + $0x48] sm:$0xff]
    %v384 = vld [vmem:[%s1 + $0x50] sm:$0xff]
    %v385 = vld [vmem:[%s1 + $0x58] sm:$0xff]
    %v386 = vld [vmem:[%s1 + $0x60] sm:$0xff]
    %v387 = vld [vmem:[%s1 + $0x68] sm:$0xff]
    %v388 = vld [vmem:[%s1 + $0x70] sm:$0xff]
    %v389 = vld [vmem:[%s1 + $0x78] sm:$0xff]
    %v390 = vld [vmem:[%s2] sm:$0xff]
    %v391 = vld [vmem:[%s2 + $0x8] sm:$0xff]
    %v392 = vld [vmem:[%s2 + $0x10] sm:$0xff]
    %v393 = vld [vmem:[%s2 + $0x18] sm:$0xff]
    %v394 = vld [vmem:[%s2 + $0x20] sm:$0xff]
    %v395 = vld [vmem:[%s2 + $0x28] sm:$0xff]
    %v396 = vld [vmem:[%s2 + $0x30] sm:$0xff]
    %v397 = vld [vmem:[%s2 + $0x38] sm:$0xff]
    %v398 = vld [vmem:[%s2 + $0x40] sm:$0xff]
    %v399 = vld [vmem:[%s2 + $0x48] sm:$0xff]
    %v400 = vld [vmem:[%s2 + $0x50] sm:$0xff]
    %v401 = vld [vmem:[%s2 + $0x58] sm:$0xff]
    %v402 = vld [vmem:[%s2 + $0x60] sm:$0xff]
    %v403 = vld [vmem:[%s2 + $0x68] sm:$0xff]
    %v404 = vld [vmem:[%s2 + $0x70] sm:$0xff]
    %v405 = vld [vmem:[%s2 + $0x78] sm:$0xff]
    %v406 = vld [vmem:[%s8] sm:$0xff]
    %v407 = vld [vmem:[%s8 + $0x8] sm:$0xff]
    %v408 = vld [vmem:[%s8 + $0x10] sm:$0xff]
    %v409 = vld [vmem:[%s0] sm:$0xff]
    %v410 = vld [vmem:[%s0 + $0x8] sm:$0xff]
    %v411 = vlaneseq
    %v412 = vshrl.u32 %v411, 7
    %v413 = vadd.s32 %v412, 8
    %v414 = vld [vmem:[%s7] sm:$0xff]
    %v415 = vld [vmem:[%s7 + $0x8] sm:$0xff]
    %v416 = vld [vmem:[%s7 + $0x10] sm:$0xff]
    %v417 = vld [vmem:[%s7 + $0x18] sm:$0xff]
    %v418 = vlaneseq
    %v419 = vshrl.u32 %v418, 7
    %v420 = vsub.s32 0, %v419
    %v421 = vrot.slane %v409, %v420
    %v422 = vlaneseq
    %v423 = vshrl.u32 %v422, 7
    %v424 = vsub.s32 0, %v423
    %v425 = vrot.slane %v410, %v424
    %vm426 = vcmp.eq.s32.totalorder %v412, %v421
    %vm427 = vcmp.eq.s32.totalorder %v412, %v425
    %vm428 = vcmp.eq.s32.totalorder %v413, %v421
    %vm429 = vcmp.eq.s32.totalorder %v413, %v425
    %v430 = vsel %vm426, 1, 0
    %v431 = vsel %vm427, 1, 0
    %v432 = vsel %vm428, 1, 0
    %v433 = vsel %vm429, 1, 0
    %v434 = vcvt.s32.f32 %v430
    %v435 = vcvt.s32.f32 %v431
    %v436 = vcvt.s32.f32 %v432
    %v437 = vcvt.s32.f32 %v433
    %vm438 = vcmask 130048
    %v440 = vsel %vm438, %v390, 0
    %v443 = vsel %vm438, %v391, 0
    %v446 = vsel %vm438, %v392, 0
    %v449 = vsel %vm438, %v393, 0
    %v452 = vsel %vm438, %v394, 0
    %v455 = vsel %vm438, %v395, 0
    %v458 = vsel %vm438, %v396, 0
    %v461 = vsel %vm438, %v397, 0
    %v464 = vsel %vm438, %v398, 0
    %v467 = vsel %vm438, %v399, 0
    %v470 = vsel %vm438, %v400, 0
    %v473 = vsel %vm438, %v401, 0
    %v476 = vsel %vm438, %v402, 0
    %v479 = vsel %vm438, %v403, 0
    %v482 = vsel %vm438, %v404, 0
    %v485 = vsel %vm438, %v405, 0
    %487 = vmatprep.subr.mxu0 %v435
    %488 = vmatpush1.msra.mxu0 %v434
    %489 = vmatprep.subr.mxu0 %v437
    %490 = vmatpush1.msra.mxu0 %v436
    %491 = vmatprep.subr.mxu0 0.0
    %492 = vmatpush1.msra.mxu0 0.0
    %493 = vmatprep.subr.mxu0 0.0
    %494 = vmatpush1.msra.mxu0 0.0
    %495 = vmatprep.subr.mxu0 0.0
    %496 = vmatpush1.msra.mxu0 0.0
    %497 = vmatprep.subr.mxu0 0.0
    %498 = vmatpush1.msra.mxu0 0.0
    %499 = vmatprep.subr.mxu0 0.0
    %500 = vmatpush1.msra.mxu0 0.0
    %501 = vmatprep.subr.mxu0 0.0
    %502 = vmatpush1.msra.mxu0 0.0
    %503 = vmatprep.subr.mxu0 0.0
    %504 = vmatpush1.msra.mxu0 0.0
    %505 = vmatprep.subr.mxu0 0.0
    %506 = vmatpush1.msra.mxu0 0.0
    %507 = vmatprep.subr.mxu0 0.0
    %508 = vmatpush1.msra.mxu0 0.0
    %509 = vmatprep.subr.mxu0 0.0
    %510 = vmatpush1.msra.mxu0 0.0
    %511 = vmatprep.subr.mxu0 0.0
    %512 = vmatpush1.msra.mxu0 0.0
    %513 = vmatprep.subr.mxu0 0.0
    %514 = vmatpush1.msra.mxu0 0.0
    %515 = vmatprep.subr.mxu0 0.0
    %516 = vmatpush1.msra.mxu0 0.0
    %517 = vmatprep.subr.mxu0 0.0
    %518 = vmatpush1.msra.mxu0 0.0
    %519 = vmatprep.subr.mxu0 0.0
    %520 = vmatpush1.msra.mxu0 0.0
    %521 = vmatprep.subr.mxu0 0.0
    %522 = vmatpush1.msra.mxu0 0.0
    %523 = vmatprep.subr.mxu0 0.0
    %524 = vmatpush1.msra.mxu0 0.0
    %525 = vmatprep.subr.mxu0 0.0
    %526 = vmatpush1.msra.mxu0 0.0
    %527 = vmatprep.subr.mxu0 0.0
    %528 = vmatpush1.msra.mxu0 0.0
    %529 = vmatprep.subr.mxu0 0.0
    %530 = vmatpush1.msra.mxu0 0.0
    %531 = vmatprep.subr.mxu0 0.0
    %532 = vmatpush1.msra.mxu0 0.0
    %533 = vmatprep.subr.mxu0 0.0
    %534 = vmatpush1.msra.mxu0 0.0
    %535 = vmatprep.subr.mxu0 0.0
    %536 = vmatpush1.msra.mxu0 0.0
    %537 = vmatprep.subr.mxu0 0.0
    %538 = vmatpush1.msra.mxu0 0.0
    %539 = vmatprep.subr.mxu0 0.0
    %540 = vmatpush1.msra.mxu0 0.0
    %541 = vmatprep.subr.mxu0 0.0
    %542 = vmatpush1.msra.mxu0 0.0
    %543 = vmatprep.subr.mxu0 0.0
    %544 = vmatpush1.msra.mxu0 0.0
    %545 = vmatprep.subr.mxu0 0.0
    %546 = vmatpush1.msra.mxu0 0.0
    %547 = vmatprep.subr.mxu0 0.0
    %548 = vmatpush1.msra.mxu0 0.0
    %549 = vmatprep.subr.mxu0 0.0
    %550 = vmatpush1.msra.mxu0 0.0
    %551 = vmatprep.mubr.f32.mxu0 0.0
    %552 = vmatmul.mubr.f32.gmra.mrb[0].mxu0 %v440
    %v553 = vpop.f32.mrb[0].mxu0
    %v554 = vadd.f32 %v272, %v553
    %v555 = vpop.f32.mrb[0].mxu0
    %v556 = vadd.f32 %v274, %v555
    %557 = vmatprep.mubr.f32.mxu0 0.0
    %558 = vmatmul.mubr.f32.gmra.mrb[0].mxu0 %v443
    %v559 = vpop.f32.mrb[0].mxu0
    %v560 = vadd.f32 %v278, %v559
    %v561 = vpop.f32.mrb[0].mxu0
    %v562 = vadd.f32 %v280, %v561
    %563 = vmatprep.mubr.f32.mxu0 0.0
    %564 = vmatmul.mubr.f32.gmra.mrb[0].mxu0 %v446
    %v565 = vpop.f32.mrb[0].mxu0
    %v566 = vadd.f32 %v284, %v565
    %v567 = vpop.f32.mrb[0].mxu0
    %v568 = vadd.f32 %v286, %v567
    %569 = vmatprep.mubr.f32.mxu0 0.0
    %570 = vmatmul.mubr.f32.gmra.mrb[0].mxu0 %v449
    %v571 = vpop.f32.mrb[0].mxu0
    %v572 = vadd.f32 %v290, %v571
    %v573 = vpop.f32.mrb[0].mxu0
    %v574 = vadd.f32 %v292, %v573
    %575 = vmatprep.mubr.f32.mxu0 0.0
    %576 = vmatmul.mubr.f32.gmra.mrb[0].mxu0 %v452
    %v577 = vpop.f32.mrb[0].mxu0
    %v578 = vadd.f32 %v296, %v577
    %v579 = vpop.f32.mrb[0].mxu0
    %v580 = vadd.f32 %v298, %v579
    %581 = vmatprep.mubr.f32.mxu0 0.0
    %582 = vmatmul.mubr.f32.gmra.mrb[0].mxu0 %v455
    %v583 = vpop.f32.mrb[0].mxu0
    %v584 = vadd.f32 %v302, %v583
    %v585 = vpop.f32.mrb[0].mxu0
    %v586 = vadd.f32 %v304, %v585
    %587 = vmatprep.mubr.f32.mxu0 0.0
    %588 = vmatmul.mubr.f32.gmra.mrb[0].mxu0 %v458
    %v589 = vpop.f32.mrb[0].mxu0
    %v590 = vadd.f32 %v308, %v589
    %v591 = vpop.f32.mrb[0].mxu0
    %v592 = vadd.f32 %v310, %v591
    %593 = vmatprep.mubr.f32.mxu0 0.0
    %594 = vmatmul.mubr.f32.gmra.mrb[0].mxu0 %v461
    %v595 = vpop.f32.mrb[0].mxu0
    %v596 = vadd.f32 %v314, %v595
    %v597 = vpop.f32.mrb[0].mxu0
    %v598 = vadd.f32 %v316, %v597
    %599 = vmatprep.mubr.f32.mxu0 0.0
    %600 = vmatmul.mubr.f32.gmra.mrb[0].mxu0 %v464
    %v601 = vpop.f32.mrb[0].mxu0
    %v602 = vadd.f32 %v320, %v601
    %v603 = vpop.f32.mrb[0].mxu0
    %v604 = vadd.f32 %v322, %v603
    %605 = vmatprep.mubr.f32.mxu0 0.0
    %606 = vmatmul.mubr.f32.gmra.mrb[0].mxu0 %v467
    %v607 = vpop.f32.mrb[0].mxu0
    %v608 = vadd.f32 %v326, %v607
    %v609 = vpop.f32.mrb[0].mxu0
    %v610 = vadd.f32 %v328, %v609
    %611 = vmatprep.mubr.f32.mxu0 0.0
    %612 = vmatmul.mubr.f32.gmra.mrb[0].mxu0 %v470
    %v613 = vpop.f32.mrb[0].mxu0
    %v614 = vadd.f32 %v332, %v613
    %v615 = vpop.f32.mrb[0].mxu0
    %v616 = vadd.f32 %v334, %v615
    %617 = vmatprep.mubr.f32.mxu0 0.0
    %618 = vmatmul.mubr.f32.gmra.mrb[0].mxu0 %v473
    %v619 = vpop.f32.mrb[0].mxu0
    %v620 = vadd.f32 %v338, %v619
    %v621 = vpop.f32.mrb[0].mxu0
    %v622 = vadd.f32 %v340, %v621
    %623 = vmatprep.mubr.f32.mxu0 0.0
    %624 = vmatmul.mubr.f32.gmra.mrb[0].mxu0 %v476
    %v625 = vpop.f32.mrb[0].mxu0
    %v626 = vadd.f32 %v344, %v625
    %v627 = vpop.f32.mrb[0].mxu0
    %v628 = vadd.f32 %v346, %v627
    %629 = vmatprep.mubr.f32.mxu0 0.0
    %630 = vmatmul.mubr.f32.gmra.mrb[0].mxu0 %v479
    %v631 = vpop.f32.mrb[0].mxu0
    %v632 = vadd.f32 %v350, %v631
    %v633 = vpop.f32.mrb[0].mxu0
    %v634 = vadd.f32 %v352, %v633
    %635 = vmatprep.mubr.f32.mxu0 0.0
    %636 = vmatmul.mubr.f32.gmra.mrb[0].mxu0 %v482
    %v637 = vpop.f32.mrb[0].mxu0
    %v638 = vadd.f32 %v356, %v637
    %v639 = vpop.f32.mrb[0].mxu0
    %v640 = vadd.f32 %v358, %v639
    %641 = vmatprep.mubr.f32.mxu0 0.0
    %642 = vmatmul.mubr.f32.gmra.mrb[0].mxu0 %v485
    %v643 = vpop.f32.mrb[0].mxu0
    %v644 = vadd.f32 %v362, %v643
    %v645 = vpop.f32.mrb[0].mxu0
    %v646 = vadd.f32 %v364, %v645
    %647 = vdwg.mxu0
    %v649 = vsel %vm438, %v374, 0
    %v652 = vsel %vm438, %v375, 0
    %v655 = vsel %vm438, %v376, 0
    %v658 = vsel %vm438, %v377, 0
    %v661 = vsel %vm438, %v378, 0
    %v664 = vsel %vm438, %v379, 0
    %v667 = vsel %vm438, %v380, 0
    %v670 = vsel %vm438, %v381, 0
    %v673 = vsel %vm438, %v382, 0
    %v676 = vsel %vm438, %v383, 0
    %v679 = vsel %vm438, %v384, 0
    %v682 = vsel %vm438, %v385, 0
    %v685 = vsel %vm438, %v386, 0
    %v688 = vsel %vm438, %v387, 0
    %v691 = vsel %vm438, %v388, 0
    %v694 = vsel %vm438, %v389, 0
    %696 = vmatprep.subr.mxu0 %v415
    %697 = vmatpush1.msra.mxu0 %v414
    %698 = vmatprep.subr.mxu0 %v417
    %699 = vmatpush1.msra.mxu0 %v416
    %700 = vmatprep.subr.mxu0 0.0
    %701 = vmatpush1.msra.mxu0 0.0
    %702 = vmatprep.subr.mxu0 0.0
    %703 = vmatpush1.msra.mxu0 0.0
    %704 = vmatprep.subr.mxu0 0.0
    %705 = vmatpush1.msra.mxu0 0.0
    %706 = vmatprep.subr.mxu0 0.0
    %707 = vmatpush1.msra.mxu0 0.0
    %708 = vmatprep.subr.mxu0 0.0
    %709 = vmatpush1.msra.mxu0 0.0
    %710 = vmatprep.subr.mxu0 0.0
    %711 = vmatpush1.msra.mxu0 0.0
    %712 = vmatprep.subr.mxu0 0.0
    %713 = vmatpush1.msra.mxu0 0.0
    %714 = vmatprep.subr.mxu0 0.0
    %715 = vmatpush1.msra.mxu0 0.0
    %716 = vmatprep.subr.mxu0 0.0
    %717 = vmatpush1.msra.mxu0 0.0
    %718 = vmatprep.subr.mxu0 0.0
    %719 = vmatpush1.msra.mxu0 0.0
    %720 = vmatprep.subr.mxu0 0.0
    %721 = vmatpush1.msra.mxu0 0.0
    %722 = vmatprep.subr.mxu0 0.0
    %723 = vmatpush1.msra.mxu0 0.0
    %724 = vmatprep.subr.mxu0 0.0
    %725 = vmatpush1.msra.mxu0 0.0
    %726 = vmatprep.subr.mxu0 0.0
    %727 = vmatpush1.msra.mxu0 0.0
    %728 = vmatprep.subr.mxu0 0.0
    %729 = vmatpush1.msra.mxu0 0.0
    %730 = vmatprep.subr.mxu0 0.0
    %731 = vmatpush1.msra.mxu0 0.0
    %732 = vmatprep.subr.mxu0 0.0
    %733 = vmatpush1.msra.mxu0 0.0
    %734 = vmatprep.subr.mxu0 0.0
    %735 = vmatpush1.msra.mxu0 0.0
    %736 = vmatprep.subr.mxu0 0.0
    %737 = vmatpush1.msra.mxu0 0.0
    %738 = vmatprep.subr.mxu0 0.0
    %739 = vmatpush1.msra.mxu0 0.0
    %740 = vmatprep.subr.mxu0 0.0
    %741 = vmatpush1.msra.mxu0 0.0
    %742 = vmatprep.subr.mxu0 0.0
    %743 = vmatpush1.msra.mxu0 0.0
    %744 = vmatprep.subr.mxu0 0.0
    %745 = vmatpush1.msra.mxu0 0.0
    %746 = vmatprep.subr.mxu0 0.0
    %747 = vmatpush1.msra.mxu0 0.0
    %748 = vmatprep.subr.mxu0 0.0
    %749 = vmatpush1.msra.mxu0 0.0
    %750 = vmatprep.subr.mxu0 0.0
    %751 = vmatpush1.msra.mxu0 0.0
    %752 = vmatprep.subr.mxu0 0.0
    %753 = vmatpush1.msra.mxu0 0.0
    %754 = vmatprep.subr.mxu0 0.0
    %755 = vmatpush1.msra.mxu0 0.0
    %756 = vmatprep.subr.mxu0 0.0
    %757 = vmatpush1.msra.mxu0 0.0
    %758 = vmatprep.subr.mxu0 0.0
    %759 = vmatpush1.msra.mxu0 0.0
    %760 = vmatprep.mubr.f32.mxu0 0.0
    %761 = vmatmul.mubr.f32.gmra.mrb[0].mxu0 %v649
    %v762 = vpop.f32.mrb[0].mxu0
    %v763 = vadd.f32 %v554, %v762
    %v764 = vpop.f32.mrb[0].mxu0
    %v765 = vadd.f32 %v556, %v764
    %766 = vmatprep.mubr.f32.mxu0 0.0
    %767 = vmatmul.mubr.f32.gmra.mrb[0].mxu0 %v652
    %v768 = vpop.f32.mrb[0].mxu0
    %v769 = vadd.f32 %v560, %v768
    %v770 = vpop.f32.mrb[0].mxu0
    %v771 = vadd.f32 %v562, %v770
    %772 = vmatprep.mubr.f32.mxu0 0.0
    %773 = vmatmul.mubr.f32.gmra.mrb[0].mxu0 %v655
    %v774 = vpop.f32.mrb[0].mxu0
    %v775 = vadd.f32 %v566, %v774
    %v776 = vpop.f32.mrb[0].mxu0
    %v777 = vadd.f32 %v568, %v776
    %778 = vmatprep.mubr.f32.mxu0 0.0
    %779 = vmatmul.mubr.f32.gmra.mrb[0].mxu0 %v658
    %v780 = vpop.f32.mrb[0].mxu0
    %v781 = vadd.f32 %v572, %v780
    %v782 = vpop.f32.mrb[0].mxu0
    %v783 = vadd.f32 %v574, %v782
    %784 = vmatprep.mubr.f32.mxu0 0.0
    %785 = vmatmul.mubr.f32.gmra.mrb[0].mxu0 %v661
    %v786 = vpop.f32.mrb[0].mxu0
    %v787 = vadd.f32 %v578, %v786
    %v788 = vpop.f32.mrb[0].mxu0
    %v789 = vadd.f32 %v580, %v788
    %790 = vmatprep.mubr.f32.mxu0 0.0
    %791 = vmatmul.mubr.f32.gmra.mrb[0].mxu0 %v664
    %v792 = vpop.f32.mrb[0].mxu0
    %v793 = vadd.f32 %v584, %v792
    %v794 = vpop.f32.mrb[0].mxu0
    %v795 = vadd.f32 %v586, %v794
    %796 = vmatprep.mubr.f32.mxu0 0.0
    %797 = vmatmul.mubr.f32.gmra.mrb[0].mxu0 %v667
    %v798 = vpop.f32.mrb[0].mxu0
    %v799 = vadd.f32 %v590, %v798
    %v800 = vpop.f32.mrb[0].mxu0
    %v801 = vadd.f32 %v592, %v800
    %802 = vmatprep.mubr.f32.mxu0 0.0
    %803 = vmatmul.mubr.f32.gmra.mrb[0].mxu0 %v670
    %v804 = vpop.f32.mrb[0].mxu0
    %v805 = vadd.f32 %v596, %v804
    %v806 = vpop.f32.mrb[0].mxu0
    %v807 = vadd.f32 %v598, %v806
    %808 = vmatprep.mubr.f32.mxu0 0.0
    %809 = vmatmul.mubr.f32.gmra.mrb[0].mxu0 %v673
    %v810 = vpop.f32.mrb[0].mxu0
    %v811 = vadd.f32 %v602, %v810
    %v812 = vpop.f32.mrb[0].mxu0
    %v813 = vadd.f32 %v604, %v812
    %814 = vmatprep.mubr.f32.mxu0 0.0
    %815 = vmatmul.mubr.f32.gmra.mrb[0].mxu0 %v676
    %v816 = vpop.f32.mrb[0].mxu0
    %v817 = vadd.f32 %v608, %v816
    %v818 = vpop.f32.mrb[0].mxu0
    %v819 = vadd.f32 %v610, %v818
    %820 = vmatprep.mubr.f32.mxu0 0.0
    %821 = vmatmul.mubr.f32.gmra.mrb[0].mxu0 %v679
    %v822 = vpop.f32.mrb[0].mxu0
    %v823 = vadd.f32 %v614, %v822
    %v824 = vpop.f32.mrb[0].mxu0
    %v825 = vadd.f32 %v616, %v824
    %826 = vmatprep.mubr.f32.mxu0 0.0
    %827 = vmatmul.mubr.f32.gmra.mrb[0].mxu0 %v682
    %v828 = vpop.f32.mrb[0].mxu0
    %v829 = vadd.f32 %v620, %v828
    %v830 = vpop.f32.mrb[0].mxu0
    %v831 = vadd.f32 %v622, %v830
    %832 = vmatprep.mubr.f32.mxu0 0.0
    %833 = vmatmul.mubr.f32.gmra.mrb[0].mxu0 %v685
    %v834 = vpop.f32.mrb[0].mxu0
    %v835 = vadd.f32 %v626, %v834
    %v836 = vpop.f32.mrb[0].mxu0
    %v837 = vadd.f32 %v628, %v836
    %838 = vmatprep.mubr.f32.mxu0 0.0
    %839 = vmatmul.mubr.f32.gmra.mrb[0].mxu0 %v688
    %v840 = vpop.f32.mrb[0].mxu0
    %v841 = vadd.f32 %v632, %v840
    %v842 = vpop.f32.mrb[0].mxu0
    %v843 = vadd.f32 %v634, %v842
    %844 = vmatprep.mubr.f32.mxu0 0.0
    %845 = vmatmul.mubr.f32.gmra.mrb[0].mxu0 %v691
    %v846 = vpop.f32.mrb[0].mxu0
    %v847 = vadd.f32 %v638, %v846
    %v848 = vpop.f32.mrb[0].mxu0
    %v849 = vadd.f32 %v640, %v848
    %850 = vmatprep.mubr.f32.mxu0 0.0
    %851 = vmatmul.mubr.f32.gmra.mrb[0].mxu0 %v694
    %v852 = vpop.f32.mrb[0].mxu0
    %v853 = vadd.f32 %v644, %v852
    %v854 = vpop.f32.mrb[0].mxu0
    %v855 = vadd.f32 %v646, %v854
    %856 = vdwg.mxu0
    %v857 = vxor.u32 %v763, 2147483648
    %v858 = vxor.u32 %v765, 2147483648
    %v859 = vxor.u32 %v769, 2147483648
    %v860 = vxor.u32 %v771, 2147483648
    %v861 = vxor.u32 %v775, 2147483648
    %v862 = vxor.u32 %v777, 2147483648
    %v863 = vxor.u32 %v781, 2147483648
    %v864 = vxor.u32 %v783, 2147483648
    %v865 = vxor.u32 %v787, 2147483648
    %v866 = vxor.u32 %v789, 2147483648
    %v867 = vxor.u32 %v793, 2147483648
    %v868 = vxor.u32 %v795, 2147483648
    %v869 = vxor.u32 %v799, 2147483648
    %v870 = vxor.u32 %v801, 2147483648
    %v871 = vxor.u32 %v805, 2147483648
    %v872 = vxor.u32 %v807, 2147483648
    %v873 = vxor.u32 %v835, 2147483648
    %v874 = vxor.u32 %v837, 2147483648
    %v875 = vxor.u32 %v841, 2147483648
    %v876 = vxor.u32 %v843, 2147483648
    %v877 = vxor.u32 %v847, 2147483648
    %v878 = vxor.u32 %v849, 2147483648
    %v879 = vxor.u32 %v853, 2147483648
    %v880 = vxor.u32 %v855, 2147483648
    %v881 = vmul.f32 %v857, 1.442695
    %v882 = vpow.pop %v881
    %v883 = vmul.f32 %v858, 1.442695
    %v884 = vpow.pop %v883
    %v885 = vmul.f32 %v859, 1.442695
    %v886 = vpow.pop %v885
    %v887 = vmul.f32 %v860, 1.442695
    %v888 = vpow.pop %v887
    %v889 = vmul.f32 %v861, 1.442695
    %v890 = vpow.pop %v889
    %v891 = vmul.f32 %v862, 1.442695
    %v892 = vpow.pop %v891
    %v893 = vmul.f32 %v863, 1.442695
    %v894 = vpow.pop %v893
    %v895 = vmul.f32 %v864, 1.442695
    %v896 = vpow.pop %v895
    %v897 = vmul.f32 %v865, 1.442695
    %v898 = vpow.pop %v897
    %v899 = vmul.f32 %v866, 1.442695
    %v900 = vpow.pop %v899
    %v901 = vmul.f32 %v867, 1.442695
    %v902 = vpow.pop %v901
    %v903 = vmul.f32 %v868, 1.442695
    %v904 = vpow.pop %v903
    %v905 = vmul.f32 %v869, 1.442695
    %v906 = vpow.pop %v905
    %v907 = vmul.f32 %v870, 1.442695
    %v908 = vpow.pop %v907
    %v909 = vmul.f32 %v871, 1.442695
    %v910 = vpow.pop %v909
    %v911 = vmul.f32 %v872, 1.442695
    %v912 = vpow.pop %v911
    %v913 = vmul.f32 %v873, 1.442695
    %v914 = vpow.pop %v913
    %v915 = vmul.f32 %v874, 1.442695
    %v916 = vpow.pop %v915
    %v917 = vmul.f32 %v875, 1.442695
    %v918 = vpow.pop %v917
    %v919 = vmul.f32 %v876, 1.442695
    %v920 = vpow.pop %v919
    %v921 = vmul.f32 %v877, 1.442695
    %v922 = vpow.pop %v921
    %v923 = vmul.f32 %v878, 1.442695
    %v924 = vpow.pop %v923
    %v925 = vmul.f32 %v879, 1.442695
    %v926 = vpow.pop %v925
    %v927 = vmul.f32 %v880, 1.442695
    %v928 = vpow.pop %v927
    %v929 = vadd.f32 %v882, 1.0
    %v930 = vadd.f32 %v884, 1.0
    %v931 = vadd.f32 %v886, 1.0
    %v932 = vadd.f32 %v888, 1.0
    %v933 = vadd.f32 %v890, 1.0
    %v934 = vadd.f32 %v892, 1.0
    %v935 = vadd.f32 %v894, 1.0
    %v936 = vadd.f32 %v896, 1.0
    %v937 = vadd.f32 %v898, 1.0
    %v938 = vadd.f32 %v900, 1.0
    %v939 = vadd.f32 %v902, 1.0
    %v940 = vadd.f32 %v904, 1.0
    %v941 = vadd.f32 %v906, 1.0
    %v942 = vadd.f32 %v908, 1.0
    %v943 = vadd.f32 %v910, 1.0
    %v944 = vadd.f32 %v912, 1.0
    %v945 = vadd.f32 %v914, 1.0
    %v946 = vadd.f32 %v916, 1.0
    %v947 = vadd.f32 %v918, 1.0
    %v948 = vadd.f32 %v920, 1.0
    %v949 = vadd.f32 %v922, 1.0
    %v950 = vadd.f32 %v924, 1.0
    %v951 = vadd.f32 %v926, 1.0
    %v952 = vadd.f32 %v928, 1.0
    %v953 = vrcp.pop %v929
    %v954 = vmul.f32 1.0, %v953
    %v955 = vrcp.pop %v930
    %v956 = vmul.f32 1.0, %v955
    %v957 = vrcp.pop %v931
    %v958 = vmul.f32 1.0, %v957
    %v959 = vrcp.pop %v932
    %v960 = vmul.f32 1.0, %v959
    %v961 = vrcp.pop %v933
    %v962 = vmul.f32 1.0, %v961
    %v963 = vrcp.pop %v934
    %v964 = vmul.f32 1.0, %v963
    %v965 = vrcp.pop %v935
    %v966 = vmul.f32 1.0, %v965
    %v967 = vrcp.pop %v936
    %v968 = vmul.f32 1.0, %v967
    %v969 = vrcp.pop %v937
    %v970 = vmul.f32 1.0, %v969
    %v971 = vrcp.pop %v938
    %v972 = vmul.f32 1.0, %v971
    %v973 = vrcp.pop %v939
    %v974 = vmul.f32 1.0, %v973
    %v975 = vrcp.pop %v940
    %v976 = vmul.f32 1.0, %v975
    %v977 = vrcp.pop %v941
    %v978 = vmul.f32 1.0, %v977
    %v979 = vrcp.pop %v942
    %v980 = vmul.f32 1.0, %v979
    %v981 = vrcp.pop %v943
    %v982 = vmul.f32 1.0, %v981
    %v983 = vrcp.pop %v944
    %v984 = vmul.f32 1.0, %v983
    %v985 = vrcp.pop %v945
    %v986 = vmul.f32 1.0, %v985
    %v987 = vrcp.pop %v946
    %v988 = vmul.f32 1.0, %v987
    %v989 = vrcp.pop %v947
    %v990 = vmul.f32 1.0, %v989
    %v991 = vrcp.pop %v948
    %v992 = vmul.f32 1.0, %v991
    %v993 = vrcp.pop %v949
    %v994 = vmul.f32 1.0, %v993
    %v995 = vrcp.pop %v950
    %v996 = vmul.f32 1.0, %v995
    %v997 = vrcp.pop %v951
    %v998 = vmul.f32 1.0, %v997
    %v999 = vrcp.pop %v952
    %v1000 = vmul.f32 1.0, %v999
    %v1001 = vtanh.pop %v811
    %v1002 = vtanh.pop %v813
    %v1003 = vtanh.pop %v817
    %v1004 = vtanh.pop %v819
    %v1005 = vtanh.pop %v823
    %v1006 = vtanh.pop %v825
    %v1007 = vtanh.pop %v829
    %v1008 = vtanh.pop %v831
    %v1009 = vmul.f32 %v970, %v366
    %v1010 = vmul.f32 %v972, %v367
    %v1011 = vmul.f32 %v974, %v368
    %v1012 = vmul.f32 %v976, %v369
    %v1013 = vmul.f32 %v978, %v370
    %v1014 = vmul.f32 %v980, %v371
    %v1015 = vmul.f32 %v982, %v372
    %v1016 = vmul.f32 %v984, %v373
    %v1017 = vmul.f32 %v954, %v1001
    %v1018 = vmul.f32 %v956, %v1002
    %v1019 = vmul.f32 %v958, %v1003
    %v1020 = vmul.f32 %v960, %v1004
    %v1021 = vmul.f32 %v962, %v1005
    %v1022 = vmul.f32 %v964, %v1006
    %v1023 = vmul.f32 %v966, %v1007
    %v1024 = vmul.f32 %v968, %v1008
    %v1025 = vadd.f32 %v1009, %v1017
    %v1026 = vadd.f32 %v1010, %v1018
    %v1027 = vadd.f32 %v1011, %v1019
    %v1028 = vadd.f32 %v1012, %v1020
    %v1029 = vadd.f32 %v1013, %v1021
    %v1030 = vadd.f32 %v1014, %v1022
    %v1031 = vadd.f32 %v1015, %v1023
    %v1032 = vadd.f32 %v1016, %v1024
    %v1033 = vtanh.pop %v1025
    %v1034 = vtanh.pop %v1026
    %v1035 = vtanh.pop %v1027
    %v1036 = vtanh.pop %v1028
    %v1037 = vtanh.pop %v1029
    %v1038 = vtanh.pop %v1030
    %v1039 = vtanh.pop %v1031
    %v1040 = vtanh.pop %v1032
    %v1041 = vmul.f32 %v986, %v1033
    %v1042 = vmul.f32 %v988, %v1034
    %v1043 = vmul.f32 %v990, %v1035
    %v1044 = vmul.f32 %v992, %v1036
    %v1045 = vmul.f32 %v994, %v1037
    %v1046 = vmul.f32 %v996, %v1038
    %v1047 = vmul.f32 %v998, %v1039
    %v1048 = vmul.f32 %v1000, %v1040
    %v1050 = vsel %vm156, %v406, 0
    %v1053 = vsel %vm156, %v407, 0
    %v1056 = vsel %vm156, %v408, 0
    %1058 = vmatprep.subr.mxu0 %v1042
    %1059 = vmatpush1.msra.mxu0 %v1041
    %1060 = vmatprep.subr.mxu0 %v1044
    %1061 = vmatpush1.msra.mxu0 %v1043
    %1062 = vmatprep.subr.mxu0 %v1046
    %1063 = vmatpush1.msra.mxu0 %v1045
    %1064 = vmatprep.subr.mxu0 %v1048
    %1065 = vmatpush1.msra.mxu0 %v1047
    %1066 = vmatprep.subr.mxu0 0.0
    %1067 = vmatpush1.msra.mxu0 0.0
    %1068 = vmatprep.subr.mxu0 0.0
    %1069 = vmatpush1.msra.mxu0 0.0
    %1070 = vmatprep.subr.mxu0 0.0
    %1071 = vmatpush1.msra.mxu0 0.0
    %1072 = vmatprep.subr.mxu0 0.0
    %1073 = vmatpush1.msra.mxu0 0.0
    %1074 = vmatprep.subr.mxu0 0.0
    %1075 = vmatpush1.msra.mxu0 0.0
    %1076 = vmatprep.subr.mxu0 0.0
    %1077 = vmatpush1.msra.mxu0 0.0
    %1078 = vmatprep.subr.mxu0 0.0
    %1079 = vmatpush1.msra.mxu0 0.0
    %1080 = vmatprep.subr.mxu0 0.0
    %1081 = vmatpush1.msra.mxu0 0.0
    %1082 = vmatprep.subr.mxu0 0.0
    %1083 = vmatpush1.msra.mxu0 0.0
    %1084 = vmatprep.subr.mxu0 0.0
    %1085 = vmatpush1.msra.mxu0 0.0
    %1086 = vmatprep.subr.mxu0 0.0
    %1087 = vmatpush1.msra.mxu0 0.0
    %1088 = vmatprep.subr.mxu0 0.0
    %1089 = vmatpush1.msra.mxu0 0.0
    %1090 = vmatprep.subr.mxu0 0.0
    %1091 = vmatpush1.msra.mxu0 0.0
    %1092 = vmatprep.subr.mxu0 0.0
    %1093 = vmatpush1.msra.mxu0 0.0
    %1094 = vmatprep.subr.mxu0 0.0
    %1095 = vmatpush1.msra.mxu0 0.0
    %1096 = vmatprep.subr.mxu0 0.0
    %1097 = vmatpush1.msra.mxu0 0.0
    %1098 = vmatprep.subr.mxu0 0.0
    %1099 = vmatpush1.msra.mxu0 0.0
    %1100 = vmatprep.subr.mxu0 0.0
    %1101 = vmatpush1.msra.mxu0 0.0
    %1102 = vmatprep.subr.mxu0 0.0
    %1103 = vmatpush1.msra.mxu0 0.0
    %1104 = vmatprep.subr.mxu0 0.0
    %1105 = vmatpush1.msra.mxu0 0.0
    %1106 = vmatprep.subr.mxu0 0.0
    %1107 = vmatpush1.msra.mxu0 0.0
    %1108 = vmatprep.subr.mxu0 0.0
    %1109 = vmatpush1.msra.mxu0 0.0
    %1110 = vmatprep.subr.mxu0 0.0
    %1111 = vmatpush1.msra.mxu0 0.0
    %1112 = vmatprep.subr.mxu0 0.0
    %1113 = vmatpush1.msra.mxu0 0.0
    %1114 = vmatprep.subr.mxu0 0.0
    %1115 = vmatpush1.msra.mxu0 0.0
    %1116 = vmatprep.subr.mxu0 0.0
    %1117 = vmatpush1.msra.mxu0 0.0
    %1118 = vmatprep.subr.mxu0 0.0
    %1119 = vmatpush1.msra.mxu0 0.0
    %1120 = vmatprep.subr.mxu0 0.0
    %1121 = vmatpush1.msra.mxu0 0.0
    %1122 = vmatprep.mubr.f32.mxu0 0.0
    %1123 = vmatmul.mubr.f32.gmra.mrb[0].mxu0 %v1050
    %v1124 = vpop.f32.mrb[0].mxu0
    %v1125 = vadd.f32 0.0, %v1124
    %v1126 = vpop.f32.mrb[0].mxu0
    %v1127 = vadd.f32 0.0, %v1126
    %1128 = vmatprep.mubr.f32.mxu0 0.0
    %1129 = vmatmul.mubr.f32.gmra.mrb[0].mxu0 %v1053
    %v1130 = vpop.f32.mrb[0].mxu0
    %v1131 = vadd.f32 0.0, %v1130
    %v1132 = vpop.f32.mrb[0].mxu0
    %v1133 = vadd.f32 0.0, %v1132
    %1134 = vmatprep.mubr.f32.mxu0 0.0
    %1135 = vmatmul.mubr.f32.gmra.mrb[0].mxu0 %v1056
    %v1136 = vpop.f32.mrb[0].mxu0
    %v1137 = vadd.f32 0.0, %v1136
    %v1138 = vpop.f32.mrb[0].mxu0
    %v1139 = vadd.f32 0.0, %v1138
    %1140 = vdwg.mxu0
    %v1141 = vrot.slane %v1125, 4
    %v1142 = vmax.f32 %v1125, %v1141
    %v1143 = vrot.slane %v1142, 2
    %v1144 = vmax.f32 %v1142, %v1143
    %v1145 = vrot.slane %v1144, 1
    %v1146 = vmax.f32 %v1144, %v1145
    %v1147 = vrot.slane %v1127, 4
    %v1148 = vmax.f32 %v1127, %v1147
    %v1149 = vrot.slane %v1148, 2
    %v1150 = vmax.f32 %v1148, %v1149
    %v1151 = vrot.slane %v1150, 1
    %v1152 = vmax.f32 %v1150, %v1151
    %v1153 = vsub.f32 %v1125, %v1146
    %v1154 = vsub.f32 %v1127, %v1152
    %v1155 = vmul.f32 %v1153, 1.442695
    %v1156 = vpow.pop %v1155
    %v1157 = vmul.f32 %v1154, 1.442695
    %v1158 = vpow.pop %v1157
    %v1159 = vrot.slane %v1156, 4
    %v1160 = vadd.f32 %v1156, %v1159
    %v1161 = vrot.slane %v1160, 2
    %v1162 = vadd.f32 %v1160, %v1161
    %v1163 = vrot.slane %v1162, 1
    %v1164 = vadd.f32 %v1162, %v1163
    %v1165 = vrot.slane %v1158, 4
    %v1166 = vadd.f32 %v1158, %v1165
    %v1167 = vrot.slane %v1166, 2
    %v1168 = vadd.f32 %v1166, %v1167
    %v1169 = vrot.slane %v1168, 1
    %v1170 = vadd.f32 %v1168, %v1169
    %v1171 = vlog2.pop %v1164
    %v1172 = vmul.f32 %v1171, 0.6931472
    %v1173 = vlog2.pop %v1170
    %v1174 = vmul.f32 %v1173, 0.6931472
    %v1175 = vsub.f32 %v1153, %v1172
    %v1176 = vsub.f32 %v1154, %v1174
    %1177 = vst [vmem:[#allocation2] sm:$0xff] %v1175
    %1178 = vst [vmem:[#allocation2 + $0x8] sm:$0xff] %v1176
    %v1179 = vmax.f32 %v1131, %v1137
    %v1180 = vrot.slane %v1179, 4
    %v1181 = vmax.f32 %v1179, %v1180
    %v1182 = vrot.slane %v1181, 2
    %v1183 = vmax.f32 %v1181, %v1182
    %v1184 = vrot.slane %v1183, 1
    %v1185 = vmax.f32 %v1183, %v1184
    %v1186 = vmax.f32 %v1133, %v1139
    %v1187 = vrot.slane %v1186, 4
    %v1188 = vmax.f32 %v1186, %v1187
    %v1189 = vrot.slane %v1188, 2
    %v1190 = vmax.f32 %v1188, %v1189
    %v1191 = vrot.slane %v1190, 1
    %v1192 = vmax.f32 %v1190, %v1191
    %v1193 = vsub.f32 %v1131, %v1185
    %v1194 = vsub.f32 %v1133, %v1192
    %v1195 = vsub.f32 %v1137, %v1185
    %v1196 = vsub.f32 %v1139, %v1192
    %v1197 = vmul.f32 %v1193, 1.442695
    %v1198 = vpow.pop %v1197
    %v1199 = vmul.f32 %v1194, 1.442695
    %v1200 = vpow.pop %v1199
    %v1201 = vmul.f32 %v1195, 1.442695
    %v1202 = vpow.pop %v1201
    %v1203 = vmul.f32 %v1196, 1.442695
    %v1204 = vpow.pop %v1203
    %v1205 = vadd.f32 %v1198, %v1202
    %v1206 = vrot.slane %v1205, 4
    %v1207 = vadd.f32 %v1205, %v1206
    %v1208 = vrot.slane %v1207, 2
    %v1209 = vadd.f32 %v1207, %v1208
    %v1210 = vrot.slane %v1209, 1
    %v1211 = vadd.f32 %v1209, %v1210
    %v1212 = vadd.f32 %v1200, %v1204
    %v1213 = vrot.slane %v1212, 4
    %v1214 = vadd.f32 %v1212, %v1213
    %v1215 = vrot.slane %v1214, 2
    %v1216 = vadd.f32 %v1214, %v1215
    %v1217 = vrot.slane %v1216, 1
    %v1218 = vadd.f32 %v1216, %v1217
    %v1219 = vrcp.pop %v1211
    %v1220 = vmul.f32 1.0, %v1219
    %v1221 = vrcp.pop %v1218
    %v1222 = vmul.f32 1.0, %v1221
    %v1223 = vmul.f32 %v1198, %v1220
    %v1224 = vmul.f32 %v1200, %v1222
    %v1225 = vmul.f32 %v1202, %v1220
    %v1226 = vmul.f32 %v1204, %v1222
    %1227 = vst [vmem:[#allocation4] sm:$0xff] %v1223
    %1228 = vst [vmem:[#allocation4 + $0x8] sm:$0xff] %v1224
    %1229 = vst [vmem:[#allocation4 + $0x10] sm:$0xff] %v1225
    %1230 = vst [vmem:[#allocation4 + $0x18] sm:$0xff] %v1226
    %v1231 = vlaneseq
    %v1232 = vshrl.u32 %v1231, 7
    %v1233 = vsub.s32 1, %v1232
    %v1234 = vrot.slane %v409, %v1233
    %v1235 = vlaneseq
    %v1236 = vshrl.u32 %v1235, 7
    %v1237 = vsub.s32 1, %v1236
    %v1238 = vrot.slane %v410, %v1237
    %vm1239 = vcmp.eq.s32.totalorder %v412, %v1234
    %vm1240 = vcmp.eq.s32.totalorder %v412, %v1238
    %vm1241 = vcmp.eq.s32.totalorder %v413, %v1234
    %vm1242 = vcmp.eq.s32.totalorder %v413, %v1238
    %v1243 = vsel %vm1239, 1, 0
    %v1244 = vsel %vm1240, 1, 0
    %v1245 = vsel %vm1241, 1, 0
    %v1246 = vsel %vm1242, 1, 0
    %v1247 = vcvt.s32.f32 %v1243
    %v1248 = vcvt.s32.f32 %v1244
    %v1249 = vcvt.s32.f32 %v1245
    %v1250 = vcvt.s32.f32 %v1246
    %1251 = vmatprep.subr.mxu0 %v1248
    %1252 = vmatpush1.msra.mxu0 %v1247
    %1253 = vmatprep.subr.mxu0 %v1250
    %1254 = vmatpush1.msra.mxu0 %v1249
    %1255 = vmatprep.subr.mxu0 0.0
    %1256 = vmatpush1.msra.mxu0 0.0
    %1257 = vmatprep.subr.mxu0 0.0
    %1258 = vmatpush1.msra.mxu0 0.0
    %1259 = vmatprep.subr.mxu0 0.0
    %1260 = vmatpush1.msra.mxu0 0.0
    %1261 = vmatprep.subr.mxu0 0.0
    %1262 = vmatpush1.msra.mxu0 0.0
    %1263 = vmatprep.subr.mxu0 0.0
    %1264 = vmatpush1.msra.mxu0 0.0
    %1265 = vmatprep.subr.mxu0 0.0
    %1266 = vmatpush1.msra.mxu0 0.0
    %1267 = vmatprep.subr.mxu0 0.0
    %1268 = vmatpush1.msra.mxu0 0.0
    %1269 = vmatprep.subr.mxu0 0.0
    %1270 = vmatpush1.msra.mxu0 0.0
    %1271 = vmatprep.subr.mxu0 0.0
    %1272 = vmatpush1.msra.mxu0 0.0
    %1273 = vmatprep.subr.mxu0 0.0
    %1274 = vmatpush1.msra.mxu0 0.0
    %1275 = vmatprep.subr.mxu0 0.0
    %1276 = vmatpush1.msra.mxu0 0.0
    %1277 = vmatprep.subr.mxu0 0.0
    %1278 = vmatpush1.msra.mxu0 0.0
    %1279 = vmatprep.subr.mxu0 0.0
    %1280 = vmatpush1.msra.mxu0 0.0
    %1281 = vmatprep.subr.mxu0 0.0
    %1282 = vmatpush1.msra.mxu0 0.0
    %1283 = vmatprep.subr.mxu0 0.0
    %1284 = vmatpush1.msra.mxu0 0.0
    %1285 = vmatprep.subr.mxu0 0.0
    %1286 = vmatpush1.msra.mxu0 0.0
    %1287 = vmatprep.subr.mxu0 0.0
    %1288 = vmatpush1.msra.mxu0 0.0
    %1289 = vmatprep.subr.mxu0 0.0
    %1290 = vmatpush1.msra.mxu0 0.0
    %1291 = vmatprep.subr.mxu0 0.0
    %1292 = vmatpush1.msra.mxu0 0.0
    %1293 = vmatprep.subr.mxu0 0.0
    %1294 = vmatpush1.msra.mxu0 0.0
    %1295 = vmatprep.subr.mxu0 0.0
    %1296 = vmatpush1.msra.mxu0 0.0
    %1297 = vmatprep.subr.mxu0 0.0
    %1298 = vmatpush1.msra.mxu0 0.0
    %1299 = vmatprep.subr.mxu0 0.0
    %1300 = vmatpush1.msra.mxu0 0.0
    %1301 = vmatprep.subr.mxu0 0.0
    %1302 = vmatpush1.msra.mxu0 0.0
    %1303 = vmatprep.subr.mxu0 0.0
    %1304 = vmatpush1.msra.mxu0 0.0
    %1305 = vmatprep.subr.mxu0 0.0
    %1306 = vmatpush1.msra.mxu0 0.0
    %1307 = vmatprep.subr.mxu0 0.0
    %1308 = vmatpush1.msra.mxu0 0.0
    %1309 = vmatprep.subr.mxu0 0.0
    %1310 = vmatpush1.msra.mxu0 0.0
    %1311 = vmatprep.subr.mxu0 0.0
    %1312 = vmatpush1.msra.mxu0 0.0
    %1313 = vmatprep.subr.mxu0 0.0
    %1314 = vmatpush1.msra.mxu0 0.0
    %1315 = vmatprep.mubr.f32.mxu0 0.0
    %1316 = vmatmul.mubr.f32.gmra.mrb[0].mxu0 %v440
    %v1317 = vpop.f32.mrb[0].mxu0
    %v1318 = vadd.f32 %v272, %v1317
    %v1319 = vpop.f32.mrb[0].mxu0
    %v1320 = vadd.f32 %v274, %v1319
    %1321 = vmatprep.mubr.f32.mxu0 0.0
    %1322 = vmatmul.mubr.f32.gmra.mrb[0].mxu0 %v443
    %v1323 = vpop.f32.mrb[0].mxu0
    %v1324 = vadd.f32 %v278, %v1323
    %v1325 = vpop.f32.mrb[0].mxu0
    %v1326 = vadd.f32 %v280, %v1325
    %1327 = vmatprep.mubr.f32.mxu0 0.0
    %1328 = vmatmul.mubr.f32.gmra.mrb[0].mxu0 %v446
    %v1329 = vpop.f32.mrb[0].mxu0
    %v1330 = vadd.f32 %v284, %v1329
    %v1331 = vpop.f32.mrb[0].mxu0
    %v1332 = vadd.f32 %v286, %v1331
    %1333 = vmatprep.mubr.f32.mxu0 0.0
    %1334 = vmatmul.mubr.f32.gmra.mrb[0].mxu0 %v449
    %v1335 = vpop.f32.mrb[0].mxu0
    %v1336 = vadd.f32 %v290, %v1335
    %v1337 = vpop.f32.mrb[0].mxu0
    %v1338 = vadd.f32 %v292, %v1337
    %1339 = vmatprep.mubr.f32.mxu0 0.0
    %1340 = vmatmul.mubr.f32.gmra.mrb[0].mxu0 %v452
    %v1341 = vpop.f32.mrb[0].mxu0
    %v1342 = vadd.f32 %v296, %v1341
    %v1343 = vpop.f32.mrb[0].mxu0
    %v1344 = vadd.f32 %v298, %v1343
    %1345 = vmatprep.mubr.f32.mxu0 0.0
    %1346 = vmatmul.mubr.f32.gmra.mrb[0].mxu0 %v455
    %v1347 = vpop.f32.mrb[0].mxu0
    %v1348 = vadd.f32 %v302, %v1347
    %v1349 = vpop.f32.mrb[0].mxu0
    %v1350 = vadd.f32 %v304, %v1349
    %1351 = vmatprep.mubr.f32.mxu0 0.0
    %1352 = vmatmul.mubr.f32.gmra.mrb[0].mxu0 %v458
    %v1353 = vpop.f32.mrb[0].mxu0
    %v1354 = vadd.f32 %v308, %v1353
    %v1355 = vpop.f32.mrb[0].mxu0
    %v1356 = vadd.f32 %v310, %v1355
    %1357 = vmatprep.mubr.f32.mxu0 0.0
    %1358 = vmatmul.mubr.f32.gmra.mrb[0].mxu0 %v461
    %v1359 = vpop.f32.mrb[0].mxu0
    %v1360 = vadd.f32 %v314, %v1359
    %v1361 = vpop.f32.mrb[0].mxu0
    %v1362 = vadd.f32 %v316, %v1361
    %1363 = vmatprep.mubr.f32.mxu0 0.0
    %1364 = vmatmul.mubr.f32.gmra.mrb[0].mxu0 %v464
    %v1365 = vpop.f32.mrb[0].mxu0
    %v1366 = vadd.f32 %v320, %v1365
    %v1367 = vpop.f32.mrb[0].mxu0
    %v1368 = vadd.f32 %v322, %v1367
    %1369 = vmatprep.mubr.f32.mxu0 0.0
    %1370 = vmatmul.mubr.f32.gmra.mrb[0].mxu0 %v467
    %v1371 = vpop.f32.mrb[0].mxu0
    %v1372 = vadd.f32 %v326, %v1371
    %v1373 = vpop.f32.mrb[0].mxu0
    %v1374 = vadd.f32 %v328, %v1373
    %1375 = vmatprep.mubr.f32.mxu0 0.0
    %1376 = vmatmul.mubr.f32.gmra.mrb[0].mxu0 %v470
    %v1377 = vpop.f32.mrb[0].mxu0
    %v1378 = vadd.f32 %v332, %v1377
    %v1379 = vpop.f32.mrb[0].mxu0
    %v1380 = vadd.f32 %v334, %v1379
    %1381 = vmatprep.mubr.f32.mxu0 0.0
    %1382 = vmatmul.mubr.f32.gmra.mrb[0].mxu0 %v473
    %v1383 = vpop.f32.mrb[0].mxu0
    %v1384 = vadd.f32 %v338, %v1383
    %v1385 = vpop.f32.mrb[0].mxu0
    %v1386 = vadd.f32 %v340, %v1385
    %1387 = vmatprep.mubr.f32.mxu0 0.0
    %1388 = vmatmul.mubr.f32.gmra.mrb[0].mxu0 %v476
    %v1389 = vpop.f32.mrb[0].mxu0
    %v1390 = vadd.f32 %v344, %v1389
    %v1391 = vpop.f32.mrb[0].mxu0
    %v1392 = vadd.f32 %v346, %v1391
    %1393 = vmatprep.mubr.f32.mxu0 0.0
    %1394 = vmatmul.mubr.f32.gmra.mrb[0].mxu0 %v479
    %v1395 = vpop.f32.mrb[0].mxu0
    %v1396 = vadd.f32 %v350, %v1395
    %v1397 = vpop.f32.mrb[0].mxu0
    %v1398 = vadd.f32 %v352, %v1397
    %1399 = vmatprep.mubr.f32.mxu0 0.0
    %1400 = vmatmul.mubr.f32.gmra.mrb[0].mxu0 %v482
    %v1401 = vpop.f32.mrb[0].mxu0
    %v1402 = vadd.f32 %v356, %v1401
    %v1403 = vpop.f32.mrb[0].mxu0
    %v1404 = vadd.f32 %v358, %v1403
    %1405 = vmatprep.mubr.f32.mxu0 0.0
    %1406 = vmatmul.mubr.f32.gmra.mrb[0].mxu0 %v485
    %v1407 = vpop.f32.mrb[0].mxu0
    %v1408 = vadd.f32 %v362, %v1407
    %v1409 = vpop.f32.mrb[0].mxu0
    %v1410 = vadd.f32 %v364, %v1409
    %1411 = vdwg.mxu0
    %1412 = vmatprep.subr.mxu0 %v1200
    %1413 = vmatpush1.msra.mxu0 %v1198
    %1414 = vmatprep.subr.mxu0 %v1204
    %1415 = vmatpush1.msra.mxu0 %v1202
    %1416 = vmatprep.subr.mxu0 0.0
    %1417 = vmatpush1.msra.mxu0 0.0
    %1418 = vmatprep.subr.mxu0 0.0
    %1419 = vmatpush1.msra.mxu0 0.0
    %1420 = vmatprep.subr.mxu0 0.0
    %1421 = vmatpush1.msra.mxu0 0.0
    %1422 = vmatprep.subr.mxu0 0.0
    %1423 = vmatpush1.msra.mxu0 0.0
    %1424 = vmatprep.subr.mxu0 0.0
    %1425 = vmatpush1.msra.mxu0 0.0
    %1426 = vmatprep.subr.mxu0 0.0
    %1427 = vmatpush1.msra.mxu0 0.0
    %1428 = vmatprep.subr.mxu0 0.0
    %1429 = vmatpush1.msra.mxu0 0.0
    %1430 = vmatprep.subr.mxu0 0.0
    %1431 = vmatpush1.msra.mxu0 0.0
    %1432 = vmatprep.subr.mxu0 0.0
    %1433 = vmatpush1.msra.mxu0 0.0
    %1434 = vmatprep.subr.mxu0 0.0
    %1435 = vmatpush1.msra.mxu0 0.0
    %1436 = vmatprep.subr.mxu0 0.0
    %1437 = vmatpush1.msra.mxu0 0.0
    %1438 = vmatprep.subr.mxu0 0.0
    %1439 = vmatpush1.msra.mxu0 0.0
    %1440 = vmatprep.subr.mxu0 0.0
    %1441 = vmatpush1.msra.mxu0 0.0
    %1442 = vmatprep.subr.mxu0 0.0
    %1443 = vmatpush1.msra.mxu0 0.0
    %1444 = vmatprep.subr.mxu0 0.0
    %1445 = vmatpush1.msra.mxu0 0.0
    %1446 = vmatprep.subr.mxu0 0.0
    %1447 = vmatpush1.msra.mxu0 0.0
    %1448 = vmatprep.subr.mxu0 0.0
    %1449 = vmatpush1.msra.mxu0 0.0
    %1450 = vmatprep.subr.mxu0 0.0
    %1451 = vmatpush1.msra.mxu0 0.0
    %1452 = vmatprep.subr.mxu0 0.0
    %1453 = vmatpush1.msra.mxu0 0.0
    %1454 = vmatprep.subr.mxu0 0.0
    %1455 = vmatpush1.msra.mxu0 0.0
    %1456 = vmatprep.subr.mxu0 0.0
    %1457 = vmatpush1.msra.mxu0 0.0
    %1458 = vmatprep.subr.mxu0 0.0
    %1459 = vmatpush1.msra.mxu0 0.0
    %1460 = vmatprep.subr.mxu0 0.0
    %1461 = vmatpush1.msra.mxu0 0.0
    %1462 = vmatprep.subr.mxu0 0.0
    %1463 = vmatpush1.msra.mxu0 0.0
    %1464 = vmatprep.subr.mxu0 0.0
    %1465 = vmatpush1.msra.mxu0 0.0
    %1466 = vmatprep.subr.mxu0 0.0
    %1467 = vmatpush1.msra.mxu0 0.0
    %1468 = vmatprep.subr.mxu0 0.0
    %1469 = vmatpush1.msra.mxu0 0.0
    %1470 = vmatprep.subr.mxu0 0.0
    %1471 = vmatpush1.msra.mxu0 0.0
    %1472 = vmatprep.subr.mxu0 0.0
    %1473 = vmatpush1.msra.mxu0 0.0
    %1474 = vmatprep.subr.mxu0 0.0
    %1475 = vmatpush1.msra.mxu0 0.0
    %1476 = vmatprep.mubr.f32.mxu0 0.0
    %1477 = vmatmul.mubr.f32.gmra.mrb[0].mxu0 %v649
    %v1478 = vpop.f32.mrb[0].mxu0
    %v1479 = vadd.f32 0.0, %v1478
    %v1480 = vpop.f32.mrb[0].mxu0
    %v1481 = vadd.f32 0.0, %v1480
    %1482 = vmatprep.mubr.f32.mxu0 0.0
    %1483 = vmatmul.mubr.f32.gmra.mrb[0].mxu0 %v652
    %v1484 = vpop.f32.mrb[0].mxu0
    %v1485 = vadd.f32 0.0, %v1484
    %v1486 = vpop.f32.mrb[0].mxu0
    %v1487 = vadd.f32 0.0, %v1486
    %1488 = vmatprep.mubr.f32.mxu0 0.0
    %1489 = vmatmul.mubr.f32.gmra.mrb[0].mxu0 %v655
    %v1490 = vpop.f32.mrb[0].mxu0
    %v1491 = vadd.f32 0.0, %v1490
    %v1492 = vpop.f32.mrb[0].mxu0
    %v1493 = vadd.f32 0.0, %v1492
    %1494 = vmatprep.mubr.f32.mxu0 0.0
    %1495 = vmatmul.mubr.f32.gmra.mrb[0].mxu0 %v658
    %v1496 = vpop.f32.mrb[0].mxu0
    %v1497 = vadd.f32 0.0, %v1496
    %v1498 = vpop.f32.mrb[0].mxu0
    %v1499 = vadd.f32 0.0, %v1498
    %1500 = vmatprep.mubr.f32.mxu0 0.0
    %1501 = vmatmul.mubr.f32.gmra.mrb[0].mxu0 %v661
    %v1502 = vpop.f32.mrb[0].mxu0
    %v1503 = vadd.f32 0.0, %v1502
    %v1504 = vpop.f32.mrb[0].mxu0
    %v1505 = vadd.f32 0.0, %v1504
    %1506 = vmatprep.mubr.f32.mxu0 0.0
    %1507 = vmatmul.mubr.f32.gmra.mrb[0].mxu0 %v664
    %v1508 = vpop.f32.mrb[0].mxu0
    %v1509 = vadd.f32 0.0, %v1508
    %v1510 = vpop.f32.mrb[0].mxu0
    %v1511 = vadd.f32 0.0, %v1510
    %1512 = vmatprep.mubr.f32.mxu0 0.0
    %1513 = vmatmul.mubr.f32.gmra.mrb[0].mxu0 %v667
    %v1514 = vpop.f32.mrb[0].mxu0
    %v1515 = vadd.f32 0.0, %v1514
    %v1516 = vpop.f32.mrb[0].mxu0
    %v1517 = vadd.f32 0.0, %v1516
    %1518 = vmatprep.mubr.f32.mxu0 0.0
    %1519 = vmatmul.mubr.f32.gmra.mrb[0].mxu0 %v670
    %v1520 = vpop.f32.mrb[0].mxu0
    %v1521 = vadd.f32 0.0, %v1520
    %v1522 = vpop.f32.mrb[0].mxu0
    %v1523 = vadd.f32 0.0, %v1522
    %1524 = vmatprep.mubr.f32.mxu0 0.0
    %1525 = vmatmul.mubr.f32.gmra.mrb[0].mxu0 %v673
    %v1526 = vpop.f32.mrb[0].mxu0
    %v1527 = vadd.f32 0.0, %v1526
    %v1528 = vpop.f32.mrb[0].mxu0
    %v1529 = vadd.f32 0.0, %v1528
    %1530 = vmatprep.mubr.f32.mxu0 0.0
    %1531 = vmatmul.mubr.f32.gmra.mrb[0].mxu0 %v676
    %v1532 = vpop.f32.mrb[0].mxu0
    %v1533 = vadd.f32 0.0, %v1532
    %v1534 = vpop.f32.mrb[0].mxu0
    %v1535 = vadd.f32 0.0, %v1534
    %1536 = vmatprep.mubr.f32.mxu0 0.0
    %1537 = vmatmul.mubr.f32.gmra.mrb[0].mxu0 %v679
    %v1538 = vpop.f32.mrb[0].mxu0
    %v1539 = vadd.f32 0.0, %v1538
    %v1540 = vpop.f32.mrb[0].mxu0
    %v1541 = vadd.f32 0.0, %v1540
    %1542 = vmatprep.mubr.f32.mxu0 0.0
    %1543 = vmatmul.mubr.f32.gmra.mrb[0].mxu0 %v682
    %v1544 = vpop.f32.mrb[0].mxu0
    %v1545 = vadd.f32 0.0, %v1544
    %v1546 = vpop.f32.mrb[0].mxu0
    %v1547 = vadd.f32 0.0, %v1546
    %1548 = vmatprep.mubr.f32.mxu0 0.0
    %1549 = vmatmul.mubr.f32.gmra.mrb[0].mxu0 %v685
    %v1550 = vpop.f32.mrb[0].mxu0
    %v1551 = vadd.f32 0.0, %v1550
    %v1552 = vpop.f32.mrb[0].mxu0
    %v1553 = vadd.f32 0.0, %v1552
    %1554 = vmatprep.mubr.f32.mxu0 0.0
    %1555 = vmatmul.mubr.f32.gmra.mrb[0].mxu0 %v688
    %v1556 = vpop.f32.mrb[0].mxu0
    %v1557 = vadd.f32 0.0, %v1556
    %v1558 = vpop.f32.mrb[0].mxu0
    %v1559 = vadd.f32 0.0, %v1558
    %1560 = vmatprep.mubr.f32.mxu0 0.0
    %1561 = vmatmul.mubr.f32.gmra.mrb[0].mxu0 %v691
    %v1562 = vpop.f32.mrb[0].mxu0
    %v1563 = vadd.f32 0.0, %v1562
    %v1564 = vpop.f32.mrb[0].mxu0
    %v1565 = vadd.f32 0.0, %v1564
    %1566 = vmatprep.mubr.f32.mxu0 0.0
    %1567 = vmatmul.mubr.f32.gmra.mrb[0].mxu0 %v694
    %v1568 = vpop.f32.mrb[0].mxu0
    %v1569 = vadd.f32 0.0, %v1568
    %v1570 = vpop.f32.mrb[0].mxu0
    %v1571 = vadd.f32 0.0, %v1570
    %1572 = vdwg.mxu0
    %v1573 = vmul.f32 %v1479, %v1220
    %v1574 = vmul.f32 %v1481, %v1222
    %v1575 = vmul.f32 %v1485, %v1220
    %v1576 = vmul.f32 %v1487, %v1222
    %v1577 = vmul.f32 %v1491, %v1220
    %v1578 = vmul.f32 %v1493, %v1222
    %v1579 = vmul.f32 %v1497, %v1220
    %v1580 = vmul.f32 %v1499, %v1222
    %v1581 = vmul.f32 %v1503, %v1220
    %v1582 = vmul.f32 %v1505, %v1222
    %v1583 = vmul.f32 %v1509, %v1220
    %v1584 = vmul.f32 %v1511, %v1222
    %v1585 = vmul.f32 %v1515, %v1220
    %v1586 = vmul.f32 %v1517, %v1222
    %v1587 = vmul.f32 %v1521, %v1220
    %v1588 = vmul.f32 %v1523, %v1222
    %v1589 = vmul.f32 %v1527, %v1220
    %v1590 = vmul.f32 %v1529, %v1222
    %v1591 = vmul.f32 %v1533, %v1220
    %v1592 = vmul.f32 %v1535, %v1222
    %v1593 = vmul.f32 %v1539, %v1220
    %v1594 = vmul.f32 %v1541, %v1222
    %v1595 = vmul.f32 %v1545, %v1220
    %v1596 = vmul.f32 %v1547, %v1222
    %v1597 = vmul.f32 %v1551, %v1220
    %v1598 = vmul.f32 %v1553, %v1222
    %v1599 = vmul.f32 %v1557, %v1220
    %v1600 = vmul.f32 %v1559, %v1222
    %v1601 = vmul.f32 %v1563, %v1220
    %v1602 = vmul.f32 %v1565, %v1222
    %v1603 = vmul.f32 %v1569, %v1220
    %v1604 = vmul.f32 %v1571, %v1222
    %v1605 = vadd.f32 %v1573, %v1318
    %v1606 = vadd.f32 %v1574, %v1320
    %v1607 = vadd.f32 %v1575, %v1324
    %v1608 = vadd.f32 %v1576, %v1326
    %v1609 = vadd.f32 %v1577, %v1330
    %v1610 = vadd.f32 %v1578, %v1332
    %v1611 = vadd.f32 %v1579, %v1336
    %v1612 = vadd.f32 %v1580, %v1338
    %v1613 = vadd.f32 %v1581, %v1342
    %v1614 = vadd.f32 %v1582, %v1344
    %v1615 = vadd.f32 %v1583, %v1348
    %v1616 = vadd.f32 %v1584, %v1350
    %v1617 = vadd.f32 %v1585, %v1354
    %v1618 = vadd.f32 %v1586, %v1356
    %v1619 = vadd.f32 %v1587, %v1360
    %v1620 = vadd.f32 %v1588, %v1362
    %v1621 = vadd.f32 %v1589, %v1366
    %v1622 = vadd.f32 %v1590, %v1368
    %v1623 = vadd.f32 %v1591, %v1372
    %v1624 = vadd.f32 %v1592, %v1374
    %v1625 = vadd.f32 %v1593, %v1378
    %v1626 = vadd.f32 %v1594, %v1380
    %v1627 = vadd.f32 %v1595, %v1384
    %v1628 = vadd.f32 %v1596, %v1386
    %v1629 = vadd.f32 %v1597, %v1390
    %v1630 = vadd.f32 %v1598, %v1392
    %v1631 = vadd.f32 %v1599, %v1396
    %v1632 = vadd.f32 %v1600, %v1398
    %v1633 = vadd.f32 %v1601, %v1402
    %v1634 = vadd.f32 %v1602, %v1404
    %v1635 = vadd.f32 %v1603, %v1408
    %v1636 = vadd.f32 %v1604, %v1410
    %v1637 = vxor.u32 %v1605, 2147483648
    %v1638 = vxor.u32 %v1606, 2147483648
    %v1639 = vxor.u32 %v1607, 2147483648
    %v1640 = vxor.u32 %v1608, 2147483648
    %v1641 = vxor.u32 %v1609, 2147483648
    %v1642 = vxor.u32 %v1610, 2147483648
    %v1643 = vxor.u32 %v1611, 2147483648
    %v1644 = vxor.u32 %v1612, 2147483648
    %v1645 = vxor.u32 %v1613, 2147483648
    %v1646 = vxor.u32 %v1614, 2147483648
    %v1647 = vxor.u32 %v1615, 2147483648
    %v1648 = vxor.u32 %v1616, 2147483648
    %v1649 = vxor.u32 %v1617, 2147483648
    %v1650 = vxor.u32 %v1618, 2147483648
    %v1651 = vxor.u32 %v1619, 2147483648
    %v1652 = vxor.u32 %v1620, 2147483648
    %v1653 = vxor.u32 %v1629, 2147483648
    %v1654 = vxor.u32 %v1630, 2147483648
    %v1655 = vxor.u32 %v1631, 2147483648
    %v1656 = vxor.u32 %v1632, 2147483648
    %v1657 = vxor.u32 %v1633, 2147483648
    %v1658 = vxor.u32 %v1634, 2147483648
    %v1659 = vxor.u32 %v1635, 2147483648
    %v1660 = vxor.u32 %v1636, 2147483648
    %v1661 = vmul.f32 %v1637, 1.442695
    %v1662 = vpow.pop %v1661
    %v1663 = vmul.f32 %v1638, 1.442695
    %v1664 = vpow.pop %v1663
    %v1665 = vmul.f32 %v1639, 1.442695
    %v1666 = vpow.pop %v1665
    %v1667 = vmul.f32 %v1640, 1.442695
    %v1668 = vpow.pop %v1667
    %v1669 = vmul.f32 %v1641, 1.442695
    %v1670 = vpow.pop %v1669
    %v1671 = vmul.f32 %v1642, 1.442695
    %v1672 = vpow.pop %v1671
    %v1673 = vmul.f32 %v1643, 1.442695
    %v1674 = vpow.pop %v1673
    %v1675 = vmul.f32 %v1644, 1.442695
    %v1676 = vpow.pop %v1675
    %v1677 = vmul.f32 %v1645, 1.442695
    %v1678 = vpow.pop %v1677
    %v1679 = vmul.f32 %v1646, 1.442695
    %v1680 = vpow.pop %v1679
    %v1681 = vmul.f32 %v1647, 1.442695
    %v1682 = vpow.pop %v1681
    %v1683 = vmul.f32 %v1648, 1.442695
    %v1684 = vpow.pop %v1683
    %v1685 = vmul.f32 %v1649, 1.442695
    %v1686 = vpow.pop %v1685
    %v1687 = vmul.f32 %v1650, 1.442695
    %v1688 = vpow.pop %v1687
    %v1689 = vmul.f32 %v1651, 1.442695
    %v1690 = vpow.pop %v1689
    %v1691 = vmul.f32 %v1652, 1.442695
    %v1692 = vpow.pop %v1691
    %v1693 = vmul.f32 %v1653, 1.442695
    %v1694 = vpow.pop %v1693
    %v1695 = vmul.f32 %v1654, 1.442695
    %v1696 = vpow.pop %v1695
    %v1697 = vmul.f32 %v1655, 1.442695
    %v1698 = vpow.pop %v1697
    %v1699 = vmul.f32 %v1656, 1.442695
    %v1700 = vpow.pop %v1699
    %v1701 = vmul.f32 %v1657, 1.442695
    %v1702 = vpow.pop %v1701
    %v1703 = vmul.f32 %v1658, 1.442695
    %v1704 = vpow.pop %v1703
    %v1705 = vmul.f32 %v1659, 1.442695
    %v1706 = vpow.pop %v1705
    %v1707 = vmul.f32 %v1660, 1.442695
    %v1708 = vpow.pop %v1707
    %v1709 = vadd.f32 %v1662, 1.0
    %v1710 = vadd.f32 %v1664, 1.0
    %v1711 = vadd.f32 %v1666, 1.0
    %v1712 = vadd.f32 %v1668, 1.0
    %v1713 = vadd.f32 %v1670, 1.0
    %v1714 = vadd.f32 %v1672, 1.0
    %v1715 = vadd.f32 %v1674, 1.0
    %v1716 = vadd.f32 %v1676, 1.0
    %v1717 = vadd.f32 %v1678, 1.0
    %v1718 = vadd.f32 %v1680, 1.0
    %v1719 = vadd.f32 %v1682, 1.0
    %v1720 = vadd.f32 %v1684, 1.0
    %v1721 = vadd.f32 %v1686, 1.0
    %v1722 = vadd.f32 %v1688, 1.0
    %v1723 = vadd.f32 %v1690, 1.0
    %v1724 = vadd.f32 %v1692, 1.0
    %v1725 = vadd.f32 %v1694, 1.0
    %v1726 = vadd.f32 %v1696, 1.0
    %v1727 = vadd.f32 %v1698, 1.0
    %v1728 = vadd.f32 %v1700, 1.0
    %v1729 = vadd.f32 %v1702, 1.0
    %v1730 = vadd.f32 %v1704, 1.0
    %v1731 = vadd.f32 %v1706, 1.0
    %v1732 = vadd.f32 %v1708, 1.0
    %v1733 = vrcp.pop %v1709
    %v1734 = vmul.f32 1.0, %v1733
    %v1735 = vrcp.pop %v1710
    %v1736 = vmul.f32 1.0, %v1735
    %v1737 = vrcp.pop %v1711
    %v1738 = vmul.f32 1.0, %v1737
    %v1739 = vrcp.pop %v1712
    %v1740 = vmul.f32 1.0, %v1739
    %v1741 = vrcp.pop %v1713
    %v1742 = vmul.f32 1.0, %v1741
    %v1743 = vrcp.pop %v1714
    %v1744 = vmul.f32 1.0, %v1743
    %v1745 = vrcp.pop %v1715
    %v1746 = vmul.f32 1.0, %v1745
    %v1747 = vrcp.pop %v1716
    %v1748 = vmul.f32 1.0, %v1747
    %v1749 = vrcp.pop %v1717
    %v1750 = vmul.f32 1.0, %v1749
    %v1751 = vrcp.pop %v1718
    %v1752 = vmul.f32 1.0, %v1751
    %v1753 = vrcp.pop %v1719
    %v1754 = vmul.f32 1.0, %v1753
    %v1755 = vrcp.pop %v1720
    %v1756 = vmul.f32 1.0, %v1755
    %v1757 = vrcp.pop %v1721
    %v1758 = vmul.f32 1.0, %v1757
    %v1759 = vrcp.pop %v1722
    %v1760 = vmul.f32 1.0, %v1759
    %v1761 = vrcp.pop %v1723
    %v1762 = vmul.f32 1.0, %v1761
    %v1763 = vrcp.pop %v1724
    %v1764 = vmul.f32 1.0, %v1763
    %v1765 = vrcp.pop %v1725
    %v1766 = vmul.f32 1.0, %v1765
    %v1767 = vrcp.pop %v1726
    %v1768 = vmul.f32 1.0, %v1767
    %v1769 = vrcp.pop %v1727
    %v1770 = vmul.f32 1.0, %v1769
    %v1771 = vrcp.pop %v1728
    %v1772 = vmul.f32 1.0, %v1771
    %v1773 = vrcp.pop %v1729
    %v1774 = vmul.f32 1.0, %v1773
    %v1775 = vrcp.pop %v1730
    %v1776 = vmul.f32 1.0, %v1775
    %v1777 = vrcp.pop %v1731
    %v1778 = vmul.f32 1.0, %v1777
    %v1779 = vrcp.pop %v1732
    %v1780 = vmul.f32 1.0, %v1779
    %v1781 = vtanh.pop %v1621
    %v1782 = vtanh.pop %v1622
    %v1783 = vtanh.pop %v1623
    %v1784 = vtanh.pop %v1624
    %v1785 = vtanh.pop %v1625
    %v1786 = vtanh.pop %v1626
    %v1787 = vtanh.pop %v1627
    %v1788 = vtanh.pop %v1628
    %v1789 = vmul.f32 %v1750, %v366
    %v1790 = vmul.f32 %v1752, %v367
    %v1791 = vmul.f32 %v1754, %v368
    %v1792 = vmul.f32 %v1756, %v369
    %v1793 = vmul.f32 %v1758, %v370
    %v1794 = vmul.f32 %v1760, %v371
    %v1795 = vmul.f32 %v1762, %v372
    %v1796 = vmul.f32 %v1764, %v373
    %v1797 = vmul.f32 %v1734, %v1781
    %v1798 = vmul.f32 %v1736, %v1782
    %v1799 = vmul.f32 %v1738, %v1783
    %v1800 = vmul.f32 %v1740, %v1784
    %v1801 = vmul.f32 %v1742, %v1785
    %v1802 = vmul.f32 %v1744, %v1786
    %v1803 = vmul.f32 %v1746, %v1787
    %v1804 = vmul.f32 %v1748, %v1788
    %v1805 = vadd.f32 %v1789, %v1797
    %v1806 = vadd.f32 %v1790, %v1798
    %v1807 = vadd.f32 %v1791, %v1799
    %v1808 = vadd.f32 %v1792, %v1800
    %v1809 = vadd.f32 %v1793, %v1801
    %v1810 = vadd.f32 %v1794, %v1802
    %v1811 = vadd.f32 %v1795, %v1803
    %v1812 = vadd.f32 %v1796, %v1804
    %v1813 = vtanh.pop %v1805
    %v1814 = vtanh.pop %v1806
    %v1815 = vtanh.pop %v1807
    %v1816 = vtanh.pop %v1808
    %v1817 = vtanh.pop %v1809
    %v1818 = vtanh.pop %v1810
    %v1819 = vtanh.pop %v1811
    %v1820 = vtanh.pop %v1812
    %v1821 = vmul.f32 %v1766, %v1813
    %v1822 = vmul.f32 %v1768, %v1814
    %v1823 = vmul.f32 %v1770, %v1815
    %v1824 = vmul.f32 %v1772, %v1816
    %v1825 = vmul.f32 %v1774, %v1817
    %v1826 = vmul.f32 %v1776, %v1818
    %v1827 = vmul.f32 %v1778, %v1819
    %v1828 = vmul.f32 %v1780, %v1820
    %1829 = vmatprep.subr.mxu0 %v1822
    %1830 = vmatpush1.msra.mxu0 %v1821
    %1831 = vmatprep.subr.mxu0 %v1824
    %1832 = vmatpush1.msra.mxu0 %v1823
    %1833 = vmatprep.subr.mxu0 %v1826
    %1834 = vmatpush1.msra.mxu0 %v1825
    %1835 = vmatprep.subr.mxu0 %v1828
    %1836 = vmatpush1.msra.mxu0 %v1827
    %1837 = vmatprep.subr.mxu0 0.0
    %1838 = vmatpush1.msra.mxu0 0.0
    %1839 = vmatprep.subr.mxu0 0.0
    %1840 = vmatpush1.msra.mxu0 0.0
    %1841 = vmatprep.subr.mxu0 0.0
    %1842 = vmatpush1.msra.mxu0 0.0
    %1843 = vmatprep.subr.mxu0 0.0
    %1844 = vmatpush1.msra.mxu0 0.0
    %1845 = vmatprep.subr.mxu0 0.0
    %1846 = vmatpush1.msra.mxu0 0.0
    %1847 = vmatprep.subr.mxu0 0.0
    %1848 = vmatpush1.msra.mxu0 0.0
    %1849 = vmatprep.subr.mxu0 0.0
    %1850 = vmatpush1.msra.mxu0 0.0
    %1851 = vmatprep.subr.mxu0 0.0
    %1852 = vmatpush1.msra.mxu0 0.0
    %1853 = vmatprep.subr.mxu0 0.0
    %1854 = vmatpush1.msra.mxu0 0.0
    %1855 = vmatprep.subr.mxu0 0.0
    %1856 = vmatpush1.msra.mxu0 0.0
    %1857 = vmatprep.subr.mxu0 0.0
    %1858 = vmatpush1.msra.mxu0 0.0
    %1859 = vmatprep.subr.mxu0 0.0
    %1860 = vmatpush1.msra.mxu0 0.0
    %1861 = vmatprep.subr.mxu0 0.0
    %1862 = vmatpush1.msra.mxu0 0.0
    %1863 = vmatprep.subr.mxu0 0.0
    %1864 = vmatpush1.msra.mxu0 0.0
    %1865 = vmatprep.subr.mxu0 0.0
    %1866 = vmatpush1.msra.mxu0 0.0
    %1867 = vmatprep.subr.mxu0 0.0
    %1868 = vmatpush1.msra.mxu0 0.0
    %1869 = vmatprep.subr.mxu0 0.0
    %1870 = vmatpush1.msra.mxu0 0.0
    %1871 = vmatprep.subr.mxu0 0.0
    %1872 = vmatpush1.msra.mxu0 0.0
    %1873 = vmatprep.subr.mxu0 0.0
    %1874 = vmatpush1.msra.mxu0 0.0
    %1875 = vmatprep.subr.mxu0 0.0
    %1876 = vmatpush1.msra.mxu0 0.0
    %1877 = vmatprep.subr.mxu0 0.0
    %1878 = vmatpush1.msra.mxu0 0.0
    %1879 = vmatprep.subr.mxu0 0.0
    %1880 = vmatpush1.msra.mxu0 0.0
    %1881 = vmatprep.subr.mxu0 0.0
    %1882 = vmatpush1.msra.mxu0 0.0
    %1883 = vmatprep.subr.mxu0 0.0
    %1884 = vmatpush1.msra.mxu0 0.0
    %1885 = vmatprep.subr.mxu0 0.0
    %1886 = vmatpush1.msra.mxu0 0.0
    %1887 = vmatprep.subr.mxu0 0.0
    %1888 = vmatpush1.msra.mxu0 0.0
    %1889 = vmatprep.subr.mxu0 0.0
    %1890 = vmatpush1.msra.mxu0 0.0
    %1891 = vmatprep.subr.mxu0 0.0
    %1892 = vmatpush1.msra.mxu0 0.0
    %1893 = vmatprep.mubr.f32.mxu0 0.0
    %1894 = vmatmul.mubr.f32.gmra.mrb[0].mxu0 %v1050
    %v1895 = vpop.f32.mrb[0].mxu0
    %v1896 = vadd.f32 0.0, %v1895
    %v1897 = vpop.f32.mrb[0].mxu0
    %v1898 = vadd.f32 0.0, %v1897
    %1899 = vmatprep.mubr.f32.mxu0 0.0
    %1900 = vmatmul.mubr.f32.gmra.mrb[0].mxu0 %v1053
    %v1901 = vpop.f32.mrb[0].mxu0
    %v1902 = vadd.f32 0.0, %v1901
    %v1903 = vpop.f32.mrb[0].mxu0
    %v1904 = vadd.f32 0.0, %v1903
    %1905 = vmatprep.mubr.f32.mxu0 0.0
    %1906 = vmatmul.mubr.f32.gmra.mrb[0].mxu0 %v1056
    %v1907 = vpop.f32.mrb[0].mxu0
    %v1908 = vadd.f32 0.0, %v1907
    %v1909 = vpop.f32.mrb[0].mxu0
    %v1910 = vadd.f32 0.0, %v1909
    %1911 = vdwg.mxu0
    %v1912 = vrot.slane %v1896, 4
    %v1913 = vmax.f32 %v1896, %v1912
    %v1914 = vrot.slane %v1913, 2
    %v1915 = vmax.f32 %v1913, %v1914
    %v1916 = vrot.slane %v1915, 1
    %v1917 = vmax.f32 %v1915, %v1916
    %v1918 = vrot.slane %v1898, 4
    %v1919 = vmax.f32 %v1898, %v1918
    %v1920 = vrot.slane %v1919, 2
    %v1921 = vmax.f32 %v1919, %v1920
    %v1922 = vrot.slane %v1921, 1
    %v1923 = vmax.f32 %v1921, %v1922
    %v1924 = vsub.f32 %v1896, %v1917
    %v1925 = vsub.f32 %v1898, %v1923
    %v1926 = vmul.f32 %v1924, 1.442695
    %v1927 = vpow.pop %v1926
    %v1928 = vmul.f32 %v1925, 1.442695
    %v1929 = vpow.pop %v1928
    %v1930 = vrot.slane %v1927, 4
    %v1931 = vadd.f32 %v1927, %v1930
    %v1932 = vrot.slane %v1931, 2
    %v1933 = vadd.f32 %v1931, %v1932
    %v1934 = vrot.slane %v1933, 1
    %v1935 = vadd.f32 %v1933, %v1934
    %v1936 = vrot.slane %v1929, 4
    %v1937 = vadd.f32 %v1929, %v1936
    %v1938 = vrot.slane %v1937, 2
    %v1939 = vadd.f32 %v1937, %v1938
    %v1940 = vrot.slane %v1939, 1
    %v1941 = vadd.f32 %v1939, %v1940
    %v1942 = vlog2.pop %v1935
    %v1943 = vmul.f32 %v1942, 0.6931472
    %v1944 = vlog2.pop %v1941
    %v1945 = vmul.f32 %v1944, 0.6931472
    %v1946 = vsub.f32 %v1924, %v1943
    %v1947 = vsub.f32 %v1925, %v1945
    %s1948 = scalar_lea.vmem [#allocation2], 16
    %1949 = vst [vmem:[%s1948] sm:$0xff] %v1946
    %1950 = vst [vmem:[%s1948 + $0x8] sm:$0xff] %v1947
    %v1951 = vmax.f32 %v1902, %v1908
    %v1952 = vrot.slane %v1951, 4
    %v1953 = vmax.f32 %v1951, %v1952
    %v1954 = vrot.slane %v1953, 2
    %v1955 = vmax.f32 %v1953, %v1954
    %v1956 = vrot.slane %v1955, 1
    %v1957 = vmax.f32 %v1955, %v1956
    %v1958 = vmax.f32 %v1904, %v1910
    %v1959 = vrot.slane %v1958, 4
    %v1960 = vmax.f32 %v1958, %v1959
    %v1961 = vrot.slane %v1960, 2
    %v1962 = vmax.f32 %v1960, %v1961
    %v1963 = vrot.slane %v1962, 1
    %v1964 = vmax.f32 %v1962, %v1963
    %v1965 = vsub.f32 %v1902, %v1957
    %v1966 = vsub.f32 %v1904, %v1964
    %v1967 = vsub.f32 %v1908, %v1957
    %v1968 = vsub.f32 %v1910, %v1964
    %v1969 = vmul.f32 %v1965, 1.442695
    %v1970 = vpow.pop %v1969
    %v1971 = vmul.f32 %v1966, 1.442695
    %v1972 = vpow.pop %v1971
    %v1973 = vmul.f32 %v1967, 1.442695
    %v1974 = vpow.pop %v1973
    %v1975 = vmul.f32 %v1968, 1.442695
    %v1976 = vpow.pop %v1975
    %v1977 = vadd.f32 %v1970, %v1974
    %v1978 = vrot.slane %v1977, 4
    %v1979 = vadd.f32 %v1977, %v1978
    %v1980 = vrot.slane %v1979, 2
    %v1981 = vadd.f32 %v1979, %v1980
    %v1982 = vrot.slane %v1981, 1
    %v1983 = vadd.f32 %v1981, %v1982
    %v1984 = vadd.f32 %v1972, %v1976
    %v1985 = vrot.slane %v1984, 4
    %v1986 = vadd.f32 %v1984, %v1985
    %v1987 = vrot.slane %v1986, 2
    %v1988 = vadd.f32 %v1986, %v1987
    %v1989 = vrot.slane %v1988, 1
    %v1990 = vadd.f32 %v1988, %v1989
    %v1991 = vrcp.pop %v1983
    %v1992 = vmul.f32 1.0, %v1991
    %v1993 = vrcp.pop %v1990
    %v1994 = vmul.f32 1.0, %v1993
    %v1995 = vmul.f32 %v1970, %v1992
    %v1996 = vmul.f32 %v1972, %v1994
    %v1997 = vmul.f32 %v1974, %v1992
    %v1998 = vmul.f32 %v1976, %v1994
    %s1999 = scalar_lea.vmem [#allocation4], 32
    %2000 = vst [vmem:[%s1999] sm:$0xff] %v1995
    %2001 = vst [vmem:[%s1999 + $0x8] sm:$0xff] %v1996
    %2002 = vst [vmem:[%s1999 + $0x10] sm:$0xff] %v1997
    %2003 = vst [vmem:[%s1999 + $0x18] sm:$0xff] %v1998
    %v2004 = vlaneseq
    %v2005 = vshrl.u32 %v2004, 7
    %v2006 = vsub.s32 2, %v2005
    %v2007 = vrot.slane %v409, %v2006
    %v2008 = vlaneseq
    %v2009 = vshrl.u32 %v2008, 7
    %v2010 = vsub.s32 2, %v2009
    %v2011 = vrot.slane %v410, %v2010
    %vm2012 = vcmp.eq.s32.totalorder %v412, %v2007
    %vm2013 = vcmp.eq.s32.totalorder %v412, %v2011
    %vm2014 = vcmp.eq.s32.totalorder %v413, %v2007
    %vm2015 = vcmp.eq.s32.totalorder %v413, %v2011
    %v2016 = vsel %vm2012, 1, 0
    %v2017 = vsel %vm2013, 1, 0
    %v2018 = vsel %vm2014, 1, 0
    %v2019 = vsel %vm2015, 1, 0
    %v2020 = vcvt.s32.f32 %v2016
    %v2021 = vcvt.s32.f32 %v2017
    %v2022 = vcvt.s32.f32 %v2018
    %v2023 = vcvt.s32.f32 %v2019
    %2024 = vmatprep.subr.mxu0 %v2021
    %2025 = vmatpush1.msra.mxu0 %v2020
    %2026 = vmatprep.subr.mxu0 %v2023
    %2027 = vmatpush1.msra.mxu0 %v2022
    %2028 = vmatprep.subr.mxu0 0.0
    %2029 = vmatpush1.msra.mxu0 0.0
    %2030 = vmatprep.subr.mxu0 0.0
    %2031 = vmatpush1.msra.mxu0 0.0
    %2032 = vmatprep.subr.mxu0 0.0
    %2033 = vmatpush1.msra.mxu0 0.0
    %2034 = vmatprep.subr.mxu0 0.0
    %2035 = vmatpush1.msra.mxu0 0.0
    %2036 = vmatprep.subr.mxu0 0.0
    %2037 = vmatpush1.msra.mxu0 0.0
    %2038 = vmatprep.subr.mxu0 0.0
    %2039 = vmatpush1.msra.mxu0 0.0
    %2040 = vmatprep.subr.mxu0 0.0
    %2041 = vmatpush1.msra.mxu0 0.0
    %2042 = vmatprep.subr.mxu0 0.0
    %2043 = vmatpush1.msra.mxu0 0.0
    %2044 = vmatprep.subr.mxu0 0.0
    %2045 = vmatpush1.msra.mxu0 0.0
    %2046 = vmatprep.subr.mxu0 0.0
    %2047 = vmatpush1.msra.mxu0 0.0
    %2048 = vmatprep.subr.mxu0 0.0
    %2049 = vmatpush1.msra.mxu0 0.0
    %2050 = vmatprep.subr.mxu0 0.0
    %2051 = vmatpush1.msra.mxu0 0.0
    %2052 = vmatprep.subr.mxu0 0.0
    %2053 = vmatpush1.msra.mxu0 0.0
    %2054 = vmatprep.subr.mxu0 0.0
    %2055 = vmatpush1.msra.mxu0 0.0
    %2056 = vmatprep.subr.mxu0 0.0
    %2057 = vmatpush1.msra.mxu0 0.0
    %2058 = vmatprep.subr.mxu0 0.0
    %2059 = vmatpush1.msra.mxu0 0.0
    %2060 = vmatprep.subr.mxu0 0.0
    %2061 = vmatpush1.msra.mxu0 0.0
    %2062 = vmatprep.subr.mxu0 0.0
    %2063 = vmatpush1.msra.mxu0 0.0
    %2064 = vmatprep.subr.mxu0 0.0
    %2065 = vmatpush1.msra.mxu0 0.0
    %2066 = vmatprep.subr.mxu0 0.0
    %2067 = vmatpush1.msra.mxu0 0.0
    %2068 = vmatprep.subr.mxu0 0.0
    %2069 = vmatpush1.msra.mxu0 0.0
    %2070 = vmatprep.subr.mxu0 0.0
    %2071 = vmatpush1.msra.mxu0 0.0
    %2072 = vmatprep.subr.mxu0 0.0
    %2073 = vmatpush1.msra.mxu0 0.0
    %2074 = vmatprep.subr.mxu0 0.0
    %2075 = vmatpush1.msra.mxu0 0.0
    %2076 = vmatprep.subr.mxu0 0.0
    %2077 = vmatpush1.msra.mxu0 0.0
    %2078 = vmatprep.subr.mxu0 0.0
    %2079 = vmatpush1.msra.mxu0 0.0
    %2080 = vmatprep.subr.mxu0 0.0
    %2081 = vmatpush1.msra.mxu0 0.0
    %2082 = vmatprep.subr.mxu0 0.0
    %2083 = vmatpush1.msra.mxu0 0.0
    %2084 = vmatprep.subr.mxu0 0.0
    %2085 = vmatpush1.msra.mxu0 0.0
    %2086 = vmatprep.subr.mxu0 0.0
    %2087 = vmatpush1.msra.mxu0 0.0
    %2088 = vmatprep.mubr.f32.mxu0 0.0
    %2089 = vmatmul.mubr.f32.gmra.mrb[0].mxu0 %v440
    %v2090 = vpop.f32.mrb[0].mxu0
    %v2091 = vadd.f32 %v272, %v2090
    %v2092 = vpop.f32.mrb[0].mxu0
    %v2093 = vadd.f32 %v274, %v2092
    %2094 = vmatprep.mubr.f32.mxu0 0.0
    %2095 = vmatmul.mubr.f32.gmra.mrb[0].mxu0 %v443
    %v2096 = vpop.f32.mrb[0].mxu0
    %v2097 = vadd.f32 %v278, %v2096
    %v2098 = vpop.f32.mrb[0].mxu0
    %v2099 = vadd.f32 %v280, %v2098
    %2100 = vmatprep.mubr.f32.mxu0 0.0
    %2101 = vmatmul.mubr.f32.gmra.mrb[0].mxu0 %v446
    %v2102 = vpop.f32.mrb[0].mxu0
    %v2103 = vadd.f32 %v284, %v2102
    %v2104 = vpop.f32.mrb[0].mxu0
    %v2105 = vadd.f32 %v286, %v2104
    %2106 = vmatprep.mubr.f32.mxu0 0.0
    %2107 = vmatmul.mubr.f32.gmra.mrb[0].mxu0 %v449
    %v2108 = vpop.f32.mrb[0].mxu0
    %v2109 = vadd.f32 %v290, %v2108
    %v2110 = vpop.f32.mrb[0].mxu0
    %v2111 = vadd.f32 %v292, %v2110
    %2112 = vmatprep.mubr.f32.mxu0 0.0
    %2113 = vmatmul.mubr.f32.gmra.mrb[0].mxu0 %v452
    %v2114 = vpop.f32.mrb[0].mxu0
    %v2115 = vadd.f32 %v296, %v2114
    %v2116 = vpop.f32.mrb[0].mxu0
    %v2117 = vadd.f32 %v298, %v2116
    %2118 = vmatprep.mubr.f32.mxu0 0.0
    %2119 = vmatmul.mubr.f32.gmra.mrb[0].mxu0 %v455
    %v2120 = vpop.f32.mrb[0].mxu0
    %v2121 = vadd.f32 %v302, %v2120
    %v2122 = vpop.f32.mrb[0].mxu0
    %v2123 = vadd.f32 %v304, %v2122
    %2124 = vmatprep.mubr.f32.mxu0 0.0
    %2125 = vmatmul.mubr.f32.gmra.mrb[0].mxu0 %v458
    %v2126 = vpop.f32.mrb[0].mxu0
    %v2127 = vadd.f32 %v308, %v2126
    %v2128 = vpop.f32.mrb[0].mxu0
    %v2129 = vadd.f32 %v310, %v2128
    %2130 = vmatprep.mubr.f32.mxu0 0.0
    %2131 = vmatmul.mubr.f32.gmra.mrb[0].mxu0 %v461
    %v2132 = vpop.f32.mrb[0].mxu0
    %v2133 = vadd.f32 %v314, %v2132
    %v2134 = vpop.f32.mrb[0].mxu0
    %v2135 = vadd.f32 %v316, %v2134
    %2136 = vmatprep.mubr.f32.mxu0 0.0
    %2137 = vmatmul.mubr.f32.gmra.mrb[0].mxu0 %v464
    %v2138 = vpop.f32.mrb[0].mxu0
    %v2139 = vadd.f32 %v320, %v2138
    %v2140 = vpop.f32.mrb[0].mxu0
    %v2141 = vadd.f32 %v322, %v2140
    %2142 = vmatprep.mubr.f32.mxu0 0.0
    %2143 = vmatmul.mubr.f32.gmra.mrb[0].mxu0 %v467
    %v2144 = vpop.f32.mrb[0].mxu0
    %v2145 = vadd.f32 %v326, %v2144
    %v2146 = vpop.f32.mrb[0].mxu0
    %v2147 = vadd.f32 %v328, %v2146
    %2148 = vmatprep.mubr.f32.mxu0 0.0
    %2149 = vmatmul.mubr.f32.gmra.mrb[0].mxu0 %v470
    %v2150 = vpop.f32.mrb[0].mxu0
    %v2151 = vadd.f32 %v332, %v2150
    %v2152 = vpop.f32.mrb[0].mxu0
    %v2153 = vadd.f32 %v334, %v2152
    %2154 = vmatprep.mubr.f32.mxu0 0.0
    %2155 = vmatmul.mubr.f32.gmra.mrb[0].mxu0 %v473
    %v2156 = vpop.f32.mrb[0].mxu0
    %v2157 = vadd.f32 %v338, %v2156
    %v2158 = vpop.f32.mrb[0].mxu0
    %v2159 = vadd.f32 %v340, %v2158
    %2160 = vmatprep.mubr.f32.mxu0 0.0
    %2161 = vmatmul.mubr.f32.gmra.mrb[0].mxu0 %v476
    %v2162 = vpop.f32.mrb[0].mxu0
    %v2163 = vadd.f32 %v344, %v2162
    %v2164 = vpop.f32.mrb[0].mxu0
    %v2165 = vadd.f32 %v346, %v2164
    %2166 = vmatprep.mubr.f32.mxu0 0.0
    %2167 = vmatmul.mubr.f32.gmra.mrb[0].mxu0 %v479
    %v2168 = vpop.f32.mrb[0].mxu0
    %v2169 = vadd.f32 %v350, %v2168
    %v2170 = vpop.f32.mrb[0].mxu0
    %v2171 = vadd.f32 %v352, %v2170
    %2172 = vmatprep.mubr.f32.mxu0 0.0
    %2173 = vmatmul.mubr.f32.gmra.mrb[0].mxu0 %v482
    %v2174 = vpop.f32.mrb[0].mxu0
    %v2175 = vadd.f32 %v356, %v2174
    %v2176 = vpop.f32.mrb[0].mxu0
    %v2177 = vadd.f32 %v358, %v2176
    %2178 = vmatprep.mubr.f32.mxu0 0.0
    %2179 = vmatmul.mubr.f32.gmra.mrb[0].mxu0 %v485
    %v2180 = vpop.f32.mrb[0].mxu0
    %v2181 = vadd.f32 %v362, %v2180
    %v2182 = vpop.f32.mrb[0].mxu0
    %v2183 = vadd.f32 %v364, %v2182
    %2184 = vdwg.mxu0
    %2185 = vmatprep.subr.mxu0 %v1972
    %2186 = vmatpush1.msra.mxu0 %v1970
    %2187 = vmatprep.subr.mxu0 %v1976
    %2188 = vmatpush1.msra.mxu0 %v1974
    %2189 = vmatprep.subr.mxu0 0.0
    %2190 = vmatpush1.msra.mxu0 0.0
    %2191 = vmatprep.subr.mxu0 0.0
    %2192 = vmatpush1.msra.mxu0 0.0
    %2193 = vmatprep.subr.mxu0 0.0
    %2194 = vmatpush1.msra.mxu0 0.0
    %2195 = vmatprep.subr.mxu0 0.0
    %2196 = vmatpush1.msra.mxu0 0.0
    %2197 = vmatprep.subr.mxu0 0.0
    %2198 = vmatpush1.msra.mxu0 0.0
    %2199 = vmatprep.subr.mxu0 0.0
    %2200 = vmatpush1.msra.mxu0 0.0
    %2201 = vmatprep.subr.mxu0 0.0
    %2202 = vmatpush1.msra.mxu0 0.0
    %2203 = vmatprep.subr.mxu0 0.0
    %2204 = vmatpush1.msra.mxu0 0.0
    %2205 = vmatprep.subr.mxu0 0.0
    %2206 = vmatpush1.msra.mxu0 0.0
    %2207 = vmatprep.subr.mxu0 0.0
    %2208 = vmatpush1.msra.mxu0 0.0
    %2209 = vmatprep.subr.mxu0 0.0
    %2210 = vmatpush1.msra.mxu0 0.0
    %2211 = vmatprep.subr.mxu0 0.0
    %2212 = vmatpush1.msra.mxu0 0.0
    %2213 = vmatprep.subr.mxu0 0.0
    %2214 = vmatpush1.msra.mxu0 0.0
    %2215 = vmatprep.subr.mxu0 0.0
    %2216 = vmatpush1.msra.mxu0 0.0
    %2217 = vmatprep.subr.mxu0 0.0
    %2218 = vmatpush1.msra.mxu0 0.0
    %2219 = vmatprep.subr.mxu0 0.0
    %2220 = vmatpush1.msra.mxu0 0.0
    %2221 = vmatprep.subr.mxu0 0.0
    %2222 = vmatpush1.msra.mxu0 0.0
    %2223 = vmatprep.subr.mxu0 0.0
    %2224 = vmatpush1.msra.mxu0 0.0
    %2225 = vmatprep.subr.mxu0 0.0
    %2226 = vmatpush1.msra.mxu0 0.0
    %2227 = vmatprep.subr.mxu0 0.0
    %2228 = vmatpush1.msra.mxu0 0.0
    %2229 = vmatprep.subr.mxu0 0.0
    %2230 = vmatpush1.msra.mxu0 0.0
    %2231 = vmatprep.subr.mxu0 0.0
    %2232 = vmatpush1.msra.mxu0 0.0
    %2233 = vmatprep.subr.mxu0 0.0
    %2234 = vmatpush1.msra.mxu0 0.0
    %2235 = vmatprep.subr.mxu0 0.0
    %2236 = vmatpush1.msra.mxu0 0.0
    %2237 = vmatprep.subr.mxu0 0.0
    %2238 = vmatpush1.msra.mxu0 0.0
    %2239 = vmatprep.subr.mxu0 0.0
    %2240 = vmatpush1.msra.mxu0 0.0
    %2241 = vmatprep.subr.mxu0 0.0
    %2242 = vmatpush1.msra.mxu0 0.0
    %2243 = vmatprep.subr.mxu0 0.0
    %2244 = vmatpush1.msra.mxu0 0.0
    %2245 = vmatprep.subr.mxu0 0.0
    %2246 = vmatpush1.msra.mxu0 0.0
    %2247 = vmatprep.subr.mxu0 0.0
    %2248 = vmatpush1.msra.mxu0 0.0
    %2249 = vmatprep.mubr.f32.mxu0 0.0
    %2250 = vmatmul.mubr.f32.gmra.mrb[0].mxu0 %v649
    %v2251 = vpop.f32.mrb[0].mxu0
    %v2252 = vadd.f32 0.0, %v2251
    %v2253 = vpop.f32.mrb[0].mxu0
    %v2254 = vadd.f32 0.0, %v2253
    %2255 = vmatprep.mubr.f32.mxu0 0.0
    %2256 = vmatmul.mubr.f32.gmra.mrb[0].mxu0 %v652
    %v2257 = vpop.f32.mrb[0].mxu0
    %v2258 = vadd.f32 0.0, %v2257
    %v2259 = vpop.f32.mrb[0].mxu0
    %v2260 = vadd.f32 0.0, %v2259
    %2261 = vmatprep.mubr.f32.mxu0 0.0
    %2262 = vmatmul.mubr.f32.gmra.mrb[0].mxu0 %v655
    %v2263 = vpop.f32.mrb[0].mxu0
    %v2264 = vadd.f32 0.0, %v2263
    %v2265 = vpop.f32.mrb[0].mxu0
    %v2266 = vadd.f32 0.0, %v2265
    %2267 = vmatprep.mubr.f32.mxu0 0.0
    %2268 = vmatmul.mubr.f32.gmra.mrb[0].mxu0 %v658
    %v2269 = vpop.f32.mrb[0].mxu0
    %v2270 = vadd.f32 0.0, %v2269
    %v2271 = vpop.f32.mrb[0].mxu0
    %v2272 = vadd.f32 0.0, %v2271
    %2273 = vmatprep.mubr.f32.mxu0 0.0
    %2274 = vmatmul.mubr.f32.gmra.mrb[0].mxu0 %v661
    %v2275 = vpop.f32.mrb[0].mxu0
    %v2276 = vadd.f32 0.0, %v2275
    %v2277 = vpop.f32.mrb[0].mxu0
    %v2278 = vadd.f32 0.0, %v2277
    %2279 = vmatprep.mubr.f32.mxu0 0.0
    %2280 = vmatmul.mubr.f32.gmra.mrb[0].mxu0 %v664
    %v2281 = vpop.f32.mrb[0].mxu0
    %v2282 = vadd.f32 0.0, %v2281
    %v2283 = vpop.f32.mrb[0].mxu0
    %v2284 = vadd.f32 0.0, %v2283
    %2285 = vmatprep.mubr.f32.mxu0 0.0
    %2286 = vmatmul.mubr.f32.gmra.mrb[0].mxu0 %v667
    %v2287 = vpop.f32.mrb[0].mxu0
    %v2288 = vadd.f32 0.0, %v2287
    %v2289 = vpop.f32.mrb[0].mxu0
    %v2290 = vadd.f32 0.0, %v2289
    %2291 = vmatprep.mubr.f32.mxu0 0.0
    %2292 = vmatmul.mubr.f32.gmra.mrb[0].mxu0 %v670
    %v2293 = vpop.f32.mrb[0].mxu0
    %v2294 = vadd.f32 0.0, %v2293
    %v2295 = vpop.f32.mrb[0].mxu0
    %v2296 = vadd.f32 0.0, %v2295
    %2297 = vmatprep.mubr.f32.mxu0 0.0
    %2298 = vmatmul.mubr.f32.gmra.mrb[0].mxu0 %v673
    %v2299 = vpop.f32.mrb[0].mxu0
    %v2300 = vadd.f32 0.0, %v2299
    %v2301 = vpop.f32.mrb[0].mxu0
    %v2302 = vadd.f32 0.0, %v2301
    %2303 = vmatprep.mubr.f32.mxu0 0.0
    %2304 = vmatmul.mubr.f32.gmra.mrb[0].mxu0 %v676
    %v2305 = vpop.f32.mrb[0].mxu0
    %v2306 = vadd.f32 0.0, %v2305
    %v2307 = vpop.f32.mrb[0].mxu0
    %v2308 = vadd.f32 0.0, %v2307
    %2309 = vmatprep.mubr.f32.mxu0 0.0
    %2310 = vmatmul.mubr.f32.gmra.mrb[0].mxu0 %v679
    %v2311 = vpop.f32.mrb[0].mxu0
    %v2312 = vadd.f32 0.0, %v2311
    %v2313 = vpop.f32.mrb[0].mxu0
    %v2314 = vadd.f32 0.0, %v2313
    %2315 = vmatprep.mubr.f32.mxu0 0.0
    %2316 = vmatmul.mubr.f32.gmra.mrb[0].mxu0 %v682
    %v2317 = vpop.f32.mrb[0].mxu0
    %v2318 = vadd.f32 0.0, %v2317
    %v2319 = vpop.f32.mrb[0].mxu0
    %v2320 = vadd.f32 0.0, %v2319
    %2321 = vmatprep.mubr.f32.mxu0 0.0
    %2322 = vmatmul.mubr.f32.gmra.mrb[0].mxu0 %v685
    %v2323 = vpop.f32.mrb[0].mxu0
    %v2324 = vadd.f32 0.0, %v2323
    %v2325 = vpop.f32.mrb[0].mxu0
    %v2326 = vadd.f32 0.0, %v2325
    %2327 = vmatprep.mubr.f32.mxu0 0.0
    %2328 = vmatmul.mubr.f32.gmra.mrb[0].mxu0 %v688
    %v2329 = vpop.f32.mrb[0].mxu0
    %v2330 = vadd.f32 0.0, %v2329
    %v2331 = vpop.f32.mrb[0].mxu0
    %v2332 = vadd.f32 0.0, %v2331
    %2333 = vmatprep.mubr.f32.mxu0 0.0
    %2334 = vmatmul.mubr.f32.gmra.mrb[0].mxu0 %v691
    %v2335 = vpop.f32.mrb[0].mxu0
    %v2336 = vadd.f32 0.0, %v2335
    %v2337 = vpop.f32.mrb[0].mxu0
    %v2338 = vadd.f32 0.0, %v2337
    %2339 = vmatprep.mubr.f32.mxu0 0.0
    %2340 = vmatmul.mubr.f32.gmra.mrb[0].mxu0 %v694
    %v2341 = vpop.f32.mrb[0].mxu0
    %v2342 = vadd.f32 0.0, %v2341
    %v2343 = vpop.f32.mrb[0].mxu0
    %v2344 = vadd.f32 0.0, %v2343
    %2345 = vdwg.mxu0
    %v2346 = vmul.f32 %v2252, %v1992
    %v2347 = vmul.f32 %v2254, %v1994
    %v2348 = vmul.f32 %v2258, %v1992
    %v2349 = vmul.f32 %v2260, %v1994
    %v2350 = vmul.f32 %v2264, %v1992
    %v2351 = vmul.f32 %v2266, %v1994
    %v2352 = vmul.f32 %v2270, %v1992
    %v2353 = vmul.f32 %v2272, %v1994
    %v2354 = vmul.f32 %v2276, %v1992
    %v2355 = vmul.f32 %v2278, %v1994
    %v2356 = vmul.f32 %v2282, %v1992
    %v2357 = vmul.f32 %v2284, %v1994
    %v2358 = vmul.f32 %v2288, %v1992
    %v2359 = vmul.f32 %v2290, %v1994
    %v2360 = vmul.f32 %v2294, %v1992
    %v2361 = vmul.f32 %v2296, %v1994
    %v2362 = vmul.f32 %v2300, %v1992
    %v2363 = vmul.f32 %v2302, %v1994
    %v2364 = vmul.f32 %v2306, %v1992
    %v2365 = vmul.f32 %v2308, %v1994
    %v2366 = vmul.f32 %v2312, %v1992
    %v2367 = vmul.f32 %v2314, %v1994
    %v2368 = vmul.f32 %v2318, %v1992
    %v2369 = vmul.f32 %v2320, %v1994
    %v2370 = vmul.f32 %v2324, %v1992
    %v2371 = vmul.f32 %v2326, %v1994
    %v2372 = vmul.f32 %v2330, %v1992
    %v2373 = vmul.f32 %v2332, %v1994
    %v2374 = vmul.f32 %v2336, %v1992
    %v2375 = vmul.f32 %v2338, %v1994
    %v2376 = vmul.f32 %v2342, %v1992
    %v2377 = vmul.f32 %v2344, %v1994
    %v2378 = vadd.f32 %v2346, %v2091
    %v2379 = vadd.f32 %v2347, %v2093
    %v2380 = vadd.f32 %v2348, %v2097
    %v2381 = vadd.f32 %v2349, %v2099
    %v2382 = vadd.f32 %v2350, %v2103
    %v2383 = vadd.f32 %v2351, %v2105
    %v2384 = vadd.f32 %v2352, %v2109
    %v2385 = vadd.f32 %v2353, %v2111
    %v2386 = vadd.f32 %v2354, %v2115
    %v2387 = vadd.f32 %v2355, %v2117
    %v2388 = vadd.f32 %v2356, %v2121
    %v2389 = vadd.f32 %v2357, %v2123
    %v2390 = vadd.f32 %v2358, %v2127
    %v2391 = vadd.f32 %v2359, %v2129
    %v2392 = vadd.f32 %v2360, %v2133
    %v2393 = vadd.f32 %v2361, %v2135
    %v2394 = vadd.f32 %v2362, %v2139
    %v2395 = vadd.f32 %v2363, %v2141
    %v2396 = vadd.f32 %v2364, %v2145
    %v2397 = vadd.f32 %v2365, %v2147
    %v2398 = vadd.f32 %v2366, %v2151
    %v2399 = vadd.f32 %v2367, %v2153
    %v2400 = vadd.f32 %v2368, %v2157
    %v2401 = vadd.f32 %v2369, %v2159
    %v2402 = vadd.f32 %v2370, %v2163
    %v2403 = vadd.f32 %v2371, %v2165
    %v2404 = vadd.f32 %v2372, %v2169
    %v2405 = vadd.f32 %v2373, %v2171
    %v2406 = vadd.f32 %v2374, %v2175
    %v2407 = vadd.f32 %v2375, %v2177
    %v2408 = vadd.f32 %v2376, %v2181
    %v2409 = vadd.f32 %v2377, %v2183
    %v2410 = vxor.u32 %v2378, 2147483648
    %v2411 = vxor.u32 %v2379, 2147483648
    %v2412 = vxor.u32 %v2380, 2147483648
    %v2413 = vxor.u32 %v2381, 2147483648
    %v2414 = vxor.u32 %v2382, 2147483648
    %v2415 = vxor.u32 %v2383, 2147483648
    %v2416 = vxor.u32 %v2384, 2147483648
    %v2417 = vxor.u32 %v2385, 2147483648
    %v2418 = vxor.u32 %v2386, 2147483648
    %v2419 = vxor.u32 %v2387, 2147483648
    %v2420 = vxor.u32 %v2388, 2147483648
    %v2421 = vxor.u32 %v2389, 2147483648
    %v2422 = vxor.u32 %v2390, 2147483648
    %v2423 = vxor.u32 %v2391, 2147483648
    %v2424 = vxor.u32 %v2392, 2147483648
    %v2425 = vxor.u32 %v2393, 2147483648
    %v2426 = vxor.u32 %v2402, 2147483648
    %v2427 = vxor.u32 %v2403, 2147483648
    %v2428 = vxor.u32 %v2404, 2147483648
    %v2429 = vxor.u32 %v2405, 2147483648
    %v2430 = vxor.u32 %v2406, 2147483648
    %v2431 = vxor.u32 %v2407, 2147483648
    %v2432 = vxor.u32 %v2408, 2147483648
    %v2433 = vxor.u32 %v2409, 2147483648
    %v2434 = vmul.f32 %v2410, 1.442695
    %v2435 = vpow.pop %v2434
    %v2436 = vmul.f32 %v2411, 1.442695
    %v2437 = vpow.pop %v2436
    %v2438 = vmul.f32 %v2412, 1.442695
    %v2439 = vpow.pop %v2438
    %v2440 = vmul.f32 %v2413, 1.442695
    %v2441 = vpow.pop %v2440
    %v2442 = vmul.f32 %v2414, 1.442695
    %v2443 = vpow.pop %v2442
    %v2444 = vmul.f32 %v2415, 1.442695
    %v2445 = vpow.pop %v2444
    %v2446 = vmul.f32 %v2416, 1.442695
    %v2447 = vpow.pop %v2446
    %v2448 = vmul.f32 %v2417, 1.442695
    %v2449 = vpow.pop %v2448
    %v2450 = vmul.f32 %v2418, 1.442695
    %v2451 = vpow.pop %v2450
    %v2452 = vmul.f32 %v2419, 1.442695
    %v2453 = vpow.pop %v2452
    %v2454 = vmul.f32 %v2420, 1.442695
    %v2455 = vpow.pop %v2454
    %v2456 = vmul.f32 %v2421, 1.442695
    %v2457 = vpow.pop %v2456
    %v2458 = vmul.f32 %v2422, 1.442695
    %v2459 = vpow.pop %v2458
    %v2460 = vmul.f32 %v2423, 1.442695
    %v2461 = vpow.pop %v2460
    %v2462 = vmul.f32 %v2424, 1.442695
    %v2463 = vpow.pop %v2462
    %v2464 = vmul.f32 %v2425, 1.442695
    %v2465 = vpow.pop %v2464
    %v2466 = vmul.f32 %v2426, 1.442695
    %v2467 = vpow.pop %v2466
    %v2468 = vmul.f32 %v2427, 1.442695
    %v2469 = vpow.pop %v2468
    %v2470 = vmul.f32 %v2428, 1.442695
    %v2471 = vpow.pop %v2470
    %v2472 = vmul.f32 %v2429, 1.442695
    %v2473 = vpow.pop %v2472
    %v2474 = vmul.f32 %v2430, 1.442695
    %v2475 = vpow.pop %v2474
    %v2476 = vmul.f32 %v2431, 1.442695
    %v2477 = vpow.pop %v2476
    %v2478 = vmul.f32 %v2432, 1.442695
    %v2479 = vpow.pop %v2478
    %v2480 = vmul.f32 %v2433, 1.442695
    %v2481 = vpow.pop %v2480
    %v2482 = vadd.f32 %v2435, 1.0
    %v2483 = vadd.f32 %v2437, 1.0
    %v2484 = vadd.f32 %v2439, 1.0
    %v2485 = vadd.f32 %v2441, 1.0
    %v2486 = vadd.f32 %v2443, 1.0
    %v2487 = vadd.f32 %v2445, 1.0
    %v2488 = vadd.f32 %v2447, 1.0
    %v2489 = vadd.f32 %v2449, 1.0
    %v2490 = vadd.f32 %v2451, 1.0
    %v2491 = vadd.f32 %v2453, 1.0
    %v2492 = vadd.f32 %v2455, 1.0
    %v2493 = vadd.f32 %v2457, 1.0
    %v2494 = vadd.f32 %v2459, 1.0
    %v2495 = vadd.f32 %v2461, 1.0
    %v2496 = vadd.f32 %v2463, 1.0
    %v2497 = vadd.f32 %v2465, 1.0
    %v2498 = vadd.f32 %v2467, 1.0
    %v2499 = vadd.f32 %v2469, 1.0
    %v2500 = vadd.f32 %v2471, 1.0
    %v2501 = vadd.f32 %v2473, 1.0
    %v2502 = vadd.f32 %v2475, 1.0
    %v2503 = vadd.f32 %v2477, 1.0
    %v2504 = vadd.f32 %v2479, 1.0
    %v2505 = vadd.f32 %v2481, 1.0
    %v2506 = vrcp.pop %v2482
    %v2507 = vmul.f32 1.0, %v2506
    %v2508 = vrcp.pop %v2483
    %v2509 = vmul.f32 1.0, %v2508
    %v2510 = vrcp.pop %v2484
    %v2511 = vmul.f32 1.0, %v2510
    %v2512 = vrcp.pop %v2485
    %v2513 = vmul.f32 1.0, %v2512
    %v2514 = vrcp.pop %v2486
    %v2515 = vmul.f32 1.0, %v2514
    %v2516 = vrcp.pop %v2487
    %v2517 = vmul.f32 1.0, %v2516
    %v2518 = vrcp.pop %v2488
    %v2519 = vmul.f32 1.0, %v2518
    %v2520 = vrcp.pop %v2489
    %v2521 = vmul.f32 1.0, %v2520
    %v2522 = vrcp.pop %v2490
    %v2523 = vmul.f32 1.0, %v2522
    %v2524 = vrcp.pop %v2491
    %v2525 = vmul.f32 1.0, %v2524
    %v2526 = vrcp.pop %v2492
    %v2527 = vmul.f32 1.0, %v2526
    %v2528 = vrcp.pop %v2493
    %v2529 = vmul.f32 1.0, %v2528
    %v2530 = vrcp.pop %v2494
    %v2531 = vmul.f32 1.0, %v2530
    %v2532 = vrcp.pop %v2495
    %v2533 = vmul.f32 1.0, %v2532
    %v2534 = vrcp.pop %v2496
    %v2535 = vmul.f32 1.0, %v2534
    %v2536 = vrcp.pop %v2497
    %v2537 = vmul.f32 1.0, %v2536
    %v2538 = vrcp.pop %v2498
    %v2539 = vmul.f32 1.0, %v2538
    %v2540 = vrcp.pop %v2499
    %v2541 = vmul.f32 1.0, %v2540
    %v2542 = vrcp.pop %v2500
    %v2543 = vmul.f32 1.0, %v2542
    %v2544 = vrcp.pop %v2501
    %v2545 = vmul.f32 1.0, %v2544
    %v2546 = vrcp.pop %v2502
    %v2547 = vmul.f32 1.0, %v2546
    %v2548 = vrcp.pop %v2503
    %v2549 = vmul.f32 1.0, %v2548
    %v2550 = vrcp.pop %v2504
    %v2551 = vmul.f32 1.0, %v2550
    %v2552 = vrcp.pop %v2505
    %v2553 = vmul.f32 1.0, %v2552
    %v2554 = vtanh.pop %v2394
    %v2555 = vtanh.pop %v2395
    %v2556 = vtanh.pop %v2396
    %v2557 = vtanh.pop %v2397
    %v2558 = vtanh.pop %v2398
    %v2559 = vtanh.pop %v2399
    %v2560 = vtanh.pop %v2400
    %v2561 = vtanh.pop %v2401
    %v2562 = vmul.f32 %v2523, %v366
    %v2563 = vmul.f32 %v2525, %v367
    %v2564 = vmul.f32 %v2527, %v368
    %v2565 = vmul.f32 %v2529, %v369
    %v2566 = vmul.f32 %v2531, %v370
    %v2567 = vmul.f32 %v2533, %v371
    %v2568 = vmul.f32 %v2535, %v372
    %v2569 = vmul.f32 %v2537, %v373
    %v2570 = vmul.f32 %v2507, %v2554
    %v2571 = vmul.f32 %v2509, %v2555
    %v2572 = vmul.f32 %v2511, %v2556
    %v2573 = vmul.f32 %v2513, %v2557
    %v2574 = vmul.f32 %v2515, %v2558
    %v2575 = vmul.f32 %v2517, %v2559
    %v2576 = vmul.f32 %v2519, %v2560
    %v2577 = vmul.f32 %v2521, %v2561
    %v2578 = vadd.f32 %v2562, %v2570
    %v2579 = vadd.f32 %v2563, %v2571
    %v2580 = vadd.f32 %v2564, %v2572
    %v2581 = vadd.f32 %v2565, %v2573
    %v2582 = vadd.f32 %v2566, %v2574
    %v2583 = vadd.f32 %v2567, %v2575
    %v2584 = vadd.f32 %v2568, %v2576
    %v2585 = vadd.f32 %v2569, %v2577
    %v2586 = vtanh.pop %v2578
    %v2587 = vtanh.pop %v2579
    %v2588 = vtanh.pop %v2580
    %v2589 = vtanh.pop %v2581
    %v2590 = vtanh.pop %v2582
    %v2591 = vtanh.pop %v2583
    %v2592 = vtanh.pop %v2584
    %v2593 = vtanh.pop %v2585
    %v2594 = vmul.f32 %v2539, %v2586
    %v2595 = vmul.f32 %v2541, %v2587
    %v2596 = vmul.f32 %v2543, %v2588
    %v2597 = vmul.f32 %v2545, %v2589
    %v2598 = vmul.f32 %v2547, %v2590
    %v2599 = vmul.f32 %v2549, %v2591
    %v2600 = vmul.f32 %v2551, %v2592
    %v2601 = vmul.f32 %v2553, %v2593
    %2602 = vmatprep.subr.mxu0 %v2595
    %2603 = vmatpush1.msra.mxu0 %v2594
    %2604 = vmatprep.subr.mxu0 %v2597
    %2605 = vmatpush1.msra.mxu0 %v2596
    %2606 = vmatprep.subr.mxu0 %v2599
    %2607 = vmatpush1.msra.mxu0 %v2598
    %2608 = vmatprep.subr.mxu0 %v2601
    %2609 = vmatpush1.msra.mxu0 %v2600
    %2610 = vmatprep.subr.mxu0 0.0
    %2611 = vmatpush1.msra.mxu0 0.0
    %2612 = vmatprep.subr.mxu0 0.0
    %2613 = vmatpush1.msra.mxu0 0.0
    %2614 = vmatprep.subr.mxu0 0.0
    %2615 = vmatpush1.msra.mxu0 0.0
    %2616 = vmatprep.subr.mxu0 0.0
    %2617 = vmatpush1.msra.mxu0 0.0
    %2618 = vmatprep.subr.mxu0 0.0
    %2619 = vmatpush1.msra.mxu0 0.0
    %2620 = vmatprep.subr.mxu0 0.0
    %2621 = vmatpush1.msra.mxu0 0.0
    %2622 = vmatprep.subr.mxu0 0.0
    %2623 = vmatpush1.msra.mxu0 0.0
    %2624 = vmatprep.subr.mxu0 0.0
    %2625 = vmatpush1.msra.mxu0 0.0
    %2626 = vmatprep.subr.mxu0 0.0
    %2627 = vmatpush1.msra.mxu0 0.0
    %2628 = vmatprep.subr.mxu0 0.0
    %2629 = vmatpush1.msra.mxu0 0.0
    %2630 = vmatprep.subr.mxu0 0.0
    %2631 = vmatpush1.msra.mxu0 0.0
    %2632 = vmatprep.subr.mxu0 0.0
    %2633 = vmatpush1.msra.mxu0 0.0
    %2634 = vmatprep.subr.mxu0 0.0
    %2635 = vmatpush1.msra.mxu0 0.0
    %2636 = vmatprep.subr.mxu0 0.0
    %2637 = vmatpush1.msra.mxu0 0.0
    %2638 = vmatprep.subr.mxu0 0.0
    %2639 = vmatpush1.msra.mxu0 0.0
    %2640 = vmatprep.subr.mxu0 0.0
    %2641 = vmatpush1.msra.mxu0 0.0
    %2642 = vmatprep.subr.mxu0 0.0
    %2643 = vmatpush1.msra.mxu0 0.0
    %2644 = vmatprep.subr.mxu0 0.0
    %2645 = vmatpush1.msra.mxu0 0.0
    %2646 = vmatprep.subr.mxu0 0.0
    %2647 = vmatpush1.msra.mxu0 0.0
    %2648 = vmatprep.subr.mxu0 0.0
    %2649 = vmatpush1.msra.mxu0 0.0
    %2650 = vmatprep.subr.mxu0 0.0
    %2651 = vmatpush1.msra.mxu0 0.0
    %2652 = vmatprep.subr.mxu0 0.0
    %2653 = vmatpush1.msra.mxu0 0.0
    %2654 = vmatprep.subr.mxu0 0.0
    %2655 = vmatpush1.msra.mxu0 0.0
    %2656 = vmatprep.subr.mxu0 0.0
    %2657 = vmatpush1.msra.mxu0 0.0
    %2658 = vmatprep.subr.mxu0 0.0
    %2659 = vmatpush1.msra.mxu0 0.0
    %2660 = vmatprep.subr.mxu0 0.0
    %2661 = vmatpush1.msra.mxu0 0.0
    %2662 = vmatprep.subr.mxu0 0.0
    %2663 = vmatpush1.msra.mxu0 0.0
    %2664 = vmatprep.subr.mxu0 0.0
    %2665 = vmatpush1.msra.mxu0 0.0
    %2666 = vmatprep.mubr.f32.mxu0 0.0
    %2667 = vmatmul.mubr.f32.gmra.mrb[0].mxu0 %v1050
    %v2668 = vpop.f32.mrb[0].mxu0
    %v2669 = vadd.f32 0.0, %v2668
    %v2670 = vpop.f32.mrb[0].mxu0
    %v2671 = vadd.f32 0.0, %v2670
    %2672 = vmatprep.mubr.f32.mxu0 0.0
    %2673 = vmatmul.mubr.f32.gmra.mrb[0].mxu0 %v1053
    %v2674 = vpop.f32.mrb[0].mxu0
    %v2675 = vadd.f32 0.0, %v2674
    %v2676 = vpop.f32.mrb[0].mxu0
    %v2677 = vadd.f32 0.0, %v2676
    %2678 = vmatprep.mubr.f32.mxu0 0.0
    %2679 = vmatmul.mubr.f32.gmra.mrb[0].mxu0 %v1056
    %v2680 = vpop.f32.mrb[0].mxu0
    %v2681 = vadd.f32 0.0, %v2680
    %v2682 = vpop.f32.mrb[0].mxu0
    %v2683 = vadd.f32 0.0, %v2682
    %2684 = vdwg.mxu0
    %v2685 = vrot.slane %v2669, 4
    %v2686 = vmax.f32 %v2669, %v2685
    %v2687 = vrot.slane %v2686, 2
    %v2688 = vmax.f32 %v2686, %v2687
    %v2689 = vrot.slane %v2688, 1
    %v2690 = vmax.f32 %v2688, %v2689
    %v2691 = vrot.slane %v2671, 4
    %v2692 = vmax.f32 %v2671, %v2691
    %v2693 = vrot.slane %v2692, 2
    %v2694 = vmax.f32 %v2692, %v2693
    %v2695 = vrot.slane %v2694, 1
    %v2696 = vmax.f32 %v2694, %v2695
    %v2697 = vsub.f32 %v2669, %v2690
    %v2698 = vsub.f32 %v2671, %v2696
    %v2699 = vmul.f32 %v2697, 1.442695
    %v2700 = vpow.pop %v2699
    %v2701 = vmul.f32 %v2698, 1.442695
    %v2702 = vpow.pop %v2701
    %v2703 = vrot.slane %v2700, 4
    %v2704 = vadd.f32 %v2700, %v2703
    %v2705 = vrot.slane %v2704, 2
    %v2706 = vadd.f32 %v2704, %v2705
    %v2707 = vrot.slane %v2706, 1
    %v2708 = vadd.f32 %v2706, %v2707
    %v2709 = vrot.slane %v2702, 4
    %v2710 = vadd.f32 %v2702, %v2709
    %v2711 = vrot.slane %v2710, 2
    %v2712 = vadd.f32 %v2710, %v2711
    %v2713 = vrot.slane %v2712, 1
    %v2714 = vadd.f32 %v2712, %v2713
    %v2715 = vlog2.pop %v2708
    %v2716 = vmul.f32 %v2715, 0.6931472
    %v2717 = vlog2.pop %v2714
    %v2718 = vmul.f32 %v2717, 0.6931472
    %v2719 = vsub.f32 %v2697, %v2716
    %v2720 = vsub.f32 %v2698, %v2718
    %s2721 = scalar_lea.vmem [#allocation2], 32
    %2722 = vst [vmem:[%s2721] sm:$0xff] %v2719
    %2723 = vst [vmem:[%s2721 + $0x8] sm:$0xff] %v2720
    %v2724 = vmax.f32 %v2675, %v2681
    %v2725 = vrot.slane %v2724, 4
    %v2726 = vmax.f32 %v2724, %v2725
    %v2727 = vrot.slane %v2726, 2
    %v2728 = vmax.f32 %v2726, %v2727
    %v2729 = vrot.slane %v2728, 1
    %v2730 = vmax.f32 %v2728, %v2729
    %v2731 = vmax.f32 %v2677, %v2683
    %v2732 = vrot.slane %v2731, 4
    %v2733 = vmax.f32 %v2731, %v2732
    %v2734 = vrot.slane %v2733, 2
    %v2735 = vmax.f32 %v2733, %v2734
    %v2736 = vrot.slane %v2735, 1
    %v2737 = vmax.f32 %v2735, %v2736
    %v2738 = vsub.f32 %v2675, %v2730
    %v2739 = vsub.f32 %v2677, %v2737
    %v2740 = vsub.f32 %v2681, %v2730
    %v2741 = vsub.f32 %v2683, %v2737
    %v2742 = vmul.f32 %v2738, 1.442695
    %v2743 = vpow.pop %v2742
    %v2744 = vmul.f32 %v2739, 1.442695
    %v2745 = vpow.pop %v2744
    %v2746 = vmul.f32 %v2740, 1.442695
    %v2747 = vpow.pop %v2746
    %v2748 = vmul.f32 %v2741, 1.442695
    %v2749 = vpow.pop %v2748
    %v2750 = vadd.f32 %v2743, %v2747
    %v2751 = vrot.slane %v2750, 4
    %v2752 = vadd.f32 %v2750, %v2751
    %v2753 = vrot.slane %v2752, 2
    %v2754 = vadd.f32 %v2752, %v2753
    %v2755 = vrot.slane %v2754, 1
    %v2756 = vadd.f32 %v2754, %v2755
    %v2757 = vadd.f32 %v2745, %v2749
    %v2758 = vrot.slane %v2757, 4
    %v2759 = vadd.f32 %v2757, %v2758
    %v2760 = vrot.slane %v2759, 2
    %v2761 = vadd.f32 %v2759, %v2760
    %v2762 = vrot.slane %v2761, 1
    %v2763 = vadd.f32 %v2761, %v2762
    %v2764 = vrcp.pop %v2756
    %v2765 = vmul.f32 1.0, %v2764
    %v2766 = vrcp.pop %v2763
    %v2767 = vmul.f32 1.0, %v2766
    %v2768 = vmul.f32 %v2743, %v2765
    %v2769 = vmul.f32 %v2745, %v2767
    %v2770 = vmul.f32 %v2747, %v2765
    %v2771 = vmul.f32 %v2749, %v2767
    %s2772 = scalar_lea.vmem [#allocation4], 64
    %2773 = vst [vmem:[%s2772] sm:$0xff] %v2768
    %2774 = vst [vmem:[%s2772 + $0x8] sm:$0xff] %v2769
    %2775 = vst [vmem:[%s2772 + $0x10] sm:$0xff] %v2770
    %2776 = vst [vmem:[%s2772 + $0x18] sm:$0xff] %v2771
    %v2777 = vlaneseq
    %v2778 = vshrl.u32 %v2777, 7
    %v2779 = vsub.s32 3, %v2778
    %v2780 = vrot.slane %v409, %v2779
    %v2781 = vlaneseq
    %v2782 = vshrl.u32 %v2781, 7
    %v2783 = vsub.s32 3, %v2782
    %v2784 = vrot.slane %v410, %v2783
    %vm2785 = vcmp.eq.s32.totalorder %v412, %v2780
    %vm2786 = vcmp.eq.s32.totalorder %v412, %v2784
    %vm2787 = vcmp.eq.s32.totalorder %v413, %v2780
    %vm2788 = vcmp.eq.s32.totalorder %v413, %v2784
    %v2789 = vsel %vm2785, 1, 0
    %v2790 = vsel %vm2786, 1, 0
    %v2791 = vsel %vm2787, 1, 0
    %v2792 = vsel %vm2788, 1, 0
    %v2793 = vcvt.s32.f32 %v2789
    %v2794 = vcvt.s32.f32 %v2790
    %v2795 = vcvt.s32.f32 %v2791
    %v2796 = vcvt.s32.f32 %v2792
    %2797 = vmatprep.subr.mxu0 %v2794
    %2798 = vmatpush1.msra.mxu0 %v2793
    %2799 = vmatprep.subr.mxu0 %v2796
    %2800 = vmatpush1.msra.mxu0 %v2795
    %2801 = vmatprep.subr.mxu0 0.0
    %2802 = vmatpush1.msra.mxu0 0.0
    %2803 = vmatprep.subr.mxu0 0.0
    %2804 = vmatpush1.msra.mxu0 0.0
    %2805 = vmatprep.subr.mxu0 0.0
    %2806 = vmatpush1.msra.mxu0 0.0
    %2807 = vmatprep.subr.mxu0 0.0
    %2808 = vmatpush1.msra.mxu0 0.0
    %2809 = vmatprep.subr.mxu0 0.0
    %2810 = vmatpush1.msra.mxu0 0.0
    %2811 = vmatprep.subr.mxu0 0.0
    %2812 = vmatpush1.msra.mxu0 0.0
    %2813 = vmatprep.subr.mxu0 0.0
    %2814 = vmatpush1.msra.mxu0 0.0
    %2815 = vmatprep.subr.mxu0 0.0
    %2816 = vmatpush1.msra.mxu0 0.0
    %2817 = vmatprep.subr.mxu0 0.0
    %2818 = vmatpush1.msra.mxu0 0.0
    %2819 = vmatprep.subr.mxu0 0.0
    %2820 = vmatpush1.msra.mxu0 0.0
    %2821 = vmatprep.subr.mxu0 0.0
    %2822 = vmatpush1.msra.mxu0 0.0
    %2823 = vmatprep.subr.mxu0 0.0
    %2824 = vmatpush1.msra.mxu0 0.0
    %2825 = vmatprep.subr.mxu0 0.0
    %2826 = vmatpush1.msra.mxu0 0.0
    %2827 = vmatprep.subr.mxu0 0.0
    %2828 = vmatpush1.msra.mxu0 0.0
    %2829 = vmatprep.subr.mxu0 0.0
    %2830 = vmatpush1.msra.mxu0 0.0
    %2831 = vmatprep.subr.mxu0 0.0
    %2832 = vmatpush1.msra.mxu0 0.0
    %2833 = vmatprep.subr.mxu0 0.0
    %2834 = vmatpush1.msra.mxu0 0.0
    %2835 = vmatprep.subr.mxu0 0.0
    %2836 = vmatpush1.msra.mxu0 0.0
    %2837 = vmatprep.subr.mxu0 0.0
    %2838 = vmatpush1.msra.mxu0 0.0
    %2839 = vmatprep.subr.mxu0 0.0
    %2840 = vmatpush1.msra.mxu0 0.0
    %2841 = vmatprep.subr.mxu0 0.0
    %2842 = vmatpush1.msra.mxu0 0.0
    %2843 = vmatprep.subr.mxu0 0.0
    %2844 = vmatpush1.msra.mxu0 0.0
    %2845 = vmatprep.subr.mxu0 0.0
    %2846 = vmatpush1.msra.mxu0 0.0
    %2847 = vmatprep.subr.mxu0 0.0
    %2848 = vmatpush1.msra.mxu0 0.0
    %2849 = vmatprep.subr.mxu0 0.0
    %2850 = vmatpush1.msra.mxu0 0.0
    %2851 = vmatprep.subr.mxu0 0.0
    %2852 = vmatpush1.msra.mxu0 0.0
    %2853 = vmatprep.subr.mxu0 0.0
    %2854 = vmatpush1.msra.mxu0 0.0
    %2855 = vmatprep.subr.mxu0 0.0
    %2856 = vmatpush1.msra.mxu0 0.0
    %2857 = vmatprep.subr.mxu0 0.0
    %2858 = vmatpush1.msra.mxu0 0.0
    %2859 = vmatprep.subr.mxu0 0.0
    %2860 = vmatpush1.msra.mxu0 0.0
    %2861 = vmatprep.mubr.f32.mxu0 0.0
    %2862 = vmatmul.mubr.f32.gmra.mrb[0].mxu0 %v440
    %v2863 = vpop.f32.mrb[0].mxu0
    %v2864 = vadd.f32 %v272, %v2863
    %v2865 = vpop.f32.mrb[0].mxu0
    %v2866 = vadd.f32 %v274, %v2865
    %2867 = vmatprep.mubr.f32.mxu0 0.0
    %2868 = vmatmul.mubr.f32.gmra.mrb[0].mxu0 %v443
    %v2869 = vpop.f32.mrb[0].mxu0
    %v2870 = vadd.f32 %v278, %v2869
    %v2871 = vpop.f32.mrb[0].mxu0
    %v2872 = vadd.f32 %v280, %v2871
    %2873 = vmatprep.mubr.f32.mxu0 0.0
    %2874 = vmatmul.mubr.f32.gmra.mrb[0].mxu0 %v446
    %v2875 = vpop.f32.mrb[0].mxu0
    %v2876 = vadd.f32 %v284, %v2875
    %v2877 = vpop.f32.mrb[0].mxu0
    %v2878 = vadd.f32 %v286, %v2877
    %2879 = vmatprep.mubr.f32.mxu0 0.0
    %2880 = vmatmul.mubr.f32.gmra.mrb[0].mxu0 %v449
    %v2881 = vpop.f32.mrb[0].mxu0
    %v2882 = vadd.f32 %v290, %v2881
    %v2883 = vpop.f32.mrb[0].mxu0
    %v2884 = vadd.f32 %v292, %v2883
    %2885 = vmatprep.mubr.f32.mxu0 0.0
    %2886 = vmatmul.mubr.f32.gmra.mrb[0].mxu0 %v452
    %v2887 = vpop.f32.mrb[0].mxu0
    %v2888 = vadd.f32 %v296, %v2887
    %v2889 = vpop.f32.mrb[0].mxu0
    %v2890 = vadd.f32 %v298, %v2889
    %2891 = vmatprep.mubr.f32.mxu0 0.0
    %2892 = vmatmul.mubr.f32.gmra.mrb[0].mxu0 %v455
    %v2893 = vpop.f32.mrb[0].mxu0
    %v2894 = vadd.f32 %v302, %v2893
    %v2895 = vpop.f32.mrb[0].mxu0
    %v2896 = vadd.f32 %v304, %v2895
    %2897 = vmatprep.mubr.f32.mxu0 0.0
    %2898 = vmatmul.mubr.f32.gmra.mrb[0].mxu0 %v458
    %v2899 = vpop.f32.mrb[0].mxu0
    %v2900 = vadd.f32 %v308, %v2899
    %v2901 = vpop.f32.mrb[0].mxu0
    %v2902 = vadd.f32 %v310, %v2901
    %2903 = vmatprep.mubr.f32.mxu0 0.0
    %2904 = vmatmul.mubr.f32.gmra.mrb[0].mxu0 %v461
    %v2905 = vpop.f32.mrb[0].mxu0
    %v2906 = vadd.f32 %v314, %v2905
    %v2907 = vpop.f32.mrb[0].mxu0
    %v2908 = vadd.f32 %v316, %v2907
    %2909 = vmatprep.mubr.f32.mxu0 0.0
    %2910 = vmatmul.mubr.f32.gmra.mrb[0].mxu0 %v464
    %v2911 = vpop.f32.mrb[0].mxu0
    %v2912 = vadd.f32 %v320, %v2911
    %v2913 = vpop.f32.mrb[0].mxu0
    %v2914 = vadd.f32 %v322, %v2913
    %2915 = vmatprep.mubr.f32.mxu0 0.0
    %2916 = vmatmul.mubr.f32.gmra.mrb[0].mxu0 %v467
    %v2917 = vpop.f32.mrb[0].mxu0
    %v2918 = vadd.f32 %v326, %v2917
    %v2919 = vpop.f32.mrb[0].mxu0
    %v2920 = vadd.f32 %v328, %v2919
    %2921 = vmatprep.mubr.f32.mxu0 0.0
    %2922 = vmatmul.mubr.f32.gmra.mrb[0].mxu0 %v470
    %v2923 = vpop.f32.mrb[0].mxu0
    %v2924 = vadd.f32 %v332, %v2923
    %v2925 = vpop.f32.mrb[0].mxu0
    %v2926 = vadd.f32 %v334, %v2925
    %2927 = vmatprep.mubr.f32.mxu0 0.0
    %2928 = vmatmul.mubr.f32.gmra.mrb[0].mxu0 %v473
    %v2929 = vpop.f32.mrb[0].mxu0
    %v2930 = vadd.f32 %v338, %v2929
    %v2931 = vpop.f32.mrb[0].mxu0
    %v2932 = vadd.f32 %v340, %v2931
    %2933 = vmatprep.mubr.f32.mxu0 0.0
    %2934 = vmatmul.mubr.f32.gmra.mrb[0].mxu0 %v476
    %v2935 = vpop.f32.mrb[0].mxu0
    %v2936 = vadd.f32 %v344, %v2935
    %v2937 = vpop.f32.mrb[0].mxu0
    %v2938 = vadd.f32 %v346, %v2937
    %2939 = vmatprep.mubr.f32.mxu0 0.0
    %2940 = vmatmul.mubr.f32.gmra.mrb[0].mxu0 %v479
    %v2941 = vpop.f32.mrb[0].mxu0
    %v2942 = vadd.f32 %v350, %v2941
    %v2943 = vpop.f32.mrb[0].mxu0
    %v2944 = vadd.f32 %v352, %v2943
    %2945 = vmatprep.mubr.f32.mxu0 0.0
    %2946 = vmatmul.mubr.f32.gmra.mrb[0].mxu0 %v482
    %v2947 = vpop.f32.mrb[0].mxu0
    %v2948 = vadd.f32 %v356, %v2947
    %v2949 = vpop.f32.mrb[0].mxu0
    %v2950 = vadd.f32 %v358, %v2949
    %2951 = vmatprep.mubr.f32.mxu0 0.0
    %2952 = vmatmul.mubr.f32.gmra.mrb[0].mxu0 %v485
    %v2953 = vpop.f32.mrb[0].mxu0
    %v2954 = vadd.f32 %v362, %v2953
    %v2955 = vpop.f32.mrb[0].mxu0
    %v2956 = vadd.f32 %v364, %v2955
    %2957 = vdwg.mxu0
    %2958 = vmatprep.subr.mxu0 %v2745
    %2959 = vmatpush1.msra.mxu0 %v2743
    %2960 = vmatprep.subr.mxu0 %v2749
    %2961 = vmatpush1.msra.mxu0 %v2747
    %2962 = vmatprep.subr.mxu0 0.0
    %2963 = vmatpush1.msra.mxu0 0.0
    %2964 = vmatprep.subr.mxu0 0.0
    %2965 = vmatpush1.msra.mxu0 0.0
    %2966 = vmatprep.subr.mxu0 0.0
    %2967 = vmatpush1.msra.mxu0 0.0
    %2968 = vmatprep.subr.mxu0 0.0
    %2969 = vmatpush1.msra.mxu0 0.0
    %2970 = vmatprep.subr.mxu0 0.0
    %2971 = vmatpush1.msra.mxu0 0.0
    %2972 = vmatprep.subr.mxu0 0.0
    %2973 = vmatpush1.msra.mxu0 0.0
    %2974 = vmatprep.subr.mxu0 0.0
    %2975 = vmatpush1.msra.mxu0 0.0
    %2976 = vmatprep.subr.mxu0 0.0
    %2977 = vmatpush1.msra.mxu0 0.0
    %2978 = vmatprep.subr.mxu0 0.0
    %2979 = vmatpush1.msra.mxu0 0.0
    %2980 = vmatprep.subr.mxu0 0.0
    %2981 = vmatpush1.msra.mxu0 0.0
    %2982 = vmatprep.subr.mxu0 0.0
    %2983 = vmatpush1.msra.mxu0 0.0
    %2984 = vmatprep.subr.mxu0 0.0
    %2985 = vmatpush1.msra.mxu0 0.0
    %2986 = vmatprep.subr.mxu0 0.0
    %2987 = vmatpush1.msra.mxu0 0.0
    %2988 = vmatprep.subr.mxu0 0.0
    %2989 = vmatpush1.msra.mxu0 0.0
    %2990 = vmatprep.subr.mxu0 0.0
    %2991 = vmatpush1.msra.mxu0 0.0
    %2992 = vmatprep.subr.mxu0 0.0
    %2993 = vmatpush1.msra.mxu0 0.0
    %2994 = vmatprep.subr.mxu0 0.0
    %2995 = vmatpush1.msra.mxu0 0.0
    %2996 = vmatprep.subr.mxu0 0.0
    %2997 = vmatpush1.msra.mxu0 0.0
    %2998 = vmatprep.subr.mxu0 0.0
    %2999 = vmatpush1.msra.mxu0 0.0
    %3000 = vmatprep.subr.mxu0 0.0
    %3001 = vmatpush1.msra.mxu0 0.0
    %3002 = vmatprep.subr.mxu0 0.0
    %3003 = vmatpush1.msra.mxu0 0.0
    %3004 = vmatprep.subr.mxu0 0.0
    %3005 = vmatpush1.msra.mxu0 0.0
    %3006 = vmatprep.subr.mxu0 0.0
    %3007 = vmatpush1.msra.mxu0 0.0
    %3008 = vmatprep.subr.mxu0 0.0
    %3009 = vmatpush1.msra.mxu0 0.0
    %3010 = vmatprep.subr.mxu0 0.0
    %3011 = vmatpush1.msra.mxu0 0.0
    %3012 = vmatprep.subr.mxu0 0.0
    %3013 = vmatpush1.msra.mxu0 0.0
    %3014 = vmatprep.subr.mxu0 0.0
    %3015 = vmatpush1.msra.mxu0 0.0
    %3016 = vmatprep.subr.mxu0 0.0
    %3017 = vmatpush1.msra.mxu0 0.0
    %3018 = vmatprep.subr.mxu0 0.0
    %3019 = vmatpush1.msra.mxu0 0.0
    %3020 = vmatprep.subr.mxu0 0.0
    %3021 = vmatpush1.msra.mxu0 0.0
    %3022 = vmatprep.mubr.f32.mxu0 0.0
    %3023 = vmatmul.mubr.f32.gmra.mrb[0].mxu0 %v649
    %v3024 = vpop.f32.mrb[0].mxu0
    %v3025 = vadd.f32 0.0, %v3024
    %v3026 = vpop.f32.mrb[0].mxu0
    %v3027 = vadd.f32 0.0, %v3026
    %3028 = vmatprep.mubr.f32.mxu0 0.0
    %3029 = vmatmul.mubr.f32.gmra.mrb[0].mxu0 %v652
    %v3030 = vpop.f32.mrb[0].mxu0
    %v3031 = vadd.f32 0.0, %v3030
    %v3032 = vpop.f32.mrb[0].mxu0
    %v3033 = vadd.f32 0.0, %v3032
    %3034 = vmatprep.mubr.f32.mxu0 0.0
    %3035 = vmatmul.mubr.f32.gmra.mrb[0].mxu0 %v655
    %v3036 = vpop.f32.mrb[0].mxu0
    %v3037 = vadd.f32 0.0, %v3036
    %v3038 = vpop.f32.mrb[0].mxu0
    %v3039 = vadd.f32 0.0, %v3038
    %3040 = vmatprep.mubr.f32.mxu0 0.0
    %3041 = vmatmul.mubr.f32.gmra.mrb[0].mxu0 %v658
    %v3042 = vpop.f32.mrb[0].mxu0
    %v3043 = vadd.f32 0.0, %v3042
    %v3044 = vpop.f32.mrb[0].mxu0
    %v3045 = vadd.f32 0.0, %v3044
    %3046 = vmatprep.mubr.f32.mxu0 0.0
    %3047 = vmatmul.mubr.f32.gmra.mrb[0].mxu0 %v661
    %v3048 = vpop.f32.mrb[0].mxu0
    %v3049 = vadd.f32 0.0, %v3048
    %v3050 = vpop.f32.mrb[0].mxu0
    %v3051 = vadd.f32 0.0, %v3050
    %3052 = vmatprep.mubr.f32.mxu0 0.0
    %3053 = vmatmul.mubr.f32.gmra.mrb[0].mxu0 %v664
    %v3054 = vpop.f32.mrb[0].mxu0
    %v3055 = vadd.f32 0.0, %v3054
    %v3056 = vpop.f32.mrb[0].mxu0
    %v3057 = vadd.f32 0.0, %v3056
    %3058 = vmatprep.mubr.f32.mxu0 0.0
    %3059 = vmatmul.mubr.f32.gmra.mrb[0].mxu0 %v667
    %v3060 = vpop.f32.mrb[0].mxu0
    %v3061 = vadd.f32 0.0, %v3060
    %v3062 = vpop.f32.mrb[0].mxu0
    %v3063 = vadd.f32 0.0, %v3062
    %3064 = vmatprep.mubr.f32.mxu0 0.0
    %3065 = vmatmul.mubr.f32.gmra.mrb[0].mxu0 %v670
    %v3066 = vpop.f32.mrb[0].mxu0
    %v3067 = vadd.f32 0.0, %v3066
    %v3068 = vpop.f32.mrb[0].mxu0
    %v3069 = vadd.f32 0.0, %v3068
    %3070 = vmatprep.mubr.f32.mxu0 0.0
    %3071 = vmatmul.mubr.f32.gmra.mrb[0].mxu0 %v673
    %v3072 = vpop.f32.mrb[0].mxu0
    %v3073 = vadd.f32 0.0, %v3072
    %v3074 = vpop.f32.mrb[0].mxu0
    %v3075 = vadd.f32 0.0, %v3074
    %3076 = vmatprep.mubr.f32.mxu0 0.0
    %3077 = vmatmul.mubr.f32.gmra.mrb[0].mxu0 %v676
    %v3078 = vpop.f32.mrb[0].mxu0
    %v3079 = vadd.f32 0.0, %v3078
    %v3080 = vpop.f32.mrb[0].mxu0
    %v3081 = vadd.f32 0.0, %v3080
    %3082 = vmatprep.mubr.f32.mxu0 0.0
    %3083 = vmatmul.mubr.f32.gmra.mrb[0].mxu0 %v679
    %v3084 = vpop.f32.mrb[0].mxu0
    %v3085 = vadd.f32 0.0, %v3084
    %v3086 = vpop.f32.mrb[0].mxu0
    %v3087 = vadd.f32 0.0, %v3086
    %3088 = vmatprep.mubr.f32.mxu0 0.0
    %3089 = vmatmul.mubr.f32.gmra.mrb[0].mxu0 %v682
    %v3090 = vpop.f32.mrb[0].mxu0
    %v3091 = vadd.f32 0.0, %v3090
    %v3092 = vpop.f32.mrb[0].mxu0
    %v3093 = vadd.f32 0.0, %v3092
    %3094 = vmatprep.mubr.f32.mxu0 0.0
    %3095 = vmatmul.mubr.f32.gmra.mrb[0].mxu0 %v685
    %v3096 = vpop.f32.mrb[0].mxu0
    %v3097 = vadd.f32 0.0, %v3096
    %v3098 = vpop.f32.mrb[0].mxu0
    %v3099 = vadd.f32 0.0, %v3098
    %3100 = vmatprep.mubr.f32.mxu0 0.0
    %3101 = vmatmul.mubr.f32.gmra.mrb[0].mxu0 %v688
    %v3102 = vpop.f32.mrb[0].mxu0
    %v3103 = vadd.f32 0.0, %v3102
    %v3104 = vpop.f32.mrb[0].mxu0
    %v3105 = vadd.f32 0.0, %v3104
    %3106 = vmatprep.mubr.f32.mxu0 0.0
    %3107 = vmatmul.mubr.f32.gmra.mrb[0].mxu0 %v691
    %v3108 = vpop.f32.mrb[0].mxu0
    %v3109 = vadd.f32 0.0, %v3108
    %v3110 = vpop.f32.mrb[0].mxu0
    %v3111 = vadd.f32 0.0, %v3110
    %3112 = vmatprep.mubr.f32.mxu0 0.0
    %3113 = vmatmul.mubr.f32.gmra.mrb[0].mxu0 %v694
    %v3114 = vpop.f32.mrb[0].mxu0
    %v3115 = vadd.f32 0.0, %v3114
    %v3116 = vpop.f32.mrb[0].mxu0
    %v3117 = vadd.f32 0.0, %v3116
    %3118 = vdwg.mxu0
    %v3119 = vmul.f32 %v3025, %v2765
    %v3120 = vmul.f32 %v3027, %v2767
    %v3121 = vmul.f32 %v3031, %v2765
    %v3122 = vmul.f32 %v3033, %v2767
    %v3123 = vmul.f32 %v3037, %v2765
    %v3124 = vmul.f32 %v3039, %v2767
    %v3125 = vmul.f32 %v3043, %v2765
    %v3126 = vmul.f32 %v3045, %v2767
    %v3127 = vmul.f32 %v3049, %v2765
    %v3128 = vmul.f32 %v3051, %v2767
    %v3129 = vmul.f32 %v3055, %v2765
    %v3130 = vmul.f32 %v3057, %v2767
    %v3131 = vmul.f32 %v3061, %v2765
    %v3132 = vmul.f32 %v3063, %v2767
    %v3133 = vmul.f32 %v3067, %v2765
    %v3134 = vmul.f32 %v3069, %v2767
    %v3135 = vmul.f32 %v3073, %v2765
    %v3136 = vmul.f32 %v3075, %v2767
    %v3137 = vmul.f32 %v3079, %v2765
    %v3138 = vmul.f32 %v3081, %v2767
    %v3139 = vmul.f32 %v3085, %v2765
    %v3140 = vmul.f32 %v3087, %v2767
    %v3141 = vmul.f32 %v3091, %v2765
    %v3142 = vmul.f32 %v3093, %v2767
    %v3143 = vmul.f32 %v3097, %v2765
    %v3144 = vmul.f32 %v3099, %v2767
    %v3145 = vmul.f32 %v3103, %v2765
    %v3146 = vmul.f32 %v3105, %v2767
    %v3147 = vmul.f32 %v3109, %v2765
    %v3148 = vmul.f32 %v3111, %v2767
    %v3149 = vmul.f32 %v3115, %v2765
    %v3150 = vmul.f32 %v3117, %v2767
    %v3151 = vadd.f32 %v3119, %v2864
    %v3152 = vadd.f32 %v3120, %v2866
    %v3153 = vadd.f32 %v3121, %v2870
    %v3154 = vadd.f32 %v3122, %v2872
    %v3155 = vadd.f32 %v3123, %v2876
    %v3156 = vadd.f32 %v3124, %v2878
    %v3157 = vadd.f32 %v3125, %v2882
    %v3158 = vadd.f32 %v3126, %v2884
    %v3159 = vadd.f32 %v3127, %v2888
    %v3160 = vadd.f32 %v3128, %v2890
    %v3161 = vadd.f32 %v3129, %v2894
    %v3162 = vadd.f32 %v3130, %v2896
    %v3163 = vadd.f32 %v3131, %v2900
    %v3164 = vadd.f32 %v3132, %v2902
    %v3165 = vadd.f32 %v3133, %v2906
    %v3166 = vadd.f32 %v3134, %v2908
    %v3167 = vadd.f32 %v3135, %v2912
    %v3168 = vadd.f32 %v3136, %v2914
    %v3169 = vadd.f32 %v3137, %v2918
    %v3170 = vadd.f32 %v3138, %v2920
    %v3171 = vadd.f32 %v3139, %v2924
    %v3172 = vadd.f32 %v3140, %v2926
    %v3173 = vadd.f32 %v3141, %v2930
    %v3174 = vadd.f32 %v3142, %v2932
    %v3175 = vadd.f32 %v3143, %v2936
    %v3176 = vadd.f32 %v3144, %v2938
    %v3177 = vadd.f32 %v3145, %v2942
    %v3178 = vadd.f32 %v3146, %v2944
    %v3179 = vadd.f32 %v3147, %v2948
    %v3180 = vadd.f32 %v3148, %v2950
    %v3181 = vadd.f32 %v3149, %v2954
    %v3182 = vadd.f32 %v3150, %v2956
    %v3183 = vxor.u32 %v3151, 2147483648
    %v3184 = vxor.u32 %v3152, 2147483648
    %v3185 = vxor.u32 %v3153, 2147483648
    %v3186 = vxor.u32 %v3154, 2147483648
    %v3187 = vxor.u32 %v3155, 2147483648
    %v3188 = vxor.u32 %v3156, 2147483648
    %v3189 = vxor.u32 %v3157, 2147483648
    %v3190 = vxor.u32 %v3158, 2147483648
    %v3191 = vxor.u32 %v3159, 2147483648
    %v3192 = vxor.u32 %v3160, 2147483648
    %v3193 = vxor.u32 %v3161, 2147483648
    %v3194 = vxor.u32 %v3162, 2147483648
    %v3195 = vxor.u32 %v3163, 2147483648
    %v3196 = vxor.u32 %v3164, 2147483648
    %v3197 = vxor.u32 %v3165, 2147483648
    %v3198 = vxor.u32 %v3166, 2147483648
    %v3199 = vxor.u32 %v3175, 2147483648
    %v3200 = vxor.u32 %v3176, 2147483648
    %v3201 = vxor.u32 %v3177, 2147483648
    %v3202 = vxor.u32 %v3178, 2147483648
    %v3203 = vxor.u32 %v3179, 2147483648
    %v3204 = vxor.u32 %v3180, 2147483648
    %v3205 = vxor.u32 %v3181, 2147483648
    %v3206 = vxor.u32 %v3182, 2147483648
    %v3207 = vmul.f32 %v3183, 1.442695
    %v3208 = vpow.pop %v3207
    %v3209 = vmul.f32 %v3184, 1.442695
    %v3210 = vpow.pop %v3209
    %v3211 = vmul.f32 %v3185, 1.442695
    %v3212 = vpow.pop %v3211
    %v3213 = vmul.f32 %v3186, 1.442695
    %v3214 = vpow.pop %v3213
    %v3215 = vmul.f32 %v3187, 1.442695
    %v3216 = vpow.pop %v3215
    %v3217 = vmul.f32 %v3188, 1.442695
    %v3218 = vpow.pop %v3217
    %v3219 = vmul.f32 %v3189, 1.442695
    %v3220 = vpow.pop %v3219
    %v3221 = vmul.f32 %v3190, 1.442695
    %v3222 = vpow.pop %v3221
    %v3223 = vmul.f32 %v3191, 1.442695
    %v3224 = vpow.pop %v3223
    %v3225 = vmul.f32 %v3192, 1.442695
    %v3226 = vpow.pop %v3225
    %v3227 = vmul.f32 %v3193, 1.442695
    %v3228 = vpow.pop %v3227
    %v3229 = vmul.f32 %v3194, 1.442695
    %v3230 = vpow.pop %v3229
    %v3231 = vmul.f32 %v3195, 1.442695
    %v3232 = vpow.pop %v3231
    %v3233 = vmul.f32 %v3196, 1.442695
    %v3234 = vpow.pop %v3233
    %v3235 = vmul.f32 %v3197, 1.442695
    %v3236 = vpow.pop %v3235
    %v3237 = vmul.f32 %v3198, 1.442695
    %v3238 = vpow.pop %v3237
    %v3239 = vmul.f32 %v3199, 1.442695
    %v3240 = vpow.pop %v3239
    %v3241 = vmul.f32 %v3200, 1.442695
    %v3242 = vpow.pop %v3241
    %v3243 = vmul.f32 %v3201, 1.442695
    %v3244 = vpow.pop %v3243
    %v3245 = vmul.f32 %v3202, 1.442695
    %v3246 = vpow.pop %v3245
    %v3247 = vmul.f32 %v3203, 1.442695
    %v3248 = vpow.pop %v3247
    %v3249 = vmul.f32 %v3204, 1.442695
    %v3250 = vpow.pop %v3249
    %v3251 = vmul.f32 %v3205, 1.442695
    %v3252 = vpow.pop %v3251
    %v3253 = vmul.f32 %v3206, 1.442695
    %v3254 = vpow.pop %v3253
    %v3255 = vadd.f32 %v3208, 1.0
    %v3256 = vadd.f32 %v3210, 1.0
    %v3257 = vadd.f32 %v3212, 1.0
    %v3258 = vadd.f32 %v3214, 1.0
    %v3259 = vadd.f32 %v3216, 1.0
    %v3260 = vadd.f32 %v3218, 1.0
    %v3261 = vadd.f32 %v3220, 1.0
    %v3262 = vadd.f32 %v3222, 1.0
    %v3263 = vadd.f32 %v3224, 1.0
    %v3264 = vadd.f32 %v3226, 1.0
    %v3265 = vadd.f32 %v3228, 1.0
    %v3266 = vadd.f32 %v3230, 1.0
    %v3267 = vadd.f32 %v3232, 1.0
    %v3268 = vadd.f32 %v3234, 1.0
    %v3269 = vadd.f32 %v3236, 1.0
    %v3270 = vadd.f32 %v3238, 1.0
    %v3271 = vadd.f32 %v3240, 1.0
    %v3272 = vadd.f32 %v3242, 1.0
    %v3273 = vadd.f32 %v3244, 1.0
    %v3274 = vadd.f32 %v3246, 1.0
    %v3275 = vadd.f32 %v3248, 1.0
    %v3276 = vadd.f32 %v3250, 1.0
    %v3277 = vadd.f32 %v3252, 1.0
    %v3278 = vadd.f32 %v3254, 1.0
    %v3279 = vrcp.pop %v3255
    %v3280 = vmul.f32 1.0, %v3279
    %v3281 = vrcp.pop %v3256
    %v3282 = vmul.f32 1.0, %v3281
    %v3283 = vrcp.pop %v3257
    %v3284 = vmul.f32 1.0, %v3283
    %v3285 = vrcp.pop %v3258
    %v3286 = vmul.f32 1.0, %v3285
    %v3287 = vrcp.pop %v3259
    %v3288 = vmul.f32 1.0, %v3287
    %v3289 = vrcp.pop %v3260
    %v3290 = vmul.f32 1.0, %v3289
    %v3291 = vrcp.pop %v3261
    %v3292 = vmul.f32 1.0, %v3291
    %v3293 = vrcp.pop %v3262
    %v3294 = vmul.f32 1.0, %v3293
    %v3295 = vrcp.pop %v3263
    %v3296 = vmul.f32 1.0, %v3295
    %v3297 = vrcp.pop %v3264
    %v3298 = vmul.f32 1.0, %v3297
    %v3299 = vrcp.pop %v3265
    %v3300 = vmul.f32 1.0, %v3299
    %v3301 = vrcp.pop %v3266
    %v3302 = vmul.f32 1.0, %v3301
    %v3303 = vrcp.pop %v3267
    %v3304 = vmul.f32 1.0, %v3303
    %v3305 = vrcp.pop %v3268
    %v3306 = vmul.f32 1.0, %v3305
    %v3307 = vrcp.pop %v3269
    %v3308 = vmul.f32 1.0, %v3307
    %v3309 = vrcp.pop %v3270
    %v3310 = vmul.f32 1.0, %v3309
    %v3311 = vrcp.pop %v3271
    %v3312 = vmul.f32 1.0, %v3311
    %v3313 = vrcp.pop %v3272
    %v3314 = vmul.f32 1.0, %v3313
    %v3315 = vrcp.pop %v3273
    %v3316 = vmul.f32 1.0, %v3315
    %v3317 = vrcp.pop %v3274
    %v3318 = vmul.f32 1.0, %v3317
    %v3319 = vrcp.pop %v3275
    %v3320 = vmul.f32 1.0, %v3319
    %v3321 = vrcp.pop %v3276
    %v3322 = vmul.f32 1.0, %v3321
    %v3323 = vrcp.pop %v3277
    %v3324 = vmul.f32 1.0, %v3323
    %v3325 = vrcp.pop %v3278
    %v3326 = vmul.f32 1.0, %v3325
    %v3327 = vtanh.pop %v3167
    %v3328 = vtanh.pop %v3168
    %v3329 = vtanh.pop %v3169
    %v3330 = vtanh.pop %v3170
    %v3331 = vtanh.pop %v3171
    %v3332 = vtanh.pop %v3172
    %v3333 = vtanh.pop %v3173
    %v3334 = vtanh.pop %v3174
    %v3335 = vmul.f32 %v3296, %v366
    %v3336 = vmul.f32 %v3298, %v367
    %v3337 = vmul.f32 %v3300, %v368
    %v3338 = vmul.f32 %v3302, %v369
    %v3339 = vmul.f32 %v3304, %v370
    %v3340 = vmul.f32 %v3306, %v371
    %v3341 = vmul.f32 %v3308, %v372
    %v3342 = vmul.f32 %v3310, %v373
    %v3343 = vmul.f32 %v3280, %v3327
    %v3344 = vmul.f32 %v3282, %v3328
    %v3345 = vmul.f32 %v3284, %v3329
    %v3346 = vmul.f32 %v3286, %v3330
    %v3347 = vmul.f32 %v3288, %v3331
    %v3348 = vmul.f32 %v3290, %v3332
    %v3349 = vmul.f32 %v3292, %v3333
    %v3350 = vmul.f32 %v3294, %v3334
    %v3351 = vadd.f32 %v3335, %v3343
    %v3352 = vadd.f32 %v3336, %v3344
    %v3353 = vadd.f32 %v3337, %v3345
    %v3354 = vadd.f32 %v3338, %v3346
    %v3355 = vadd.f32 %v3339, %v3347
    %v3356 = vadd.f32 %v3340, %v3348
    %v3357 = vadd.f32 %v3341, %v3349
    %v3358 = vadd.f32 %v3342, %v3350
    %v3359 = vtanh.pop %v3351
    %v3360 = vtanh.pop %v3352
    %v3361 = vtanh.pop %v3353
    %v3362 = vtanh.pop %v3354
    %v3363 = vtanh.pop %v3355
    %v3364 = vtanh.pop %v3356
    %v3365 = vtanh.pop %v3357
    %v3366 = vtanh.pop %v3358
    %v3367 = vmul.f32 %v3312, %v3359
    %v3368 = vmul.f32 %v3314, %v3360
    %v3369 = vmul.f32 %v3316, %v3361
    %v3370 = vmul.f32 %v3318, %v3362
    %v3371 = vmul.f32 %v3320, %v3363
    %v3372 = vmul.f32 %v3322, %v3364
    %v3373 = vmul.f32 %v3324, %v3365
    %v3374 = vmul.f32 %v3326, %v3366
    %3375 = vmatprep.subr.mxu0 %v3368
    %3376 = vmatpush1.msra.mxu0 %v3367
    %3377 = vmatprep.subr.mxu0 %v3370
    %3378 = vmatpush1.msra.mxu0 %v3369
    %3379 = vmatprep.subr.mxu0 %v3372
    %3380 = vmatpush1.msra.mxu0 %v3371
    %3381 = vmatprep.subr.mxu0 %v3374
    %3382 = vmatpush1.msra.mxu0 %v3373
    %3383 = vmatprep.subr.mxu0 0.0
    %3384 = vmatpush1.msra.mxu0 0.0
    %3385 = vmatprep.subr.mxu0 0.0
    %3386 = vmatpush1.msra.mxu0 0.0
    %3387 = vmatprep.subr.mxu0 0.0
    %3388 = vmatpush1.msra.mxu0 0.0
    %3389 = vmatprep.subr.mxu0 0.0
    %3390 = vmatpush1.msra.mxu0 0.0
    %3391 = vmatprep.subr.mxu0 0.0
    %3392 = vmatpush1.msra.mxu0 0.0
    %3393 = vmatprep.subr.mxu0 0.0
    %3394 = vmatpush1.msra.mxu0 0.0
    %3395 = vmatprep.subr.mxu0 0.0
    %3396 = vmatpush1.msra.mxu0 0.0
    %3397 = vmatprep.subr.mxu0 0.0
    %3398 = vmatpush1.msra.mxu0 0.0
    %3399 = vmatprep.subr.mxu0 0.0
    %3400 = vmatpush1.msra.mxu0 0.0
    %3401 = vmatprep.subr.mxu0 0.0
    %3402 = vmatpush1.msra.mxu0 0.0
    %3403 = vmatprep.subr.mxu0 0.0
    %3404 = vmatpush1.msra.mxu0 0.0
    %3405 = vmatprep.subr.mxu0 0.0
    %3406 = vmatpush1.msra.mxu0 0.0
    %3407 = vmatprep.subr.mxu0 0.0
    %3408 = vmatpush1.msra.mxu0 0.0
    %3409 = vmatprep.subr.mxu0 0.0
    %3410 = vmatpush1.msra.mxu0 0.0
    %3411 = vmatprep.subr.mxu0 0.0
    %3412 = vmatpush1.msra.mxu0 0.0
    %3413 = vmatprep.subr.mxu0 0.0
    %3414 = vmatpush1.msra.mxu0 0.0
    %3415 = vmatprep.subr.mxu0 0.0
    %3416 = vmatpush1.msra.mxu0 0.0
    %3417 = vmatprep.subr.mxu0 0.0
    %3418 = vmatpush1.msra.mxu0 0.0
    %3419 = vmatprep.subr.mxu0 0.0
    %3420 = vmatpush1.msra.mxu0 0.0
    %3421 = vmatprep.subr.mxu0 0.0
    %3422 = vmatpush1.msra.mxu0 0.0
    %3423 = vmatprep.subr.mxu0 0.0
    %3424 = vmatpush1.msra.mxu0 0.0
    %3425 = vmatprep.subr.mxu0 0.0
    %3426 = vmatpush1.msra.mxu0 0.0
    %3427 = vmatprep.subr.mxu0 0.0
    %3428 = vmatpush1.msra.mxu0 0.0
    %3429 = vmatprep.subr.mxu0 0.0
    %3430 = vmatpush1.msra.mxu0 0.0
    %3431 = vmatprep.subr.mxu0 0.0
    %3432 = vmatpush1.msra.mxu0 0.0
    %3433 = vmatprep.subr.mxu0 0.0
    %3434 = vmatpush1.msra.mxu0 0.0
    %3435 = vmatprep.subr.mxu0 0.0
    %3436 = vmatpush1.msra.mxu0 0.0
    %3437 = vmatprep.subr.mxu0 0.0
    %3438 = vmatpush1.msra.mxu0 0.0
    %3439 = vmatprep.mubr.f32.mxu0 0.0
    %3440 = vmatmul.mubr.f32.gmra.mrb[0].mxu0 %v1050
    %v3441 = vpop.f32.mrb[0].mxu0
    %v3442 = vadd.f32 0.0, %v3441
    %v3443 = vpop.f32.mrb[0].mxu0
    %v3444 = vadd.f32 0.0, %v3443
    %3445 = vmatprep.mubr.f32.mxu0 0.0
    %3446 = vmatmul.mubr.f32.gmra.mrb[0].mxu0 %v1053
    %v3447 = vpop.f32.mrb[0].mxu0
    %v3448 = vadd.f32 0.0, %v3447
    %v3449 = vpop.f32.mrb[0].mxu0
    %v3450 = vadd.f32 0.0, %v3449
    %3451 = vmatprep.mubr.f32.mxu0 0.0
    %3452 = vmatmul.mubr.f32.gmra.mrb[0].mxu0 %v1056
    %v3453 = vpop.f32.mrb[0].mxu0
    %v3454 = vadd.f32 0.0, %v3453
    %v3455 = vpop.f32.mrb[0].mxu0
    %v3456 = vadd.f32 0.0, %v3455
    %3457 = vdwg.mxu0
    %v3458 = vrot.slane %v3442, 4
    %v3459 = vmax.f32 %v3442, %v3458
    %v3460 = vrot.slane %v3459, 2
    %v3461 = vmax.f32 %v3459, %v3460
    %v3462 = vrot.slane %v3461, 1
    %v3463 = vmax.f32 %v3461, %v3462
    %v3464 = vrot.slane %v3444, 4
    %v3465 = vmax.f32 %v3444, %v3464
    %v3466 = vrot.slane %v3465, 2
    %v3467 = vmax.f32 %v3465, %v3466
    %v3468 = vrot.slane %v3467, 1
    %v3469 = vmax.f32 %v3467, %v3468
    %v3470 = vsub.f32 %v3442, %v3463
    %v3471 = vsub.f32 %v3444, %v3469
    %v3472 = vmul.f32 %v3470, 1.442695
    %v3473 = vpow.pop %v3472
    %v3474 = vmul.f32 %v3471, 1.442695
    %v3475 = vpow.pop %v3474
    %v3476 = vrot.slane %v3473, 4
    %v3477 = vadd.f32 %v3473, %v3476
    %v3478 = vrot.slane %v3477, 2
    %v3479 = vadd.f32 %v3477, %v3478
    %v3480 = vrot.slane %v3479, 1
    %v3481 = vadd.f32 %v3479, %v3480
    %v3482 = vrot.slane %v3475, 4
    %v3483 = vadd.f32 %v3475, %v3482
    %v3484 = vrot.slane %v3483, 2
    %v3485 = vadd.f32 %v3483, %v3484
    %v3486 = vrot.slane %v3485, 1
    %v3487 = vadd.f32 %v3485, %v3486
    %v3488 = vlog2.pop %v3481
    %v3489 = vmul.f32 %v3488, 0.6931472
    %v3490 = vlog2.pop %v3487
    %v3491 = vmul.f32 %v3490, 0.6931472
    %v3492 = vsub.f32 %v3470, %v3489
    %v3493 = vsub.f32 %v3471, %v3491
    %s3494 = scalar_lea.vmem [#allocation2], 48
    %3495 = vst [vmem:[%s3494] sm:$0xff] %v3492
    %3496 = vst [vmem:[%s3494 + $0x8] sm:$0xff] %v3493
    %v3497 = vmax.f32 %v3448, %v3454
    %v3498 = vrot.slane %v3497, 4
    %v3499 = vmax.f32 %v3497, %v3498
    %v3500 = vrot.slane %v3499, 2
    %v3501 = vmax.f32 %v3499, %v3500
    %v3502 = vrot.slane %v3501, 1
    %v3503 = vmax.f32 %v3501, %v3502
    %v3504 = vmax.f32 %v3450, %v3456
    %v3505 = vrot.slane %v3504, 4
    %v3506 = vmax.f32 %v3504, %v3505
    %v3507 = vrot.slane %v3506, 2
    %v3508 = vmax.f32 %v3506, %v3507
    %v3509 = vrot.slane %v3508, 1
    %v3510 = vmax.f32 %v3508, %v3509
    %v3511 = vsub.f32 %v3448, %v3503
    %v3512 = vsub.f32 %v3450, %v3510
    %v3513 = vsub.f32 %v3454, %v3503
    %v3514 = vsub.f32 %v3456, %v3510
    %v3515 = vmul.f32 %v3511, 1.442695
    %v3516 = vpow.pop %v3515
    %v3517 = vmul.f32 %v3512, 1.442695
    %v3518 = vpow.pop %v3517
    %v3519 = vmul.f32 %v3513, 1.442695
    %v3520 = vpow.pop %v3519
    %v3521 = vmul.f32 %v3514, 1.442695
    %v3522 = vpow.pop %v3521
    %v3523 = vadd.f32 %v3516, %v3520
    %v3524 = vrot.slane %v3523, 4
    %v3525 = vadd.f32 %v3523, %v3524
    %v3526 = vrot.slane %v3525, 2
    %v3527 = vadd.f32 %v3525, %v3526
    %v3528 = vrot.slane %v3527, 1
    %v3529 = vadd.f32 %v3527, %v3528
    %v3530 = vadd.f32 %v3518, %v3522
    %v3531 = vrot.slane %v3530, 4
    %v3532 = vadd.f32 %v3530, %v3531
    %v3533 = vrot.slane %v3532, 2
    %v3534 = vadd.f32 %v3532, %v3533
    %v3535 = vrot.slane %v3534, 1
    %v3536 = vadd.f32 %v3534, %v3535
    %v3537 = vrcp.pop %v3529
    %v3538 = vmul.f32 1.0, %v3537
    %v3539 = vrcp.pop %v3536
    %v3540 = vmul.f32 1.0, %v3539
    %v3541 = vmul.f32 %v3516, %v3538
    %v3542 = vmul.f32 %v3518, %v3540
    %v3543 = vmul.f32 %v3520, %v3538
    %v3544 = vmul.f32 %v3522, %v3540
    %s3545 = scalar_lea.vmem [#allocation4], 96
    %3546 = vst [vmem:[%s3545] sm:$0xff] %v3541
    %3547 = vst [vmem:[%s3545 + $0x8] sm:$0xff] %v3542
    %3548 = vst [vmem:[%s3545 + $0x10] sm:$0xff] %v3543
    %3549 = vst [vmem:[%s3545 + $0x18] sm:$0xff] %v3544
    %v3550 = vlaneseq
    %v3551 = vshrl.u32 %v3550, 7
    %v3552 = vsub.s32 4, %v3551
    %v3553 = vrot.slane %v409, %v3552
    %v3554 = vlaneseq
    %v3555 = vshrl.u32 %v3554, 7
    %v3556 = vsub.s32 4, %v3555
    %v3557 = vrot.slane %v410, %v3556
    %vm3558 = vcmp.eq.s32.totalorder %v412, %v3553
    %vm3559 = vcmp.eq.s32.totalorder %v412, %v3557
    %vm3560 = vcmp.eq.s32.totalorder %v413, %v3553
    %vm3561 = vcmp.eq.s32.totalorder %v413, %v3557
    %v3562 = vsel %vm3558, 1, 0
    %v3563 = vsel %vm3559, 1, 0
    %v3564 = vsel %vm3560, 1, 0
    %v3565 = vsel %vm3561, 1, 0
    %v3566 = vcvt.s32.f32 %v3562
    %v3567 = vcvt.s32.f32 %v3563
    %v3568 = vcvt.s32.f32 %v3564
    %v3569 = vcvt.s32.f32 %v3565
    %3570 = vmatprep.subr.mxu0 %v3567
    %3571 = vmatpush1.msra.mxu0 %v3566
    %3572 = vmatprep.subr.mxu0 %v3569
    %3573 = vmatpush1.msra.mxu0 %v3568
    %3574 = vmatprep.subr.mxu0 0.0
    %3575 = vmatpush1.msra.mxu0 0.0
    %3576 = vmatprep.subr.mxu0 0.0
    %3577 = vmatpush1.msra.mxu0 0.0
    %3578 = vmatprep.subr.mxu0 0.0
    %3579 = vmatpush1.msra.mxu0 0.0
    %3580 = vmatprep.subr.mxu0 0.0
    %3581 = vmatpush1.msra.mxu0 0.0
    %3582 = vmatprep.subr.mxu0 0.0
    %3583 = vmatpush1.msra.mxu0 0.0
    %3584 = vmatprep.subr.mxu0 0.0
    %3585 = vmatpush1.msra.mxu0 0.0
    %3586 = vmatprep.subr.mxu0 0.0
    %3587 = vmatpush1.msra.mxu0 0.0
    %3588 = vmatprep.subr.mxu0 0.0
    %3589 = vmatpush1.msra.mxu0 0.0
    %3590 = vmatprep.subr.mxu0 0.0
    %3591 = vmatpush1.msra.mxu0 0.0
    %3592 = vmatprep.subr.mxu0 0.0
    %3593 = vmatpush1.msra.mxu0 0.0
    %3594 = vmatprep.subr.mxu0 0.0
    %3595 = vmatpush1.msra.mxu0 0.0
    %3596 = vmatprep.subr.mxu0 0.0
    %3597 = vmatpush1.msra.mxu0 0.0
    %3598 = vmatprep.subr.mxu0 0.0
    %3599 = vmatpush1.msra.mxu0 0.0
    %3600 = vmatprep.subr.mxu0 0.0
    %3601 = vmatpush1.msra.mxu0 0.0
    %3602 = vmatprep.subr.mxu0 0.0
    %3603 = vmatpush1.msra.mxu0 0.0
    %3604 = vmatprep.subr.mxu0 0.0
    %3605 = vmatpush1.msra.mxu0 0.0
    %3606 = vmatprep.subr.mxu0 0.0
    %3607 = vmatpush1.msra.mxu0 0.0
    %3608 = vmatprep.subr.mxu0 0.0
    %3609 = vmatpush1.msra.mxu0 0.0
    %3610 = vmatprep.subr.mxu0 0.0
    %3611 = vmatpush1.msra.mxu0 0.0
    %3612 = vmatprep.subr.mxu0 0.0
    %3613 = vmatpush1.msra.mxu0 0.0
    %3614 = vmatprep.subr.mxu0 0.0
    %3615 = vmatpush1.msra.mxu0 0.0
    %3616 = vmatprep.subr.mxu0 0.0
    %3617 = vmatpush1.msra.mxu0 0.0
    %3618 = vmatprep.subr.mxu0 0.0
    %3619 = vmatpush1.msra.mxu0 0.0
    %3620 = vmatprep.subr.mxu0 0.0
    %3621 = vmatpush1.msra.mxu0 0.0
    %3622 = vmatprep.subr.mxu0 0.0
    %3623 = vmatpush1.msra.mxu0 0.0
    %3624 = vmatprep.subr.mxu0 0.0
    %3625 = vmatpush1.msra.mxu0 0.0
    %3626 = vmatprep.subr.mxu0 0.0
    %3627 = vmatpush1.msra.mxu0 0.0
    %3628 = vmatprep.subr.mxu0 0.0
    %3629 = vmatpush1.msra.mxu0 0.0
    %3630 = vmatprep.subr.mxu0 0.0
    %3631 = vmatpush1.msra.mxu0 0.0
    %3632 = vmatprep.subr.mxu0 0.0
    %3633 = vmatpush1.msra.mxu0 0.0
    %3634 = vmatprep.mubr.f32.mxu0 0.0
    %3635 = vmatmul.mubr.f32.gmra.mrb[0].mxu0 %v440
    %v3636 = vpop.f32.mrb[0].mxu0
    %v3637 = vadd.f32 %v272, %v3636
    %v3638 = vpop.f32.mrb[0].mxu0
    %v3639 = vadd.f32 %v274, %v3638
    %3640 = vmatprep.mubr.f32.mxu0 0.0
    %3641 = vmatmul.mubr.f32.gmra.mrb[0].mxu0 %v443
    %v3642 = vpop.f32.mrb[0].mxu0
    %v3643 = vadd.f32 %v278, %v3642
    %v3644 = vpop.f32.mrb[0].mxu0
    %v3645 = vadd.f32 %v280, %v3644
    %3646 = vmatprep.mubr.f32.mxu0 0.0
    %3647 = vmatmul.mubr.f32.gmra.mrb[0].mxu0 %v446
    %v3648 = vpop.f32.mrb[0].mxu0
    %v3649 = vadd.f32 %v284, %v3648
    %v3650 = vpop.f32.mrb[0].mxu0
    %v3651 = vadd.f32 %v286, %v3650
    %3652 = vmatprep.mubr.f32.mxu0 0.0
    %3653 = vmatmul.mubr.f32.gmra.mrb[0].mxu0 %v449
    %v3654 = vpop.f32.mrb[0].mxu0
    %v3655 = vadd.f32 %v290, %v3654
    %v3656 = vpop.f32.mrb[0].mxu0
    %v3657 = vadd.f32 %v292, %v3656
    %3658 = vmatprep.mubr.f32.mxu0 0.0
    %3659 = vmatmul.mubr.f32.gmra.mrb[0].mxu0 %v452
    %v3660 = vpop.f32.mrb[0].mxu0
    %v3661 = vadd.f32 %v296, %v3660
    %v3662 = vpop.f32.mrb[0].mxu0
    %v3663 = vadd.f32 %v298, %v3662
    %3664 = vmatprep.mubr.f32.mxu0 0.0
    %3665 = vmatmul.mubr.f32.gmra.mrb[0].mxu0 %v455
    %v3666 = vpop.f32.mrb[0].mxu0
    %v3667 = vadd.f32 %v302, %v3666
    %v3668 = vpop.f32.mrb[0].mxu0
    %v3669 = vadd.f32 %v304, %v3668
    %3670 = vmatprep.mubr.f32.mxu0 0.0
    %3671 = vmatmul.mubr.f32.gmra.mrb[0].mxu0 %v458
    %v3672 = vpop.f32.mrb[0].mxu0
    %v3673 = vadd.f32 %v308, %v3672
    %v3674 = vpop.f32.mrb[0].mxu0
    %v3675 = vadd.f32 %v310, %v3674
    %3676 = vmatprep.mubr.f32.mxu0 0.0
    %3677 = vmatmul.mubr.f32.gmra.mrb[0].mxu0 %v461
    %v3678 = vpop.f32.mrb[0].mxu0
    %v3679 = vadd.f32 %v314, %v3678
    %v3680 = vpop.f32.mrb[0].mxu0
    %v3681 = vadd.f32 %v316, %v3680
    %3682 = vmatprep.mubr.f32.mxu0 0.0
    %3683 = vmatmul.mubr.f32.gmra.mrb[0].mxu0 %v464
    %v3684 = vpop.f32.mrb[0].mxu0
    %v3685 = vadd.f32 %v320, %v3684
    %v3686 = vpop.f32.mrb[0].mxu0
    %v3687 = vadd.f32 %v322, %v3686
    %3688 = vmatprep.mubr.f32.mxu0 0.0
    %3689 = vmatmul.mubr.f32.gmra.mrb[0].mxu0 %v467
    %v3690 = vpop.f32.mrb[0].mxu0
    %v3691 = vadd.f32 %v326, %v3690
    %v3692 = vpop.f32.mrb[0].mxu0
    %v3693 = vadd.f32 %v328, %v3692
    %3694 = vmatprep.mubr.f32.mxu0 0.0
    %3695 = vmatmul.mubr.f32.gmra.mrb[0].mxu0 %v470
    %v3696 = vpop.f32.mrb[0].mxu0
    %v3697 = vadd.f32 %v332, %v3696
    %v3698 = vpop.f32.mrb[0].mxu0
    %v3699 = vadd.f32 %v334, %v3698
    %3700 = vmatprep.mubr.f32.mxu0 0.0
    %3701 = vmatmul.mubr.f32.gmra.mrb[0].mxu0 %v473
    %v3702 = vpop.f32.mrb[0].mxu0
    %v3703 = vadd.f32 %v338, %v3702
    %v3704 = vpop.f32.mrb[0].mxu0
    %v3705 = vadd.f32 %v340, %v3704
    %3706 = vmatprep.mubr.f32.mxu0 0.0
    %3707 = vmatmul.mubr.f32.gmra.mrb[0].mxu0 %v476
    %v3708 = vpop.f32.mrb[0].mxu0
    %v3709 = vadd.f32 %v344, %v3708
    %v3710 = vpop.f32.mrb[0].mxu0
    %v3711 = vadd.f32 %v346, %v3710
    %3712 = vmatprep.mubr.f32.mxu0 0.0
    %3713 = vmatmul.mubr.f32.gmra.mrb[0].mxu0 %v479
    %v3714 = vpop.f32.mrb[0].mxu0
    %v3715 = vadd.f32 %v350, %v3714
    %v3716 = vpop.f32.mrb[0].mxu0
    %v3717 = vadd.f32 %v352, %v3716
    %3718 = vmatprep.mubr.f32.mxu0 0.0
    %3719 = vmatmul.mubr.f32.gmra.mrb[0].mxu0 %v482
    %v3720 = vpop.f32.mrb[0].mxu0
    %v3721 = vadd.f32 %v356, %v3720
    %v3722 = vpop.f32.mrb[0].mxu0
    %v3723 = vadd.f32 %v358, %v3722
    %3724 = vmatprep.mubr.f32.mxu0 0.0
    %3725 = vmatmul.mubr.f32.gmra.mrb[0].mxu0 %v485
    %v3726 = vpop.f32.mrb[0].mxu0
    %v3727 = vadd.f32 %v362, %v3726
    %v3728 = vpop.f32.mrb[0].mxu0
    %v3729 = vadd.f32 %v364, %v3728
    %3730 = vdwg.mxu0
    %3731 = vmatprep.subr.mxu0 %v3518
    %3732 = vmatpush1.msra.mxu0 %v3516
    %3733 = vmatprep.subr.mxu0 %v3522
    %3734 = vmatpush1.msra.mxu0 %v3520
    %3735 = vmatprep.subr.mxu0 0.0
    %3736 = vmatpush1.msra.mxu0 0.0
    %3737 = vmatprep.subr.mxu0 0.0
    %3738 = vmatpush1.msra.mxu0 0.0
    %3739 = vmatprep.subr.mxu0 0.0
    %3740 = vmatpush1.msra.mxu0 0.0
    %3741 = vmatprep.subr.mxu0 0.0
    %3742 = vmatpush1.msra.mxu0 0.0
    %3743 = vmatprep.subr.mxu0 0.0
    %3744 = vmatpush1.msra.mxu0 0.0
    %3745 = vmatprep.subr.mxu0 0.0
    %3746 = vmatpush1.msra.mxu0 0.0
    %3747 = vmatprep.subr.mxu0 0.0
    %3748 = vmatpush1.msra.mxu0 0.0
    %3749 = vmatprep.subr.mxu0 0.0
    %3750 = vmatpush1.msra.mxu0 0.0
    %3751 = vmatprep.subr.mxu0 0.0
    %3752 = vmatpush1.msra.mxu0 0.0
    %3753 = vmatprep.subr.mxu0 0.0
    %3754 = vmatpush1.msra.mxu0 0.0
    %3755 = vmatprep.subr.mxu0 0.0
    %3756 = vmatpush1.msra.mxu0 0.0
    %3757 = vmatprep.subr.mxu0 0.0
    %3758 = vmatpush1.msra.mxu0 0.0
    %3759 = vmatprep.subr.mxu0 0.0
    %3760 = vmatpush1.msra.mxu0 0.0
    %3761 = vmatprep.subr.mxu0 0.0
    %3762 = vmatpush1.msra.mxu0 0.0
    %3763 = vmatprep.subr.mxu0 0.0
    %3764 = vmatpush1.msra.mxu0 0.0
    %3765 = vmatprep.subr.mxu0 0.0
    %3766 = vmatpush1.msra.mxu0 0.0
    %3767 = vmatprep.subr.mxu0 0.0
    %3768 = vmatpush1.msra.mxu0 0.0
    %3769 = vmatprep.subr.mxu0 0.0
    %3770 = vmatpush1.msra.mxu0 0.0
    %3771 = vmatprep.subr.mxu0 0.0
    %3772 = vmatpush1.msra.mxu0 0.0
    %3773 = vmatprep.subr.mxu0 0.0
    %3774 = vmatpush1.msra.mxu0 0.0
    %3775 = vmatprep.subr.mxu0 0.0
    %3776 = vmatpush1.msra.mxu0 0.0
    %3777 = vmatprep.subr.mxu0 0.0
    %3778 = vmatpush1.msra.mxu0 0.0
    %3779 = vmatprep.subr.mxu0 0.0
    %3780 = vmatpush1.msra.mxu0 0.0
    %3781 = vmatprep.subr.mxu0 0.0
    %3782 = vmatpush1.msra.mxu0 0.0
    %3783 = vmatprep.subr.mxu0 0.0
    %3784 = vmatpush1.msra.mxu0 0.0
    %3785 = vmatprep.subr.mxu0 0.0
    %3786 = vmatpush1.msra.mxu0 0.0
    %3787 = vmatprep.subr.mxu0 0.0
    %3788 = vmatpush1.msra.mxu0 0.0
    %3789 = vmatprep.subr.mxu0 0.0
    %3790 = vmatpush1.msra.mxu0 0.0
    %3791 = vmatprep.subr.mxu0 0.0
    %3792 = vmatpush1.msra.mxu0 0.0
    %3793 = vmatprep.subr.mxu0 0.0
    %3794 = vmatpush1.msra.mxu0 0.0
    %3795 = vmatprep.mubr.f32.mxu0 0.0
    %3796 = vmatmul.mubr.f32.gmra.mrb[0].mxu0 %v649
    %v3797 = vpop.f32.mrb[0].mxu0
    %v3798 = vadd.f32 0.0, %v3797
    %v3799 = vpop.f32.mrb[0].mxu0
    %v3800 = vadd.f32 0.0, %v3799
    %3801 = vmatprep.mubr.f32.mxu0 0.0
    %3802 = vmatmul.mubr.f32.gmra.mrb[0].mxu0 %v652
    %v3803 = vpop.f32.mrb[0].mxu0
    %v3804 = vadd.f32 0.0, %v3803
    %v3805 = vpop.f32.mrb[0].mxu0
    %v3806 = vadd.f32 0.0, %v3805
    %3807 = vmatprep.mubr.f32.mxu0 0.0
    %3808 = vmatmul.mubr.f32.gmra.mrb[0].mxu0 %v655
    %v3809 = vpop.f32.mrb[0].mxu0
    %v3810 = vadd.f32 0.0, %v3809
    %v3811 = vpop.f32.mrb[0].mxu0
    %v3812 = vadd.f32 0.0, %v3811
    %3813 = vmatprep.mubr.f32.mxu0 0.0
    %3814 = vmatmul.mubr.f32.gmra.mrb[0].mxu0 %v658
    %v3815 = vpop.f32.mrb[0].mxu0
    %v3816 = vadd.f32 0.0, %v3815
    %v3817 = vpop.f32.mrb[0].mxu0
    %v3818 = vadd.f32 0.0, %v3817
    %3819 = vmatprep.mubr.f32.mxu0 0.0
    %3820 = vmatmul.mubr.f32.gmra.mrb[0].mxu0 %v661
    %v3821 = vpop.f32.mrb[0].mxu0
    %v3822 = vadd.f32 0.0, %v3821
    %v3823 = vpop.f32.mrb[0].mxu0
    %v3824 = vadd.f32 0.0, %v3823
    %3825 = vmatprep.mubr.f32.mxu0 0.0
    %3826 = vmatmul.mubr.f32.gmra.mrb[0].mxu0 %v664
    %v3827 = vpop.f32.mrb[0].mxu0
    %v3828 = vadd.f32 0.0, %v3827
    %v3829 = vpop.f32.mrb[0].mxu0
    %v3830 = vadd.f32 0.0, %v3829
    %3831 = vmatprep.mubr.f32.mxu0 0.0
    %3832 = vmatmul.mubr.f32.gmra.mrb[0].mxu0 %v667
    %v3833 = vpop.f32.mrb[0].mxu0
    %v3834 = vadd.f32 0.0, %v3833
    %v3835 = vpop.f32.mrb[0].mxu0
    %v3836 = vadd.f32 0.0, %v3835
    %3837 = vmatprep.mubr.f32.mxu0 0.0
    %3838 = vmatmul.mubr.f32.gmra.mrb[0].mxu0 %v670
    %v3839 = vpop.f32.mrb[0].mxu0
    %v3840 = vadd.f32 0.0, %v3839
    %v3841 = vpop.f32.mrb[0].mxu0
    %v3842 = vadd.f32 0.0, %v3841
    %3843 = vmatprep.mubr.f32.mxu0 0.0
    %3844 = vmatmul.mubr.f32.gmra.mrb[0].mxu0 %v673
    %v3845 = vpop.f32.mrb[0].mxu0
    %v3846 = vadd.f32 0.0, %v3845
    %v3847 = vpop.f32.mrb[0].mxu0
    %v3848 = vadd.f32 0.0, %v3847
    %3849 = vmatprep.mubr.f32.mxu0 0.0
    %3850 = vmatmul.mubr.f32.gmra.mrb[0].mxu0 %v676
    %v3851 = vpop.f32.mrb[0].mxu0
    %v3852 = vadd.f32 0.0, %v3851
    %v3853 = vpop.f32.mrb[0].mxu0
    %v3854 = vadd.f32 0.0, %v3853
    %3855 = vmatprep.mubr.f32.mxu0 0.0
    %3856 = vmatmul.mubr.f32.gmra.mrb[0].mxu0 %v679
    %v3857 = vpop.f32.mrb[0].mxu0
    %v3858 = vadd.f32 0.0, %v3857
    %v3859 = vpop.f32.mrb[0].mxu0
    %v3860 = vadd.f32 0.0, %v3859
    %3861 = vmatprep.mubr.f32.mxu0 0.0
    %3862 = vmatmul.mubr.f32.gmra.mrb[0].mxu0 %v682
    %v3863 = vpop.f32.mrb[0].mxu0
    %v3864 = vadd.f32 0.0, %v3863
    %v3865 = vpop.f32.mrb[0].mxu0
    %v3866 = vadd.f32 0.0, %v3865
    %3867 = vmatprep.mubr.f32.mxu0 0.0
    %3868 = vmatmul.mubr.f32.gmra.mrb[0].mxu0 %v685
    %v3869 = vpop.f32.mrb[0].mxu0
    %v3870 = vadd.f32 0.0, %v3869
    %v3871 = vpop.f32.mrb[0].mxu0
    %v3872 = vadd.f32 0.0, %v3871
    %3873 = vmatprep.mubr.f32.mxu0 0.0
    %3874 = vmatmul.mubr.f32.gmra.mrb[0].mxu0 %v688
    %v3875 = vpop.f32.mrb[0].mxu0
    %v3876 = vadd.f32 0.0, %v3875
    %v3877 = vpop.f32.mrb[0].mxu0
    %v3878 = vadd.f32 0.0, %v3877
    %3879 = vmatprep.mubr.f32.mxu0 0.0
    %3880 = vmatmul.mubr.f32.gmra.mrb[0].mxu0 %v691
    %v3881 = vpop.f32.mrb[0].mxu0
    %v3882 = vadd.f32 0.0, %v3881
    %v3883 = vpop.f32.mrb[0].mxu0
    %v3884 = vadd.f32 0.0, %v3883
    %3885 = vmatprep.mubr.f32.mxu0 0.0
    %3886 = vmatmul.mubr.f32.gmra.mrb[0].mxu0 %v694
    %v3887 = vpop.f32.mrb[0].mxu0
    %v3888 = vadd.f32 0.0, %v3887
    %v3889 = vpop.f32.mrb[0].mxu0
    %v3890 = vadd.f32 0.0, %v3889
    %3891 = vdwg.mxu0
    %v3892 = vmul.f32 %v3798, %v3538
    %v3893 = vmul.f32 %v3800, %v3540
    %v3894 = vmul.f32 %v3804, %v3538
    %v3895 = vmul.f32 %v3806, %v3540
    %v3896 = vmul.f32 %v3810, %v3538
    %v3897 = vmul.f32 %v3812, %v3540
    %v3898 = vmul.f32 %v3816, %v3538
    %v3899 = vmul.f32 %v3818, %v3540
    %v3900 = vmul.f32 %v3822, %v3538
    %v3901 = vmul.f32 %v3824, %v3540
    %v3902 = vmul.f32 %v3828, %v3538
    %v3903 = vmul.f32 %v3830, %v3540
    %v3904 = vmul.f32 %v3834, %v3538
    %v3905 = vmul.f32 %v3836, %v3540
    %v3906 = vmul.f32 %v3840, %v3538
    %v3907 = vmul.f32 %v3842, %v3540
    %v3908 = vmul.f32 %v3846, %v3538
    %v3909 = vmul.f32 %v3848, %v3540
    %v3910 = vmul.f32 %v3852, %v3538
    %v3911 = vmul.f32 %v3854, %v3540
    %v3912 = vmul.f32 %v3858, %v3538
    %v3913 = vmul.f32 %v3860, %v3540
    %v3914 = vmul.f32 %v3864, %v3538
    %v3915 = vmul.f32 %v3866, %v3540
    %v3916 = vmul.f32 %v3870, %v3538
    %v3917 = vmul.f32 %v3872, %v3540
    %v3918 = vmul.f32 %v3876, %v3538
    %v3919 = vmul.f32 %v3878, %v3540
    %v3920 = vmul.f32 %v3882, %v3538
    %v3921 = vmul.f32 %v3884, %v3540
    %v3922 = vmul.f32 %v3888, %v3538
    %v3923 = vmul.f32 %v3890, %v3540
    %v3924 = vadd.f32 %v3892, %v3637
    %v3925 = vadd.f32 %v3893, %v3639
    %v3926 = vadd.f32 %v3894, %v3643
    %v3927 = vadd.f32 %v3895, %v3645
    %v3928 = vadd.f32 %v3896, %v3649
    %v3929 = vadd.f32 %v3897, %v3651
    %v3930 = vadd.f32 %v3898, %v3655
    %v3931 = vadd.f32 %v3899, %v3657
    %v3932 = vadd.f32 %v3900, %v3661
    %v3933 = vadd.f32 %v3901, %v3663
    %v3934 = vadd.f32 %v3902, %v3667
    %v3935 = vadd.f32 %v3903, %v3669
    %v3936 = vadd.f32 %v3904, %v3673
    %v3937 = vadd.f32 %v3905, %v3675
    %v3938 = vadd.f32 %v3906, %v3679
    %v3939 = vadd.f32 %v3907, %v3681
    %v3940 = vadd.f32 %v3908, %v3685
    %v3941 = vadd.f32 %v3909, %v3687
    %v3942 = vadd.f32 %v3910, %v3691
    %v3943 = vadd.f32 %v3911, %v3693
    %v3944 = vadd.f32 %v3912, %v3697
    %v3945 = vadd.f32 %v3913, %v3699
    %v3946 = vadd.f32 %v3914, %v3703
    %v3947 = vadd.f32 %v3915, %v3705
    %v3948 = vadd.f32 %v3916, %v3709
    %v3949 = vadd.f32 %v3917, %v3711
    %v3950 = vadd.f32 %v3918, %v3715
    %v3951 = vadd.f32 %v3919, %v3717
    %v3952 = vadd.f32 %v3920, %v3721
    %v3953 = vadd.f32 %v3921, %v3723
    %v3954 = vadd.f32 %v3922, %v3727
    %v3955 = vadd.f32 %v3923, %v3729
    %v3956 = vxor.u32 %v3924, 2147483648
    %v3957 = vxor.u32 %v3925, 2147483648
    %v3958 = vxor.u32 %v3926, 2147483648
    %v3959 = vxor.u32 %v3927, 2147483648
    %v3960 = vxor.u32 %v3928, 2147483648
    %v3961 = vxor.u32 %v3929, 2147483648
    %v3962 = vxor.u32 %v3930, 2147483648
    %v3963 = vxor.u32 %v3931, 2147483648
    %v3964 = vxor.u32 %v3932, 2147483648
    %v3965 = vxor.u32 %v3933, 2147483648
    %v3966 = vxor.u32 %v3934, 2147483648
    %v3967 = vxor.u32 %v3935, 2147483648
    %v3968 = vxor.u32 %v3936, 2147483648
    %v3969 = vxor.u32 %v3937, 2147483648
    %v3970 = vxor.u32 %v3938, 2147483648
    %v3971 = vxor.u32 %v3939, 2147483648
    %v3972 = vxor.u32 %v3948, 2147483648
    %v3973 = vxor.u32 %v3949, 2147483648
    %v3974 = vxor.u32 %v3950, 2147483648
    %v3975 = vxor.u32 %v3951, 2147483648
    %v3976 = vxor.u32 %v3952, 2147483648
    %v3977 = vxor.u32 %v3953, 2147483648
    %v3978 = vxor.u32 %v3954, 2147483648
    %v3979 = vxor.u32 %v3955, 2147483648
    %v3980 = vmul.f32 %v3956, 1.442695
    %v3981 = vpow.pop %v3980
    %v3982 = vmul.f32 %v3957, 1.442695
    %v3983 = vpow.pop %v3982
    %v3984 = vmul.f32 %v3958, 1.442695
    %v3985 = vpow.pop %v3984
    %v3986 = vmul.f32 %v3959, 1.442695
    %v3987 = vpow.pop %v3986
    %v3988 = vmul.f32 %v3960, 1.442695
    %v3989 = vpow.pop %v3988
    %v3990 = vmul.f32 %v3961, 1.442695
    %v3991 = vpow.pop %v3990
    %v3992 = vmul.f32 %v3962, 1.442695
    %v3993 = vpow.pop %v3992
    %v3994 = vmul.f32 %v3963, 1.442695
    %v3995 = vpow.pop %v3994
    %v3996 = vmul.f32 %v3964, 1.442695
    %v3997 = vpow.pop %v3996
    %v3998 = vmul.f32 %v3965, 1.442695
    %v3999 = vpow.pop %v3998
    %v4000 = vmul.f32 %v3966, 1.442695
    %v4001 = vpow.pop %v4000
    %v4002 = vmul.f32 %v3967, 1.442695
    %v4003 = vpow.pop %v4002
    %v4004 = vmul.f32 %v3968, 1.442695
    %v4005 = vpow.pop %v4004
    %v4006 = vmul.f32 %v3969, 1.442695
    %v4007 = vpow.pop %v4006
    %v4008 = vmul.f32 %v3970, 1.442695
    %v4009 = vpow.pop %v4008
    %v4010 = vmul.f32 %v3971, 1.442695
    %v4011 = vpow.pop %v4010
    %v4012 = vmul.f32 %v3972, 1.442695
    %v4013 = vpow.pop %v4012
    %v4014 = vmul.f32 %v3973, 1.442695
    %v4015 = vpow.pop %v4014
    %v4016 = vmul.f32 %v3974, 1.442695
    %v4017 = vpow.pop %v4016
    %v4018 = vmul.f32 %v3975, 1.442695
    %v4019 = vpow.pop %v4018
    %v4020 = vmul.f32 %v3976, 1.442695
    %v4021 = vpow.pop %v4020
    %v4022 = vmul.f32 %v3977, 1.442695
    %v4023 = vpow.pop %v4022
    %v4024 = vmul.f32 %v3978, 1.442695
    %v4025 = vpow.pop %v4024
    %v4026 = vmul.f32 %v3979, 1.442695
    %v4027 = vpow.pop %v4026
    %v4028 = vadd.f32 %v3981, 1.0
    %v4029 = vadd.f32 %v3983, 1.0
    %v4030 = vadd.f32 %v3985, 1.0
    %v4031 = vadd.f32 %v3987, 1.0
    %v4032 = vadd.f32 %v3989, 1.0
    %v4033 = vadd.f32 %v3991, 1.0
    %v4034 = vadd.f32 %v3993, 1.0
    %v4035 = vadd.f32 %v3995, 1.0
    %v4036 = vadd.f32 %v3997, 1.0
    %v4037 = vadd.f32 %v3999, 1.0
    %v4038 = vadd.f32 %v4001, 1.0
    %v4039 = vadd.f32 %v4003, 1.0
    %v4040 = vadd.f32 %v4005, 1.0
    %v4041 = vadd.f32 %v4007, 1.0
    %v4042 = vadd.f32 %v4009, 1.0
    %v4043 = vadd.f32 %v4011, 1.0
    %v4044 = vadd.f32 %v4013, 1.0
    %v4045 = vadd.f32 %v4015, 1.0
    %v4046 = vadd.f32 %v4017, 1.0
    %v4047 = vadd.f32 %v4019, 1.0
    %v4048 = vadd.f32 %v4021, 1.0
    %v4049 = vadd.f32 %v4023, 1.0
    %v4050 = vadd.f32 %v4025, 1.0
    %v4051 = vadd.f32 %v4027, 1.0
    %v4052 = vrcp.pop %v4028
    %v4053 = vmul.f32 1.0, %v4052
    %v4054 = vrcp.pop %v4029
    %v4055 = vmul.f32 1.0, %v4054
    %v4056 = vrcp.pop %v4030
    %v4057 = vmul.f32 1.0, %v4056
    %v4058 = vrcp.pop %v4031
    %v4059 = vmul.f32 1.0, %v4058
    %v4060 = vrcp.pop %v4032
    %v4061 = vmul.f32 1.0, %v4060
    %v4062 = vrcp.pop %v4033
    %v4063 = vmul.f32 1.0, %v4062
    %v4064 = vrcp.pop %v4034
    %v4065 = vmul.f32 1.0, %v4064
    %v4066 = vrcp.pop %v4035
    %v4067 = vmul.f32 1.0, %v4066
    %v4068 = vrcp.pop %v4036
    %v4069 = vmul.f32 1.0, %v4068
    %v4070 = vrcp.pop %v4037
    %v4071 = vmul.f32 1.0, %v4070
    %v4072 = vrcp.pop %v4038
    %v4073 = vmul.f32 1.0, %v4072
    %v4074 = vrcp.pop %v4039
    %v4075 = vmul.f32 1.0, %v4074
    %v4076 = vrcp.pop %v4040
    %v4077 = vmul.f32 1.0, %v4076
    %v4078 = vrcp.pop %v4041
    %v4079 = vmul.f32 1.0, %v4078
    %v4080 = vrcp.pop %v4042
    %v4081 = vmul.f32 1.0, %v4080
    %v4082 = vrcp.pop %v4043
    %v4083 = vmul.f32 1.0, %v4082
    %v4084 = vrcp.pop %v4044
    %v4085 = vmul.f32 1.0, %v4084
    %v4086 = vrcp.pop %v4045
    %v4087 = vmul.f32 1.0, %v4086
    %v4088 = vrcp.pop %v4046
    %v4089 = vmul.f32 1.0, %v4088
    %v4090 = vrcp.pop %v4047
    %v4091 = vmul.f32 1.0, %v4090
    %v4092 = vrcp.pop %v4048
    %v4093 = vmul.f32 1.0, %v4092
    %v4094 = vrcp.pop %v4049
    %v4095 = vmul.f32 1.0, %v4094
    %v4096 = vrcp.pop %v4050
    %v4097 = vmul.f32 1.0, %v4096
    %v4098 = vrcp.pop %v4051
    %v4099 = vmul.f32 1.0, %v4098
    %v4100 = vtanh.pop %v3940
    %v4101 = vtanh.pop %v3941
    %v4102 = vtanh.pop %v3942
    %v4103 = vtanh.pop %v3943
    %v4104 = vtanh.pop %v3944
    %v4105 = vtanh.pop %v3945
    %v4106 = vtanh.pop %v3946
    %v4107 = vtanh.pop %v3947
    %v4108 = vmul.f32 %v4069, %v366
    %v4109 = vmul.f32 %v4071, %v367
    %v4110 = vmul.f32 %v4073, %v368
    %v4111 = vmul.f32 %v4075, %v369
    %v4112 = vmul.f32 %v4077, %v370
    %v4113 = vmul.f32 %v4079, %v371
    %v4114 = vmul.f32 %v4081, %v372
    %v4115 = vmul.f32 %v4083, %v373
    %v4116 = vmul.f32 %v4053, %v4100
    %v4117 = vmul.f32 %v4055, %v4101
    %v4118 = vmul.f32 %v4057, %v4102
    %v4119 = vmul.f32 %v4059, %v4103
    %v4120 = vmul.f32 %v4061, %v4104
    %v4121 = vmul.f32 %v4063, %v4105
    %v4122 = vmul.f32 %v4065, %v4106
    %v4123 = vmul.f32 %v4067, %v4107
    %v4124 = vadd.f32 %v4108, %v4116
    %v4125 = vadd.f32 %v4109, %v4117
    %v4126 = vadd.f32 %v4110, %v4118
    %v4127 = vadd.f32 %v4111, %v4119
    %v4128 = vadd.f32 %v4112, %v4120
    %v4129 = vadd.f32 %v4113, %v4121
    %v4130 = vadd.f32 %v4114, %v4122
    %v4131 = vadd.f32 %v4115, %v4123
    %v4132 = vtanh.pop %v4124
    %v4133 = vtanh.pop %v4125
    %v4134 = vtanh.pop %v4126
    %v4135 = vtanh.pop %v4127
    %v4136 = vtanh.pop %v4128
    %v4137 = vtanh.pop %v4129
    %v4138 = vtanh.pop %v4130
    %v4139 = vtanh.pop %v4131
    %v4140 = vmul.f32 %v4085, %v4132
    %v4141 = vmul.f32 %v4087, %v4133
    %v4142 = vmul.f32 %v4089, %v4134
    %v4143 = vmul.f32 %v4091, %v4135
    %v4144 = vmul.f32 %v4093, %v4136
    %v4145 = vmul.f32 %v4095, %v4137
    %v4146 = vmul.f32 %v4097, %v4138
    %v4147 = vmul.f32 %v4099, %v4139
    %4148 = vmatprep.subr.mxu0 %v4141
    %4149 = vmatpush1.msra.mxu0 %v4140
    %4150 = vmatprep.subr.mxu0 %v4143
    %4151 = vmatpush1.msra.mxu0 %v4142
    %4152 = vmatprep.subr.mxu0 %v4145
    %4153 = vmatpush1.msra.mxu0 %v4144
    %4154 = vmatprep.subr.mxu0 %v4147
    %4155 = vmatpush1.msra.mxu0 %v4146
    %4156 = vmatprep.subr.mxu0 0.0
    %4157 = vmatpush1.msra.mxu0 0.0
    %4158 = vmatprep.subr.mxu0 0.0
    %4159 = vmatpush1.msra.mxu0 0.0
    %4160 = vmatprep.subr.mxu0 0.0
    %4161 = vmatpush1.msra.mxu0 0.0
    %4162 = vmatprep.subr.mxu0 0.0
    %4163 = vmatpush1.msra.mxu0 0.0
    %4164 = vmatprep.subr.mxu0 0.0
    %4165 = vmatpush1.msra.mxu0 0.0
    %4166 = vmatprep.subr.mxu0 0.0
    %4167 = vmatpush1.msra.mxu0 0.0
    %4168 = vmatprep.subr.mxu0 0.0
    %4169 = vmatpush1.msra.mxu0 0.0
    %4170 = vmatprep.subr.mxu0 0.0
    %4171 = vmatpush1.msra.mxu0 0.0
    %4172 = vmatprep.subr.mxu0 0.0
    %4173 = vmatpush1.msra.mxu0 0.0
    %4174 = vmatprep.subr.mxu0 0.0
    %4175 = vmatpush1.msra.mxu0 0.0
    %4176 = vmatprep.subr.mxu0 0.0
    %4177 = vmatpush1.msra.mxu0 0.0
    %4178 = vmatprep.subr.mxu0 0.0
    %4179 = vmatpush1.msra.mxu0 0.0
    %4180 = vmatprep.subr.mxu0 0.0
    %4181 = vmatpush1.msra.mxu0 0.0
    %4182 = vmatprep.subr.mxu0 0.0
    %4183 = vmatpush1.msra.mxu0 0.0
    %4184 = vmatprep.subr.mxu0 0.0
    %4185 = vmatpush1.msra.mxu0 0.0
    %4186 = vmatprep.subr.mxu0 0.0
    %4187 = vmatpush1.msra.mxu0 0.0
    %4188 = vmatprep.subr.mxu0 0.0
    %4189 = vmatpush1.msra.mxu0 0.0
    %4190 = vmatprep.subr.mxu0 0.0
    %4191 = vmatpush1.msra.mxu0 0.0
    %4192 = vmatprep.subr.mxu0 0.0
    %4193 = vmatpush1.msra.mxu0 0.0
    %4194 = vmatprep.subr.mxu0 0.0
    %4195 = vmatpush1.msra.mxu0 0.0
    %4196 = vmatprep.subr.mxu0 0.0
    %4197 = vmatpush1.msra.mxu0 0.0
    %4198 = vmatprep.subr.mxu0 0.0
    %4199 = vmatpush1.msra.mxu0 0.0
    %4200 = vmatprep.subr.mxu0 0.0
    %4201 = vmatpush1.msra.mxu0 0.0
    %4202 = vmatprep.subr.mxu0 0.0
    %4203 = vmatpush1.msra.mxu0 0.0
    %4204 = vmatprep.subr.mxu0 0.0
    %4205 = vmatpush1.msra.mxu0 0.0
    %4206 = vmatprep.subr.mxu0 0.0
    %4207 = vmatpush1.msra.mxu0 0.0
    %4208 = vmatprep.subr.mxu0 0.0
    %4209 = vmatpush1.msra.mxu0 0.0
    %4210 = vmatprep.subr.mxu0 0.0
    %4211 = vmatpush1.msra.mxu0 0.0
    %4212 = vmatprep.mubr.f32.mxu0 0.0
    %4213 = vmatmul.mubr.f32.gmra.mrb[0].mxu0 %v1050
    %v4214 = vpop.f32.mrb[0].mxu0
    %v4215 = vadd.f32 0.0, %v4214
    %v4216 = vpop.f32.mrb[0].mxu0
    %v4217 = vadd.f32 0.0, %v4216
    %4218 = vmatprep.mubr.f32.mxu0 0.0
    %4219 = vmatmul.mubr.f32.gmra.mrb[0].mxu0 %v1053
    %v4220 = vpop.f32.mrb[0].mxu0
    %v4221 = vadd.f32 0.0, %v4220
    %v4222 = vpop.f32.mrb[0].mxu0
    %v4223 = vadd.f32 0.0, %v4222
    %4224 = vmatprep.mubr.f32.mxu0 0.0
    %4225 = vmatmul.mubr.f32.gmra.mrb[0].mxu0 %v1056
    %v4226 = vpop.f32.mrb[0].mxu0
    %v4227 = vadd.f32 0.0, %v4226
    %v4228 = vpop.f32.mrb[0].mxu0
    %v4229 = vadd.f32 0.0, %v4228
    %4230 = vdwg.mxu0
    %v4231 = vrot.slane %v4215, 4
    %v4232 = vmax.f32 %v4215, %v4231
    %v4233 = vrot.slane %v4232, 2
    %v4234 = vmax.f32 %v4232, %v4233
    %v4235 = vrot.slane %v4234, 1
    %v4236 = vmax.f32 %v4234, %v4235
    %v4237 = vrot.slane %v4217, 4
    %v4238 = vmax.f32 %v4217, %v4237
    %v4239 = vrot.slane %v4238, 2
    %v4240 = vmax.f32 %v4238, %v4239
    %v4241 = vrot.slane %v4240, 1
    %v4242 = vmax.f32 %v4240, %v4241
    %v4243 = vsub.f32 %v4215, %v4236
    %v4244 = vsub.f32 %v4217, %v4242
    %v4245 = vmul.f32 %v4243, 1.442695
    %v4246 = vpow.pop %v4245
    %v4247 = vmul.f32 %v4244, 1.442695
    %v4248 = vpow.pop %v4247
    %v4249 = vrot.slane %v4246, 4
    %v4250 = vadd.f32 %v4246, %v4249
    %v4251 = vrot.slane %v4250, 2
    %v4252 = vadd.f32 %v4250, %v4251
    %v4253 = vrot.slane %v4252, 1
    %v4254 = vadd.f32 %v4252, %v4253
    %v4255 = vrot.slane %v4248, 4
    %v4256 = vadd.f32 %v4248, %v4255
    %v4257 = vrot.slane %v4256, 2
    %v4258 = vadd.f32 %v4256, %v4257
    %v4259 = vrot.slane %v4258, 1
    %v4260 = vadd.f32 %v4258, %v4259
    %v4261 = vlog2.pop %v4254
    %v4262 = vmul.f32 %v4261, 0.6931472
    %v4263 = vlog2.pop %v4260
    %v4264 = vmul.f32 %v4263, 0.6931472
    %v4265 = vsub.f32 %v4243, %v4262
    %v4266 = vsub.f32 %v4244, %v4264
    %s4267 = scalar_lea.vmem [#allocation2], 64
    %4268 = vst [vmem:[%s4267] sm:$0xff] %v4265
    %4269 = vst [vmem:[%s4267 + $0x8] sm:$0xff] %v4266
    %v4270 = vmax.f32 %v4221, %v4227
    %v4271 = vrot.slane %v4270, 4
    %v4272 = vmax.f32 %v4270, %v4271
    %v4273 = vrot.slane %v4272, 2
    %v4274 = vmax.f32 %v4272, %v4273
    %v4275 = vrot.slane %v4274, 1
    %v4276 = vmax.f32 %v4274, %v4275
    %v4277 = vmax.f32 %v4223, %v4229
    %v4278 = vrot.slane %v4277, 4
    %v4279 = vmax.f32 %v4277, %v4278
    %v4280 = vrot.slane %v4279, 2
    %v4281 = vmax.f32 %v4279, %v4280
    %v4282 = vrot.slane %v4281, 1
    %v4283 = vmax.f32 %v4281, %v4282
    %v4284 = vsub.f32 %v4221, %v4276
    %v4285 = vsub.f32 %v4223, %v4283
    %v4286 = vsub.f32 %v4227, %v4276
    %v4287 = vsub.f32 %v4229, %v4283
    %v4288 = vmul.f32 %v4284, 1.442695
    %v4289 = vpow.pop %v4288
    %v4290 = vmul.f32 %v4285, 1.442695
    %v4291 = vpow.pop %v4290
    %v4292 = vmul.f32 %v4286, 1.442695
    %v4293 = vpow.pop %v4292
    %v4294 = vmul.f32 %v4287, 1.442695
    %v4295 = vpow.pop %v4294
    %v4296 = vadd.f32 %v4289, %v4293
    %v4297 = vrot.slane %v4296, 4
    %v4298 = vadd.f32 %v4296, %v4297
    %v4299 = vrot.slane %v4298, 2
    %v4300 = vadd.f32 %v4298, %v4299
    %v4301 = vrot.slane %v4300, 1
    %v4302 = vadd.f32 %v4300, %v4301
    %v4303 = vadd.f32 %v4291, %v4295
    %v4304 = vrot.slane %v4303, 4
    %v4305 = vadd.f32 %v4303, %v4304
    %v4306 = vrot.slane %v4305, 2
    %v4307 = vadd.f32 %v4305, %v4306
    %v4308 = vrot.slane %v4307, 1
    %v4309 = vadd.f32 %v4307, %v4308
    %v4310 = vrcp.pop %v4302
    %v4311 = vmul.f32 1.0, %v4310
    %v4312 = vrcp.pop %v4309
    %v4313 = vmul.f32 1.0, %v4312
    %v4314 = vmul.f32 %v4289, %v4311
    %v4315 = vmul.f32 %v4291, %v4313
    %v4316 = vmul.f32 %v4293, %v4311
    %v4317 = vmul.f32 %v4295, %v4313
    %s4318 = scalar_lea.vmem [#allocation4], 128
    %4319 = vst [vmem:[%s4318] sm:$0xff] %v4314
    %4320 = vst [vmem:[%s4318 + $0x8] sm:$0xff] %v4315
    %4321 = vst [vmem:[%s4318 + $0x10] sm:$0xff] %v4316
    %4322 = vst [vmem:[%s4318 + $0x18] sm:$0xff] %v4317
    %v4323 = vlaneseq
    %v4324 = vshrl.u32 %v4323, 7
    %v4325 = vsub.s32 5, %v4324
    %v4326 = vrot.slane %v409, %v4325
    %v4327 = vlaneseq
    %v4328 = vshrl.u32 %v4327, 7
    %v4329 = vsub.s32 5, %v4328
    %v4330 = vrot.slane %v410, %v4329
    %vm4331 = vcmp.eq.s32.totalorder %v412, %v4326
    %vm4332 = vcmp.eq.s32.totalorder %v412, %v4330
    %vm4333 = vcmp.eq.s32.totalorder %v413, %v4326
    %vm4334 = vcmp.eq.s32.totalorder %v413, %v4330
    %v4335 = vsel %vm4331, 1, 0
    %v4336 = vsel %vm4332, 1, 0
    %v4337 = vsel %vm4333, 1, 0
    %v4338 = vsel %vm4334, 1, 0
    %v4339 = vcvt.s32.f32 %v4335
    %v4340 = vcvt.s32.f32 %v4336
    %v4341 = vcvt.s32.f32 %v4337
    %v4342 = vcvt.s32.f32 %v4338
    %4343 = vmatprep.subr.mxu0 %v4340
    %4344 = vmatpush1.msra.mxu0 %v4339
    %4345 = vmatprep.subr.mxu0 %v4342
    %4346 = vmatpush1.msra.mxu0 %v4341
    %4347 = vmatprep.subr.mxu0 0.0
    %4348 = vmatpush1.msra.mxu0 0.0
    %4349 = vmatprep.subr.mxu0 0.0
    %4350 = vmatpush1.msra.mxu0 0.0
    %4351 = vmatprep.subr.mxu0 0.0
    %4352 = vmatpush1.msra.mxu0 0.0
    %4353 = vmatprep.subr.mxu0 0.0
    %4354 = vmatpush1.msra.mxu0 0.0
    %4355 = vmatprep.subr.mxu0 0.0
    %4356 = vmatpush1.msra.mxu0 0.0
    %4357 = vmatprep.subr.mxu0 0.0
    %4358 = vmatpush1.msra.mxu0 0.0
    %4359 = vmatprep.subr.mxu0 0.0
    %4360 = vmatpush1.msra.mxu0 0.0
    %4361 = vmatprep.subr.mxu0 0.0
    %4362 = vmatpush1.msra.mxu0 0.0
    %4363 = vmatprep.subr.mxu0 0.0
    %4364 = vmatpush1.msra.mxu0 0.0
    %4365 = vmatprep.subr.mxu0 0.0
    %4366 = vmatpush1.msra.mxu0 0.0
    %4367 = vmatprep.subr.mxu0 0.0
    %4368 = vmatpush1.msra.mxu0 0.0
    %4369 = vmatprep.subr.mxu0 0.0
    %4370 = vmatpush1.msra.mxu0 0.0
    %4371 = vmatprep.subr.mxu0 0.0
    %4372 = vmatpush1.msra.mxu0 0.0
    %4373 = vmatprep.subr.mxu0 0.0
    %4374 = vmatpush1.msra.mxu0 0.0
    %4375 = vmatprep.subr.mxu0 0.0
    %4376 = vmatpush1.msra.mxu0 0.0
    %4377 = vmatprep.subr.mxu0 0.0
    %4378 = vmatpush1.msra.mxu0 0.0
    %4379 = vmatprep.subr.mxu0 0.0
    %4380 = vmatpush1.msra.mxu0 0.0
    %4381 = vmatprep.subr.mxu0 0.0
    %4382 = vmatpush1.msra.mxu0 0.0
    %4383 = vmatprep.subr.mxu0 0.0
    %4384 = vmatpush1.msra.mxu0 0.0
    %4385 = vmatprep.subr.mxu0 0.0
    %4386 = vmatpush1.msra.mxu0 0.0
    %4387 = vmatprep.subr.mxu0 0.0
    %4388 = vmatpush1.msra.mxu0 0.0
    %4389 = vmatprep.subr.mxu0 0.0
    %4390 = vmatpush1.msra.mxu0 0.0
    %4391 = vmatprep.subr.mxu0 0.0
    %4392 = vmatpush1.msra.mxu0 0.0
    %4393 = vmatprep.subr.mxu0 0.0
    %4394 = vmatpush1.msra.mxu0 0.0
    %4395 = vmatprep.subr.mxu0 0.0
    %4396 = vmatpush1.msra.mxu0 0.0
    %4397 = vmatprep.subr.mxu0 0.0
    %4398 = vmatpush1.msra.mxu0 0.0
    %4399 = vmatprep.subr.mxu0 0.0
    %4400 = vmatpush1.msra.mxu0 0.0
    %4401 = vmatprep.subr.mxu0 0.0
    %4402 = vmatpush1.msra.mxu0 0.0
    %4403 = vmatprep.subr.mxu0 0.0
    %4404 = vmatpush1.msra.mxu0 0.0
    %4405 = vmatprep.subr.mxu0 0.0
    %4406 = vmatpush1.msra.mxu0 0.0
    %4407 = vmatprep.mubr.f32.mxu0 0.0
    %4408 = vmatmul.mubr.f32.gmra.mrb[0].mxu0 %v440
    %v4409 = vpop.f32.mrb[0].mxu0
    %v4410 = vadd.f32 %v272, %v4409
    %v4411 = vpop.f32.mrb[0].mxu0
    %v4412 = vadd.f32 %v274, %v4411
    %4413 = vmatprep.mubr.f32.mxu0 0.0
    %4414 = vmatmul.mubr.f32.gmra.mrb[0].mxu0 %v443
    %v4415 = vpop.f32.mrb[0].mxu0
    %v4416 = vadd.f32 %v278, %v4415
    %v4417 = vpop.f32.mrb[0].mxu0
    %v4418 = vadd.f32 %v280, %v4417
    %4419 = vmatprep.mubr.f32.mxu0 0.0
    %4420 = vmatmul.mubr.f32.gmra.mrb[0].mxu0 %v446
    %v4421 = vpop.f32.mrb[0].mxu0
    %v4422 = vadd.f32 %v284, %v4421
    %v4423 = vpop.f32.mrb[0].mxu0
    %v4424 = vadd.f32 %v286, %v4423
    %4425 = vmatprep.mubr.f32.mxu0 0.0
    %4426 = vmatmul.mubr.f32.gmra.mrb[0].mxu0 %v449
    %v4427 = vpop.f32.mrb[0].mxu0
    %v4428 = vadd.f32 %v290, %v4427
    %v4429 = vpop.f32.mrb[0].mxu0
    %v4430 = vadd.f32 %v292, %v4429
    %4431 = vmatprep.mubr.f32.mxu0 0.0
    %4432 = vmatmul.mubr.f32.gmra.mrb[0].mxu0 %v452
    %v4433 = vpop.f32.mrb[0].mxu0
    %v4434 = vadd.f32 %v296, %v4433
    %v4435 = vpop.f32.mrb[0].mxu0
    %v4436 = vadd.f32 %v298, %v4435
    %4437 = vmatprep.mubr.f32.mxu0 0.0
    %4438 = vmatmul.mubr.f32.gmra.mrb[0].mxu0 %v455
    %v4439 = vpop.f32.mrb[0].mxu0
    %v4440 = vadd.f32 %v302, %v4439
    %v4441 = vpop.f32.mrb[0].mxu0
    %v4442 = vadd.f32 %v304, %v4441
    %4443 = vmatprep.mubr.f32.mxu0 0.0
    %4444 = vmatmul.mubr.f32.gmra.mrb[0].mxu0 %v458
    %v4445 = vpop.f32.mrb[0].mxu0
    %v4446 = vadd.f32 %v308, %v4445
    %v4447 = vpop.f32.mrb[0].mxu0
    %v4448 = vadd.f32 %v310, %v4447
    %4449 = vmatprep.mubr.f32.mxu0 0.0
    %4450 = vmatmul.mubr.f32.gmra.mrb[0].mxu0 %v461
    %v4451 = vpop.f32.mrb[0].mxu0
    %v4452 = vadd.f32 %v314, %v4451
    %v4453 = vpop.f32.mrb[0].mxu0
    %v4454 = vadd.f32 %v316, %v4453
    %4455 = vmatprep.mubr.f32.mxu0 0.0
    %4456 = vmatmul.mubr.f32.gmra.mrb[0].mxu0 %v464
    %v4457 = vpop.f32.mrb[0].mxu0
    %v4458 = vadd.f32 %v320, %v4457
    %v4459 = vpop.f32.mrb[0].mxu0
    %v4460 = vadd.f32 %v322, %v4459
    %4461 = vmatprep.mubr.f32.mxu0 0.0
    %4462 = vmatmul.mubr.f32.gmra.mrb[0].mxu0 %v467
    %v4463 = vpop.f32.mrb[0].mxu0
    %v4464 = vadd.f32 %v326, %v4463
    %v4465 = vpop.f32.mrb[0].mxu0
    %v4466 = vadd.f32 %v328, %v4465
    %4467 = vmatprep.mubr.f32.mxu0 0.0
    %4468 = vmatmul.mubr.f32.gmra.mrb[0].mxu0 %v470
    %v4469 = vpop.f32.mrb[0].mxu0
    %v4470 = vadd.f32 %v332, %v4469
    %v4471 = vpop.f32.mrb[0].mxu0
    %v4472 = vadd.f32 %v334, %v4471
    %4473 = vmatprep.mubr.f32.mxu0 0.0
    %4474 = vmatmul.mubr.f32.gmra.mrb[0].mxu0 %v473
    %v4475 = vpop.f32.mrb[0].mxu0
    %v4476 = vadd.f32 %v338, %v4475
    %v4477 = vpop.f32.mrb[0].mxu0
    %v4478 = vadd.f32 %v340, %v4477
    %4479 = vmatprep.mubr.f32.mxu0 0.0
    %4480 = vmatmul.mubr.f32.gmra.mrb[0].mxu0 %v476
    %v4481 = vpop.f32.mrb[0].mxu0
    %v4482 = vadd.f32 %v344, %v4481
    %v4483 = vpop.f32.mrb[0].mxu0
    %v4484 = vadd.f32 %v346, %v4483
    %4485 = vmatprep.mubr.f32.mxu0 0.0
    %4486 = vmatmul.mubr.f32.gmra.mrb[0].mxu0 %v479
    %v4487 = vpop.f32.mrb[0].mxu0
    %v4488 = vadd.f32 %v350, %v4487
    %v4489 = vpop.f32.mrb[0].mxu0
    %v4490 = vadd.f32 %v352, %v4489
    %4491 = vmatprep.mubr.f32.mxu0 0.0
    %4492 = vmatmul.mubr.f32.gmra.mrb[0].mxu0 %v482
    %v4493 = vpop.f32.mrb[0].mxu0
    %v4494 = vadd.f32 %v356, %v4493
    %v4495 = vpop.f32.mrb[0].mxu0
    %v4496 = vadd.f32 %v358, %v4495
    %4497 = vmatprep.mubr.f32.mxu0 0.0
    %4498 = vmatmul.mubr.f32.gmra.mrb[0].mxu0 %v485
    %v4499 = vpop.f32.mrb[0].mxu0
    %v4500 = vadd.f32 %v362, %v4499
    %v4501 = vpop.f32.mrb[0].mxu0
    %v4502 = vadd.f32 %v364, %v4501
    %4503 = vdwg.mxu0
    %4504 = vmatprep.subr.mxu0 %v4291
    %4505 = vmatpush1.msra.mxu0 %v4289
    %4506 = vmatprep.subr.mxu0 %v4295
    %4507 = vmatpush1.msra.mxu0 %v4293
    %4508 = vmatprep.subr.mxu0 0.0
    %4509 = vmatpush1.msra.mxu0 0.0
    %4510 = vmatprep.subr.mxu0 0.0
    %4511 = vmatpush1.msra.mxu0 0.0
    %4512 = vmatprep.subr.mxu0 0.0
    %4513 = vmatpush1.msra.mxu0 0.0
    %4514 = vmatprep.subr.mxu0 0.0
    %4515 = vmatpush1.msra.mxu0 0.0
    %4516 = vmatprep.subr.mxu0 0.0
    %4517 = vmatpush1.msra.mxu0 0.0
    %4518 = vmatprep.subr.mxu0 0.0
    %4519 = vmatpush1.msra.mxu0 0.0
    %4520 = vmatprep.subr.mxu0 0.0
    %4521 = vmatpush1.msra.mxu0 0.0
    %4522 = vmatprep.subr.mxu0 0.0
    %4523 = vmatpush1.msra.mxu0 0.0
    %4524 = vmatprep.subr.mxu0 0.0
    %4525 = vmatpush1.msra.mxu0 0.0
    %4526 = vmatprep.subr.mxu0 0.0
    %4527 = vmatpush1.msra.mxu0 0.0
    %4528 = vmatprep.subr.mxu0 0.0
    %4529 = vmatpush1.msra.mxu0 0.0
    %4530 = vmatprep.subr.mxu0 0.0
    %4531 = vmatpush1.msra.mxu0 0.0
    %4532 = vmatprep.subr.mxu0 0.0
    %4533 = vmatpush1.msra.mxu0 0.0
    %4534 = vmatprep.subr.mxu0 0.0
    %4535 = vmatpush1.msra.mxu0 0.0
    %4536 = vmatprep.subr.mxu0 0.0
    %4537 = vmatpush1.msra.mxu0 0.0
    %4538 = vmatprep.subr.mxu0 0.0
    %4539 = vmatpush1.msra.mxu0 0.0
    %4540 = vmatprep.subr.mxu0 0.0
    %4541 = vmatpush1.msra.mxu0 0.0
    %4542 = vmatprep.subr.mxu0 0.0
    %4543 = vmatpush1.msra.mxu0 0.0
    %4544 = vmatprep.subr.mxu0 0.0
    %4545 = vmatpush1.msra.mxu0 0.0
    %4546 = vmatprep.subr.mxu0 0.0
    %4547 = vmatpush1.msra.mxu0 0.0
    %4548 = vmatprep.subr.mxu0 0.0
    %4549 = vmatpush1.msra.mxu0 0.0
    %4550 = vmatprep.subr.mxu0 0.0
    %4551 = vmatpush1.msra.mxu0 0.0
    %4552 = vmatprep.subr.mxu0 0.0
    %4553 = vmatpush1.msra.mxu0 0.0
    %4554 = vmatprep.subr.mxu0 0.0
    %4555 = vmatpush1.msra.mxu0 0.0
    %4556 = vmatprep.subr.mxu0 0.0
    %4557 = vmatpush1.msra.mxu0 0.0
    %4558 = vmatprep.subr.mxu0 0.0
    %4559 = vmatpush1.msra.mxu0 0.0
    %4560 = vmatprep.subr.mxu0 0.0
    %4561 = vmatpush1.msra.mxu0 0.0
    %4562 = vmatprep.subr.mxu0 0.0
    %4563 = vmatpush1.msra.mxu0 0.0
    %4564 = vmatprep.subr.mxu0 0.0
    %4565 = vmatpush1.msra.mxu0 0.0
    %4566 = vmatprep.subr.mxu0 0.0
    %4567 = vmatpush1.msra.mxu0 0.0
    %4568 = vmatprep.mubr.f32.mxu0 0.0
    %4569 = vmatmul.mubr.f32.gmra.mrb[0].mxu0 %v649
    %v4570 = vpop.f32.mrb[0].mxu0
    %v4571 = vadd.f32 0.0, %v4570
    %v4572 = vpop.f32.mrb[0].mxu0
    %v4573 = vadd.f32 0.0, %v4572
    %4574 = vmatprep.mubr.f32.mxu0 0.0
    %4575 = vmatmul.mubr.f32.gmra.mrb[0].mxu0 %v652
    %v4576 = vpop.f32.mrb[0].mxu0
    %v4577 = vadd.f32 0.0, %v4576
    %v4578 = vpop.f32.mrb[0].mxu0
    %v4579 = vadd.f32 0.0, %v4578
    %4580 = vmatprep.mubr.f32.mxu0 0.0
    %4581 = vmatmul.mubr.f32.gmra.mrb[0].mxu0 %v655
    %v4582 = vpop.f32.mrb[0].mxu0
    %v4583 = vadd.f32 0.0, %v4582
    %v4584 = vpop.f32.mrb[0].mxu0
    %v4585 = vadd.f32 0.0, %v4584
    %4586 = vmatprep.mubr.f32.mxu0 0.0
    %4587 = vmatmul.mubr.f32.gmra.mrb[0].mxu0 %v658
    %v4588 = vpop.f32.mrb[0].mxu0
    %v4589 = vadd.f32 0.0, %v4588
    %v4590 = vpop.f32.mrb[0].mxu0
    %v4591 = vadd.f32 0.0, %v4590
    %4592 = vmatprep.mubr.f32.mxu0 0.0
    %4593 = vmatmul.mubr.f32.gmra.mrb[0].mxu0 %v661
    %v4594 = vpop.f32.mrb[0].mxu0
    %v4595 = vadd.f32 0.0, %v4594
    %v4596 = vpop.f32.mrb[0].mxu0
    %v4597 = vadd.f32 0.0, %v4596
    %4598 = vmatprep.mubr.f32.mxu0 0.0
    %4599 = vmatmul.mubr.f32.gmra.mrb[0].mxu0 %v664
    %v4600 = vpop.f32.mrb[0].mxu0
    %v4601 = vadd.f32 0.0, %v4600
    %v4602 = vpop.f32.mrb[0].mxu0
    %v4603 = vadd.f32 0.0, %v4602
    %4604 = vmatprep.mubr.f32.mxu0 0.0
    %4605 = vmatmul.mubr.f32.gmra.mrb[0].mxu0 %v667
    %v4606 = vpop.f32.mrb[0].mxu0
    %v4607 = vadd.f32 0.0, %v4606
    %v4608 = vpop.f32.mrb[0].mxu0
    %v4609 = vadd.f32 0.0, %v4608
    %4610 = vmatprep.mubr.f32.mxu0 0.0
    %4611 = vmatmul.mubr.f32.gmra.mrb[0].mxu0 %v670
    %v4612 = vpop.f32.mrb[0].mxu0
    %v4613 = vadd.f32 0.0, %v4612
    %v4614 = vpop.f32.mrb[0].mxu0
    %v4615 = vadd.f32 0.0, %v4614
    %4616 = vmatprep.mubr.f32.mxu0 0.0
    %4617 = vmatmul.mubr.f32.gmra.mrb[0].mxu0 %v673
    %v4618 = vpop.f32.mrb[0].mxu0
    %v4619 = vadd.f32 0.0, %v4618
    %v4620 = vpop.f32.mrb[0].mxu0
    %v4621 = vadd.f32 0.0, %v4620
    %4622 = vmatprep.mubr.f32.mxu0 0.0
    %4623 = vmatmul.mubr.f32.gmra.mrb[0].mxu0 %v676
    %v4624 = vpop.f32.mrb[0].mxu0
    %v4625 = vadd.f32 0.0, %v4624
    %v4626 = vpop.f32.mrb[0].mxu0
    %v4627 = vadd.f32 0.0, %v4626
    %4628 = vmatprep.mubr.f32.mxu0 0.0
    %4629 = vmatmul.mubr.f32.gmra.mrb[0].mxu0 %v679
    %v4630 = vpop.f32.mrb[0].mxu0
    %v4631 = vadd.f32 0.0, %v4630
    %v4632 = vpop.f32.mrb[0].mxu0
    %v4633 = vadd.f32 0.0, %v4632
    %4634 = vmatprep.mubr.f32.mxu0 0.0
    %4635 = vmatmul.mubr.f32.gmra.mrb[0].mxu0 %v682
    %v4636 = vpop.f32.mrb[0].mxu0
    %v4637 = vadd.f32 0.0, %v4636
    %v4638 = vpop.f32.mrb[0].mxu0
    %v4639 = vadd.f32 0.0, %v4638
    %4640 = vmatprep.mubr.f32.mxu0 0.0
    %4641 = vmatmul.mubr.f32.gmra.mrb[0].mxu0 %v685
    %v4642 = vpop.f32.mrb[0].mxu0
    %v4643 = vadd.f32 0.0, %v4642
    %v4644 = vpop.f32.mrb[0].mxu0
    %v4645 = vadd.f32 0.0, %v4644
    %4646 = vmatprep.mubr.f32.mxu0 0.0
    %4647 = vmatmul.mubr.f32.gmra.mrb[0].mxu0 %v688
    %v4648 = vpop.f32.mrb[0].mxu0
    %v4649 = vadd.f32 0.0, %v4648
    %v4650 = vpop.f32.mrb[0].mxu0
    %v4651 = vadd.f32 0.0, %v4650
    %4652 = vmatprep.mubr.f32.mxu0 0.0
    %4653 = vmatmul.mubr.f32.gmra.mrb[0].mxu0 %v691
    %v4654 = vpop.f32.mrb[0].mxu0
    %v4655 = vadd.f32 0.0, %v4654
    %v4656 = vpop.f32.mrb[0].mxu0
    %v4657 = vadd.f32 0.0, %v4656
    %4658 = vmatprep.mubr.f32.mxu0 0.0
    %4659 = vmatmul.mubr.f32.gmra.mrb[0].mxu0 %v694
    %v4660 = vpop.f32.mrb[0].mxu0
    %v4661 = vadd.f32 0.0, %v4660
    %v4662 = vpop.f32.mrb[0].mxu0
    %v4663 = vadd.f32 0.0, %v4662
    %4664 = vdwg.mxu0
    %v4665 = vmul.f32 %v4571, %v4311
    %v4666 = vmul.f32 %v4573, %v4313
    %v4667 = vmul.f32 %v4577, %v4311
    %v4668 = vmul.f32 %v4579, %v4313
    %v4669 = vmul.f32 %v4583, %v4311
    %v4670 = vmul.f32 %v4585, %v4313
    %v4671 = vmul.f32 %v4589, %v4311
    %v4672 = vmul.f32 %v4591, %v4313
    %v4673 = vmul.f32 %v4595, %v4311
    %v4674 = vmul.f32 %v4597, %v4313
    %v4675 = vmul.f32 %v4601, %v4311
    %v4676 = vmul.f32 %v4603, %v4313
    %v4677 = vmul.f32 %v4607, %v4311
    %v4678 = vmul.f32 %v4609, %v4313
    %v4679 = vmul.f32 %v4613, %v4311
    %v4680 = vmul.f32 %v4615, %v4313
    %v4681 = vmul.f32 %v4619, %v4311
    %v4682 = vmul.f32 %v4621, %v4313
    %v4683 = vmul.f32 %v4625, %v4311
    %v4684 = vmul.f32 %v4627, %v4313
    %v4685 = vmul.f32 %v4631, %v4311
    %v4686 = vmul.f32 %v4633, %v4313
    %v4687 = vmul.f32 %v4637, %v4311
    %v4688 = vmul.f32 %v4639, %v4313
    %v4689 = vmul.f32 %v4643, %v4311
    %v4690 = vmul.f32 %v4645, %v4313
    %v4691 = vmul.f32 %v4649, %v4311
    %v4692 = vmul.f32 %v4651, %v4313
    %v4693 = vmul.f32 %v4655, %v4311
    %v4694 = vmul.f32 %v4657, %v4313
    %v4695 = vmul.f32 %v4661, %v4311
    %v4696 = vmul.f32 %v4663, %v4313
    %v4697 = vadd.f32 %v4665, %v4410
    %v4698 = vadd.f32 %v4666, %v4412
    %v4699 = vadd.f32 %v4667, %v4416
    %v4700 = vadd.f32 %v4668, %v4418
    %v4701 = vadd.f32 %v4669, %v4422
    %v4702 = vadd.f32 %v4670, %v4424
    %v4703 = vadd.f32 %v4671, %v4428
    %v4704 = vadd.f32 %v4672, %v4430
    %v4705 = vadd.f32 %v4673, %v4434
    %v4706 = vadd.f32 %v4674, %v4436
    %v4707 = vadd.f32 %v4675, %v4440
    %v4708 = vadd.f32 %v4676, %v4442
    %v4709 = vadd.f32 %v4677, %v4446
    %v4710 = vadd.f32 %v4678, %v4448
    %v4711 = vadd.f32 %v4679, %v4452
    %v4712 = vadd.f32 %v4680, %v4454
    %v4713 = vadd.f32 %v4681, %v4458
    %v4714 = vadd.f32 %v4682, %v4460
    %v4715 = vadd.f32 %v4683, %v4464
    %v4716 = vadd.f32 %v4684, %v4466
    %v4717 = vadd.f32 %v4685, %v4470
    %v4718 = vadd.f32 %v4686, %v4472
    %v4719 = vadd.f32 %v4687, %v4476
    %v4720 = vadd.f32 %v4688, %v4478
    %v4721 = vadd.f32 %v4689, %v4482
    %v4722 = vadd.f32 %v4690, %v4484
    %v4723 = vadd.f32 %v4691, %v4488
    %v4724 = vadd.f32 %v4692, %v4490
    %v4725 = vadd.f32 %v4693, %v4494
    %v4726 = vadd.f32 %v4694, %v4496
    %v4727 = vadd.f32 %v4695, %v4500
    %v4728 = vadd.f32 %v4696, %v4502
    %v4729 = vxor.u32 %v4697, 2147483648
    %v4730 = vxor.u32 %v4698, 2147483648
    %v4731 = vxor.u32 %v4699, 2147483648
    %v4732 = vxor.u32 %v4700, 2147483648
    %v4733 = vxor.u32 %v4701, 2147483648
    %v4734 = vxor.u32 %v4702, 2147483648
    %v4735 = vxor.u32 %v4703, 2147483648
    %v4736 = vxor.u32 %v4704, 2147483648
    %v4737 = vxor.u32 %v4705, 2147483648
    %v4738 = vxor.u32 %v4706, 2147483648
    %v4739 = vxor.u32 %v4707, 2147483648
    %v4740 = vxor.u32 %v4708, 2147483648
    %v4741 = vxor.u32 %v4709, 2147483648
    %v4742 = vxor.u32 %v4710, 2147483648
    %v4743 = vxor.u32 %v4711, 2147483648
    %v4744 = vxor.u32 %v4712, 2147483648
    %v4745 = vxor.u32 %v4721, 2147483648
    %v4746 = vxor.u32 %v4722, 2147483648
    %v4747 = vxor.u32 %v4723, 2147483648
    %v4748 = vxor.u32 %v4724, 2147483648
    %v4749 = vxor.u32 %v4725, 2147483648
    %v4750 = vxor.u32 %v4726, 2147483648
    %v4751 = vxor.u32 %v4727, 2147483648
    %v4752 = vxor.u32 %v4728, 2147483648
    %v4753 = vmul.f32 %v4729, 1.442695
    %v4754 = vpow.pop %v4753
    %v4755 = vmul.f32 %v4730, 1.442695
    %v4756 = vpow.pop %v4755
    %v4757 = vmul.f32 %v4731, 1.442695
    %v4758 = vpow.pop %v4757
    %v4759 = vmul.f32 %v4732, 1.442695
    %v4760 = vpow.pop %v4759
    %v4761 = vmul.f32 %v4733, 1.442695
    %v4762 = vpow.pop %v4761
    %v4763 = vmul.f32 %v4734, 1.442695
    %v4764 = vpow.pop %v4763
    %v4765 = vmul.f32 %v4735, 1.442695
    %v4766 = vpow.pop %v4765
    %v4767 = vmul.f32 %v4736, 1.442695
    %v4768 = vpow.pop %v4767
    %v4769 = vmul.f32 %v4737, 1.442695
    %v4770 = vpow.pop %v4769
    %v4771 = vmul.f32 %v4738, 1.442695
    %v4772 = vpow.pop %v4771
    %v4773 = vmul.f32 %v4739, 1.442695
    %v4774 = vpow.pop %v4773
    %v4775 = vmul.f32 %v4740, 1.442695
    %v4776 = vpow.pop %v4775
    %v4777 = vmul.f32 %v4741, 1.442695
    %v4778 = vpow.pop %v4777
    %v4779 = vmul.f32 %v4742, 1.442695
    %v4780 = vpow.pop %v4779
    %v4781 = vmul.f32 %v4743, 1.442695
    %v4782 = vpow.pop %v4781
    %v4783 = vmul.f32 %v4744, 1.442695
    %v4784 = vpow.pop %v4783
    %v4785 = vmul.f32 %v4745, 1.442695
    %v4786 = vpow.pop %v4785
    %v4787 = vmul.f32 %v4746, 1.442695
    %v4788 = vpow.pop %v4787
    %v4789 = vmul.f32 %v4747, 1.442695
    %v4790 = vpow.pop %v4789
    %v4791 = vmul.f32 %v4748, 1.442695
    %v4792 = vpow.pop %v4791
    %v4793 = vmul.f32 %v4749, 1.442695
    %v4794 = vpow.pop %v4793
    %v4795 = vmul.f32 %v4750, 1.442695
    %v4796 = vpow.pop %v4795
    %v4797 = vmul.f32 %v4751, 1.442695
    %v4798 = vpow.pop %v4797
    %v4799 = vmul.f32 %v4752, 1.442695
    %v4800 = vpow.pop %v4799
    %v4801 = vadd.f32 %v4754, 1.0
    %v4802 = vadd.f32 %v4756, 1.0
    %v4803 = vadd.f32 %v4758, 1.0
    %v4804 = vadd.f32 %v4760, 1.0
    %v4805 = vadd.f32 %v4762, 1.0
    %v4806 = vadd.f32 %v4764, 1.0
    %v4807 = vadd.f32 %v4766, 1.0
    %v4808 = vadd.f32 %v4768, 1.0
    %v4809 = vadd.f32 %v4770, 1.0
    %v4810 = vadd.f32 %v4772, 1.0
    %v4811 = vadd.f32 %v4774, 1.0
    %v4812 = vadd.f32 %v4776, 1.0
    %v4813 = vadd.f32 %v4778, 1.0
    %v4814 = vadd.f32 %v4780, 1.0
    %v4815 = vadd.f32 %v4782, 1.0
    %v4816 = vadd.f32 %v4784, 1.0
    %v4817 = vadd.f32 %v4786, 1.0
    %v4818 = vadd.f32 %v4788, 1.0
    %v4819 = vadd.f32 %v4790, 1.0
    %v4820 = vadd.f32 %v4792, 1.0
    %v4821 = vadd.f32 %v4794, 1.0
    %v4822 = vadd.f32 %v4796, 1.0
    %v4823 = vadd.f32 %v4798, 1.0
    %v4824 = vadd.f32 %v4800, 1.0
    %v4825 = vrcp.pop %v4801
    %v4826 = vmul.f32 1.0, %v4825
    %v4827 = vrcp.pop %v4802
    %v4828 = vmul.f32 1.0, %v4827
    %v4829 = vrcp.pop %v4803
    %v4830 = vmul.f32 1.0, %v4829
    %v4831 = vrcp.pop %v4804
    %v4832 = vmul.f32 1.0, %v4831
    %v4833 = vrcp.pop %v4805
    %v4834 = vmul.f32 1.0, %v4833
    %v4835 = vrcp.pop %v4806
    %v4836 = vmul.f32 1.0, %v4835
    %v4837 = vrcp.pop %v4807
    %v4838 = vmul.f32 1.0, %v4837
    %v4839 = vrcp.pop %v4808
    %v4840 = vmul.f32 1.0, %v4839
    %v4841 = vrcp.pop %v4809
    %v4842 = vmul.f32 1.0, %v4841
    %v4843 = vrcp.pop %v4810
    %v4844 = vmul.f32 1.0, %v4843
    %v4845 = vrcp.pop %v4811
    %v4846 = vmul.f32 1.0, %v4845
    %v4847 = vrcp.pop %v4812
    %v4848 = vmul.f32 1.0, %v4847
    %v4849 = vrcp.pop %v4813
    %v4850 = vmul.f32 1.0, %v4849
    %v4851 = vrcp.pop %v4814
    %v4852 = vmul.f32 1.0, %v4851
    %v4853 = vrcp.pop %v4815
    %v4854 = vmul.f32 1.0, %v4853
    %v4855 = vrcp.pop %v4816
    %v4856 = vmul.f32 1.0, %v4855
    %v4857 = vrcp.pop %v4817
    %v4858 = vmul.f32 1.0, %v4857
    %v4859 = vrcp.pop %v4818
    %v4860 = vmul.f32 1.0, %v4859
    %v4861 = vrcp.pop %v4819
    %v4862 = vmul.f32 1.0, %v4861
    %v4863 = vrcp.pop %v4820
    %v4864 = vmul.f32 1.0, %v4863
    %v4865 = vrcp.pop %v4821
    %v4866 = vmul.f32 1.0, %v4865
    %v4867 = vrcp.pop %v4822
    %v4868 = vmul.f32 1.0, %v4867
    %v4869 = vrcp.pop %v4823
    %v4870 = vmul.f32 1.0, %v4869
    %v4871 = vrcp.pop %v4824
    %v4872 = vmul.f32 1.0, %v4871
    %v4873 = vtanh.pop %v4713
    %v4874 = vtanh.pop %v4714
    %v4875 = vtanh.pop %v4715
    %v4876 = vtanh.pop %v4716
    %v4877 = vtanh.pop %v4717
    %v4878 = vtanh.pop %v4718
    %v4879 = vtanh.pop %v4719
    %v4880 = vtanh.pop %v4720
    %v4881 = vmul.f32 %v4842, %v366
    %v4882 = vmul.f32 %v4844, %v367
    %v4883 = vmul.f32 %v4846, %v368
    %v4884 = vmul.f32 %v4848, %v369
    %v4885 = vmul.f32 %v4850, %v370
    %v4886 = vmul.f32 %v4852, %v371
    %v4887 = vmul.f32 %v4854, %v372
    %v4888 = vmul.f32 %v4856, %v373
    %v4889 = vmul.f32 %v4826, %v4873
    %v4890 = vmul.f32 %v4828, %v4874
    %v4891 = vmul.f32 %v4830, %v4875
    %v4892 = vmul.f32 %v4832, %v4876
    %v4893 = vmul.f32 %v4834, %v4877
    %v4894 = vmul.f32 %v4836, %v4878
    %v4895 = vmul.f32 %v4838, %v4879
    %v4896 = vmul.f32 %v4840, %v4880
    %v4897 = vadd.f32 %v4881, %v4889
    %v4898 = vadd.f32 %v4882, %v4890
    %v4899 = vadd.f32 %v4883, %v4891
    %v4900 = vadd.f32 %v4884, %v4892
    %v4901 = vadd.f32 %v4885, %v4893
    %v4902 = vadd.f32 %v4886, %v4894
    %v4903 = vadd.f32 %v4887, %v4895
    %v4904 = vadd.f32 %v4888, %v4896
    %v4905 = vtanh.pop %v4897
    %v4906 = vtanh.pop %v4898
    %v4907 = vtanh.pop %v4899
    %v4908 = vtanh.pop %v4900
    %v4909 = vtanh.pop %v4901
    %v4910 = vtanh.pop %v4902
    %v4911 = vtanh.pop %v4903
    %v4912 = vtanh.pop %v4904
    %v4913 = vmul.f32 %v4858, %v4905
    %v4914 = vmul.f32 %v4860, %v4906
    %v4915 = vmul.f32 %v4862, %v4907
    %v4916 = vmul.f32 %v4864, %v4908
    %v4917 = vmul.f32 %v4866, %v4909
    %v4918 = vmul.f32 %v4868, %v4910
    %v4919 = vmul.f32 %v4870, %v4911
    %v4920 = vmul.f32 %v4872, %v4912
    %4921 = vmatprep.subr.mxu0 %v4914
    %4922 = vmatpush1.msra.mxu0 %v4913
    %4923 = vmatprep.subr.mxu0 %v4916
    %4924 = vmatpush1.msra.mxu0 %v4915
    %4925 = vmatprep.subr.mxu0 %v4918
    %4926 = vmatpush1.msra.mxu0 %v4917
    %4927 = vmatprep.subr.mxu0 %v4920
    %4928 = vmatpush1.msra.mxu0 %v4919
    %4929 = vmatprep.subr.mxu0 0.0
    %4930 = vmatpush1.msra.mxu0 0.0
    %4931 = vmatprep.subr.mxu0 0.0
    %4932 = vmatpush1.msra.mxu0 0.0
    %4933 = vmatprep.subr.mxu0 0.0
    %4934 = vmatpush1.msra.mxu0 0.0
    %4935 = vmatprep.subr.mxu0 0.0
    %4936 = vmatpush1.msra.mxu0 0.0
    %4937 = vmatprep.subr.mxu0 0.0
    %4938 = vmatpush1.msra.mxu0 0.0
    %4939 = vmatprep.subr.mxu0 0.0
    %4940 = vmatpush1.msra.mxu0 0.0
    %4941 = vmatprep.subr.mxu0 0.0
    %4942 = vmatpush1.msra.mxu0 0.0
    %4943 = vmatprep.subr.mxu0 0.0
    %4944 = vmatpush1.msra.mxu0 0.0
    %4945 = vmatprep.subr.mxu0 0.0
    %4946 = vmatpush1.msra.mxu0 0.0
    %4947 = vmatprep.subr.mxu0 0.0
    %4948 = vmatpush1.msra.mxu0 0.0
    %4949 = vmatprep.subr.mxu0 0.0
    %4950 = vmatpush1.msra.mxu0 0.0
    %4951 = vmatprep.subr.mxu0 0.0
    %4952 = vmatpush1.msra.mxu0 0.0
    %4953 = vmatprep.subr.mxu0 0.0
    %4954 = vmatpush1.msra.mxu0 0.0
    %4955 = vmatprep.subr.mxu0 0.0
    %4956 = vmatpush1.msra.mxu0 0.0
    %4957 = vmatprep.subr.mxu0 0.0
    %4958 = vmatpush1.msra.mxu0 0.0
    %4959 = vmatprep.subr.mxu0 0.0
    %4960 = vmatpush1.msra.mxu0 0.0
    %4961 = vmatprep.subr.mxu0 0.0
    %4962 = vmatpush1.msra.mxu0 0.0
    %4963 = vmatprep.subr.mxu0 0.0
    %4964 = vmatpush1.msra.mxu0 0.0
    %4965 = vmatprep.subr.mxu0 0.0
    %4966 = vmatpush1.msra.mxu0 0.0
    %4967 = vmatprep.subr.mxu0 0.0
    %4968 = vmatpush1.msra.mxu0 0.0
    %4969 = vmatprep.subr.mxu0 0.0
    %4970 = vmatpush1.msra.mxu0 0.0
    %4971 = vmatprep.subr.mxu0 0.0
    %4972 = vmatpush1.msra.mxu0 0.0
    %4973 = vmatprep.subr.mxu0 0.0
    %4974 = vmatpush1.msra.mxu0 0.0
    %4975 = vmatprep.subr.mxu0 0.0
    %4976 = vmatpush1.msra.mxu0 0.0
    %4977 = vmatprep.subr.mxu0 0.0
    %4978 = vmatpush1.msra.mxu0 0.0
    %4979 = vmatprep.subr.mxu0 0.0
    %4980 = vmatpush1.msra.mxu0 0.0
    %4981 = vmatprep.subr.mxu0 0.0
    %4982 = vmatpush1.msra.mxu0 0.0
    %4983 = vmatprep.subr.mxu0 0.0
    %4984 = vmatpush1.msra.mxu0 0.0
    %4985 = vmatprep.mubr.f32.mxu0 0.0
    %4986 = vmatmul.mubr.f32.gmra.mrb[0].mxu0 %v1050
    %v4987 = vpop.f32.mrb[0].mxu0
    %v4988 = vadd.f32 0.0, %v4987
    %v4989 = vpop.f32.mrb[0].mxu0
    %v4990 = vadd.f32 0.0, %v4989
    %4991 = vmatprep.mubr.f32.mxu0 0.0
    %4992 = vmatmul.mubr.f32.gmra.mrb[0].mxu0 %v1053
    %v4993 = vpop.f32.mrb[0].mxu0
    %v4994 = vadd.f32 0.0, %v4993
    %v4995 = vpop.f32.mrb[0].mxu0
    %v4996 = vadd.f32 0.0, %v4995
    %4997 = vmatprep.mubr.f32.mxu0 0.0
    %4998 = vmatmul.mubr.f32.gmra.mrb[0].mxu0 %v1056
    %v4999 = vpop.f32.mrb[0].mxu0
    %v5000 = vadd.f32 0.0, %v4999
    %v5001 = vpop.f32.mrb[0].mxu0
    %v5002 = vadd.f32 0.0, %v5001
    %5003 = vdwg.mxu0
    %v5004 = vrot.slane %v4988, 4
    %v5005 = vmax.f32 %v4988, %v5004
    %v5006 = vrot.slane %v5005, 2
    %v5007 = vmax.f32 %v5005, %v5006
    %v5008 = vrot.slane %v5007, 1
    %v5009 = vmax.f32 %v5007, %v5008
    %v5010 = vrot.slane %v4990, 4
    %v5011 = vmax.f32 %v4990, %v5010
    %v5012 = vrot.slane %v5011, 2
    %v5013 = vmax.f32 %v5011, %v5012
    %v5014 = vrot.slane %v5013, 1
    %v5015 = vmax.f32 %v5013, %v5014
    %v5016 = vsub.f32 %v4988, %v5009
    %v5017 = vsub.f32 %v4990, %v5015
    %v5018 = vmul.f32 %v5016, 1.442695
    %v5019 = vpow.pop %v5018
    %v5020 = vmul.f32 %v5017, 1.442695
    %v5021 = vpow.pop %v5020
    %v5022 = vrot.slane %v5019, 4
    %v5023 = vadd.f32 %v5019, %v5022
    %v5024 = vrot.slane %v5023, 2
    %v5025 = vadd.f32 %v5023, %v5024
    %v5026 = vrot.slane %v5025, 1
    %v5027 = vadd.f32 %v5025, %v5026
    %v5028 = vrot.slane %v5021, 4
    %v5029 = vadd.f32 %v5021, %v5028
    %v5030 = vrot.slane %v5029, 2
    %v5031 = vadd.f32 %v5029, %v5030
    %v5032 = vrot.slane %v5031, 1
    %v5033 = vadd.f32 %v5031, %v5032
    %v5034 = vlog2.pop %v5027
    %v5035 = vmul.f32 %v5034, 0.6931472
    %v5036 = vlog2.pop %v5033
    %v5037 = vmul.f32 %v5036, 0.6931472
    %v5038 = vsub.f32 %v5016, %v5035
    %v5039 = vsub.f32 %v5017, %v5037
    %s5040 = scalar_lea.vmem [#allocation2], 80
    %5041 = vst [vmem:[%s5040] sm:$0xff] %v5038
    %5042 = vst [vmem:[%s5040 + $0x8] sm:$0xff] %v5039
    %v5043 = vmax.f32 %v4994, %v5000
    %v5044 = vrot.slane %v5043, 4
    %v5045 = vmax.f32 %v5043, %v5044
    %v5046 = vrot.slane %v5045, 2
    %v5047 = vmax.f32 %v5045, %v5046
    %v5048 = vrot.slane %v5047, 1
    %v5049 = vmax.f32 %v5047, %v5048
    %v5050 = vmax.f32 %v4996, %v5002
    %v5051 = vrot.slane %v5050, 4
    %v5052 = vmax.f32 %v5050, %v5051
    %v5053 = vrot.slane %v5052, 2
    %v5054 = vmax.f32 %v5052, %v5053
    %v5055 = vrot.slane %v5054, 1
    %v5056 = vmax.f32 %v5054, %v5055
    %v5057 = vsub.f32 %v4994, %v5049
    %v5058 = vsub.f32 %v4996, %v5056
    %v5059 = vsub.f32 %v5000, %v5049
    %v5060 = vsub.f32 %v5002, %v5056
    %v5061 = vmul.f32 %v5057, 1.442695
    %v5062 = vpow.pop %v5061
    %v5063 = vmul.f32 %v5058, 1.442695
    %v5064 = vpow.pop %v5063
    %v5065 = vmul.f32 %v5059, 1.442695
    %v5066 = vpow.pop %v5065
    %v5067 = vmul.f32 %v5060, 1.442695
    %v5068 = vpow.pop %v5067
    %v5069 = vadd.f32 %v5062, %v5066
    %v5070 = vrot.slane %v5069, 4
    %v5071 = vadd.f32 %v5069, %v5070
    %v5072 = vrot.slane %v5071, 2
    %v5073 = vadd.f32 %v5071, %v5072
    %v5074 = vrot.slane %v5073, 1
    %v5075 = vadd.f32 %v5073, %v5074
    %v5076 = vadd.f32 %v5064, %v5068
    %v5077 = vrot.slane %v5076, 4
    %v5078 = vadd.f32 %v5076, %v5077
    %v5079 = vrot.slane %v5078, 2
    %v5080 = vadd.f32 %v5078, %v5079
    %v5081 = vrot.slane %v5080, 1
    %v5082 = vadd.f32 %v5080, %v5081
    %v5083 = vrcp.pop %v5075
    %v5084 = vmul.f32 1.0, %v5083
    %v5085 = vrcp.pop %v5082
    %v5086 = vmul.f32 1.0, %v5085
    %v5087 = vmul.f32 %v5062, %v5084
    %v5088 = vmul.f32 %v5064, %v5086
    %v5089 = vmul.f32 %v5066, %v5084
    %v5090 = vmul.f32 %v5068, %v5086
    %s5091 = scalar_lea.vmem [#allocation4], 160
    %5092 = vst [vmem:[%s5091] sm:$0xff] %v5087
    %5093 = vst [vmem:[%s5091 + $0x8] sm:$0xff] %v5088
    %5094 = vst [vmem:[%s5091 + $0x10] sm:$0xff] %v5089
    %5095 = vst [vmem:[%s5091 + $0x18] sm:$0xff] %v5090
    %v5096 = vlaneseq
    %v5097 = vshrl.u32 %v5096, 7
    %v5098 = vsub.s32 6, %v5097
    %v5099 = vrot.slane %v409, %v5098
    %v5100 = vlaneseq
    %v5101 = vshrl.u32 %v5100, 7
    %v5102 = vsub.s32 6, %v5101
    %v5103 = vrot.slane %v410, %v5102
    %vm5104 = vcmp.eq.s32.totalorder %v412, %v5099
    %vm5105 = vcmp.eq.s32.totalorder %v412, %v5103
    %vm5106 = vcmp.eq.s32.totalorder %v413, %v5099
    %vm5107 = vcmp.eq.s32.totalorder %v413, %v5103
    %v5108 = vsel %vm5104, 1, 0
    %v5109 = vsel %vm5105, 1, 0
    %v5110 = vsel %vm5106, 1, 0
    %v5111 = vsel %vm5107, 1, 0
    %v5112 = vcvt.s32.f32 %v5108
    %v5113 = vcvt.s32.f32 %v5109
    %v5114 = vcvt.s32.f32 %v5110
    %v5115 = vcvt.s32.f32 %v5111
    %5116 = vmatprep.subr.mxu0 %v5113
    %5117 = vmatpush1.msra.mxu0 %v5112
    %5118 = vmatprep.subr.mxu0 %v5115
    %5119 = vmatpush1.msra.mxu0 %v5114
    %5120 = vmatprep.subr.mxu0 0.0
    %5121 = vmatpush1.msra.mxu0 0.0
    %5122 = vmatprep.subr.mxu0 0.0
    %5123 = vmatpush1.msra.mxu0 0.0
    %5124 = vmatprep.subr.mxu0 0.0
    %5125 = vmatpush1.msra.mxu0 0.0
    %5126 = vmatprep.subr.mxu0 0.0
    %5127 = vmatpush1.msra.mxu0 0.0
    %5128 = vmatprep.subr.mxu0 0.0
    %5129 = vmatpush1.msra.mxu0 0.0
    %5130 = vmatprep.subr.mxu0 0.0
    %5131 = vmatpush1.msra.mxu0 0.0
    %5132 = vmatprep.subr.mxu0 0.0
    %5133 = vmatpush1.msra.mxu0 0.0
    %5134 = vmatprep.subr.mxu0 0.0
    %5135 = vmatpush1.msra.mxu0 0.0
    %5136 = vmatprep.subr.mxu0 0.0
    %5137 = vmatpush1.msra.mxu0 0.0
    %5138 = vmatprep.subr.mxu0 0.0
    %5139 = vmatpush1.msra.mxu0 0.0
    %5140 = vmatprep.subr.mxu0 0.0
    %5141 = vmatpush1.msra.mxu0 0.0
    %5142 = vmatprep.subr.mxu0 0.0
    %5143 = vmatpush1.msra.mxu0 0.0
    %5144 = vmatprep.subr.mxu0 0.0
    %5145 = vmatpush1.msra.mxu0 0.0
    %5146 = vmatprep.subr.mxu0 0.0
    %5147 = vmatpush1.msra.mxu0 0.0
    %5148 = vmatprep.subr.mxu0 0.0
    %5149 = vmatpush1.msra.mxu0 0.0
    %5150 = vmatprep.subr.mxu0 0.0
    %5151 = vmatpush1.msra.mxu0 0.0
    %5152 = vmatprep.subr.mxu0 0.0
    %5153 = vmatpush1.msra.mxu0 0.0
    %5154 = vmatprep.subr.mxu0 0.0
    %5155 = vmatpush1.msra.mxu0 0.0
    %5156 = vmatprep.subr.mxu0 0.0
    %5157 = vmatpush1.msra.mxu0 0.0
    %5158 = vmatprep.subr.mxu0 0.0
    %5159 = vmatpush1.msra.mxu0 0.0
    %5160 = vmatprep.subr.mxu0 0.0
    %5161 = vmatpush1.msra.mxu0 0.0
    %5162 = vmatprep.subr.mxu0 0.0
    %5163 = vmatpush1.msra.mxu0 0.0
    %5164 = vmatprep.subr.mxu0 0.0
    %5165 = vmatpush1.msra.mxu0 0.0
    %5166 = vmatprep.subr.mxu0 0.0
    %5167 = vmatpush1.msra.mxu0 0.0
    %5168 = vmatprep.subr.mxu0 0.0
    %5169 = vmatpush1.msra.mxu0 0.0
    %5170 = vmatprep.subr.mxu0 0.0
    %5171 = vmatpush1.msra.mxu0 0.0
    %5172 = vmatprep.subr.mxu0 0.0
    %5173 = vmatpush1.msra.mxu0 0.0
    %5174 = vmatprep.subr.mxu0 0.0
    %5175 = vmatpush1.msra.mxu0 0.0
    %5176 = vmatprep.subr.mxu0 0.0
    %5177 = vmatpush1.msra.mxu0 0.0
    %5178 = vmatprep.subr.mxu0 0.0
    %5179 = vmatpush1.msra.mxu0 0.0
    %5180 = vmatprep.mubr.f32.mxu0 0.0
    %5181 = vmatmul.mubr.f32.gmra.mrb[0].mxu0 %v440
    %v5182 = vpop.f32.mrb[0].mxu0
    %v5183 = vadd.f32 %v272, %v5182
    %v5184 = vpop.f32.mrb[0].mxu0
    %v5185 = vadd.f32 %v274, %v5184
    %5186 = vmatprep.mubr.f32.mxu0 0.0
    %5187 = vmatmul.mubr.f32.gmra.mrb[0].mxu0 %v443
    %v5188 = vpop.f32.mrb[0].mxu0
    %v5189 = vadd.f32 %v278, %v5188
    %v5190 = vpop.f32.mrb[0].mxu0
    %v5191 = vadd.f32 %v280, %v5190
    %5192 = vmatprep.mubr.f32.mxu0 0.0
    %5193 = vmatmul.mubr.f32.gmra.mrb[0].mxu0 %v446
    %v5194 = vpop.f32.mrb[0].mxu0
    %v5195 = vadd.f32 %v284, %v5194
    %v5196 = vpop.f32.mrb[0].mxu0
    %v5197 = vadd.f32 %v286, %v5196
    %5198 = vmatprep.mubr.f32.mxu0 0.0
    %5199 = vmatmul.mubr.f32.gmra.mrb[0].mxu0 %v449
    %v5200 = vpop.f32.mrb[0].mxu0
    %v5201 = vadd.f32 %v290, %v5200
    %v5202 = vpop.f32.mrb[0].mxu0
    %v5203 = vadd.f32 %v292, %v5202
    %5204 = vmatprep.mubr.f32.mxu0 0.0
    %5205 = vmatmul.mubr.f32.gmra.mrb[0].mxu0 %v452
    %v5206 = vpop.f32.mrb[0].mxu0
    %v5207 = vadd.f32 %v296, %v5206
    %v5208 = vpop.f32.mrb[0].mxu0
    %v5209 = vadd.f32 %v298, %v5208
    %5210 = vmatprep.mubr.f32.mxu0 0.0
    %5211 = vmatmul.mubr.f32.gmra.mrb[0].mxu0 %v455
    %v5212 = vpop.f32.mrb[0].mxu0
    %v5213 = vadd.f32 %v302, %v5212
    %v5214 = vpop.f32.mrb[0].mxu0
    %v5215 = vadd.f32 %v304, %v5214
    %5216 = vmatprep.mubr.f32.mxu0 0.0
    %5217 = vmatmul.mubr.f32.gmra.mrb[0].mxu0 %v458
    %v5218 = vpop.f32.mrb[0].mxu0
    %v5219 = vadd.f32 %v308, %v5218
    %v5220 = vpop.f32.mrb[0].mxu0
    %v5221 = vadd.f32 %v310, %v5220
    %5222 = vmatprep.mubr.f32.mxu0 0.0
    %5223 = vmatmul.mubr.f32.gmra.mrb[0].mxu0 %v461
    %v5224 = vpop.f32.mrb[0].mxu0
    %v5225 = vadd.f32 %v314, %v5224
    %v5226 = vpop.f32.mrb[0].mxu0
    %v5227 = vadd.f32 %v316, %v5226
    %5228 = vmatprep.mubr.f32.mxu0 0.0
    %5229 = vmatmul.mubr.f32.gmra.mrb[0].mxu0 %v464
    %v5230 = vpop.f32.mrb[0].mxu0
    %v5231 = vadd.f32 %v320, %v5230
    %v5232 = vpop.f32.mrb[0].mxu0
    %v5233 = vadd.f32 %v322, %v5232
    %5234 = vmatprep.mubr.f32.mxu0 0.0
    %5235 = vmatmul.mubr.f32.gmra.mrb[0].mxu0 %v467
    %v5236 = vpop.f32.mrb[0].mxu0
    %v5237 = vadd.f32 %v326, %v5236
    %v5238 = vpop.f32.mrb[0].mxu0
    %v5239 = vadd.f32 %v328, %v5238
    %5240 = vmatprep.mubr.f32.mxu0 0.0
    %5241 = vmatmul.mubr.f32.gmra.mrb[0].mxu0 %v470
    %v5242 = vpop.f32.mrb[0].mxu0
    %v5243 = vadd.f32 %v332, %v5242
    %v5244 = vpop.f32.mrb[0].mxu0
    %v5245 = vadd.f32 %v334, %v5244
    %5246 = vmatprep.mubr.f32.mxu0 0.0
    %5247 = vmatmul.mubr.f32.gmra.mrb[0].mxu0 %v473
    %v5248 = vpop.f32.mrb[0].mxu0
    %v5249 = vadd.f32 %v338, %v5248
    %v5250 = vpop.f32.mrb[0].mxu0
    %v5251 = vadd.f32 %v340, %v5250
    %5252 = vmatprep.mubr.f32.mxu0 0.0
    %5253 = vmatmul.mubr.f32.gmra.mrb[0].mxu0 %v476
    %v5254 = vpop.f32.mrb[0].mxu0
    %v5255 = vadd.f32 %v344, %v5254
    %v5256 = vpop.f32.mrb[0].mxu0
    %v5257 = vadd.f32 %v346, %v5256
    %5258 = vmatprep.mubr.f32.mxu0 0.0
    %5259 = vmatmul.mubr.f32.gmra.mrb[0].mxu0 %v479
    %v5260 = vpop.f32.mrb[0].mxu0
    %v5261 = vadd.f32 %v350, %v5260
    %v5262 = vpop.f32.mrb[0].mxu0
    %v5263 = vadd.f32 %v352, %v5262
    %5264 = vmatprep.mubr.f32.mxu0 0.0
    %5265 = vmatmul.mubr.f32.gmra.mrb[0].mxu0 %v482
    %v5266 = vpop.f32.mrb[0].mxu0
    %v5267 = vadd.f32 %v356, %v5266
    %v5268 = vpop.f32.mrb[0].mxu0
    %v5269 = vadd.f32 %v358, %v5268
    %5270 = vmatprep.mubr.f32.mxu0 0.0
    %5271 = vmatmul.mubr.f32.gmra.mrb[0].mxu0 %v485
    %v5272 = vpop.f32.mrb[0].mxu0
    %v5273 = vadd.f32 %v362, %v5272
    %v5274 = vpop.f32.mrb[0].mxu0
    %v5275 = vadd.f32 %v364, %v5274
    %5276 = vdwg.mxu0
    %5277 = vmatprep.subr.mxu0 %v5064
    %5278 = vmatpush1.msra.mxu0 %v5062
    %5279 = vmatprep.subr.mxu0 %v5068
    %5280 = vmatpush1.msra.mxu0 %v5066
    %5281 = vmatprep.subr.mxu0 0.0
    %5282 = vmatpush1.msra.mxu0 0.0
    %5283 = vmatprep.subr.mxu0 0.0
    %5284 = vmatpush1.msra.mxu0 0.0
    %5285 = vmatprep.subr.mxu0 0.0
    %5286 = vmatpush1.msra.mxu0 0.0
    %5287 = vmatprep.subr.mxu0 0.0
    %5288 = vmatpush1.msra.mxu0 0.0
    %5289 = vmatprep.subr.mxu0 0.0
    %5290 = vmatpush1.msra.mxu0 0.0
    %5291 = vmatprep.subr.mxu0 0.0
    %5292 = vmatpush1.msra.mxu0 0.0
    %5293 = vmatprep.subr.mxu0 0.0
    %5294 = vmatpush1.msra.mxu0 0.0
    %5295 = vmatprep.subr.mxu0 0.0
    %5296 = vmatpush1.msra.mxu0 0.0
    %5297 = vmatprep.subr.mxu0 0.0
    %5298 = vmatpush1.msra.mxu0 0.0
    %5299 = vmatprep.subr.mxu0 0.0
    %5300 = vmatpush1.msra.mxu0 0.0
    %5301 = vmatprep.subr.mxu0 0.0
    %5302 = vmatpush1.msra.mxu0 0.0
    %5303 = vmatprep.subr.mxu0 0.0
    %5304 = vmatpush1.msra.mxu0 0.0
    %5305 = vmatprep.subr.mxu0 0.0
    %5306 = vmatpush1.msra.mxu0 0.0
    %5307 = vmatprep.subr.mxu0 0.0
    %5308 = vmatpush1.msra.mxu0 0.0
    %5309 = vmatprep.subr.mxu0 0.0
    %5310 = vmatpush1.msra.mxu0 0.0
    %5311 = vmatprep.subr.mxu0 0.0
    %5312 = vmatpush1.msra.mxu0 0.0
    %5313 = vmatprep.subr.mxu0 0.0
    %5314 = vmatpush1.msra.mxu0 0.0
    %5315 = vmatprep.subr.mxu0 0.0
    %5316 = vmatpush1.msra.mxu0 0.0
    %5317 = vmatprep.subr.mxu0 0.0
    %5318 = vmatpush1.msra.mxu0 0.0
    %5319 = vmatprep.subr.mxu0 0.0
    %5320 = vmatpush1.msra.mxu0 0.0
    %5321 = vmatprep.subr.mxu0 0.0
    %5322 = vmatpush1.msra.mxu0 0.0
    %5323 = vmatprep.subr.mxu0 0.0
    %5324 = vmatpush1.msra.mxu0 0.0
    %5325 = vmatprep.subr.mxu0 0.0
    %5326 = vmatpush1.msra.mxu0 0.0
    %5327 = vmatprep.subr.mxu0 0.0
    %5328 = vmatpush1.msra.mxu0 0.0
    %5329 = vmatprep.subr.mxu0 0.0
    %5330 = vmatpush1.msra.mxu0 0.0
    %5331 = vmatprep.subr.mxu0 0.0
    %5332 = vmatpush1.msra.mxu0 0.0
    %5333 = vmatprep.subr.mxu0 0.0
    %5334 = vmatpush1.msra.mxu0 0.0
    %5335 = vmatprep.subr.mxu0 0.0
    %5336 = vmatpush1.msra.mxu0 0.0
    %5337 = vmatprep.subr.mxu0 0.0
    %5338 = vmatpush1.msra.mxu0 0.0
    %5339 = vmatprep.subr.mxu0 0.0
    %5340 = vmatpush1.msra.mxu0 0.0
    %5341 = vmatprep.mubr.f32.mxu0 0.0
    %5342 = vmatmul.mubr.f32.gmra.mrb[0].mxu0 %v649
    %v5343 = vpop.f32.mrb[0].mxu0
    %v5344 = vadd.f32 0.0, %v5343
    %v5345 = vpop.f32.mrb[0].mxu0
    %v5346 = vadd.f32 0.0, %v5345
    %5347 = vmatprep.mubr.f32.mxu0 0.0
    %5348 = vmatmul.mubr.f32.gmra.mrb[0].mxu0 %v652
    %v5349 = vpop.f32.mrb[0].mxu0
    %v5350 = vadd.f32 0.0, %v5349
    %v5351 = vpop.f32.mrb[0].mxu0
    %v5352 = vadd.f32 0.0, %v5351
    %5353 = vmatprep.mubr.f32.mxu0 0.0
    %5354 = vmatmul.mubr.f32.gmra.mrb[0].mxu0 %v655
    %v5355 = vpop.f32.mrb[0].mxu0
    %v5356 = vadd.f32 0.0, %v5355
    %v5357 = vpop.f32.mrb[0].mxu0
    %v5358 = vadd.f32 0.0, %v5357
    %5359 = vmatprep.mubr.f32.mxu0 0.0
    %5360 = vmatmul.mubr.f32.gmra.mrb[0].mxu0 %v658
    %v5361 = vpop.f32.mrb[0].mxu0
    %v5362 = vadd.f32 0.0, %v5361
    %v5363 = vpop.f32.mrb[0].mxu0
    %v5364 = vadd.f32 0.0, %v5363
    %5365 = vmatprep.mubr.f32.mxu0 0.0
    %5366 = vmatmul.mubr.f32.gmra.mrb[0].mxu0 %v661
    %v5367 = vpop.f32.mrb[0].mxu0
    %v5368 = vadd.f32 0.0, %v5367
    %v5369 = vpop.f32.mrb[0].mxu0
    %v5370 = vadd.f32 0.0, %v5369
    %5371 = vmatprep.mubr.f32.mxu0 0.0
    %5372 = vmatmul.mubr.f32.gmra.mrb[0].mxu0 %v664
    %v5373 = vpop.f32.mrb[0].mxu0
    %v5374 = vadd.f32 0.0, %v5373
    %v5375 = vpop.f32.mrb[0].mxu0
    %v5376 = vadd.f32 0.0, %v5375
    %5377 = vmatprep.mubr.f32.mxu0 0.0
    %5378 = vmatmul.mubr.f32.gmra.mrb[0].mxu0 %v667
    %v5379 = vpop.f32.mrb[0].mxu0
    %v5380 = vadd.f32 0.0, %v5379
    %v5381 = vpop.f32.mrb[0].mxu0
    %v5382 = vadd.f32 0.0, %v5381
    %5383 = vmatprep.mubr.f32.mxu0 0.0
    %5384 = vmatmul.mubr.f32.gmra.mrb[0].mxu0 %v670
    %v5385 = vpop.f32.mrb[0].mxu0
    %v5386 = vadd.f32 0.0, %v5385
    %v5387 = vpop.f32.mrb[0].mxu0
    %v5388 = vadd.f32 0.0, %v5387
    %5389 = vmatprep.mubr.f32.mxu0 0.0
    %5390 = vmatmul.mubr.f32.gmra.mrb[0].mxu0 %v673
    %v5391 = vpop.f32.mrb[0].mxu0
    %v5392 = vadd.f32 0.0, %v5391
    %v5393 = vpop.f32.mrb[0].mxu0
    %v5394 = vadd.f32 0.0, %v5393
    %5395 = vmatprep.mubr.f32.mxu0 0.0
    %5396 = vmatmul.mubr.f32.gmra.mrb[0].mxu0 %v676
    %v5397 = vpop.f32.mrb[0].mxu0
    %v5398 = vadd.f32 0.0, %v5397
    %v5399 = vpop.f32.mrb[0].mxu0
    %v5400 = vadd.f32 0.0, %v5399
    %5401 = vmatprep.mubr.f32.mxu0 0.0
    %5402 = vmatmul.mubr.f32.gmra.mrb[0].mxu0 %v679
    %v5403 = vpop.f32.mrb[0].mxu0
    %v5404 = vadd.f32 0.0, %v5403
    %v5405 = vpop.f32.mrb[0].mxu0
    %v5406 = vadd.f32 0.0, %v5405
    %5407 = vmatprep.mubr.f32.mxu0 0.0
    %5408 = vmatmul.mubr.f32.gmra.mrb[0].mxu0 %v682
    %v5409 = vpop.f32.mrb[0].mxu0
    %v5410 = vadd.f32 0.0, %v5409
    %v5411 = vpop.f32.mrb[0].mxu0
    %v5412 = vadd.f32 0.0, %v5411
    %5413 = vmatprep.mubr.f32.mxu0 0.0
    %5414 = vmatmul.mubr.f32.gmra.mrb[0].mxu0 %v685
    %v5415 = vpop.f32.mrb[0].mxu0
    %v5416 = vadd.f32 0.0, %v5415
    %v5417 = vpop.f32.mrb[0].mxu0
    %v5418 = vadd.f32 0.0, %v5417
    %5419 = vmatprep.mubr.f32.mxu0 0.0
    %5420 = vmatmul.mubr.f32.gmra.mrb[0].mxu0 %v688
    %v5421 = vpop.f32.mrb[0].mxu0
    %v5422 = vadd.f32 0.0, %v5421
    %v5423 = vpop.f32.mrb[0].mxu0
    %v5424 = vadd.f32 0.0, %v5423
    %5425 = vmatprep.mubr.f32.mxu0 0.0
    %5426 = vmatmul.mubr.f32.gmra.mrb[0].mxu0 %v691
    %v5427 = vpop.f32.mrb[0].mxu0
    %v5428 = vadd.f32 0.0, %v5427
    %v5429 = vpop.f32.mrb[0].mxu0
    %v5430 = vadd.f32 0.0, %v5429
    %5431 = vmatprep.mubr.f32.mxu0 0.0
    %5432 = vmatmul.mubr.f32.gmra.mrb[0].mxu0 %v694
    %v5433 = vpop.f32.mrb[0].mxu0
    %v5434 = vadd.f32 0.0, %v5433
    %v5435 = vpop.f32.mrb[0].mxu0
    %v5436 = vadd.f32 0.0, %v5435
    %5437 = vdwg.mxu0
    %v5438 = vmul.f32 %v5344, %v5084
    %v5439 = vmul.f32 %v5346, %v5086
    %v5440 = vmul.f32 %v5350, %v5084
    %v5441 = vmul.f32 %v5352, %v5086
    %v5442 = vmul.f32 %v5356, %v5084
    %v5443 = vmul.f32 %v5358, %v5086
    %v5444 = vmul.f32 %v5362, %v5084
    %v5445 = vmul.f32 %v5364, %v5086
    %v5446 = vmul.f32 %v5368, %v5084
    %v5447 = vmul.f32 %v5370, %v5086
    %v5448 = vmul.f32 %v5374, %v5084
    %v5449 = vmul.f32 %v5376, %v5086
    %v5450 = vmul.f32 %v5380, %v5084
    %v5451 = vmul.f32 %v5382, %v5086
    %v5452 = vmul.f32 %v5386, %v5084
    %v5453 = vmul.f32 %v5388, %v5086
    %v5454 = vmul.f32 %v5392, %v5084
    %v5455 = vmul.f32 %v5394, %v5086
    %v5456 = vmul.f32 %v5398, %v5084
    %v5457 = vmul.f32 %v5400, %v5086
    %v5458 = vmul.f32 %v5404, %v5084
    %v5459 = vmul.f32 %v5406, %v5086
    %v5460 = vmul.f32 %v5410, %v5084
    %v5461 = vmul.f32 %v5412, %v5086
    %v5462 = vmul.f32 %v5416, %v5084
    %v5463 = vmul.f32 %v5418, %v5086
    %v5464 = vmul.f32 %v5422, %v5084
    %v5465 = vmul.f32 %v5424, %v5086
    %v5466 = vmul.f32 %v5428, %v5084
    %v5467 = vmul.f32 %v5430, %v5086
    %v5468 = vmul.f32 %v5434, %v5084
    %v5469 = vmul.f32 %v5436, %v5086
    %v5470 = vadd.f32 %v5438, %v5183
    %v5471 = vadd.f32 %v5439, %v5185
    %v5472 = vadd.f32 %v5440, %v5189
    %v5473 = vadd.f32 %v5441, %v5191
    %v5474 = vadd.f32 %v5442, %v5195
    %v5475 = vadd.f32 %v5443, %v5197
    %v5476 = vadd.f32 %v5444, %v5201
    %v5477 = vadd.f32 %v5445, %v5203
    %v5478 = vadd.f32 %v5446, %v5207
    %v5479 = vadd.f32 %v5447, %v5209
    %v5480 = vadd.f32 %v5448, %v5213
    %v5481 = vadd.f32 %v5449, %v5215
    %v5482 = vadd.f32 %v5450, %v5219
    %v5483 = vadd.f32 %v5451, %v5221
    %v5484 = vadd.f32 %v5452, %v5225
    %v5485 = vadd.f32 %v5453, %v5227
    %v5486 = vadd.f32 %v5454, %v5231
    %v5487 = vadd.f32 %v5455, %v5233
    %v5488 = vadd.f32 %v5456, %v5237
    %v5489 = vadd.f32 %v5457, %v5239
    %v5490 = vadd.f32 %v5458, %v5243
    %v5491 = vadd.f32 %v5459, %v5245
    %v5492 = vadd.f32 %v5460, %v5249
    %v5493 = vadd.f32 %v5461, %v5251
    %v5494 = vadd.f32 %v5462, %v5255
    %v5495 = vadd.f32 %v5463, %v5257
    %v5496 = vadd.f32 %v5464, %v5261
    %v5497 = vadd.f32 %v5465, %v5263
    %v5498 = vadd.f32 %v5466, %v5267
    %v5499 = vadd.f32 %v5467, %v5269
    %v5500 = vadd.f32 %v5468, %v5273
    %v5501 = vadd.f32 %v5469, %v5275
    %v5502 = vxor.u32 %v5470, 2147483648
    %v5503 = vxor.u32 %v5471, 2147483648
    %v5504 = vxor.u32 %v5472, 2147483648
    %v5505 = vxor.u32 %v5473, 2147483648
    %v5506 = vxor.u32 %v5474, 2147483648
    %v5507 = vxor.u32 %v5475, 2147483648
    %v5508 = vxor.u32 %v5476, 2147483648
    %v5509 = vxor.u32 %v5477, 2147483648
    %v5510 = vxor.u32 %v5478, 2147483648
    %v5511 = vxor.u32 %v5479, 2147483648
    %v5512 = vxor.u32 %v5480, 2147483648
    %v5513 = vxor.u32 %v5481, 2147483648
    %v5514 = vxor.u32 %v5482, 2147483648
    %v5515 = vxor.u32 %v5483, 2147483648
    %v5516 = vxor.u32 %v5484, 2147483648
    %v5517 = vxor.u32 %v5485, 2147483648
    %v5518 = vxor.u32 %v5494, 2147483648
    %v5519 = vxor.u32 %v5495, 2147483648
    %v5520 = vxor.u32 %v5496, 2147483648
    %v5521 = vxor.u32 %v5497, 2147483648
    %v5522 = vxor.u32 %v5498, 2147483648
    %v5523 = vxor.u32 %v5499, 2147483648
    %v5524 = vxor.u32 %v5500, 2147483648
    %v5525 = vxor.u32 %v5501, 2147483648
    %v5526 = vmul.f32 %v5502, 1.442695
    %v5527 = vpow.pop %v5526
    %v5528 = vmul.f32 %v5503, 1.442695
    %v5529 = vpow.pop %v5528
    %v5530 = vmul.f32 %v5504, 1.442695
    %v5531 = vpow.pop %v5530
    %v5532 = vmul.f32 %v5505, 1.442695
    %v5533 = vpow.pop %v5532
    %v5534 = vmul.f32 %v5506, 1.442695
    %v5535 = vpow.pop %v5534
    %v5536 = vmul.f32 %v5507, 1.442695
    %v5537 = vpow.pop %v5536
    %v5538 = vmul.f32 %v5508, 1.442695
    %v5539 = vpow.pop %v5538
    %v5540 = vmul.f32 %v5509, 1.442695
    %v5541 = vpow.pop %v5540
    %v5542 = vmul.f32 %v5510, 1.442695
    %v5543 = vpow.pop %v5542
    %v5544 = vmul.f32 %v5511, 1.442695
    %v5545 = vpow.pop %v5544
    %v5546 = vmul.f32 %v5512, 1.442695
    %v5547 = vpow.pop %v5546
    %v5548 = vmul.f32 %v5513, 1.442695
    %v5549 = vpow.pop %v5548
    %v5550 = vmul.f32 %v5514, 1.442695
    %v5551 = vpow.pop %v5550
    %v5552 = vmul.f32 %v5515, 1.442695
    %v5553 = vpow.pop %v5552
    %v5554 = vmul.f32 %v5516, 1.442695
    %v5555 = vpow.pop %v5554
    %v5556 = vmul.f32 %v5517, 1.442695
    %v5557 = vpow.pop %v5556
    %v5558 = vmul.f32 %v5518, 1.442695
    %v5559 = vpow.pop %v5558
    %v5560 = vmul.f32 %v5519, 1.442695
    %v5561 = vpow.pop %v5560
    %v5562 = vmul.f32 %v5520, 1.442695
    %v5563 = vpow.pop %v5562
    %v5564 = vmul.f32 %v5521, 1.442695
    %v5565 = vpow.pop %v5564
    %v5566 = vmul.f32 %v5522, 1.442695
    %v5567 = vpow.pop %v5566
    %v5568 = vmul.f32 %v5523, 1.442695
    %v5569 = vpow.pop %v5568
    %v5570 = vmul.f32 %v5524, 1.442695
    %v5571 = vpow.pop %v5570
    %v5572 = vmul.f32 %v5525, 1.442695
    %v5573 = vpow.pop %v5572
    %v5574 = vadd.f32 %v5527, 1.0
    %v5575 = vadd.f32 %v5529, 1.0
    %v5576 = vadd.f32 %v5531, 1.0
    %v5577 = vadd.f32 %v5533, 1.0
    %v5578 = vadd.f32 %v5535, 1.0
    %v5579 = vadd.f32 %v5537, 1.0
    %v5580 = vadd.f32 %v5539, 1.0
    %v5581 = vadd.f32 %v5541, 1.0
    %v5582 = vadd.f32 %v5543, 1.0
    %v5583 = vadd.f32 %v5545, 1.0
    %v5584 = vadd.f32 %v5547, 1.0
    %v5585 = vadd.f32 %v5549, 1.0
    %v5586 = vadd.f32 %v5551, 1.0
    %v5587 = vadd.f32 %v5553, 1.0
    %v5588 = vadd.f32 %v5555, 1.0
    %v5589 = vadd.f32 %v5557, 1.0
    %v5590 = vadd.f32 %v5559, 1.0
    %v5591 = vadd.f32 %v5561, 1.0
    %v5592 = vadd.f32 %v5563, 1.0
    %v5593 = vadd.f32 %v5565, 1.0
    %v5594 = vadd.f32 %v5567, 1.0
    %v5595 = vadd.f32 %v5569, 1.0
    %v5596 = vadd.f32 %v5571, 1.0
    %v5597 = vadd.f32 %v5573, 1.0
    %v5598 = vrcp.pop %v5574
    %v5599 = vmul.f32 1.0, %v5598
    %v5600 = vrcp.pop %v5575
    %v5601 = vmul.f32 1.0, %v5600
    %v5602 = vrcp.pop %v5576
    %v5603 = vmul.f32 1.0, %v5602
    %v5604 = vrcp.pop %v5577
    %v5605 = vmul.f32 1.0, %v5604
    %v5606 = vrcp.pop %v5578
    %v5607 = vmul.f32 1.0, %v5606
    %v5608 = vrcp.pop %v5579
    %v5609 = vmul.f32 1.0, %v5608
    %v5610 = vrcp.pop %v5580
    %v5611 = vmul.f32 1.0, %v5610
    %v5612 = vrcp.pop %v5581
    %v5613 = vmul.f32 1.0, %v5612
    %v5614 = vrcp.pop %v5582
    %v5615 = vmul.f32 1.0, %v5614
    %v5616 = vrcp.pop %v5583
    %v5617 = vmul.f32 1.0, %v5616
    %v5618 = vrcp.pop %v5584
    %v5619 = vmul.f32 1.0, %v5618
    %v5620 = vrcp.pop %v5585
    %v5621 = vmul.f32 1.0, %v5620
    %v5622 = vrcp.pop %v5586
    %v5623 = vmul.f32 1.0, %v5622
    %v5624 = vrcp.pop %v5587
    %v5625 = vmul.f32 1.0, %v5624
    %v5626 = vrcp.pop %v5588
    %v5627 = vmul.f32 1.0, %v5626
    %v5628 = vrcp.pop %v5589
    %v5629 = vmul.f32 1.0, %v5628
    %v5630 = vrcp.pop %v5590
    %v5631 = vmul.f32 1.0, %v5630
    %v5632 = vrcp.pop %v5591
    %v5633 = vmul.f32 1.0, %v5632
    %v5634 = vrcp.pop %v5592
    %v5635 = vmul.f32 1.0, %v5634
    %v5636 = vrcp.pop %v5593
    %v5637 = vmul.f32 1.0, %v5636
    %v5638 = vrcp.pop %v5594
    %v5639 = vmul.f32 1.0, %v5638
    %v5640 = vrcp.pop %v5595
    %v5641 = vmul.f32 1.0, %v5640
    %v5642 = vrcp.pop %v5596
    %v5643 = vmul.f32 1.0, %v5642
    %v5644 = vrcp.pop %v5597
    %v5645 = vmul.f32 1.0, %v5644
    %v5646 = vtanh.pop %v5486
    %v5647 = vtanh.pop %v5487
    %v5648 = vtanh.pop %v5488
    %v5649 = vtanh.pop %v5489
    %v5650 = vtanh.pop %v5490
    %v5651 = vtanh.pop %v5491
    %v5652 = vtanh.pop %v5492
    %v5653 = vtanh.pop %v5493
    %v5654 = vmul.f32 %v5615, %v366
    %v5655 = vmul.f32 %v5617, %v367
    %v5656 = vmul.f32 %v5619, %v368
    %v5657 = vmul.f32 %v5621, %v369
    %v5658 = vmul.f32 %v5623, %v370
    %v5659 = vmul.f32 %v5625, %v371
    %v5660 = vmul.f32 %v5627, %v372
    %v5661 = vmul.f32 %v5629, %v373
    %v5662 = vmul.f32 %v5599, %v5646
    %v5663 = vmul.f32 %v5601, %v5647
    %v5664 = vmul.f32 %v5603, %v5648
    %v5665 = vmul.f32 %v5605, %v5649
    %v5666 = vmul.f32 %v5607, %v5650
    %v5667 = vmul.f32 %v5609, %v5651
    %v5668 = vmul.f32 %v5611, %v5652
    %v5669 = vmul.f32 %v5613, %v5653
    %v5670 = vadd.f32 %v5654, %v5662
    %v5671 = vadd.f32 %v5655, %v5663
    %v5672 = vadd.f32 %v5656, %v5664
    %v5673 = vadd.f32 %v5657, %v5665
    %v5674 = vadd.f32 %v5658, %v5666
    %v5675 = vadd.f32 %v5659, %v5667
    %v5676 = vadd.f32 %v5660, %v5668
    %v5677 = vadd.f32 %v5661, %v5669
    %v5678 = vtanh.pop %v5670
    %v5679 = vtanh.pop %v5671
    %v5680 = vtanh.pop %v5672
    %v5681 = vtanh.pop %v5673
    %v5682 = vtanh.pop %v5674
    %v5683 = vtanh.pop %v5675
    %v5684 = vtanh.pop %v5676
    %v5685 = vtanh.pop %v5677
    %v5686 = vmul.f32 %v5631, %v5678
    %v5687 = vmul.f32 %v5633, %v5679
    %v5688 = vmul.f32 %v5635, %v5680
    %v5689 = vmul.f32 %v5637, %v5681
    %v5690 = vmul.f32 %v5639, %v5682
    %v5691 = vmul.f32 %v5641, %v5683
    %v5692 = vmul.f32 %v5643, %v5684
    %v5693 = vmul.f32 %v5645, %v5685
    %5694 = vmatprep.subr.mxu0 %v5687
    %5695 = vmatpush1.msra.mxu0 %v5686
    %5696 = vmatprep.subr.mxu0 %v5689
    %5697 = vmatpush1.msra.mxu0 %v5688
    %5698 = vmatprep.subr.mxu0 %v5691
    %5699 = vmatpush1.msra.mxu0 %v5690
    %5700 = vmatprep.subr.mxu0 %v5693
    %5701 = vmatpush1.msra.mxu0 %v5692
    %5702 = vmatprep.subr.mxu0 0.0
    %5703 = vmatpush1.msra.mxu0 0.0
    %5704 = vmatprep.subr.mxu0 0.0
    %5705 = vmatpush1.msra.mxu0 0.0
    %5706 = vmatprep.subr.mxu0 0.0
    %5707 = vmatpush1.msra.mxu0 0.0
    %5708 = vmatprep.subr.mxu0 0.0
    %5709 = vmatpush1.msra.mxu0 0.0
    %5710 = vmatprep.subr.mxu0 0.0
    %5711 = vmatpush1.msra.mxu0 0.0
    %5712 = vmatprep.subr.mxu0 0.0
    %5713 = vmatpush1.msra.mxu0 0.0
    %5714 = vmatprep.subr.mxu0 0.0
    %5715 = vmatpush1.msra.mxu0 0.0
    %5716 = vmatprep.subr.mxu0 0.0
    %5717 = vmatpush1.msra.mxu0 0.0
    %5718 = vmatprep.subr.mxu0 0.0
    %5719 = vmatpush1.msra.mxu0 0.0
    %5720 = vmatprep.subr.mxu0 0.0
    %5721 = vmatpush1.msra.mxu0 0.0
    %5722 = vmatprep.subr.mxu0 0.0
    %5723 = vmatpush1.msra.mxu0 0.0
    %5724 = vmatprep.subr.mxu0 0.0
    %5725 = vmatpush1.msra.mxu0 0.0
    %5726 = vmatprep.subr.mxu0 0.0
    %5727 = vmatpush1.msra.mxu0 0.0
    %5728 = vmatprep.subr.mxu0 0.0
    %5729 = vmatpush1.msra.mxu0 0.0
    %5730 = vmatprep.subr.mxu0 0.0
    %5731 = vmatpush1.msra.mxu0 0.0
    %5732 = vmatprep.subr.mxu0 0.0
    %5733 = vmatpush1.msra.mxu0 0.0
    %5734 = vmatprep.subr.mxu0 0.0
    %5735 = vmatpush1.msra.mxu0 0.0
    %5736 = vmatprep.subr.mxu0 0.0
    %5737 = vmatpush1.msra.mxu0 0.0
    %5738 = vmatprep.subr.mxu0 0.0
    %5739 = vmatpush1.msra.mxu0 0.0
    %5740 = vmatprep.subr.mxu0 0.0
    %5741 = vmatpush1.msra.mxu0 0.0
    %5742 = vmatprep.subr.mxu0 0.0
    %5743 = vmatpush1.msra.mxu0 0.0
    %5744 = vmatprep.subr.mxu0 0.0
    %5745 = vmatpush1.msra.mxu0 0.0
    %5746 = vmatprep.subr.mxu0 0.0
    %5747 = vmatpush1.msra.mxu0 0.0
    %5748 = vmatprep.subr.mxu0 0.0
    %5749 = vmatpush1.msra.mxu0 0.0
    %5750 = vmatprep.subr.mxu0 0.0
    %5751 = vmatpush1.msra.mxu0 0.0
    %5752 = vmatprep.subr.mxu0 0.0
    %5753 = vmatpush1.msra.mxu0 0.0
    %5754 = vmatprep.subr.mxu0 0.0
    %5755 = vmatpush1.msra.mxu0 0.0
    %5756 = vmatprep.subr.mxu0 0.0
    %5757 = vmatpush1.msra.mxu0 0.0
    %5758 = vmatprep.mubr.f32.mxu0 0.0
    %5759 = vmatmul.mubr.f32.gmra.mrb[0].mxu0 %v1050
    %v5760 = vpop.f32.mrb[0].mxu0
    %v5761 = vadd.f32 0.0, %v5760
    %v5762 = vpop.f32.mrb[0].mxu0
    %v5763 = vadd.f32 0.0, %v5762
    %5764 = vmatprep.mubr.f32.mxu0 0.0
    %5765 = vmatmul.mubr.f32.gmra.mrb[0].mxu0 %v1053
    %v5766 = vpop.f32.mrb[0].mxu0
    %v5767 = vadd.f32 0.0, %v5766
    %v5768 = vpop.f32.mrb[0].mxu0
    %v5769 = vadd.f32 0.0, %v5768
    %5770 = vmatprep.mubr.f32.mxu0 0.0
    %5771 = vmatmul.mubr.f32.gmra.mrb[0].mxu0 %v1056
    %v5772 = vpop.f32.mrb[0].mxu0
    %v5773 = vadd.f32 0.0, %v5772
    %v5774 = vpop.f32.mrb[0].mxu0
    %v5775 = vadd.f32 0.0, %v5774
    %5776 = vdwg.mxu0
    %v5777 = vrot.slane %v5761, 4
    %v5778 = vmax.f32 %v5761, %v5777
    %v5779 = vrot.slane %v5778, 2
    %v5780 = vmax.f32 %v5778, %v5779
    %v5781 = vrot.slane %v5780, 1
    %v5782 = vmax.f32 %v5780, %v5781
    %v5783 = vrot.slane %v5763, 4
    %v5784 = vmax.f32 %v5763, %v5783
    %v5785 = vrot.slane %v5784, 2
    %v5786 = vmax.f32 %v5784, %v5785
    %v5787 = vrot.slane %v5786, 1
    %v5788 = vmax.f32 %v5786, %v5787
    %v5789 = vsub.f32 %v5761, %v5782
    %v5790 = vsub.f32 %v5763, %v5788
    %v5791 = vmul.f32 %v5789, 1.442695
    %v5792 = vpow.pop %v5791
    %v5793 = vmul.f32 %v5790, 1.442695
    %v5794 = vpow.pop %v5793
    %v5795 = vrot.slane %v5792, 4
    %v5796 = vadd.f32 %v5792, %v5795
    %v5797 = vrot.slane %v5796, 2
    %v5798 = vadd.f32 %v5796, %v5797
    %v5799 = vrot.slane %v5798, 1
    %v5800 = vadd.f32 %v5798, %v5799
    %v5801 = vrot.slane %v5794, 4
    %v5802 = vadd.f32 %v5794, %v5801
    %v5803 = vrot.slane %v5802, 2
    %v5804 = vadd.f32 %v5802, %v5803
    %v5805 = vrot.slane %v5804, 1
    %v5806 = vadd.f32 %v5804, %v5805
    %v5807 = vlog2.pop %v5800
    %v5808 = vmul.f32 %v5807, 0.6931472
    %v5809 = vlog2.pop %v5806
    %v5810 = vmul.f32 %v5809, 0.6931472
    %v5811 = vsub.f32 %v5789, %v5808
    %v5812 = vsub.f32 %v5790, %v5810
    %s5813 = scalar_lea.vmem [#allocation2], 96
    %5814 = vst [vmem:[%s5813] sm:$0xff] %v5811
    %5815 = vst [vmem:[%s5813 + $0x8] sm:$0xff] %v5812
    %v5816 = vmax.f32 %v5767, %v5773
    %v5817 = vrot.slane %v5816, 4
    %v5818 = vmax.f32 %v5816, %v5817
    %v5819 = vrot.slane %v5818, 2
    %v5820 = vmax.f32 %v5818, %v5819
    %v5821 = vrot.slane %v5820, 1
    %v5822 = vmax.f32 %v5820, %v5821
    %v5823 = vmax.f32 %v5769, %v5775
    %v5824 = vrot.slane %v5823, 4
    %v5825 = vmax.f32 %v5823, %v5824
    %v5826 = vrot.slane %v5825, 2
    %v5827 = vmax.f32 %v5825, %v5826
    %v5828 = vrot.slane %v5827, 1
    %v5829 = vmax.f32 %v5827, %v5828
    %v5830 = vsub.f32 %v5767, %v5822
    %v5831 = vsub.f32 %v5769, %v5829
    %v5832 = vsub.f32 %v5773, %v5822
    %v5833 = vsub.f32 %v5775, %v5829
    %v5834 = vmul.f32 %v5830, 1.442695
    %v5835 = vpow.pop %v5834
    %v5836 = vmul.f32 %v5831, 1.442695
    %v5837 = vpow.pop %v5836
    %v5838 = vmul.f32 %v5832, 1.442695
    %v5839 = vpow.pop %v5838
    %v5840 = vmul.f32 %v5833, 1.442695
    %v5841 = vpow.pop %v5840
    %v5842 = vadd.f32 %v5835, %v5839
    %v5843 = vrot.slane %v5842, 4
    %v5844 = vadd.f32 %v5842, %v5843
    %v5845 = vrot.slane %v5844, 2
    %v5846 = vadd.f32 %v5844, %v5845
    %v5847 = vrot.slane %v5846, 1
    %v5848 = vadd.f32 %v5846, %v5847
    %v5849 = vadd.f32 %v5837, %v5841
    %v5850 = vrot.slane %v5849, 4
    %v5851 = vadd.f32 %v5849, %v5850
    %v5852 = vrot.slane %v5851, 2
    %v5853 = vadd.f32 %v5851, %v5852
    %v5854 = vrot.slane %v5853, 1
    %v5855 = vadd.f32 %v5853, %v5854
    %v5856 = vrcp.pop %v5848
    %v5857 = vmul.f32 1.0, %v5856
    %v5858 = vrcp.pop %v5855
    %v5859 = vmul.f32 1.0, %v5858
    %v5860 = vmul.f32 %v5835, %v5857
    %v5861 = vmul.f32 %v5837, %v5859
    %v5862 = vmul.f32 %v5839, %v5857
    %v5863 = vmul.f32 %v5841, %v5859
    %s5864 = scalar_lea.vmem [#allocation4], 192
    %5865 = vst [vmem:[%s5864] sm:$0xff] %v5860
    %5866 = vst [vmem:[%s5864 + $0x8] sm:$0xff] %v5861
    %5867 = vst [vmem:[%s5864 + $0x10] sm:$0xff] %v5862
    %5868 = vst [vmem:[%s5864 + $0x18] sm:$0xff] %v5863
    %v5869 = vlaneseq
    %v5870 = vshrl.u32 %v5869, 7
    %v5871 = vsub.s32 7, %v5870
    %v5872 = vrot.slane %v409, %v5871
    %v5873 = vlaneseq
    %v5874 = vshrl.u32 %v5873, 7
    %v5875 = vsub.s32 7, %v5874
    %v5876 = vrot.slane %v410, %v5875
    %vm5877 = vcmp.eq.s32.totalorder %v412, %v5872
    %vm5878 = vcmp.eq.s32.totalorder %v412, %v5876
    %vm5879 = vcmp.eq.s32.totalorder %v413, %v5872
    %vm5880 = vcmp.eq.s32.totalorder %v413, %v5876
    %v5881 = vsel %vm5877, 1, 0
    %v5882 = vsel %vm5878, 1, 0
    %v5883 = vsel %vm5879, 1, 0
    %v5884 = vsel %vm5880, 1, 0
    %v5885 = vcvt.s32.f32 %v5881
    %v5886 = vcvt.s32.f32 %v5882
    %v5887 = vcvt.s32.f32 %v5883
    %v5888 = vcvt.s32.f32 %v5884
    %5889 = vmatprep.subr.mxu0 %v5886
    %5890 = vmatpush1.msra.mxu0 %v5885
    %5891 = vmatprep.subr.mxu0 %v5888
    %5892 = vmatpush1.msra.mxu0 %v5887
    %5893 = vmatprep.subr.mxu0 0.0
    %5894 = vmatpush1.msra.mxu0 0.0
    %5895 = vmatprep.subr.mxu0 0.0
    %5896 = vmatpush1.msra.mxu0 0.0
    %5897 = vmatprep.subr.mxu0 0.0
    %5898 = vmatpush1.msra.mxu0 0.0
    %5899 = vmatprep.subr.mxu0 0.0
    %5900 = vmatpush1.msra.mxu0 0.0
    %5901 = vmatprep.subr.mxu0 0.0
    %5902 = vmatpush1.msra.mxu0 0.0
    %5903 = vmatprep.subr.mxu0 0.0
    %5904 = vmatpush1.msra.mxu0 0.0
    %5905 = vmatprep.subr.mxu0 0.0
    %5906 = vmatpush1.msra.mxu0 0.0
    %5907 = vmatprep.subr.mxu0 0.0
    %5908 = vmatpush1.msra.mxu0 0.0
    %5909 = vmatprep.subr.mxu0 0.0
    %5910 = vmatpush1.msra.mxu0 0.0
    %5911 = vmatprep.subr.mxu0 0.0
    %5912 = vmatpush1.msra.mxu0 0.0
    %5913 = vmatprep.subr.mxu0 0.0
    %5914 = vmatpush1.msra.mxu0 0.0
    %5915 = vmatprep.subr.mxu0 0.0
    %5916 = vmatpush1.msra.mxu0 0.0
    %5917 = vmatprep.subr.mxu0 0.0
    %5918 = vmatpush1.msra.mxu0 0.0
    %5919 = vmatprep.subr.mxu0 0.0
    %5920 = vmatpush1.msra.mxu0 0.0
    %5921 = vmatprep.subr.mxu0 0.0
    %5922 = vmatpush1.msra.mxu0 0.0
    %5923 = vmatprep.subr.mxu0 0.0
    %5924 = vmatpush1.msra.mxu0 0.0
    %5925 = vmatprep.subr.mxu0 0.0
    %5926 = vmatpush1.msra.mxu0 0.0
    %5927 = vmatprep.subr.mxu0 0.0
    %5928 = vmatpush1.msra.mxu0 0.0
    %5929 = vmatprep.subr.mxu0 0.0
    %5930 = vmatpush1.msra.mxu0 0.0
    %5931 = vmatprep.subr.mxu0 0.0
    %5932 = vmatpush1.msra.mxu0 0.0
    %5933 = vmatprep.subr.mxu0 0.0
    %5934 = vmatpush1.msra.mxu0 0.0
    %5935 = vmatprep.subr.mxu0 0.0
    %5936 = vmatpush1.msra.mxu0 0.0
    %5937 = vmatprep.subr.mxu0 0.0
    %5938 = vmatpush1.msra.mxu0 0.0
    %5939 = vmatprep.subr.mxu0 0.0
    %5940 = vmatpush1.msra.mxu0 0.0
    %5941 = vmatprep.subr.mxu0 0.0
    %5942 = vmatpush1.msra.mxu0 0.0
    %5943 = vmatprep.subr.mxu0 0.0
    %5944 = vmatpush1.msra.mxu0 0.0
    %5945 = vmatprep.subr.mxu0 0.0
    %5946 = vmatpush1.msra.mxu0 0.0
    %5947 = vmatprep.subr.mxu0 0.0
    %5948 = vmatpush1.msra.mxu0 0.0
    %5949 = vmatprep.subr.mxu0 0.0
    %5950 = vmatpush1.msra.mxu0 0.0
    %5951 = vmatprep.subr.mxu0 0.0
    %5952 = vmatpush1.msra.mxu0 0.0
    %5953 = vmatprep.mubr.f32.mxu0 0.0
    %5954 = vmatmul.mubr.f32.gmra.mrb[0].mxu0 %v440
    %v5955 = vpop.f32.mrb[0].mxu0
    %v5956 = vadd.f32 %v272, %v5955
    %v5957 = vpop.f32.mrb[0].mxu0
    %v5958 = vadd.f32 %v274, %v5957
    %5959 = vmatprep.mubr.f32.mxu0 0.0
    %5960 = vmatmul.mubr.f32.gmra.mrb[0].mxu0 %v443
    %v5961 = vpop.f32.mrb[0].mxu0
    %v5962 = vadd.f32 %v278, %v5961
    %v5963 = vpop.f32.mrb[0].mxu0
    %v5964 = vadd.f32 %v280, %v5963
    %5965 = vmatprep.mubr.f32.mxu0 0.0
    %5966 = vmatmul.mubr.f32.gmra.mrb[0].mxu0 %v446
    %v5967 = vpop.f32.mrb[0].mxu0
    %v5968 = vadd.f32 %v284, %v5967
    %v5969 = vpop.f32.mrb[0].mxu0
    %v5970 = vadd.f32 %v286, %v5969
    %5971 = vmatprep.mubr.f32.mxu0 0.0
    %5972 = vmatmul.mubr.f32.gmra.mrb[0].mxu0 %v449
    %v5973 = vpop.f32.mrb[0].mxu0
    %v5974 = vadd.f32 %v290, %v5973
    %v5975 = vpop.f32.mrb[0].mxu0
    %v5976 = vadd.f32 %v292, %v5975
    %5977 = vmatprep.mubr.f32.mxu0 0.0
    %5978 = vmatmul.mubr.f32.gmra.mrb[0].mxu0 %v452
    %v5979 = vpop.f32.mrb[0].mxu0
    %v5980 = vadd.f32 %v296, %v5979
    %v5981 = vpop.f32.mrb[0].mxu0
    %v5982 = vadd.f32 %v298, %v5981
    %5983 = vmatprep.mubr.f32.mxu0 0.0
    %5984 = vmatmul.mubr.f32.gmra.mrb[0].mxu0 %v455
    %v5985 = vpop.f32.mrb[0].mxu0
    %v5986 = vadd.f32 %v302, %v5985
    %v5987 = vpop.f32.mrb[0].mxu0
    %v5988 = vadd.f32 %v304, %v5987
    %5989 = vmatprep.mubr.f32.mxu0 0.0
    %5990 = vmatmul.mubr.f32.gmra.mrb[0].mxu0 %v458
    %v5991 = vpop.f32.mrb[0].mxu0
    %v5992 = vadd.f32 %v308, %v5991
    %v5993 = vpop.f32.mrb[0].mxu0
    %v5994 = vadd.f32 %v310, %v5993
    %5995 = vmatprep.mubr.f32.mxu0 0.0
    %5996 = vmatmul.mubr.f32.gmra.mrb[0].mxu0 %v461
    %v5997 = vpop.f32.mrb[0].mxu0
    %v5998 = vadd.f32 %v314, %v5997
    %v5999 = vpop.f32.mrb[0].mxu0
    %v6000 = vadd.f32 %v316, %v5999
    %6001 = vmatprep.mubr.f32.mxu0 0.0
    %6002 = vmatmul.mubr.f32.gmra.mrb[0].mxu0 %v464
    %v6003 = vpop.f32.mrb[0].mxu0
    %v6004 = vadd.f32 %v320, %v6003
    %v6005 = vpop.f32.mrb[0].mxu0
    %v6006 = vadd.f32 %v322, %v6005
    %6007 = vmatprep.mubr.f32.mxu0 0.0
    %6008 = vmatmul.mubr.f32.gmra.mrb[0].mxu0 %v467
    %v6009 = vpop.f32.mrb[0].mxu0
    %v6010 = vadd.f32 %v326, %v6009
    %v6011 = vpop.f32.mrb[0].mxu0
    %v6012 = vadd.f32 %v328, %v6011
    %6013 = vmatprep.mubr.f32.mxu0 0.0
    %6014 = vmatmul.mubr.f32.gmra.mrb[0].mxu0 %v470
    %v6015 = vpop.f32.mrb[0].mxu0
    %v6016 = vadd.f32 %v332, %v6015
    %v6017 = vpop.f32.mrb[0].mxu0
    %v6018 = vadd.f32 %v334, %v6017
    %6019 = vmatprep.mubr.f32.mxu0 0.0
    %6020 = vmatmul.mubr.f32.gmra.mrb[0].mxu0 %v473
    %v6021 = vpop.f32.mrb[0].mxu0
    %v6022 = vadd.f32 %v338, %v6021
    %v6023 = vpop.f32.mrb[0].mxu0
    %v6024 = vadd.f32 %v340, %v6023
    %6025 = vmatprep.mubr.f32.mxu0 0.0
    %6026 = vmatmul.mubr.f32.gmra.mrb[0].mxu0 %v476
    %v6027 = vpop.f32.mrb[0].mxu0
    %v6028 = vadd.f32 %v344, %v6027
    %v6029 = vpop.f32.mrb[0].mxu0
    %v6030 = vadd.f32 %v346, %v6029
    %6031 = vmatprep.mubr.f32.mxu0 0.0
    %6032 = vmatmul.mubr.f32.gmra.mrb[0].mxu0 %v479
    %v6033 = vpop.f32.mrb[0].mxu0
    %v6034 = vadd.f32 %v350, %v6033
    %v6035 = vpop.f32.mrb[0].mxu0
    %v6036 = vadd.f32 %v352, %v6035
    %6037 = vmatprep.mubr.f32.mxu0 0.0
    %6038 = vmatmul.mubr.f32.gmra.mrb[0].mxu0 %v482
    %v6039 = vpop.f32.mrb[0].mxu0
    %v6040 = vadd.f32 %v356, %v6039
    %v6041 = vpop.f32.mrb[0].mxu0
    %v6042 = vadd.f32 %v358, %v6041
    %6043 = vmatprep.mubr.f32.mxu0 0.0
    %6044 = vmatmul.mubr.f32.gmra.mrb[0].mxu0 %v485
    %v6045 = vpop.f32.mrb[0].mxu0
    %v6046 = vadd.f32 %v362, %v6045
    %v6047 = vpop.f32.mrb[0].mxu0
    %v6048 = vadd.f32 %v364, %v6047
    %6049 = vdwg.mxu0
    %6050 = vmatprep.subr.mxu0 %v5837
    %6051 = vmatpush1.msra.mxu0 %v5835
    %6052 = vmatprep.subr.mxu0 %v5841
    %6053 = vmatpush1.msra.mxu0 %v5839
    %6054 = vmatprep.subr.mxu0 0.0
    %6055 = vmatpush1.msra.mxu0 0.0
    %6056 = vmatprep.subr.mxu0 0.0
    %6057 = vmatpush1.msra.mxu0 0.0
    %6058 = vmatprep.subr.mxu0 0.0
    %6059 = vmatpush1.msra.mxu0 0.0
    %6060 = vmatprep.subr.mxu0 0.0
    %6061 = vmatpush1.msra.mxu0 0.0
    %6062 = vmatprep.subr.mxu0 0.0
    %6063 = vmatpush1.msra.mxu0 0.0
    %6064 = vmatprep.subr.mxu0 0.0
    %6065 = vmatpush1.msra.mxu0 0.0
    %6066 = vmatprep.subr.mxu0 0.0
    %6067 = vmatpush1.msra.mxu0 0.0
    %6068 = vmatprep.subr.mxu0 0.0
    %6069 = vmatpush1.msra.mxu0 0.0
    %6070 = vmatprep.subr.mxu0 0.0
    %6071 = vmatpush1.msra.mxu0 0.0
    %6072 = vmatprep.subr.mxu0 0.0
    %6073 = vmatpush1.msra.mxu0 0.0
    %6074 = vmatprep.subr.mxu0 0.0
    %6075 = vmatpush1.msra.mxu0 0.0
    %6076 = vmatprep.subr.mxu0 0.0
    %6077 = vmatpush1.msra.mxu0 0.0
    %6078 = vmatprep.subr.mxu0 0.0
    %6079 = vmatpush1.msra.mxu0 0.0
    %6080 = vmatprep.subr.mxu0 0.0
    %6081 = vmatpush1.msra.mxu0 0.0
    %6082 = vmatprep.subr.mxu0 0.0
    %6083 = vmatpush1.msra.mxu0 0.0
    %6084 = vmatprep.subr.mxu0 0.0
    %6085 = vmatpush1.msra.mxu0 0.0
    %6086 = vmatprep.subr.mxu0 0.0
    %6087 = vmatpush1.msra.mxu0 0.0
    %6088 = vmatprep.subr.mxu0 0.0
    %6089 = vmatpush1.msra.mxu0 0.0
    %6090 = vmatprep.subr.mxu0 0.0
    %6091 = vmatpush1.msra.mxu0 0.0
    %6092 = vmatprep.subr.mxu0 0.0
    %6093 = vmatpush1.msra.mxu0 0.0
    %6094 = vmatprep.subr.mxu0 0.0
    %6095 = vmatpush1.msra.mxu0 0.0
    %6096 = vmatprep.subr.mxu0 0.0
    %6097 = vmatpush1.msra.mxu0 0.0
    %6098 = vmatprep.subr.mxu0 0.0
    %6099 = vmatpush1.msra.mxu0 0.0
    %6100 = vmatprep.subr.mxu0 0.0
    %6101 = vmatpush1.msra.mxu0 0.0
    %6102 = vmatprep.subr.mxu0 0.0
    %6103 = vmatpush1.msra.mxu0 0.0
    %6104 = vmatprep.subr.mxu0 0.0
    %6105 = vmatpush1.msra.mxu0 0.0
    %6106 = vmatprep.subr.mxu0 0.0
    %6107 = vmatpush1.msra.mxu0 0.0
    %6108 = vmatprep.subr.mxu0 0.0
    %6109 = vmatpush1.msra.mxu0 0.0
    %6110 = vmatprep.subr.mxu0 0.0
    %6111 = vmatpush1.msra.mxu0 0.0
    %6112 = vmatprep.subr.mxu0 0.0
    %6113 = vmatpush1.msra.mxu0 0.0
    %6114 = vmatprep.mubr.f32.mxu0 0.0
    %6115 = vmatmul.mubr.f32.gmra.mrb[0].mxu0 %v649
    %v6116 = vpop.f32.mrb[0].mxu0
    %v6117 = vadd.f32 0.0, %v6116
    %v6118 = vpop.f32.mrb[0].mxu0
    %v6119 = vadd.f32 0.0, %v6118
    %6120 = vmatprep.mubr.f32.mxu0 0.0
    %6121 = vmatmul.mubr.f32.gmra.mrb[0].mxu0 %v652
    %v6122 = vpop.f32.mrb[0].mxu0
    %v6123 = vadd.f32 0.0, %v6122
    %v6124 = vpop.f32.mrb[0].mxu0
    %v6125 = vadd.f32 0.0, %v6124
    %6126 = vmatprep.mubr.f32.mxu0 0.0
    %6127 = vmatmul.mubr.f32.gmra.mrb[0].mxu0 %v655
    %v6128 = vpop.f32.mrb[0].mxu0
    %v6129 = vadd.f32 0.0, %v6128
    %v6130 = vpop.f32.mrb[0].mxu0
    %v6131 = vadd.f32 0.0, %v6130
    %6132 = vmatprep.mubr.f32.mxu0 0.0
    %6133 = vmatmul.mubr.f32.gmra.mrb[0].mxu0 %v658
    %v6134 = vpop.f32.mrb[0].mxu0
    %v6135 = vadd.f32 0.0, %v6134
    %v6136 = vpop.f32.mrb[0].mxu0
    %v6137 = vadd.f32 0.0, %v6136
    %6138 = vmatprep.mubr.f32.mxu0 0.0
    %6139 = vmatmul.mubr.f32.gmra.mrb[0].mxu0 %v661
    %v6140 = vpop.f32.mrb[0].mxu0
    %v6141 = vadd.f32 0.0, %v6140
    %v6142 = vpop.f32.mrb[0].mxu0
    %v6143 = vadd.f32 0.0, %v6142
    %6144 = vmatprep.mubr.f32.mxu0 0.0
    %6145 = vmatmul.mubr.f32.gmra.mrb[0].mxu0 %v664
    %v6146 = vpop.f32.mrb[0].mxu0
    %v6147 = vadd.f32 0.0, %v6146
    %v6148 = vpop.f32.mrb[0].mxu0
    %v6149 = vadd.f32 0.0, %v6148
    %6150 = vmatprep.mubr.f32.mxu0 0.0
    %6151 = vmatmul.mubr.f32.gmra.mrb[0].mxu0 %v667
    %v6152 = vpop.f32.mrb[0].mxu0
    %v6153 = vadd.f32 0.0, %v6152
    %v6154 = vpop.f32.mrb[0].mxu0
    %v6155 = vadd.f32 0.0, %v6154
    %6156 = vmatprep.mubr.f32.mxu0 0.0
    %6157 = vmatmul.mubr.f32.gmra.mrb[0].mxu0 %v670
    %v6158 = vpop.f32.mrb[0].mxu0
    %v6159 = vadd.f32 0.0, %v6158
    %v6160 = vpop.f32.mrb[0].mxu0
    %v6161 = vadd.f32 0.0, %v6160
    %6162 = vmatprep.mubr.f32.mxu0 0.0
    %6163 = vmatmul.mubr.f32.gmra.mrb[0].mxu0 %v673
    %v6164 = vpop.f32.mrb[0].mxu0
    %v6165 = vadd.f32 0.0, %v6164
    %v6166 = vpop.f32.mrb[0].mxu0
    %v6167 = vadd.f32 0.0, %v6166
    %6168 = vmatprep.mubr.f32.mxu0 0.0
    %6169 = vmatmul.mubr.f32.gmra.mrb[0].mxu0 %v676
    %v6170 = vpop.f32.mrb[0].mxu0
    %v6171 = vadd.f32 0.0, %v6170
    %v6172 = vpop.f32.mrb[0].mxu0
    %v6173 = vadd.f32 0.0, %v6172
    %6174 = vmatprep.mubr.f32.mxu0 0.0
    %6175 = vmatmul.mubr.f32.gmra.mrb[0].mxu0 %v679
    %v6176 = vpop.f32.mrb[0].mxu0
    %v6177 = vadd.f32 0.0, %v6176
    %v6178 = vpop.f32.mrb[0].mxu0
    %v6179 = vadd.f32 0.0, %v6178
    %6180 = vmatprep.mubr.f32.mxu0 0.0
    %6181 = vmatmul.mubr.f32.gmra.mrb[0].mxu0 %v682
    %v6182 = vpop.f32.mrb[0].mxu0
    %v6183 = vadd.f32 0.0, %v6182
    %v6184 = vpop.f32.mrb[0].mxu0
    %v6185 = vadd.f32 0.0, %v6184
    %6186 = vmatprep.mubr.f32.mxu0 0.0
    %6187 = vmatmul.mubr.f32.gmra.mrb[0].mxu0 %v685
    %v6188 = vpop.f32.mrb[0].mxu0
    %v6189 = vadd.f32 0.0, %v6188
    %v6190 = vpop.f32.mrb[0].mxu0
    %v6191 = vadd.f32 0.0, %v6190
    %6192 = vmatprep.mubr.f32.mxu0 0.0
    %6193 = vmatmul.mubr.f32.gmra.mrb[0].mxu0 %v688
    %v6194 = vpop.f32.mrb[0].mxu0
    %v6195 = vadd.f32 0.0, %v6194
    %v6196 = vpop.f32.mrb[0].mxu0
    %v6197 = vadd.f32 0.0, %v6196
    %6198 = vmatprep.mubr.f32.mxu0 0.0
    %6199 = vmatmul.mubr.f32.gmra.mrb[0].mxu0 %v691
    %v6200 = vpop.f32.mrb[0].mxu0
    %v6201 = vadd.f32 0.0, %v6200
    %v6202 = vpop.f32.mrb[0].mxu0
    %v6203 = vadd.f32 0.0, %v6202
    %6204 = vmatprep.mubr.f32.mxu0 0.0
    %6205 = vmatmul.mubr.f32.gmra.mrb[0].mxu0 %v694
    %v6206 = vpop.f32.mrb[0].mxu0
    %v6207 = vadd.f32 0.0, %v6206
    %v6208 = vpop.f32.mrb[0].mxu0
    %v6209 = vadd.f32 0.0, %v6208
    %6210 = vdwg.mxu0
    %v6211 = vmul.f32 %v6117, %v5857
    %v6212 = vmul.f32 %v6119, %v5859
    %v6213 = vmul.f32 %v6123, %v5857
    %v6214 = vmul.f32 %v6125, %v5859
    %v6215 = vmul.f32 %v6129, %v5857
    %v6216 = vmul.f32 %v6131, %v5859
    %v6217 = vmul.f32 %v6135, %v5857
    %v6218 = vmul.f32 %v6137, %v5859
    %v6219 = vmul.f32 %v6141, %v5857
    %v6220 = vmul.f32 %v6143, %v5859
    %v6221 = vmul.f32 %v6147, %v5857
    %v6222 = vmul.f32 %v6149, %v5859
    %v6223 = vmul.f32 %v6153, %v5857
    %v6224 = vmul.f32 %v6155, %v5859
    %v6225 = vmul.f32 %v6159, %v5857
    %v6226 = vmul.f32 %v6161, %v5859
    %v6227 = vmul.f32 %v6165, %v5857
    %v6228 = vmul.f32 %v6167, %v5859
    %v6229 = vmul.f32 %v6171, %v5857
    %v6230 = vmul.f32 %v6173, %v5859
    %v6231 = vmul.f32 %v6177, %v5857
    %v6232 = vmul.f32 %v6179, %v5859
    %v6233 = vmul.f32 %v6183, %v5857
    %v6234 = vmul.f32 %v6185, %v5859
    %v6235 = vmul.f32 %v6189, %v5857
    %v6236 = vmul.f32 %v6191, %v5859
    %v6237 = vmul.f32 %v6195, %v5857
    %v6238 = vmul.f32 %v6197, %v5859
    %v6239 = vmul.f32 %v6201, %v5857
    %v6240 = vmul.f32 %v6203, %v5859
    %v6241 = vmul.f32 %v6207, %v5857
    %v6242 = vmul.f32 %v6209, %v5859
    %v6243 = vadd.f32 %v6211, %v5956
    %v6244 = vadd.f32 %v6212, %v5958
    %v6245 = vadd.f32 %v6213, %v5962
    %v6246 = vadd.f32 %v6214, %v5964
    %v6247 = vadd.f32 %v6215, %v5968
    %v6248 = vadd.f32 %v6216, %v5970
    %v6249 = vadd.f32 %v6217, %v5974
    %v6250 = vadd.f32 %v6218, %v5976
    %v6251 = vadd.f32 %v6219, %v5980
    %v6252 = vadd.f32 %v6220, %v5982
    %v6253 = vadd.f32 %v6221, %v5986
    %v6254 = vadd.f32 %v6222, %v5988
    %v6255 = vadd.f32 %v6223, %v5992
    %v6256 = vadd.f32 %v6224, %v5994
    %v6257 = vadd.f32 %v6225, %v5998
    %v6258 = vadd.f32 %v6226, %v6000
    %v6259 = vadd.f32 %v6227, %v6004
    %v6260 = vadd.f32 %v6228, %v6006
    %v6261 = vadd.f32 %v6229, %v6010
    %v6262 = vadd.f32 %v6230, %v6012
    %v6263 = vadd.f32 %v6231, %v6016
    %v6264 = vadd.f32 %v6232, %v6018
    %v6265 = vadd.f32 %v6233, %v6022
    %v6266 = vadd.f32 %v6234, %v6024
    %v6267 = vadd.f32 %v6235, %v6028
    %v6268 = vadd.f32 %v6236, %v6030
    %v6269 = vadd.f32 %v6237, %v6034
    %v6270 = vadd.f32 %v6238, %v6036
    %v6271 = vadd.f32 %v6239, %v6040
    %v6272 = vadd.f32 %v6240, %v6042
    %v6273 = vadd.f32 %v6241, %v6046
    %v6274 = vadd.f32 %v6242, %v6048
    %v6275 = vxor.u32 %v6243, 2147483648
    %v6276 = vxor.u32 %v6244, 2147483648
    %v6277 = vxor.u32 %v6245, 2147483648
    %v6278 = vxor.u32 %v6246, 2147483648
    %v6279 = vxor.u32 %v6247, 2147483648
    %v6280 = vxor.u32 %v6248, 2147483648
    %v6281 = vxor.u32 %v6249, 2147483648
    %v6282 = vxor.u32 %v6250, 2147483648
    %v6283 = vxor.u32 %v6251, 2147483648
    %v6284 = vxor.u32 %v6252, 2147483648
    %v6285 = vxor.u32 %v6253, 2147483648
    %v6286 = vxor.u32 %v6254, 2147483648
    %v6287 = vxor.u32 %v6255, 2147483648
    %v6288 = vxor.u32 %v6256, 2147483648
    %v6289 = vxor.u32 %v6257, 2147483648
    %v6290 = vxor.u32 %v6258, 2147483648
    %v6291 = vxor.u32 %v6267, 2147483648
    %v6292 = vxor.u32 %v6268, 2147483648
    %v6293 = vxor.u32 %v6269, 2147483648
    %v6294 = vxor.u32 %v6270, 2147483648
    %v6295 = vxor.u32 %v6271, 2147483648
    %v6296 = vxor.u32 %v6272, 2147483648
    %v6297 = vxor.u32 %v6273, 2147483648
    %v6298 = vxor.u32 %v6274, 2147483648
    %v6299 = vmul.f32 %v6275, 1.442695
    %v6300 = vpow.pop %v6299
    %v6301 = vmul.f32 %v6276, 1.442695
    %v6302 = vpow.pop %v6301
    %v6303 = vmul.f32 %v6277, 1.442695
    %v6304 = vpow.pop %v6303
    %v6305 = vmul.f32 %v6278, 1.442695
    %v6306 = vpow.pop %v6305
    %v6307 = vmul.f32 %v6279, 1.442695
    %v6308 = vpow.pop %v6307
    %v6309 = vmul.f32 %v6280, 1.442695
    %v6310 = vpow.pop %v6309
    %v6311 = vmul.f32 %v6281, 1.442695
    %v6312 = vpow.pop %v6311
    %v6313 = vmul.f32 %v6282, 1.442695
    %v6314 = vpow.pop %v6313
    %v6315 = vmul.f32 %v6283, 1.442695
    %v6316 = vpow.pop %v6315
    %v6317 = vmul.f32 %v6284, 1.442695
    %v6318 = vpow.pop %v6317
    %v6319 = vmul.f32 %v6285, 1.442695
    %v6320 = vpow.pop %v6319
    %v6321 = vmul.f32 %v6286, 1.442695
    %v6322 = vpow.pop %v6321
    %v6323 = vmul.f32 %v6287, 1.442695
    %v6324 = vpow.pop %v6323
    %v6325 = vmul.f32 %v6288, 1.442695
    %v6326 = vpow.pop %v6325
    %v6327 = vmul.f32 %v6289, 1.442695
    %v6328 = vpow.pop %v6327
    %v6329 = vmul.f32 %v6290, 1.442695
    %v6330 = vpow.pop %v6329
    %v6331 = vmul.f32 %v6291, 1.442695
    %v6332 = vpow.pop %v6331
    %v6333 = vmul.f32 %v6292, 1.442695
    %v6334 = vpow.pop %v6333
    %v6335 = vmul.f32 %v6293, 1.442695
    %v6336 = vpow.pop %v6335
    %v6337 = vmul.f32 %v6294, 1.442695
    %v6338 = vpow.pop %v6337
    %v6339 = vmul.f32 %v6295, 1.442695
    %v6340 = vpow.pop %v6339
    %v6341 = vmul.f32 %v6296, 1.442695
    %v6342 = vpow.pop %v6341
    %v6343 = vmul.f32 %v6297, 1.442695
    %v6344 = vpow.pop %v6343
    %v6345 = vmul.f32 %v6298, 1.442695
    %v6346 = vpow.pop %v6345
    %v6347 = vadd.f32 %v6300, 1.0
    %v6348 = vadd.f32 %v6302, 1.0
    %v6349 = vadd.f32 %v6304, 1.0
    %v6350 = vadd.f32 %v6306, 1.0
    %v6351 = vadd.f32 %v6308, 1.0
    %v6352 = vadd.f32 %v6310, 1.0
    %v6353 = vadd.f32 %v6312, 1.0
    %v6354 = vadd.f32 %v6314, 1.0
    %v6355 = vadd.f32 %v6316, 1.0
    %v6356 = vadd.f32 %v6318, 1.0
    %v6357 = vadd.f32 %v6320, 1.0
    %v6358 = vadd.f32 %v6322, 1.0
    %v6359 = vadd.f32 %v6324, 1.0
    %v6360 = vadd.f32 %v6326, 1.0
    %v6361 = vadd.f32 %v6328, 1.0
    %v6362 = vadd.f32 %v6330, 1.0
    %v6363 = vadd.f32 %v6332, 1.0
    %v6364 = vadd.f32 %v6334, 1.0
    %v6365 = vadd.f32 %v6336, 1.0
    %v6366 = vadd.f32 %v6338, 1.0
    %v6367 = vadd.f32 %v6340, 1.0
    %v6368 = vadd.f32 %v6342, 1.0
    %v6369 = vadd.f32 %v6344, 1.0
    %v6370 = vadd.f32 %v6346, 1.0
    %v6371 = vrcp.pop %v6347
    %v6372 = vmul.f32 1.0, %v6371
    %v6373 = vrcp.pop %v6348
    %v6374 = vmul.f32 1.0, %v6373
    %v6375 = vrcp.pop %v6349
    %v6376 = vmul.f32 1.0, %v6375
    %v6377 = vrcp.pop %v6350
    %v6378 = vmul.f32 1.0, %v6377
    %v6379 = vrcp.pop %v6351
    %v6380 = vmul.f32 1.0, %v6379
    %v6381 = vrcp.pop %v6352
    %v6382 = vmul.f32 1.0, %v6381
    %v6383 = vrcp.pop %v6353
    %v6384 = vmul.f32 1.0, %v6383
    %v6385 = vrcp.pop %v6354
    %v6386 = vmul.f32 1.0, %v6385
    %v6387 = vrcp.pop %v6355
    %v6388 = vmul.f32 1.0, %v6387
    %v6389 = vrcp.pop %v6356
    %v6390 = vmul.f32 1.0, %v6389
    %v6391 = vrcp.pop %v6357
    %v6392 = vmul.f32 1.0, %v6391
    %v6393 = vrcp.pop %v6358
    %v6394 = vmul.f32 1.0, %v6393
    %v6395 = vrcp.pop %v6359
    %v6396 = vmul.f32 1.0, %v6395
    %v6397 = vrcp.pop %v6360
    %v6398 = vmul.f32 1.0, %v6397
    %v6399 = vrcp.pop %v6361
    %v6400 = vmul.f32 1.0, %v6399
    %v6401 = vrcp.pop %v6362
    %v6402 = vmul.f32 1.0, %v6401
    %v6403 = vrcp.pop %v6363
    %v6404 = vmul.f32 1.0, %v6403
    %v6405 = vrcp.pop %v6364
    %v6406 = vmul.f32 1.0, %v6405
    %v6407 = vrcp.pop %v6365
    %v6408 = vmul.f32 1.0, %v6407
    %v6409 = vrcp.pop %v6366
    %v6410 = vmul.f32 1.0, %v6409
    %v6411 = vrcp.pop %v6367
    %v6412 = vmul.f32 1.0, %v6411
    %v6413 = vrcp.pop %v6368
    %v6414 = vmul.f32 1.0, %v6413
    %v6415 = vrcp.pop %v6369
    %v6416 = vmul.f32 1.0, %v6415
    %v6417 = vrcp.pop %v6370
    %v6418 = vmul.f32 1.0, %v6417
    %v6419 = vtanh.pop %v6259
    %v6420 = vtanh.pop %v6260
    %v6421 = vtanh.pop %v6261
    %v6422 = vtanh.pop %v6262
    %v6423 = vtanh.pop %v6263
    %v6424 = vtanh.pop %v6264
    %v6425 = vtanh.pop %v6265
    %v6426 = vtanh.pop %v6266
    %v6427 = vmul.f32 %v6388, %v366
    %v6428 = vmul.f32 %v6390, %v367
    %v6429 = vmul.f32 %v6392, %v368
    %v6430 = vmul.f32 %v6394, %v369
    %v6431 = vmul.f32 %v6396, %v370
    %v6432 = vmul.f32 %v6398, %v371
    %v6433 = vmul.f32 %v6400, %v372
    %v6434 = vmul.f32 %v6402, %v373
    %v6435 = vmul.f32 %v6372, %v6419
    %v6436 = vmul.f32 %v6374, %v6420
    %v6437 = vmul.f32 %v6376, %v6421
    %v6438 = vmul.f32 %v6378, %v6422
    %v6439 = vmul.f32 %v6380, %v6423
    %v6440 = vmul.f32 %v6382, %v6424
    %v6441 = vmul.f32 %v6384, %v6425
    %v6442 = vmul.f32 %v6386, %v6426
    %v6443 = vadd.f32 %v6427, %v6435
    %v6444 = vadd.f32 %v6428, %v6436
    %v6445 = vadd.f32 %v6429, %v6437
    %v6446 = vadd.f32 %v6430, %v6438
    %v6447 = vadd.f32 %v6431, %v6439
    %v6448 = vadd.f32 %v6432, %v6440
    %v6449 = vadd.f32 %v6433, %v6441
    %v6450 = vadd.f32 %v6434, %v6442
    %v6451 = vtanh.pop %v6443
    %v6452 = vtanh.pop %v6444
    %v6453 = vtanh.pop %v6445
    %v6454 = vtanh.pop %v6446
    %v6455 = vtanh.pop %v6447
    %v6456 = vtanh.pop %v6448
    %v6457 = vtanh.pop %v6449
    %v6458 = vtanh.pop %v6450
    %v6459 = vmul.f32 %v6404, %v6451
    %v6460 = vmul.f32 %v6406, %v6452
    %v6461 = vmul.f32 %v6408, %v6453
    %v6462 = vmul.f32 %v6410, %v6454
    %v6463 = vmul.f32 %v6412, %v6455
    %v6464 = vmul.f32 %v6414, %v6456
    %v6465 = vmul.f32 %v6416, %v6457
    %v6466 = vmul.f32 %v6418, %v6458
    %6467 = vmatprep.subr.mxu0 %v6460
    %6468 = vmatpush1.msra.mxu0 %v6459
    %6469 = vmatprep.subr.mxu0 %v6462
    %6470 = vmatpush1.msra.mxu0 %v6461
    %6471 = vmatprep.subr.mxu0 %v6464
    %6472 = vmatpush1.msra.mxu0 %v6463
    %6473 = vmatprep.subr.mxu0 %v6466
    %6474 = vmatpush1.msra.mxu0 %v6465
    %6475 = vmatprep.subr.mxu0 0.0
    %6476 = vmatpush1.msra.mxu0 0.0
    %6477 = vmatprep.subr.mxu0 0.0
    %6478 = vmatpush1.msra.mxu0 0.0
    %6479 = vmatprep.subr.mxu0 0.0
    %6480 = vmatpush1.msra.mxu0 0.0
    %6481 = vmatprep.subr.mxu0 0.0
    %6482 = vmatpush1.msra.mxu0 0.0
    %6483 = vmatprep.subr.mxu0 0.0
    %6484 = vmatpush1.msra.mxu0 0.0
    %6485 = vmatprep.subr.mxu0 0.0
    %6486 = vmatpush1.msra.mxu0 0.0
    %6487 = vmatprep.subr.mxu0 0.0
    %6488 = vmatpush1.msra.mxu0 0.0
    %6489 = vmatprep.subr.mxu0 0.0
    %6490 = vmatpush1.msra.mxu0 0.0
    %6491 = vmatprep.subr.mxu0 0.0
    %6492 = vmatpush1.msra.mxu0 0.0
    %6493 = vmatprep.subr.mxu0 0.0
    %6494 = vmatpush1.msra.mxu0 0.0
    %6495 = vmatprep.subr.mxu0 0.0
    %6496 = vmatpush1.msra.mxu0 0.0
    %6497 = vmatprep.subr.mxu0 0.0
    %6498 = vmatpush1.msra.mxu0 0.0
    %6499 = vmatprep.subr.mxu0 0.0
    %6500 = vmatpush1.msra.mxu0 0.0
    %6501 = vmatprep.subr.mxu0 0.0
    %6502 = vmatpush1.msra.mxu0 0.0
    %6503 = vmatprep.subr.mxu0 0.0
    %6504 = vmatpush1.msra.mxu0 0.0
    %6505 = vmatprep.subr.mxu0 0.0
    %6506 = vmatpush1.msra.mxu0 0.0
    %6507 = vmatprep.subr.mxu0 0.0
    %6508 = vmatpush1.msra.mxu0 0.0
    %6509 = vmatprep.subr.mxu0 0.0
    %6510 = vmatpush1.msra.mxu0 0.0
    %6511 = vmatprep.subr.mxu0 0.0
    %6512 = vmatpush1.msra.mxu0 0.0
    %6513 = vmatprep.subr.mxu0 0.0
    %6514 = vmatpush1.msra.mxu0 0.0
    %6515 = vmatprep.subr.mxu0 0.0
    %6516 = vmatpush1.msra.mxu0 0.0
    %6517 = vmatprep.subr.mxu0 0.0
    %6518 = vmatpush1.msra.mxu0 0.0
    %6519 = vmatprep.subr.mxu0 0.0
    %6520 = vmatpush1.msra.mxu0 0.0
    %6521 = vmatprep.subr.mxu0 0.0
    %6522 = vmatpush1.msra.mxu0 0.0
    %6523 = vmatprep.subr.mxu0 0.0
    %6524 = vmatpush1.msra.mxu0 0.0
    %6525 = vmatprep.subr.mxu0 0.0
    %6526 = vmatpush1.msra.mxu0 0.0
    %6527 = vmatprep.subr.mxu0 0.0
    %6528 = vmatpush1.msra.mxu0 0.0
    %6529 = vmatprep.subr.mxu0 0.0
    %6530 = vmatpush1.msra.mxu0 0.0
    %6531 = vmatprep.mubr.f32.mxu0 0.0
    %6532 = vmatmul.mubr.f32.gmra.mrb[0].mxu0 %v1050
    %v6533 = vpop.f32.mrb[0].mxu0
    %v6534 = vadd.f32 0.0, %v6533
    %v6535 = vpop.f32.mrb[0].mxu0
    %v6536 = vadd.f32 0.0, %v6535
    %6537 = vmatprep.mubr.f32.mxu0 0.0
    %6538 = vmatmul.mubr.f32.gmra.mrb[0].mxu0 %v1053
    %v6539 = vpop.f32.mrb[0].mxu0
    %v6540 = vadd.f32 0.0, %v6539
    %v6541 = vpop.f32.mrb[0].mxu0
    %v6542 = vadd.f32 0.0, %v6541
    %6543 = vmatprep.mubr.f32.mxu0 0.0
    %6544 = vmatmul.mubr.f32.gmra.mrb[0].mxu0 %v1056
    %v6545 = vpop.f32.mrb[0].mxu0
    %v6546 = vadd.f32 0.0, %v6545
    %v6547 = vpop.f32.mrb[0].mxu0
    %v6548 = vadd.f32 0.0, %v6547
    %6549 = vdwg.mxu0
    %v6550 = vrot.slane %v6534, 4
    %v6551 = vmax.f32 %v6534, %v6550
    %v6552 = vrot.slane %v6551, 2
    %v6553 = vmax.f32 %v6551, %v6552
    %v6554 = vrot.slane %v6553, 1
    %v6555 = vmax.f32 %v6553, %v6554
    %v6556 = vrot.slane %v6536, 4
    %v6557 = vmax.f32 %v6536, %v6556
    %v6558 = vrot.slane %v6557, 2
    %v6559 = vmax.f32 %v6557, %v6558
    %v6560 = vrot.slane %v6559, 1
    %v6561 = vmax.f32 %v6559, %v6560
    %v6562 = vsub.f32 %v6534, %v6555
    %v6563 = vsub.f32 %v6536, %v6561
    %v6564 = vmul.f32 %v6562, 1.442695
    %v6565 = vpow.pop %v6564
    %v6566 = vmul.f32 %v6563, 1.442695
    %v6567 = vpow.pop %v6566
    %v6568 = vrot.slane %v6565, 4
    %v6569 = vadd.f32 %v6565, %v6568
    %v6570 = vrot.slane %v6569, 2
    %v6571 = vadd.f32 %v6569, %v6570
    %v6572 = vrot.slane %v6571, 1
    %v6573 = vadd.f32 %v6571, %v6572
    %v6574 = vrot.slane %v6567, 4
    %v6575 = vadd.f32 %v6567, %v6574
    %v6576 = vrot.slane %v6575, 2
    %v6577 = vadd.f32 %v6575, %v6576
    %v6578 = vrot.slane %v6577, 1
    %v6579 = vadd.f32 %v6577, %v6578
    %v6580 = vlog2.pop %v6573
    %v6581 = vmul.f32 %v6580, 0.6931472
    %v6582 = vlog2.pop %v6579
    %v6583 = vmul.f32 %v6582, 0.6931472
    %v6584 = vsub.f32 %v6562, %v6581
    %v6585 = vsub.f32 %v6563, %v6583
    %s6586 = scalar_lea.vmem [#allocation2], 112
    %6587 = vst [vmem:[%s6586] sm:$0xff] %v6584
    %6588 = vst [vmem:[%s6586 + $0x8] sm:$0xff] %v6585
    %v6589 = vmax.f32 %v6540, %v6546
    %v6590 = vrot.slane %v6589, 4
    %v6591 = vmax.f32 %v6589, %v6590
    %v6592 = vrot.slane %v6591, 2
    %v6593 = vmax.f32 %v6591, %v6592
    %v6594 = vrot.slane %v6593, 1
    %v6595 = vmax.f32 %v6593, %v6594
    %v6596 = vmax.f32 %v6542, %v6548
    %v6597 = vrot.slane %v6596, 4
    %v6598 = vmax.f32 %v6596, %v6597
    %v6599 = vrot.slane %v6598, 2
    %v6600 = vmax.f32 %v6598, %v6599
    %v6601 = vrot.slane %v6600, 1
    %v6602 = vmax.f32 %v6600, %v6601
    %v6603 = vsub.f32 %v6540, %v6595
    %v6604 = vsub.f32 %v6542, %v6602
    %v6605 = vsub.f32 %v6546, %v6595
    %v6606 = vsub.f32 %v6548, %v6602
    %v6607 = vmul.f32 %v6603, 1.442695
    %v6608 = vpow.pop %v6607
    %v6609 = vmul.f32 %v6604, 1.442695
    %v6610 = vpow.pop %v6609
    %v6611 = vmul.f32 %v6605, 1.442695
    %v6612 = vpow.pop %v6611
    %v6613 = vmul.f32 %v6606, 1.442695
    %v6614 = vpow.pop %v6613
    %v6615 = vadd.f32 %v6608, %v6612
    %v6616 = vrot.slane %v6615, 4
    %v6617 = vadd.f32 %v6615, %v6616
    %v6618 = vrot.slane %v6617, 2
    %v6619 = vadd.f32 %v6617, %v6618
    %v6620 = vrot.slane %v6619, 1
    %v6621 = vadd.f32 %v6619, %v6620
    %v6622 = vadd.f32 %v6610, %v6614
    %v6623 = vrot.slane %v6622, 4
    %v6624 = vadd.f32 %v6622, %v6623
    %v6625 = vrot.slane %v6624, 2
    %v6626 = vadd.f32 %v6624, %v6625
    %v6627 = vrot.slane %v6626, 1
    %v6628 = vadd.f32 %v6626, %v6627
    %v6629 = vrcp.pop %v6621
    %v6630 = vmul.f32 1.0, %v6629
    %v6631 = vrcp.pop %v6628
    %v6632 = vmul.f32 1.0, %v6631
    %v6633 = vmul.f32 %v6608, %v6630
    %v6634 = vmul.f32 %v6610, %v6632
    %v6635 = vmul.f32 %v6612, %v6630
    %v6636 = vmul.f32 %v6614, %v6632
    %s6637 = scalar_lea.vmem [#allocation4], 224
    %6638 = vst [vmem:[%s6637] sm:$0xff] %v6633
    %6639 = vst [vmem:[%s6637 + $0x8] sm:$0xff] %v6634
    %6640 = vst [vmem:[%s6637 + $0x10] sm:$0xff] %v6635
    %6641 = vst [vmem:[%s6637 + $0x18] sm:$0xff] %v6636
    // Predicated region
    $region38: #{tpu_custom_call.1} parent=1 // pred_check
      _
    $region39: #{tpu_custom_call.1} parent=1 // pred_check_branch
      %6643 = sbr.rel (0) target = $region41
    $region40: #{tpu_custom_call.1} parent=1 // pred_region
      %s6645 = ssub.s32 2048, 2048
      %6646 = vsyncadd [#allocation3], %s6645
      %s6647 = sshll.u32 [#allocation2], 4
      %s6648 = int_to_ptr.vmem [resolvable:$true] %s6647
      %6653 = dma.vmem_to_hbm [thread:$0]  %s6648, 2048, %s9, [#allocation3], 256, 256, 16
    $region41: #{tpu_custom_call.1} parent=1 // pred_fallthru
      _
    // Predicated region
    $region42: #{tpu_custom_call.1} parent=1 // pred_check
      _
    $region43: #{tpu_custom_call.1} parent=1 // pred_check_branch
      %6655 = sbr.rel (0) target = $region45
    $region44: #{tpu_custom_call.1} parent=1 // pred_region
      %s6657 = ssub.s32 4096, 4096
      %6658 = vsyncadd [#allocation5], %s6657
      %s6659 = sshll.u32 [#allocation4], 4
      %s6660 = int_to_ptr.vmem [resolvable:$true] %s6659
      %6665 = dma.vmem_to_hbm [thread:$0]  %s6660, 4096, %s10, [#allocation5], 256, 256, 16
    $region45: #{tpu_custom_call.1} parent=1 // pred_fallthru
      _
    // Predicated region
    $region46: #{tpu_custom_call.1} parent=1 // pred_check
      _
    $region47: #{tpu_custom_call.1} parent=1 // pred_check_branch
      %6667 = sbr.rel (0) target = $region49
    $region48: #{tpu_custom_call.1} parent=1 // pred_region
      %6668 = dma.done [#allocation3], 2048
    $region49: #{tpu_custom_call.1} parent=1 // pred_fallthru
      _
    // Predicated region
    $region50: #{tpu_custom_call.1} parent=1 // pred_check
      _
    $region51: #{tpu_custom_call.1} parent=1 // pred_check_branch
      %6670 = sbr.rel (0) target = $region53
    $region52: #{tpu_custom_call.1} parent=1 // pred_region
      %6671 = dma.done [#allocation5], 4096
    $region53: #{tpu_custom_call.1} parent=1 // pred_fallthru
      _
    %6672 = vsyncpa [#allocation3], 1
    %6673 = vsyncpa [#allocation5], 1

</llo_original>
